<compile_context>
chip_gen: v7x
topology: tpu7x:2x2x1
jax: 0.10.0
libtpu: 0.0.40
codegen_flags: <defaults>
</compile_context>

<pallas_src>
import functools

import jax
import jax.numpy as jnp
from jax.experimental import pallas as pl
from jax.experimental.pallas import tpu as pltpu


# ---------------------------------------------------------------------------
# Pallas kernels
# ---------------------------------------------------------------------------

def _conv1_relu_pool_kernel(pat_ref, w_ref, b_ref, o_ref):
    """conv1 (im2col matmul) + bias + ReLU + 2x2 average pool for one image.

    pat_ref: (4, 576, 9)  leading axis = 2x2 pool sub-position
    w_ref  : (9, 32)      conv1 weight as (kh*kw, C_out)
    b_ref  : (1, 32)
    o_ref  : (1, 576, 32) pooled output (24*24 pixels)
    """
    w = w_ref[...]
    bias = b_ref[...]
    acc = jnp.zeros(o_ref.shape[1:], jnp.float32)
    for p in range(4):  # static unroll over the pool window
        y = jnp.dot(pat_ref[p], w, preferred_element_type=jnp.float32)
        acc = acc + jnp.maximum(y + bias, 0.0)
    o_ref[0] = acc * 0.25


def _conv2_skip_relu_pool_kernel(pat_ref, skip_ref, w_ref, b_ref, o_ref):
    """conv2 (im2col matmul) + bias + skip add + ReLU + 2x2 average pool.

    pat_ref : (4, 144, 288)  leading axis = pool sub-position
    skip_ref: (4, 144, 32)   pooled1 values at the same positions
    w_ref   : (288, 32)      conv2 weight as (kh*kw*C_in, C_out)
    b_ref   : (1, 32)
    o_ref   : (1, 144, 32)
    """
    w = w_ref[...]
    bias = b_ref[...]
    acc = jnp.zeros(o_ref.shape[1:], jnp.float32)
    for p in range(4):
        y = jnp.dot(pat_ref[p], w, preferred_element_type=jnp.float32)
        acc = acc + jnp.maximum(y + bias + skip_ref[p].astype(jnp.float32), 0.0)
    o_ref[0] = acc * 0.25


def _mlp_kernel(x_ref, w1_ref, b1_ref, w2_ref, b2_ref, o_ref):
    """fc1 + ReLU + fc2 with an N=128 lane-dense (zero-padded) output.

    x_ref : (TB, 4608)
    w1_ref: (4608, 128), b1_ref: (1, 128)
    w2_ref: (128, 128) zero-padded from (128, 2), b2_ref: (1, 128)
    o_ref : (TB, 128)   caller slices [:, :2]
    """
    h = jnp.dot(x_ref[...], w1_ref[...], preferred_element_type=jnp.float32)
    h = jnp.maximum(h + b1_ref[...], 0.0)
    out = jnp.dot(h.astype(w2_ref.dtype), w2_ref[...],
                  preferred_element_type=jnp.float32) + b2_ref[...]
    o_ref[...] = out.astype(o_ref.dtype)


# ---------------------------------------------------------------------------
# Wrapper-side layout plumbing (im2col + pool-window regrouping)
# ---------------------------------------------------------------------------

def _im2col_conv1_pool_grouped(x_img):
    """x_img (B, 50, 50) -> patches (B*4, 576, 9), rows grouped by pool window."""
    B, H, W = x_img.shape
    Ho, Wo = H - 2, W - 2                       # 'valid' conv1 output: 48 x 48
    cols = [x_img[:, di:di + Ho, dj:dj + Wo] for di in range(3) for dj in range(3)]
    pat = jnp.stack(cols, axis=-1)              # (B, 48, 48, 9)
    pat = pat.reshape(B, Ho // 2, 2, Wo // 2, 2, 9)
    pat = pat.transpose(0, 2, 4, 1, 3, 5)       # (B, si, sj, i, j, 9)
    return pat.reshape(B * 4, (Ho // 2) * (Wo // 2), 9)


def _im2col_conv2_pool_grouped(pooled1):
    """pooled1 (B, 24, 24, 32) NHWC -> patches (B*4, 144, 288), skip (B*4, 144, 32)."""
    B, H, W, C = pooled1.shape
    xp = jnp.pad(pooled1, ((0, 0), (1, 1), (1, 1), (0, 0)))    # 'same' padding
    cols = [xp[:, di:di + H, dj:dj + W, :] for di in range(3) for dj in range(3)]
    pat = jnp.concatenate(cols, axis=-1)        # (B, 24, 24, 288): k = (di*3+dj)*32 + ci
    pat = pat.reshape(B, H // 2, 2, W // 2, 2, 9 * C).transpose(0, 2, 4, 1, 3, 5)
    pat = pat.reshape(B * 4, (H // 2) * (W // 2), 9 * C)
    skip = pooled1.reshape(B, H // 2, 2, W // 2, 2, C).transpose(0, 2, 4, 1, 3, 5)
    skip = skip.reshape(B * 4, (H // 2) * (W // 2), C)
    return pat, skip


# ---------------------------------------------------------------------------
# Forward pass
# ---------------------------------------------------------------------------

def skipcnn1_forward(x, params, *, compute_dtype=jnp.float32):
    """x: (B, 1, 50, 50) float32. Returns (B, 2) float32.

    compute_dtype: dtype of matmul operands fed to the MXU (float32 for a
    bit-faithful check; bfloat16 halves DMA bytes / MXU passes on v6e/v7x while
    keeping f32 accumulation via preferred_element_type).
    """
    (conv_w1, conv_b1, conv_w2, conv_b2, w_fc1, b_fc1, w_fc2, b_fc2) = params
    B = x.shape[0]
    assert x.shape[1:] == (1, 50, 50), "SkipCNN1 requires 50x50 single-channel input"
    cd = compute_dtype

    # ---- conv1 + ReLU + avg_pool (Kernel A) --------------------------------
    x_img = x[:, 0, :, :]                                        # (B, 50, 50)
    patches1 = _im2col_conv1_pool_grouped(x_img).astype(cd)      # (B*4, 576, 9)
    w1col = conv_w1.reshape(32, 9).T.astype(cd)                  # (9, 32)
    b1_2d = conv_b1.reshape(1, 32).astype(jnp.float32)

    P1 = 24 * 24
    pooled1 = pl.pallas_call(
        _conv1_relu_pool_kernel,
        out_shape=jax.ShapeDtypeStruct((B, P1, 32), jnp.float32),
        grid=(B,),
        in_specs=[
            pl.BlockSpec((4, P1, 9), lambda b: (b, 0, 0)),
            pl.BlockSpec((9, 32), lambda b: (0, 0)),     # resident across grid steps
            pl.BlockSpec((1, 32), lambda b: (0, 0)),
        ],
        out_specs=pl.BlockSpec((1, P1, 32), lambda b: (b, 0, 0)),
        compiler_params=pltpu.CompilerParams(dimension_semantics=("parallel",)),
    )(patches1, w1col, b1_2d)

    # ---- conv2 + skip + ReLU + avg_pool (Kernel B) --------------------------
    pooled1_nhwc = pooled1.reshape(B, 24, 24, 32)
    patches2, skip = _im2col_conv2_pool_grouped(pooled1_nhwc)
    patches2 = patches2.astype(cd)                               # (B*4, 144, 288)
    skip = skip.astype(cd)                                       # (B*4, 144, 32)
    w2col = conv_w2.transpose(2, 3, 1, 0).reshape(9 * 32, 32).astype(cd)
    b2_2d = conv_b2.reshape(1, 32).astype(jnp.float32)

    P2 = 12 * 12
    pooled2 = pl.pallas_call(
        _conv2_skip_relu_pool_kernel,
        out_shape=jax.ShapeDtypeStruct((B, P2, 32), jnp.float32),
        grid=(B,),
        in_specs=[
            pl.BlockSpec((4, P2, 288), lambda b: (b, 0, 0)),
            pl.BlockSpec((4, P2, 32), lambda b: (b, 0, 0)),
            pl.BlockSpec((288, 32), lambda b: (0, 0)),
            pl.BlockSpec((1, 32), lambda b: (0, 0)),
        ],
        out_specs=pl.BlockSpec((1, P2, 32), lambda b: (b, 0, 0)),
        compiler_params=pltpu.CompilerParams(dimension_semantics=("parallel",)),
    )(patches2, skip, w2col, b2_2d)

    # ---- flatten in torch NCHW order, then fc1 + ReLU + fc2 (Kernel C) ------
    feat = pooled2.reshape(B, 12, 12, 32).transpose(0, 3, 1, 2).reshape(B, 4608)
    feat = feat.astype(cd)

    w_fc1_t = w_fc1.astype(cd)                                   # (4608, 128)
    b_fc1_2d = b_fc1.reshape(1, 128).astype(jnp.float32)
    # Lane-dense output: zero-pad the 2-wide fc2 to 128 columns.
    NPAD = 128
    w_fc2_p = jnp.zeros((128, NPAD), cd).at[:, :2].set(w_fc2.astype(cd))
    b_fc2_p = jnp.zeros((1, NPAD), jnp.float32).at[:, :2].set(b_fc2.reshape(1, 2))

    # Batch tiling: TB rows per grid step; weights stay VMEM-resident; the
    # grid axis is "parallel" so v7x's two TensorCores split independent tiles.
    in_feats = 4608
    TB = B if B <= 128 else 128
    nb = pl.cdiv(B, TB)
    cost = pl.CostEstimate(
        flops=2 * B * (in_feats * 128 + 128 * NPAD),
        transcendentals=0,
        bytes_accessed=(feat.size * feat.dtype.itemsize
                        + w_fc1_t.size * w_fc1_t.dtype.itemsize
                        + w_fc2_p.size * w_fc2_p.dtype.itemsize
                        + (128 + NPAD) * 4
                        + B * NPAD * 4),
    )
    out_padded = pl.pallas_call(
        _mlp_kernel,
        out_shape=jax.ShapeDtypeStruct((B, NPAD), jnp.float32),
        grid=(nb,),
        in_specs=[
            pl.BlockSpec((TB, in_feats), lambda i: (i, 0)),
            pl.BlockSpec((in_feats, 128), lambda i: (0, 0)),
            pl.BlockSpec((1, 128), lambda i: (0, 0)),
            pl.BlockSpec((128, NPAD), lambda i: (0, 0)),
            pl.BlockSpec((1, NPAD), lambda i: (0, 0)),
        ],
        out_specs=pl.BlockSpec((TB, NPAD), lambda i: (i, 0)),
        compiler_params=pltpu.CompilerParams(
            dimension_semantics=("parallel",),
            vmem_limit_bytes=32 * 1024 * 1024,   # explicit budget (fits v7x's 64 MiB VMEM)
        ),
        cost_estimate=cost,
    )(feat, w_fc1_t, b_fc1_2d, w_fc2_p, b_fc2_p)

    return out_padded[:, :2]


# ---------------------------------------------------------------------------
# Pure-JAX reference (independent of the im2col path) and init
# ---------------------------------------------------------------------------

def _avg_pool_2x2_nchw(x):
    B, C, H, W = x.shape
    return x.reshape(B, C, H // 2, 2, W // 2, 2).mean(axis=(3, 5))


def skipcnn1_reference(x, params):
    (conv_w1, conv_b1, conv_w2, conv_b2, w_fc1, b_fc1, w_fc2, b_fc2) = params
    dn = ("NCHW", "OIHW", "NCHW")
    hi = jax.lax.Precision.HIGHEST
    y = jax.lax.conv_general_dilated(x, conv_w1, (1, 1), "VALID",
                                     dimension_numbers=dn, precision=hi)
    y = jnp.maximum(y + conv_b1[None, :, None, None], 0.0)
    y = _avg_pool_2x2_nchw(y)
    y1 = y
    z = jax.lax.conv_general_dilated(y, conv_w2, (1, 1), ((1, 1), (1, 1)),
                                     dimension_numbers=dn, precision=hi)
    z = jnp.maximum(z + conv_b2[None, :, None, None] + y1, 0.0)
    z = _avg_pool_2x2_nchw(z)
    feat = z.reshape(z.shape[0], -1)
    h = jnp.maximum(jnp.dot(feat, w_fc1, precision=hi) + b_fc1, 0.0)
    return jnp.dot(h, w_fc2, precision=hi) + b_fc2


def init_params(key):
    """Deterministic init mirroring torch defaults (U[-1/sqrt(fan_in), +])."""
    ks = jax.random.split(key, 8)

    def u(k, shape, fan_in):
        bound = 1.0 / float(jnp.sqrt(float(fan_in)))
        return jax.random.uniform(k, shape, jnp.float32, -bound, bound)

    conv_w1 = u(ks[0], (32, 1, 3, 3), 9)        # torch OIHW layout
    conv_b1 = u(ks[1], (32,), 9)
    conv_w2 = u(ks[2], (32, 32, 3, 3), 288)
    conv_b2 = u(ks[3], (32,), 288)
    w_fc1 = u(ks[4], (4608, 128), 4608)         # stored as (in, out) == torch weight.T
    b_fc1 = u(ks[5], (128,), 4608)
    w_fc2 = u(ks[6], (128, 2), 128)
    b_fc2 = u(ks[7], (2,), 128)
    return (conv_w1, conv_b1, conv_w2, conv_b2, w_fc1, b_fc1, w_fc2, b_fc2)


if __name__ == "__main__":
    key = jax.random.PRNGKey(0)
    pkey, xkey = jax.random.split(key)
    params = init_params(pkey)

    batch = 2
    # fc1 expects 4608 = 32*12*12 features => the forward implies a 50x50 input.
    x = jax.random.normal(xkey, (batch, 1, 50, 50), jnp.float32)

    out = jax.jit(skipcnn1_forward)(x, params)
    jax.block_until_ready(out)

    ref = skipcnn1_reference(x, params)
    assert out.shape == (batch, 2)
    assert jnp.allclose(out, ref, atol=5e-3, rtol=1e-3)

    # bf16-operand path (v6e/v7x feedback): bf16 MXU inputs, f32 accumulate.
    out_bf16 = jax.jit(
        functools.partial(skipcnn1_forward, compute_dtype=jnp.bfloat16))(x, params)
    jax.block_until_ready(out_bf16)
    assert jnp.allclose(out_bf16, ref, atol=5e-2, rtol=5e-2)

    print("KERNEL_OK")
</pallas_src>

<mosaic_0001>
module attributes {stable_mosaic.version = 11 : i64} {
  func.func @_conv1_relu_pool_kernel(%arg0: i32, %arg1: memref<4x576x9xf32, #tpu.memory_space<vmem>>, %arg2: memref<9x32xf32, #tpu.memory_space<vmem>>, %arg3: memref<1x32xf32, #tpu.memory_space<vmem>>, %arg4: memref<1x576x32xf32, #tpu.memory_space<vmem>>) attributes {dimension_semantics = [#tpu.dimension_semantics<parallel>], iteration_bounds = array<i64: 2>, scalar_prefetch = 0 : i64, scratch_operands = 0 : i64, tpu.core_type = #tpu.core_type<tc>, window_params = [{transform_indices = @transform_0, window_bounds = array<i64: 4, 576, 9>}, {pipeline_mode = #tpu.pipeline_mode<synchronous>, transform_indices = @transform_1, window_bounds = array<i64: 9, 32>}, {pipeline_mode = #tpu.pipeline_mode<synchronous>, transform_indices = @transform_2, window_bounds = array<i64: 1, 32>}, {transform_indices = @transform_3, window_bounds = array<i64: 1, 576, 32>}]} {
    %c0 = arith.constant 0 : index
    %c0_0 = arith.constant 0 : index
    %0 = vector.load %arg2[%c0, %c0_0] : memref<9x32xf32, #tpu.memory_space<vmem>>, vector<9x32xf32>
    %c0_1 = arith.constant 0 : index
    %c0_2 = arith.constant 0 : index
    %1 = vector.load %arg3[%c0_1, %c0_2] : memref<1x32xf32, #tpu.memory_space<vmem>>, vector<1x32xf32>
    %cst = arith.constant 0.000000e+00 : f32
    %2 = vector.broadcast %cst : f32 to vector<576x32xf32>
    %c0_3 = arith.constant 0 : index
    %c0_4 = arith.constant 0 : index
    %c0_5 = arith.constant 0 : index
    %3 = vector.load %arg1[%c0_3, %c0_4, %c0_5] : memref<4x576x9xf32, #tpu.memory_space<vmem>>, vector<1x576x9xf32>
    %4 = vector.shape_cast %3 : vector<1x576x9xf32> to vector<576x9xf32>
    %cst_6 = arith.constant dense<0.000000e+00> : vector<576x32xf32>
    %5 = tpu.matmul %4, %0, %cst_6 {dimension_numbers = #tpu.dot_dimension_numbers<[1], [0], [0], [1], [0, 0, 1, 1], [], []>} : vector<576x9xf32>, vector<9x32xf32>, vector<576x32xf32> -> vector<576x32xf32>
    %6 = vector.broadcast %1 : vector<1x32xf32> to vector<576x32xf32>
    %7 = arith.addf %5, %6 : vector<576x32xf32>
    %cst_7 = arith.constant 0.000000e+00 : f32
    %8 = vector.broadcast %cst_7 : f32 to vector<576x32xf32>
    %9 = arith.maximumf %7, %8 : vector<576x32xf32>
    %10 = arith.addf %2, %9 : vector<576x32xf32>
    %c1 = arith.constant 1 : index
    %c0_8 = arith.constant 0 : index
    %c0_9 = arith.constant 0 : index
    %11 = vector.load %arg1[%c1, %c0_8, %c0_9] : memref<4x576x9xf32, #tpu.memory_space<vmem>>, vector<1x576x9xf32>
    %12 = vector.shape_cast %11 : vector<1x576x9xf32> to vector<576x9xf32>
    %cst_10 = arith.constant dense<0.000000e+00> : vector<576x32xf32>
    %13 = tpu.matmul %12, %0, %cst_10 {dimension_numbers = #tpu.dot_dimension_numbers<[1], [0], [0], [1], [0, 0, 1, 1], [], []>} : vector<576x9xf32>, vector<9x32xf32>, vector<576x32xf32> -> vector<576x32xf32>
    %14 = vector.broadcast %1 : vector<1x32xf32> to vector<576x32xf32>
    %15 = arith.addf %13, %14 : vector<576x32xf32>
    %cst_11 = arith.constant 0.000000e+00 : f32
    %16 = vector.broadcast %cst_11 : f32 to vector<576x32xf32>
    %17 = arith.maximumf %15, %16 : vector<576x32xf32>
    %18 = arith.addf %10, %17 : vector<576x32xf32>
    %c2 = arith.constant 2 : index
    %c0_12 = arith.constant 0 : index
    %c0_13 = arith.constant 0 : index
    %19 = vector.load %arg1[%c2, %c0_12, %c0_13] : memref<4x576x9xf32, #tpu.memory_space<vmem>>, vector<1x576x9xf32>
    %20 = vector.shape_cast %19 : vector<1x576x9xf32> to vector<576x9xf32>
    %cst_14 = arith.constant dense<0.000000e+00> : vector<576x32xf32>
    %21 = tpu.matmul %20, %0, %cst_14 {dimension_numbers = #tpu.dot_dimension_numbers<[1], [0], [0], [1], [0, 0, 1, 1], [], []>} : vector<576x9xf32>, vector<9x32xf32>, vector<576x32xf32> -> vector<576x32xf32>
    %22 = vector.broadcast %1 : vector<1x32xf32> to vector<576x32xf32>
    %23 = arith.addf %21, %22 : vector<576x32xf32>
    %cst_15 = arith.constant 0.000000e+00 : f32
    %24 = vector.broadcast %cst_15 : f32 to vector<576x32xf32>
    %25 = arith.maximumf %23, %24 : vector<576x32xf32>
    %26 = arith.addf %18, %25 : vector<576x32xf32>
    %c3 = arith.constant 3 : index
    %c0_16 = arith.constant 0 : index
    %c0_17 = arith.constant 0 : index
    %27 = vector.load %arg1[%c3, %c0_16, %c0_17] : memref<4x576x9xf32, #tpu.memory_space<vmem>>, vector<1x576x9xf32>
    %28 = vector.shape_cast %27 : vector<1x576x9xf32> to vector<576x9xf32>
    %cst_18 = arith.constant dense<0.000000e+00> : vector<576x32xf32>
    %29 = tpu.matmul %28, %0, %cst_18 {dimension_numbers = #tpu.dot_dimension_numbers<[1], [0], [0], [1], [0, 0, 1, 1], [], []>} : vector<576x9xf32>, vector<9x32xf32>, vector<576x32xf32> -> vector<576x32xf32>
    %30 = vector.broadcast %1 : vector<1x32xf32> to vector<576x32xf32>
    %31 = arith.addf %29, %30 : vector<576x32xf32>
    %cst_19 = arith.constant 0.000000e+00 : f32
    %32 = vector.broadcast %cst_19 : f32 to vector<576x32xf32>
    %33 = arith.maximumf %31, %32 : vector<576x32xf32>
    %34 = arith.addf %26, %33 : vector<576x32xf32>
    %cst_20 = arith.constant 2.500000e-01 : f32
    %35 = vector.broadcast %cst_20 : f32 to vector<576x32xf32>
    %36 = arith.mulf %34, %35 : vector<576x32xf32>
    %c0_21 = arith.constant 0 : index
    %c0_22 = arith.constant 0 : index
    %c0_23 = arith.constant 0 : index
    %37 = vector.load %arg4[%c0_21, %c0_22, %c0_23] : memref<1x576x32xf32, #tpu.memory_space<vmem>>, vector<1x576x32xf32>
    %38 = vector.shape_cast %37 : vector<1x576x32xf32> to vector<576x32xf32>
    %39 = vector.shape_cast %36 : vector<576x32xf32> to vector<1x576x32xf32>
    tpu.vector_store %arg4[%c0_21, %c0_22, %c0_23], %39 {strides = array<i32>} : memref<1x576x32xf32, #tpu.memory_space<vmem>>, vector<1x576x32xf32>,
    return
  }
  func.func @transform_0(%arg0: i32) -> (i32, i32, i32) {
    %c0_i32 = arith.constant 0 : i32
    %c0_i32_0 = arith.constant 0 : i32
    %c0_i32_1 = arith.constant 0 : i32
    return %arg0, %c0_i32, %c0_i32_0 : i32, i32, i32
  }
  func.func @transform_1(%arg0: i32) -> (i32, i32) {
    %c0_i32 = arith.constant 0 : i32
    %c0_i32_0 = arith.constant 0 : i32
    %c0_i32_1 = arith.constant 0 : i32
    return %c0_i32, %c0_i32_0 : i32, i32
  }
  func.func @transform_2(%arg0: i32) -> (i32, i32) {
    %c0_i32 = arith.constant 0 : i32
    %c0_i32_0 = arith.constant 0 : i32
    %c0_i32_1 = arith.constant 0 : i32
    return %c0_i32, %c0_i32_0 : i32, i32
  }
  func.func @transform_3(%arg0: i32) -> (i32, i32, i32) {
    %c0_i32 = arith.constant 0 : i32
    %c0_i32_0 = arith.constant 0 : i32
    %c0_i32_1 = arith.constant 0 : i32
    return %arg0, %c0_i32, %c0_i32_0 : i32, i32, i32
  }
}

module attributes {stable_mosaic.version = 11 : i64} {
  func.func @_conv2_skip_relu_pool_kernel(%arg0: i32, %arg1: memref<4x144x288xf32, #tpu.memory_space<vmem>>, %arg2: memref<4x144x32xf32, #tpu.memory_space<vmem>>, %arg3: memref<288x32xf32, #tpu.memory_space<vmem>>, %arg4: memref<1x32xf32, #tpu.memory_space<vmem>>, %arg5: memref<1x144x32xf32, #tpu.memory_space<vmem>>) attributes {dimension_semantics = [#tpu.dimension_semantics<parallel>], iteration_bounds = array<i64: 2>, scalar_prefetch = 0 : i64, scratch_operands = 0 : i64, tpu.core_type = #tpu.core_type<tc>, window_params = [{transform_indices = @transform_0, window_bounds = array<i64: 4, 144, 288>}, {transform_indices = @transform_1, window_bounds = array<i64: 4, 144, 32>}, {pipeline_mode = #tpu.pipeline_mode<synchronous>, transform_indices = @transform_2, window_bounds = array<i64: 288, 32>}, {pipeline_mode = #tpu.pipeline_mode<synchronous>, transform_indices = @transform_3, window_bounds = array<i64: 1, 32>}, {transform_indices = @transform_4, window_bounds = array<i64: 1, 144, 32>}]} {
    %c0 = arith.constant 0 : index
    %c0_0 = arith.constant 0 : index
    %0 = vector.load %arg3[%c0, %c0_0] : memref<288x32xf32, #tpu.memory_space<vmem>>, vector<288x32xf32>
    %c0_1 = arith.constant 0 : index
    %c0_2 = arith.constant 0 : index
    %1 = vector.load %arg4[%c0_1, %c0_2] : memref<1x32xf32, #tpu.memory_space<vmem>>, vector<1x32xf32>
    %cst = arith.constant 0.000000e+00 : f32
    %2 = vector.broadcast %cst : f32 to vector<144x32xf32>
    %c0_3 = arith.constant 0 : index
    %c0_4 = arith.constant 0 : index
    %c0_5 = arith.constant 0 : index
    %3 = vector.load %arg1[%c0_3, %c0_4, %c0_5] : memref<4x144x288xf32, #tpu.memory_space<vmem>>, vector<1x144x288xf32>
    %4 = vector.shape_cast %3 : vector<1x144x288xf32> to vector<144x288xf32>
    %cst_6 = arith.constant dense<0.000000e+00> : vector<144x32xf32>
    %5 = tpu.matmul %4, %0, %cst_6 {dimension_numbers = #tpu.dot_dimension_numbers<[1], [0], [0], [1], [0, 0, 1, 1], [], []>} : vector<144x288xf32>, vector<288x32xf32>, vector<144x32xf32> -> vector<144x32xf32>
    %6 = vector.broadcast %1 : vector<1x32xf32> to vector<144x32xf32>
    %7 = arith.addf %5, %6 : vector<144x32xf32>
    %c0_7 = arith.constant 0 : index
    %c0_8 = arith.constant 0 : index
    %c0_9 = arith.constant 0 : index
    %8 = vector.load %arg2[%c0_7, %c0_8, %c0_9] : memref<4x144x32xf32, #tpu.memory_space<vmem>>, vector<1x144x32xf32>
    %9 = vector.shape_cast %8 : vector<1x144x32xf32> to vector<144x32xf32>
    %10 = arith.addf %7, %9 : vector<144x32xf32>
    %cst_10 = arith.constant 0.000000e+00 : f32
    %11 = vector.broadcast %cst_10 : f32 to vector<144x32xf32>
    %12 = arith.maximumf %10, %11 : vector<144x32xf32>
    %13 = arith.addf %2, %12 : vector<144x32xf32>
    %c1 = arith.constant 1 : index
    %c0_11 = arith.constant 0 : index
    %c0_12 = arith.constant 0 : index
    %14 = vector.load %arg1[%c1, %c0_11, %c0_12] : memref<4x144x288xf32, #tpu.memory_space<vmem>>, vector<1x144x288xf32>
    %15 = vector.shape_cast %14 : vector<1x144x288xf32> to vector<144x288xf32>
    %cst_13 = arith.constant dense<0.000000e+00> : vector<144x32xf32>
    %16 = tpu.matmul %15, %0, %cst_13 {dimension_numbers = #tpu.dot_dimension_numbers<[1], [0], [0], [1], [0, 0, 1, 1], [], []>} : vector<144x288xf32>, vector<288x32xf32>, vector<144x32xf32> -> vector<144x32xf32>
    %17 = vector.broadcast %1 : vector<1x32xf32> to vector<144x32xf32>
    %18 = arith.addf %16, %17 : vector<144x32xf32>
    %c1_14 = arith.constant 1 : index
    %c0_15 = arith.constant 0 : index
    %c0_16 = arith.constant 0 : index
    %19 = vector.load %arg2[%c1_14, %c0_15, %c0_16] : memref<4x144x32xf32, #tpu.memory_space<vmem>>, vector<1x144x32xf32>
    %20 = vector.shape_cast %19 : vector<1x144x32xf32> to vector<144x32xf32>
    %21 = arith.addf %18, %20 : vector<144x32xf32>
    %cst_17 = arith.constant 0.000000e+00 : f32
    %22 = vector.broadcast %cst_17 : f32 to vector<144x32xf32>
    %23 = arith.maximumf %21, %22 : vector<144x32xf32>
    %24 = arith.addf %13, %23 : vector<144x32xf32>
    %c2 = arith.constant 2 : index
    %c0_18 = arith.constant 0 : index
    %c0_19 = arith.constant 0 : index
    %25 = vector.load %arg1[%c2, %c0_18, %c0_19] : memref<4x144x288xf32, #tpu.memory_space<vmem>>, vector<1x144x288xf32>
    %26 = vector.shape_cast %25 : vector<1x144x288xf32> to vector<144x288xf32>
    %cst_20 = arith.constant dense<0.000000e+00> : vector<144x32xf32>
    %27 = tpu.matmul %26, %0, %cst_20 {dimension_numbers = #tpu.dot_dimension_numbers<[1], [0], [0], [1], [0, 0, 1, 1], [], []>} : vector<144x288xf32>, vector<288x32xf32>, vector<144x32xf32> -> vector<144x32xf32>
    %28 = vector.broadcast %1 : vector<1x32xf32> to vector<144x32xf32>
    %29 = arith.addf %27, %28 : vector<144x32xf32>
    %c2_21 = arith.constant 2 : index
    %c0_22 = arith.constant 0 : index
    %c0_23 = arith.constant 0 : index
    %30 = vector.load %arg2[%c2_21, %c0_22, %c0_23] : memref<4x144x32xf32, #tpu.memory_space<vmem>>, vector<1x144x32xf32>
    %31 = vector.shape_cast %30 : vector<1x144x32xf32> to vector<144x32xf32>
    %32 = arith.addf %29, %31 : vector<144x32xf32>
    %cst_24 = arith.constant 0.000000e+00 : f32
    %33 = vector.broadcast %cst_24 : f32 to vector<144x32xf32>
    %34 = arith.maximumf %32, %33 : vector<144x32xf32>
    %35 = arith.addf %24, %34 : vector<144x32xf32>
    %c3 = arith.constant 3 : index
    %c0_25 = arith.constant 0 : index
    %c0_26 = arith.constant 0 : index
    %36 = vector.load %arg1[%c3, %c0_25, %c0_26] : memref<4x144x288xf32, #tpu.memory_space<vmem>>, vector<1x144x288xf32>
    %37 = vector.shape_cast %36 : vector<1x144x288xf32> to vector<144x288xf32>
    %cst_27 = arith.constant dense<0.000000e+00> : vector<144x32xf32>
    %38 = tpu.matmul %37, %0, %cst_27 {dimension_numbers = #tpu.dot_dimension_numbers<[1], [0], [0], [1], [0, 0, 1, 1], [], []>} : vector<144x288xf32>, vector<288x32xf32>, vector<144x32xf32> -> vector<144x32xf32>
    %39 = vector.broadcast %1 : vector<1x32xf32> to vector<144x32xf32>
    %40 = arith.addf %38, %39 : vector<144x32xf32>
    %c3_28 = arith.constant 3 : index
    %c0_29 = arith.constant 0 : index
    %c0_30 = arith.constant 0 : index
    %41 = vector.load %arg2[%c3_28, %c0_29, %c0_30] : memref<4x144x32xf32, #tpu.memory_space<vmem>>, vector<1x144x32xf32>
    %42 = vector.shape_cast %41 : vector<1x144x32xf32> to vector<144x32xf32>
    %43 = arith.addf %40, %42 : vector<144x32xf32>
    %cst_31 = arith.constant 0.000000e+00 : f32
    %44 = vector.broadcast %cst_31 : f32 to vector<144x32xf32>
    %45 = arith.maximumf %43, %44 : vector<144x32xf32>
    %46 = arith.addf %35, %45 : vector<144x32xf32>
    %cst_32 = arith.constant 2.500000e-01 : f32
    %47 = vector.broadcast %cst_32 : f32 to vector<144x32xf32>
    %48 = arith.mulf %46, %47 : vector<144x32xf32>
    %c0_33 = arith.constant 0 : index
    %c0_34 = arith.constant 0 : index
    %c0_35 = arith.constant 0 : index
    %49 = vector.load %arg5[%c0_33, %c0_34, %c0_35] : memref<1x144x32xf32, #tpu.memory_space<vmem>>, vector<1x144x32xf32>
    %50 = vector.shape_cast %49 : vector<1x144x32xf32> to vector<144x32xf32>
    %51 = vector.shape_cast %48 : vector<144x32xf32> to vector<1x144x32xf32>
    tpu.vector_store %arg5[%c0_33, %c0_34, %c0_35], %51 {strides = array<i32>} : memref<1x144x32xf32, #tpu.memory_space<vmem>>, vector<1x144x32xf32>,
    return
  }
  func.func @transform_0(%arg0: i32) -> (i32, i32, i32) {
    %c0_i32 = arith.constant 0 : i32
    %c0_i32_0 = arith.constant 0 : i32
    %c0_i32_1 = arith.constant 0 : i32
    return %arg0, %c0_i32, %c0_i32_0 : i32, i32, i32
  }
  func.func @transform_1(%arg0: i32) -> (i32, i32, i32) {
    %c0_i32 = arith.constant 0 : i32
    %c0_i32_0 = arith.constant 0 : i32
    %c0_i32_1 = arith.constant 0 : i32
    return %arg0, %c0_i32, %c0_i32_0 : i32, i32, i32
  }
  func.func @transform_2(%arg0: i32) -> (i32, i32) {
    %c0_i32 = arith.constant 0 : i32
    %c0_i32_0 = arith.constant 0 : i32
    %c0_i32_1 = arith.constant 0 : i32
    return %c0_i32, %c0_i32_0 : i32, i32
  }
  func.func @transform_3(%arg0: i32) -> (i32, i32) {
    %c0_i32 = arith.constant 0 : i32
    %c0_i32_0 = arith.constant 0 : i32
    %c0_i32_1 = arith.constant 0 : i32
    return %c0_i32, %c0_i32_0 : i32, i32
  }
  func.func @transform_4(%arg0: i32) -> (i32, i32, i32) {
    %c0_i32 = arith.constant 0 : i32
    %c0_i32_0 = arith.constant 0 : i32
    %c0_i32_1 = arith.constant 0 : i32
    return %arg0, %c0_i32, %c0_i32_0 : i32, i32, i32
  }
}

module attributes {stable_mosaic.version = 11 : i64} {
  func.func @_mlp_kernel(%arg0: i32, %arg1: memref<2x4608xf32, #tpu.memory_space<vmem>>, %arg2: memref<4608x128xf32, #tpu.memory_space<vmem>>, %arg3: memref<1x128xf32, #tpu.memory_space<vmem>>, %arg4: memref<128x128xf32, #tpu.memory_space<vmem>>, %arg5: memref<1x128xf32, #tpu.memory_space<vmem>>, %arg6: memref<2x128xf32, #tpu.memory_space<vmem>>) attributes {dimension_semantics = [#tpu.dimension_semantics<parallel>], iteration_bounds = array<i64: 1>, scalar_prefetch = 0 : i64, scratch_operands = 0 : i64, tpu.core_type = #tpu.core_type<tc>, window_params = [{transform_indices = @transform_0, window_bounds = array<i64: 2, 4608>}, {pipeline_mode = #tpu.pipeline_mode<synchronous>, transform_indices = @transform_1, window_bounds = array<i64: 4608, 128>}, {pipeline_mode = #tpu.pipeline_mode<synchronous>, transform_indices = @transform_2, window_bounds = array<i64: 1, 128>}, {pipeline_mode = #tpu.pipeline_mode<synchronous>, transform_indices = @transform_3, window_bounds = array<i64: 128, 128>}, {pipeline_mode = #tpu.pipeline_mode<synchronous>, transform_indices = @transform_4, window_bounds = array<i64: 1, 128>}, {transform_indices = @transform_5, window_bounds = array<i64: 2, 128>}]} {
    %c0 = arith.constant 0 : index
    %c0_0 = arith.constant 0 : index
    %0 = vector.load %arg1[%c0, %c0_0] : memref<2x4608xf32, #tpu.memory_space<vmem>>, vector<2x4608xf32>
    %c0_1 = arith.constant 0 : index
    %c0_2 = arith.constant 0 : index
    %1 = vector.load %arg2[%c0_1, %c0_2] : memref<4608x128xf32, #tpu.memory_space<vmem>>, vector<4608x128xf32>
    %cst = arith.constant dense<0.000000e+00> : vector<2x128xf32>
    %2 = tpu.matmul %0, %1, %cst {dimension_numbers = #tpu.dot_dimension_numbers<[1], [0], [0], [1], [0, 0, 1, 1], [], []>} : vector<2x4608xf32>, vector<4608x128xf32>, vector<2x128xf32> -> vector<2x128xf32>
    %c0_3 = arith.constant 0 : index
    %c0_4 = arith.constant 0 : index
    %3 = vector.load %arg3[%c0_3, %c0_4] : memref<1x128xf32, #tpu.memory_space<vmem>>, vector<1x128xf32>
    %4 = vector.broadcast %3 : vector<1x128xf32> to vector<2x128xf32>
    %5 = arith.addf %2, %4 : vector<2x128xf32>
    %cst_5 = arith.constant 0.000000e+00 : f32
    %6 = vector.broadcast %cst_5 : f32 to vector<2x128xf32>
    %7 = arith.maximumf %5, %6 : vector<2x128xf32>
    %c0_6 = arith.constant 0 : index
    %c0_7 = arith.constant 0 : index
    %8 = vector.load %arg4[%c0_6, %c0_7] : memref<128x128xf32, #tpu.memory_space<vmem>>, vector<128x128xf32>
    %cst_8 = arith.constant dense<0.000000e+00> : vector<2x128xf32>
    %9 = tpu.matmul %7, %8, %cst_8 {dimension_numbers = #tpu.dot_dimension_numbers<[1], [0], [0], [1], [0, 0, 1, 1], [], []>} : vector<2x128xf32>, vector<128x128xf32>, vector<2x128xf32> -> vector<2x128xf32>
    %c0_9 = arith.constant 0 : index
    %c0_10 = arith.constant 0 : index
    %10 = vector.load %arg5[%c0_9, %c0_10] : memref<1x128xf32, #tpu.memory_space<vmem>>, vector<1x128xf32>
    %11 = vector.broadcast %10 : vector<1x128xf32> to vector<2x128xf32>
    %12 = arith.addf %9, %11 : vector<2x128xf32>
    %c0_11 = arith.constant 0 : index
    %c0_12 = arith.constant 0 : index
    %13 = vector.load %arg6[%c0_11, %c0_12] : memref<2x128xf32, #tpu.memory_space<vmem>>, vector<2x128xf32>
    tpu.vector_store %arg6[%c0_11, %c0_12], %12 {strides = array<i32>} : memref<2x128xf32, #tpu.memory_space<vmem>>, vector<2x128xf32>,
    return
  }
  func.func @transform_0(%arg0: i32) -> (i32, i32) {
    %c0_i32 = arith.constant 0 : i32
    %c0_i32_0 = arith.constant 0 : i32
    return %arg0, %c0_i32 : i32, i32
  }
  func.func @transform_1(%arg0: i32) -> (i32, i32) {
    %c0_i32 = arith.constant 0 : i32
    %c0_i32_0 = arith.constant 0 : i32
    %c0_i32_1 = arith.constant 0 : i32
    return %c0_i32, %c0_i32_0 : i32, i32
  }
  func.func @transform_2(%arg0: i32) -> (i32, i32) {
    %c0_i32 = arith.constant 0 : i32
    %c0_i32_0 = arith.constant 0 : i32
    %c0_i32_1 = arith.constant 0 : i32
    return %c0_i32, %c0_i32_0 : i32, i32
  }
  func.func @transform_3(%arg0: i32) -> (i32, i32) {
    %c0_i32 = arith.constant 0 : i32
    %c0_i32_0 = arith.constant 0 : i32
    %c0_i32_1 = arith.constant 0 : i32
    return %c0_i32, %c0_i32_0 : i32, i32
  }
  func.func @transform_4(%arg0: i32) -> (i32, i32) {
    %c0_i32 = arith.constant 0 : i32
    %c0_i32_0 = arith.constant 0 : i32
    %c0_i32_1 = arith.constant 0 : i32
    return %c0_i32, %c0_i32_0 : i32, i32
  }
  func.func @transform_5(%arg0: i32) -> (i32, i32) {
    %c0_i32 = arith.constant 0 : i32
    %c0_i32_0 = arith.constant 0 : i32
    return %arg0, %c0_i32 : i32, i32
  }
}

</mosaic_0001>

<llo_original>
// kernel: skipcnn1_forward.3
$region0: #{skipcnn1_forward.3}
  #allocation0 [shape = 'u32[]', space=smem, size = 0x4, offset = 0x4, fixed_abs, tag = 'smem constant byte address 0x4 - core index']
  #allocation1 [shape = 'u32[144,128]{1,0:T(1,128)}', space=vmem, size = 0x12000, scoped, tag = 'internal scratch']
  %s0 = inlined_call_operand.vmem [shape: f32[8,576,9], index: 0, kind: input, shape index: {}]
  %s1 = inlined_call_operand.vmem [shape: f32[9,32], index: 1, kind: input, shape index: {}]
  %s2 = inlined_call_operand.vmem [shape: f32[1,32], index: 2, kind: input, shape index: {}]
  %s3 = inlined_call_operand.vmem [shape: f32[2,576,32], index: 3, kind: output, shape index: {}]
  %s4 = sld [smem:[#allocation0]]
  $region45: #{skipcnn1_forward.3} parent=0
    _
  %s6 = ssub.s32 1, %s4
  %s7 = scalar_select 0, %s6, %s4
  loop: start=0, step=1, limit=4
  $region2: #{skipcnn1_forward.3} parent=0 // loop_pre_header
    _
  $region3: #{skipcnn1_forward.3} parent=0 // loop_header
    %s9 = sphi 0, %s13
    %p10 = scmp.ge.s32.totalorder %s9, 4
    %s19 = sphi 0, %s21
    %s22 = sphi 0, %s19
    %s23 = sphi 0, %s22
    %s39 = sphi 0, %s23
    %s43 = sphi 0, %s43
    %s45 = sphi 0, %s43
    %s46 = sphi 0, %s45
    %s60 = sphi 0, %s46
    %s64 = sphi 0, %s64
    %s66 = sphi 0, %s64
    %s67 = sphi 0, %s66
    %s81 = sphi 0, %s67
    %s87 = sphi 0, %s89
    %s90 = sphi 0, %s87
    %s91 = sphi 0, %s90
    %s107 = sphi 0, %s91
  $region4: #{skipcnn1_forward.3} parent=0 // loop_header_branch
    %12 = sbr.rel (%p10) target = $region8
  $region5: #{skipcnn1_forward.3} parent=0 // loop_body
    %s14 = ssub.s32 %s9, 1
    %s15 = ssub.s32 %s9, 2
    %s16 = sadd.s32 %s9, 1
    %s17 = ssub.s32 %s9, %s16
    %p18 = scmp.eq.s32.totalorder %s17, 0
    %s20 = sadd.s32 %s19, 1
    %s21 = scalar_select %p18, %s19, %s20
    %p24 = pneg %p18
    %p25 = scmp.eq.s32.totalorder %s9, 1
    %p26 = por %p24, %p25
    %p27 = scmp.ne.s32.totalorder %s19, %s22
    %p28 = scmp.eq.s32.totalorder %s9, 0
    %p29 = por %p27, %p28
    %p30 = scmp.ne.s32.totalorder %s19, %s22
    %p31 = scmp.eq.s32.totalorder %s14, 1
    %p32 = por %p30, %p31
    %p33 = scmp.ne.s32.totalorder %s22, %s23
    %p34 = scmp.eq.s32.totalorder %s14, 0
    %p35 = por %p33, %p34
    %p36 = scmp.ne.s32.totalorder %s22, %s23
    %p37 = scmp.eq.s32.totalorder %s15, 1
    %p38 = por %p36, %p37
    %p40 = scmp.ne.s32.totalorder %s23, %s39
    %p41 = scmp.eq.s32.totalorder %s15, 0
    %p42 = por %p40, %p41
    %s44 = sadd.s32 %s43, 1
    %p47 = scmp.eq.s32.totalorder %s9, 1
    %p48 = scmp.ne.s32.totalorder %s43, %s45
    %p49 = scmp.eq.s32.totalorder %s9, 0
    %p50 = por %p48, %p49
    %p51 = scmp.ne.s32.totalorder %s43, %s45
    %p52 = scmp.eq.s32.totalorder %s14, 1
    %p53 = por %p51, %p52
    %p54 = scmp.ne.s32.totalorder %s45, %s46
    %p55 = scmp.eq.s32.totalorder %s14, 0
    %p56 = por %p54, %p55
    %p57 = scmp.ne.s32.totalorder %s45, %s46
    %p58 = scmp.eq.s32.totalorder %s15, 1
    %p59 = por %p57, %p58
    %p61 = scmp.ne.s32.totalorder %s46, %s60
    %p62 = scmp.eq.s32.totalorder %s15, 0
    %p63 = por %p61, %p62
    %s65 = sadd.s32 %s64, 1
    %p68 = scmp.eq.s32.totalorder %s9, 1
    %p69 = scmp.ne.s32.totalorder %s64, %s66
    %p70 = scmp.eq.s32.totalorder %s9, 0
    %p71 = por %p69, %p70
    %p72 = scmp.ne.s32.totalorder %s64, %s66
    %p73 = scmp.eq.s32.totalorder %s14, 1
    %p74 = por %p72, %p73
    %p75 = scmp.ne.s32.totalorder %s66, %s67
    %p76 = scmp.eq.s32.totalorder %s14, 0
    %p77 = por %p75, %p76
    %p78 = scmp.ne.s32.totalorder %s66, %s67
    %p79 = scmp.eq.s32.totalorder %s15, 1
    %p80 = por %p78, %p79
    %p82 = scmp.ne.s32.totalorder %s67, %s81
    %p83 = scmp.eq.s32.totalorder %s15, 0
    %p84 = por %p82, %p83
    %s85 = ssub.s32 %s9, %s16
    %p86 = scmp.eq.s32.totalorder %s85, 0
    %s88 = sadd.s32 %s87, 1
    %s89 = scalar_select %p86, %s87, %s88
    %p92 = pneg %p86
    %p93 = scmp.eq.s32.totalorder %s9, 1
    %p94 = por %p92, %p93
    %p95 = scmp.ne.s32.totalorder %s87, %s90
    %p96 = scmp.eq.s32.totalorder %s9, 0
    %p97 = por %p95, %p96
    %p98 = scmp.ne.s32.totalorder %s87, %s90
    %p99 = scmp.eq.s32.totalorder %s14, 1
    %p100 = por %p98, %p99
    %p101 = scmp.ne.s32.totalorder %s90, %s91
    %p102 = scmp.eq.s32.totalorder %s14, 0
    %p103 = por %p101, %p102
    %p104 = scmp.ne.s32.totalorder %s90, %s91
    %p105 = scmp.eq.s32.totalorder %s15, 1
    %p106 = por %p104, %p105
    %p108 = scmp.ne.s32.totalorder %s91, %s107
    %p109 = scmp.eq.s32.totalorder %s15, 0
    %p110 = por %p108, %p109
    %p111 = scmp.le.s32.totalorder 1, %s9
    %p112 = scmp.lt.s32.totalorder %s9, 3
    %p113 = pnand %p111, %p112
    %p114 = pneg %p113
    // Predicated region
    $region9: #{skipcnn1_forward.3} parent=5 // pred_check
      _
    $region10: #{skipcnn1_forward.3} parent=5 // pred_check_branch
      %116 = sbr.rel (%p113) target = $region12
    $region11: #{skipcnn1_forward.3} parent=5 // pred_region
      %s117 = ssub.s32 %s9, 1
      // Predicated region
      $region13: #{skipcnn1_forward.3} parent=11 // pred_check
        %p118 = pneg %p56
      $region14: #{skipcnn1_forward.3} parent=11 // pred_check_branch
        %120 = sbr.rel (%p118) target = $region16
      $region15: #{skipcnn1_forward.3} parent=11 // pred_region
        _
      $region16: #{skipcnn1_forward.3} parent=11 // pred_fallthru
        _
      // Predicated region
      $region17: #{skipcnn1_forward.3} parent=11 // pred_check
        %p121 = pneg %p77
      $region18: #{skipcnn1_forward.3} parent=11 // pred_check_branch
        %123 = sbr.rel (%p121) target = $region20
      $region19: #{skipcnn1_forward.3} parent=11 // pred_region
        _
      $region20: #{skipcnn1_forward.3} parent=11 // pred_fallthru
        _
    $region12: #{skipcnn1_forward.3} parent=5 // pred_fallthru
      _
    %p124 = scmp.lt.s32.totalorder %s9, 2
    // Predicated region
    $region21: #{skipcnn1_forward.3} parent=5 // pred_check
      %p125 = pneg %p124
    $region22: #{skipcnn1_forward.3} parent=5 // pred_check_branch
      %127 = sbr.rel (%p125) target = $region24
    $region23: #{skipcnn1_forward.3} parent=5 // pred_region
      // Predicated region
      $region25: #{skipcnn1_forward.3} parent=23 // pred_check
        %p128 = pneg %p29
      $region26: #{skipcnn1_forward.3} parent=23 // pred_check_branch
        %130 = sbr.rel (%p128) target = $region28
      $region27: #{skipcnn1_forward.3} parent=23 // pred_region
        %s131 = smul.u32 4, %s9
        %p132 = scmp.lt.s32.totalorder %s131, 7
        %s133 = scalar_select %p132, %s131, 7
        %s134 = smul.addr %s133, 72
        %s135 = smul.addr %s134, 8
        %s136 = scalar_lea.vmem %s0, %s135
        %s137 = smul.u32 4, %s9
      $region28: #{skipcnn1_forward.3} parent=23 // pred_fallthru
        _
    $region24: #{skipcnn1_forward.3} parent=5 // pred_fallthru
      _
    %p138 = scmp.le.s32.totalorder 1, %s9
    %p139 = scmp.lt.s32.totalorder %s9, 3
    %p140 = pnand %p138, %p139
    %p141 = pneg %p140
    // Predicated region
    $region29: #{skipcnn1_forward.3} parent=5 // pred_check
      _
    $region30: #{skipcnn1_forward.3} parent=5 // pred_check_branch
      %143 = sbr.rel (%p140) target = $region32
    $region31: #{skipcnn1_forward.3} parent=5 // pred_region
      %s144 = ssub.s32 %s9, 1
      %s145 = smul.u32 4, %s14
      %p146 = scmp.lt.s32.totalorder %s145, 7
      %s147 = scalar_select %p146, %s145, 7
      %s148 = smul.addr %s147, 72
      %s149 = smul.addr %s148, 8
      %s150 = scalar_lea.vmem %s0, %s149
      %p151 = pneg %p35
      %p152 = pneg %p32
      %p153 = pneg %p56
      %p154 = pneg %p53
      %p155 = pneg %p77
      %p156 = pneg %p74
      %p157 = pneg %p103
      %p158 = pneg %p100
      %p159 = scmp.lt.s32.totalorder %s14, 1
      %s160 = scalar_select %p159, %s14, 1
      %s161 = smul.addr %s160, 72
      %s162 = smul.addr %s161, 8
      %s163 = scalar_lea.vmem %s3, %s162
      %s164 = smul.u32 4, %s14
      %p165 = scmp.lt.s32.totalorder %s164, 7
      %s166 = scalar_select %p165, %s164, 7
      %s167 = smul.addr %s166, 72
      %s168 = smul.addr %s167, 8
      %s169 = scalar_lea.vmem %s0, %s168
      %s170 = smul.u32 4, %s14
      %p171 = scmp.lt.s32.totalorder %s14, 1
      %s172 = scalar_select %p171, %s14, 1
      %s173 = smul.addr %s172, 72
      %s174 = smul.addr %s173, 8
      %s175 = scalar_lea.vmem %s3, %s174
      %v176 = vld [vmem:[%s1] sm:$0xff]
      %v177 = vld [vmem:[%s1 + $0x8] sm:$0x1]
      %v178 = vld [vmem:[%s2] sm:$0x1]
      %v179 = vld [vmem:[%s169] sm:$0xff]
      %v180 = vld [vmem:[%s169 + $0x8] sm:$0xff]
      %v181 = vld [vmem:[%s169 + $0x10] sm:$0xff]
      %v182 = vld [vmem:[%s169 + $0x18] sm:$0xff]
      %v183 = vld [vmem:[%s169 + $0x20] sm:$0xff]
      %v184 = vld [vmem:[%s169 + $0x28] sm:$0xff]
      %v185 = vld [vmem:[%s169 + $0x30] sm:$0xff]
      %v186 = vld [vmem:[%s169 + $0x38] sm:$0xff]
      %v187 = vld [vmem:[%s169 + $0x40] sm:$0xff]
      %v188 = vld [vmem:[%s169 + $0x48] sm:$0xff]
      %v189 = vld [vmem:[%s169 + $0x50] sm:$0xff]
      %v190 = vld [vmem:[%s169 + $0x58] sm:$0xff]
      %v191 = vld [vmem:[%s169 + $0x60] sm:$0xff]
      %v192 = vld [vmem:[%s169 + $0x68] sm:$0xff]
      %v193 = vld [vmem:[%s169 + $0x70] sm:$0xff]
      %v194 = vld [vmem:[%s169 + $0x78] sm:$0xff]
      %v195 = vld [vmem:[%s169 + $0x80] sm:$0xff]
      %v196 = vld [vmem:[%s169 + $0x88] sm:$0xff]
      %v197 = vld [vmem:[%s169 + $0x90] sm:$0xff]
      %v198 = vld [vmem:[%s169 + $0x98] sm:$0xff]
      %v199 = vld [vmem:[%s169 + $0xa0] sm:$0xff]
      %v200 = vld [vmem:[%s169 + $0xa8] sm:$0xff]
      %v201 = vld [vmem:[%s169 + $0xb0] sm:$0xff]
      %v202 = vld [vmem:[%s169 + $0xb8] sm:$0xff]
      %v203 = vld [vmem:[%s169 + $0xc0] sm:$0xff]
      %v204 = vld [vmem:[%s169 + $0xc8] sm:$0xff]
      %v205 = vld [vmem:[%s169 + $0xd0] sm:$0xff]
      %v206 = vld [vmem:[%s169 + $0xd8] sm:$0xff]
      %v207 = vld [vmem:[%s169 + $0xe0] sm:$0xff]
      %v208 = vld [vmem:[%s169 + $0xe8] sm:$0xff]
      %v209 = vld [vmem:[%s169 + $0xf0] sm:$0xff]
      %v210 = vld [vmem:[%s169 + $0xf8] sm:$0xff]
      %v211 = vld [vmem:[%s169 + $0x100] sm:$0xff]
      %v212 = vld [vmem:[%s169 + $0x108] sm:$0xff]
      %v213 = vld [vmem:[%s169 + $0x110] sm:$0xff]
      %v214 = vld [vmem:[%s169 + $0x118] sm:$0xff]
      %v215 = vld [vmem:[%s169 + $0x120] sm:$0xff]
      %v216 = vld [vmem:[%s169 + $0x128] sm:$0xff]
      %v217 = vld [vmem:[%s169 + $0x130] sm:$0xff]
      %v218 = vld [vmem:[%s169 + $0x138] sm:$0xff]
      %v219 = vld [vmem:[%s169 + $0x140] sm:$0xff]
      %v220 = vld [vmem:[%s169 + $0x148] sm:$0xff]
      %v221 = vld [vmem:[%s169 + $0x150] sm:$0xff]
      %v222 = vld [vmem:[%s169 + $0x158] sm:$0xff]
      %v223 = vld [vmem:[%s169 + $0x160] sm:$0xff]
      %v224 = vld [vmem:[%s169 + $0x168] sm:$0xff]
      %v225 = vld [vmem:[%s169 + $0x170] sm:$0xff]
      %v226 = vld [vmem:[%s169 + $0x178] sm:$0xff]
      %v227 = vld [vmem:[%s169 + $0x180] sm:$0xff]
      %v228 = vld [vmem:[%s169 + $0x188] sm:$0xff]
      %v229 = vld [vmem:[%s169 + $0x190] sm:$0xff]
      %v230 = vld [vmem:[%s169 + $0x198] sm:$0xff]
      %v231 = vld [vmem:[%s169 + $0x1a0] sm:$0xff]
      %v232 = vld [vmem:[%s169 + $0x1a8] sm:$0xff]
      %v233 = vld [vmem:[%s169 + $0x1b0] sm:$0xff]
      %v234 = vld [vmem:[%s169 + $0x1b8] sm:$0xff]
      %v235 = vld [vmem:[%s169 + $0x1c0] sm:$0xff]
      %v236 = vld [vmem:[%s169 + $0x1c8] sm:$0xff]
      %v237 = vld [vmem:[%s169 + $0x1d0] sm:$0xff]
      %v238 = vld [vmem:[%s169 + $0x1d8] sm:$0xff]
      %v239 = vld [vmem:[%s169 + $0x1e0] sm:$0xff]
      %v240 = vld [vmem:[%s169 + $0x1e8] sm:$0xff]
      %v241 = vld [vmem:[%s169 + $0x1f0] sm:$0xff]
      %v242 = vld [vmem:[%s169 + $0x1f8] sm:$0xff]
      %v243 = vld [vmem:[%s169 + $0x200] sm:$0xff]
      %v244 = vld [vmem:[%s169 + $0x208] sm:$0xff]
      %v245 = vld [vmem:[%s169 + $0x210] sm:$0xff]
      %v246 = vld [vmem:[%s169 + $0x218] sm:$0xff]
      %v247 = vld [vmem:[%s169 + $0x220] sm:$0xff]
      %v248 = vld [vmem:[%s169 + $0x228] sm:$0xff]
      %v249 = vld [vmem:[%s169 + $0x230] sm:$0xff]
      %v250 = vld [vmem:[%s169 + $0x238] sm:$0xff]
      %v252 = vlaneseq
      %v253 = vshrl.u32 %v252, 7
      %v254 = vsub.s32 0, %v253
      %v255 = vrot.slane %v178, %v254
      %vm257 = vcmask 72704
      %v259 = vsel %vm257, %v179, 0
      %v262 = vsel %vm257, %v180, 0
      %v265 = vsel %vm257, %v181, 0
      %v268 = vsel %vm257, %v182, 0
      %v271 = vsel %vm257, %v183, 0
      %v274 = vsel %vm257, %v184, 0
      %v277 = vsel %vm257, %v185, 0
      %v280 = vsel %vm257, %v186, 0
      %v283 = vsel %vm257, %v187, 0
      %v286 = vsel %vm257, %v188, 0
      %v289 = vsel %vm257, %v189, 0
      %v292 = vsel %vm257, %v190, 0
      %v295 = vsel %vm257, %v191, 0
      %v298 = vsel %vm257, %v192, 0
      %v301 = vsel %vm257, %v193, 0
      %v304 = vsel %vm257, %v194, 0
      %v307 = vsel %vm257, %v195, 0
      %v310 = vsel %vm257, %v196, 0
      %v313 = vsel %vm257, %v197, 0
      %v316 = vsel %vm257, %v198, 0
      %v319 = vsel %vm257, %v199, 0
      %v322 = vsel %vm257, %v200, 0
      %v325 = vsel %vm257, %v201, 0
      %v328 = vsel %vm257, %v202, 0
      %v331 = vsel %vm257, %v203, 0
      %v334 = vsel %vm257, %v204, 0
      %v337 = vsel %vm257, %v205, 0
      %v340 = vsel %vm257, %v206, 0
      %v343 = vsel %vm257, %v207, 0
      %v346 = vsel %vm257, %v208, 0
      %v349 = vsel %vm257, %v209, 0
      %v352 = vsel %vm257, %v210, 0
      %v355 = vsel %vm257, %v211, 0
      %v358 = vsel %vm257, %v212, 0
      %v361 = vsel %vm257, %v213, 0
      %v364 = vsel %vm257, %v214, 0
      %v367 = vsel %vm257, %v215, 0
      %v370 = vsel %vm257, %v216, 0
      %v373 = vsel %vm257, %v217, 0
      %v376 = vsel %vm257, %v218, 0
      %v379 = vsel %vm257, %v219, 0
      %v382 = vsel %vm257, %v220, 0
      %v385 = vsel %vm257, %v221, 0
      %v388 = vsel %vm257, %v222, 0
      %v391 = vsel %vm257, %v223, 0
      %v394 = vsel %vm257, %v224, 0
      %v397 = vsel %vm257, %v225, 0
      %v400 = vsel %vm257, %v226, 0
      %v403 = vsel %vm257, %v227, 0
      %v406 = vsel %vm257, %v228, 0
      %v409 = vsel %vm257, %v229, 0
      %v412 = vsel %vm257, %v230, 0
      %v415 = vsel %vm257, %v231, 0
      %v418 = vsel %vm257, %v232, 0
      %v421 = vsel %vm257, %v233, 0
      %v424 = vsel %vm257, %v234, 0
      %v427 = vsel %vm257, %v235, 0
      %v430 = vsel %vm257, %v236, 0
      %v433 = vsel %vm257, %v237, 0
      %v436 = vsel %vm257, %v238, 0
      %v439 = vsel %vm257, %v239, 0
      %v442 = vsel %vm257, %v240, 0
      %v445 = vsel %vm257, %v241, 0
      %v448 = vsel %vm257, %v242, 0
      %v451 = vsel %vm257, %v243, 0
      %v454 = vsel %vm257, %v244, 0
      %v457 = vsel %vm257, %v245, 0
      %v460 = vsel %vm257, %v246, 0
      %v463 = vsel %vm257, %v247, 0
      %v466 = vsel %vm257, %v248, 0
      %v469 = vsel %vm257, %v249, 0
      %v472 = vsel %vm257, %v250, 0
      %vm474 = vcmask 1040384
      %v476 = vsel %vm474, %v177, 0
      %478 = vmatprep.subr.mxu0 0.0
      %479 = vmatpush1.msra.mxu0 %v176
      %480 = vmatprep.subr.mxu0 0.0
      %481 = vmatpush1.msra.mxu0 %v476
      %482 = vmatprep.subr.mxu0 0.0
      %483 = vmatpush1.msra.mxu0 0.0
      %484 = vmatprep.subr.mxu0 0.0
      %485 = vmatpush1.msra.mxu0 0.0
      %486 = vmatprep.subr.mxu0 0.0
      %487 = vmatpush1.msra.mxu0 0.0
      %488 = vmatprep.subr.mxu0 0.0
      %489 = vmatpush1.msra.mxu0 0.0
      %490 = vmatprep.subr.mxu0 0.0
      %491 = vmatpush1.msra.mxu0 0.0
      %492 = vmatprep.subr.mxu0 0.0
      %493 = vmatpush1.msra.mxu0 0.0
      %494 = vmatprep.subr.mxu0 0.0
      %495 = vmatpush1.msra.mxu0 0.0
      %496 = vmatprep.subr.mxu0 0.0
      %497 = vmatpush1.msra.mxu0 0.0
      %498 = vmatprep.subr.mxu0 0.0
      %499 = vmatpush1.msra.mxu0 0.0
      %500 = vmatprep.subr.mxu0 0.0
      %501 = vmatpush1.msra.mxu0 0.0
      %502 = vmatprep.subr.mxu0 0.0
      %503 = vmatpush1.msra.mxu0 0.0
      %504 = vmatprep.subr.mxu0 0.0
      %505 = vmatpush1.msra.mxu0 0.0
      %506 = vmatprep.subr.mxu0 0.0
      %507 = vmatpush1.msra.mxu0 0.0
      %508 = vmatprep.subr.mxu0 0.0
      %509 = vmatpush1.msra.mxu0 0.0
      %510 = vmatprep.subr.mxu0 0.0
      %511 = vmatpush1.msra.mxu0 0.0
      %512 = vmatprep.subr.mxu0 0.0
      %513 = vmatpush1.msra.mxu0 0.0
      %514 = vmatprep.subr.mxu0 0.0
      %515 = vmatpush1.msra.mxu0 0.0
      %516 = vmatprep.subr.mxu0 0.0
      %517 = vmatpush1.msra.mxu0 0.0
      %518 = vmatprep.subr.mxu0 0.0
      %519 = vmatpush1.msra.mxu0 0.0
      %520 = vmatprep.subr.mxu0 0.0
      %521 = vmatpush1.msra.mxu0 0.0
      %522 = vmatprep.subr.mxu0 0.0
      %523 = vmatpush1.msra.mxu0 0.0
      %524 = vmatprep.subr.mxu0 0.0
      %525 = vmatpush1.msra.mxu0 0.0
      %526 = vmatprep.subr.mxu0 0.0
      %527 = vmatpush1.msra.mxu0 0.0
      %528 = vmatprep.subr.mxu0 0.0
      %529 = vmatpush1.msra.mxu0 0.0
      %530 = vmatprep.subr.mxu0 0.0
      %531 = vmatpush1.msra.mxu0 0.0
      %532 = vmatprep.subr.mxu0 0.0
      %533 = vmatpush1.msra.mxu0 0.0
      %534 = vmatprep.subr.mxu0 0.0
      %535 = vmatpush1.msra.mxu0 0.0
      %536 = vmatprep.subr.mxu0 0.0
      %537 = vmatpush1.msra.mxu0 0.0
      %538 = vmatprep.subr.mxu0 0.0
      %539 = vmatpush1.msra.mxu0 0.0
      %540 = vmatprep.subr.mxu0 0.0
      %541 = vmatpush1.msra.mxu0 0.0
      %542 = vmatprep.mubr.f32.mxu0 0.0
      %543 = vmatmul.mubr.f32.gmra.mrb[0].mxu0 %v259
      %v544 = vpop.f32.mrb[0].mxu0
      %v545 = vadd.f32 %v255, %v544
      %v546 = vpop.f32.mrb[0].mxu0
      %547 = vmatprep.mubr.f32.mxu0 0.0
      %548 = vmatmul.mubr.f32.gmra.mrb[0].mxu0 %v262
      %v549 = vpop.f32.mrb[0].mxu0
      %v550 = vadd.f32 %v255, %v549
      %v551 = vpop.f32.mrb[0].mxu0
      %552 = vmatprep.mubr.f32.mxu0 0.0
      %553 = vmatmul.mubr.f32.gmra.mrb[0].mxu0 %v265
      %v554 = vpop.f32.mrb[0].mxu0
      %v555 = vadd.f32 %v255, %v554
      %v556 = vpop.f32.mrb[0].mxu0
      %557 = vmatprep.mubr.f32.mxu0 0.0
      %558 = vmatmul.mubr.f32.gmra.mrb[0].mxu0 %v268
      %v559 = vpop.f32.mrb[0].mxu0
      %v560 = vadd.f32 %v255, %v559
      %v561 = vpop.f32.mrb[0].mxu0
      %562 = vmatprep.mubr.f32.mxu0 0.0
      %563 = vmatmul.mubr.f32.gmra.mrb[0].mxu0 %v271
      %v564 = vpop.f32.mrb[0].mxu0
      %v565 = vadd.f32 %v255, %v564
      %v566 = vpop.f32.mrb[0].mxu0
      %567 = vmatprep.mubr.f32.mxu0 0.0
      %568 = vmatmul.mubr.f32.gmra.mrb[0].mxu0 %v274
      %v569 = vpop.f32.mrb[0].mxu0
      %v570 = vadd.f32 %v255, %v569
      %v571 = vpop.f32.mrb[0].mxu0
      %572 = vmatprep.mubr.f32.mxu0 0.0
      %573 = vmatmul.mubr.f32.gmra.mrb[0].mxu0 %v277
      %v574 = vpop.f32.mrb[0].mxu0
      %v575 = vadd.f32 %v255, %v574
      %v576 = vpop.f32.mrb[0].mxu0
      %577 = vmatprep.mubr.f32.mxu0 0.0
      %578 = vmatmul.mubr.f32.gmra.mrb[0].mxu0 %v280
      %v579 = vpop.f32.mrb[0].mxu0
      %v580 = vadd.f32 %v255, %v579
      %v581 = vpop.f32.mrb[0].mxu0
      %582 = vmatprep.mubr.f32.mxu0 0.0
      %583 = vmatmul.mubr.f32.gmra.mrb[0].mxu0 %v283
      %v584 = vpop.f32.mrb[0].mxu0
      %v585 = vadd.f32 %v255, %v584
      %v586 = vpop.f32.mrb[0].mxu0
      %587 = vmatprep.mubr.f32.mxu0 0.0
      %588 = vmatmul.mubr.f32.gmra.mrb[0].mxu0 %v286
      %v589 = vpop.f32.mrb[0].mxu0
      %v590 = vadd.f32 %v255, %v589
      %v591 = vpop.f32.mrb[0].mxu0
      %592 = vmatprep.mubr.f32.mxu0 0.0
      %593 = vmatmul.mubr.f32.gmra.mrb[0].mxu0 %v289
      %v594 = vpop.f32.mrb[0].mxu0
      %v595 = vadd.f32 %v255, %v594
      %v596 = vpop.f32.mrb[0].mxu0
      %597 = vmatprep.mubr.f32.mxu0 0.0
      %598 = vmatmul.mubr.f32.gmra.mrb[0].mxu0 %v292
      %v599 = vpop.f32.mrb[0].mxu0
      %v600 = vadd.f32 %v255, %v599
      %v601 = vpop.f32.mrb[0].mxu0
      %602 = vmatprep.mubr.f32.mxu0 0.0
      %603 = vmatmul.mubr.f32.gmra.mrb[0].mxu0 %v295
      %v604 = vpop.f32.mrb[0].mxu0
      %v605 = vadd.f32 %v255, %v604
      %v606 = vpop.f32.mrb[0].mxu0
      %607 = vmatprep.mubr.f32.mxu0 0.0
      %608 = vmatmul.mubr.f32.gmra.mrb[0].mxu0 %v298
      %v609 = vpop.f32.mrb[0].mxu0
      %v610 = vadd.f32 %v255, %v609
      %v611 = vpop.f32.mrb[0].mxu0
      %612 = vmatprep.mubr.f32.mxu0 0.0
      %613 = vmatmul.mubr.f32.gmra.mrb[0].mxu0 %v301
      %v614 = vpop.f32.mrb[0].mxu0
      %v615 = vadd.f32 %v255, %v614
      %v616 = vpop.f32.mrb[0].mxu0
      %617 = vmatprep.mubr.f32.mxu0 0.0
      %618 = vmatmul.mubr.f32.gmra.mrb[0].mxu0 %v304
      %v619 = vpop.f32.mrb[0].mxu0
      %v620 = vadd.f32 %v255, %v619
      %v621 = vpop.f32.mrb[0].mxu0
      %622 = vmatprep.mubr.f32.mxu0 0.0
      %623 = vmatmul.mubr.f32.gmra.mrb[0].mxu0 %v307
      %v624 = vpop.f32.mrb[0].mxu0
      %v625 = vadd.f32 %v255, %v624
      %v626 = vpop.f32.mrb[0].mxu0
      %627 = vmatprep.mubr.f32.mxu0 0.0
      %628 = vmatmul.mubr.f32.gmra.mrb[0].mxu0 %v310
      %v629 = vpop.f32.mrb[0].mxu0
      %v630 = vadd.f32 %v255, %v629
      %v631 = vpop.f32.mrb[0].mxu0
      %632 = vmatprep.mubr.f32.mxu0 0.0
      %633 = vmatmul.mubr.f32.gmra.mrb[0].mxu0 %v313
      %v634 = vpop.f32.mrb[0].mxu0
      %v635 = vadd.f32 %v255, %v634
      %v636 = vpop.f32.mrb[0].mxu0
      %637 = vmatprep.mubr.f32.mxu0 0.0
      %638 = vmatmul.mubr.f32.gmra.mrb[0].mxu0 %v316
      %v639 = vpop.f32.mrb[0].mxu0
      %v640 = vadd.f32 %v255, %v639
      %v641 = vpop.f32.mrb[0].mxu0
      %642 = vmatprep.mubr.f32.mxu0 0.0
      %643 = vmatmul.mubr.f32.gmra.mrb[0].mxu0 %v319
      %v644 = vpop.f32.mrb[0].mxu0
      %v645 = vadd.f32 %v255, %v644
      %v646 = vpop.f32.mrb[0].mxu0
      %647 = vmatprep.mubr.f32.mxu0 0.0
      %648 = vmatmul.mubr.f32.gmra.mrb[0].mxu0 %v322
      %v649 = vpop.f32.mrb[0].mxu0
      %v650 = vadd.f32 %v255, %v649
      %v651 = vpop.f32.mrb[0].mxu0
      %652 = vmatprep.mubr.f32.mxu0 0.0
      %653 = vmatmul.mubr.f32.gmra.mrb[0].mxu0 %v325
      %v654 = vpop.f32.mrb[0].mxu0
      %v655 = vadd.f32 %v255, %v654
      %v656 = vpop.f32.mrb[0].mxu0
      %657 = vmatprep.mubr.f32.mxu0 0.0
      %658 = vmatmul.mubr.f32.gmra.mrb[0].mxu0 %v328
      %v659 = vpop.f32.mrb[0].mxu0
      %v660 = vadd.f32 %v255, %v659
      %v661 = vpop.f32.mrb[0].mxu0
      %662 = vmatprep.mubr.f32.mxu0 0.0
      %663 = vmatmul.mubr.f32.gmra.mrb[0].mxu0 %v331
      %v664 = vpop.f32.mrb[0].mxu0
      %v665 = vadd.f32 %v255, %v664
      %v666 = vpop.f32.mrb[0].mxu0
      %667 = vmatprep.mubr.f32.mxu0 0.0
      %668 = vmatmul.mubr.f32.gmra.mrb[0].mxu0 %v334
      %v669 = vpop.f32.mrb[0].mxu0
      %v670 = vadd.f32 %v255, %v669
      %v671 = vpop.f32.mrb[0].mxu0
      %672 = vmatprep.mubr.f32.mxu0 0.0
      %673 = vmatmul.mubr.f32.gmra.mrb[0].mxu0 %v337
      %v674 = vpop.f32.mrb[0].mxu0
      %v675 = vadd.f32 %v255, %v674
      %v676 = vpop.f32.mrb[0].mxu0
      %677 = vmatprep.mubr.f32.mxu0 0.0
      %678 = vmatmul.mubr.f32.gmra.mrb[0].mxu0 %v340
      %v679 = vpop.f32.mrb[0].mxu0
      %v680 = vadd.f32 %v255, %v679
      %v681 = vpop.f32.mrb[0].mxu0
      %682 = vmatprep.mubr.f32.mxu0 0.0
      %683 = vmatmul.mubr.f32.gmra.mrb[0].mxu0 %v343
      %v684 = vpop.f32.mrb[0].mxu0
      %v685 = vadd.f32 %v255, %v684
      %v686 = vpop.f32.mrb[0].mxu0
      %687 = vmatprep.mubr.f32.mxu0 0.0
      %688 = vmatmul.mubr.f32.gmra.mrb[0].mxu0 %v346
      %v689 = vpop.f32.mrb[0].mxu0
      %v690 = vadd.f32 %v255, %v689
      %v691 = vpop.f32.mrb[0].mxu0
      %692 = vmatprep.mubr.f32.mxu0 0.0
      %693 = vmatmul.mubr.f32.gmra.mrb[0].mxu0 %v349
      %v694 = vpop.f32.mrb[0].mxu0
      %v695 = vadd.f32 %v255, %v694
      %v696 = vpop.f32.mrb[0].mxu0
      %697 = vmatprep.mubr.f32.mxu0 0.0
      %698 = vmatmul.mubr.f32.gmra.mrb[0].mxu0 %v352
      %v699 = vpop.f32.mrb[0].mxu0
      %v700 = vadd.f32 %v255, %v699
      %v701 = vpop.f32.mrb[0].mxu0
      %702 = vmatprep.mubr.f32.mxu0 0.0
      %703 = vmatmul.mubr.f32.gmra.mrb[0].mxu0 %v355
      %v704 = vpop.f32.mrb[0].mxu0
      %v705 = vadd.f32 %v255, %v704
      %v706 = vpop.f32.mrb[0].mxu0
      %707 = vmatprep.mubr.f32.mxu0 0.0
      %708 = vmatmul.mubr.f32.gmra.mrb[0].mxu0 %v358
      %v709 = vpop.f32.mrb[0].mxu0
      %v710 = vadd.f32 %v255, %v709
      %v711 = vpop.f32.mrb[0].mxu0
      %712 = vmatprep.mubr.f32.mxu0 0.0
      %713 = vmatmul.mubr.f32.gmra.mrb[0].mxu0 %v361
      %v714 = vpop.f32.mrb[0].mxu0
      %v715 = vadd.f32 %v255, %v714
      %v716 = vpop.f32.mrb[0].mxu0
      %717 = vmatprep.mubr.f32.mxu0 0.0
      %718 = vmatmul.mubr.f32.gmra.mrb[0].mxu0 %v364
      %v719 = vpop.f32.mrb[0].mxu0
      %v720 = vadd.f32 %v255, %v719
      %v721 = vpop.f32.mrb[0].mxu0
      %722 = vmatprep.mubr.f32.mxu0 0.0
      %723 = vmatmul.mubr.f32.gmra.mrb[0].mxu0 %v367
      %v724 = vpop.f32.mrb[0].mxu0
      %v725 = vadd.f32 %v255, %v724
      %v726 = vpop.f32.mrb[0].mxu0
      %727 = vmatprep.mubr.f32.mxu0 0.0
      %728 = vmatmul.mubr.f32.gmra.mrb[0].mxu0 %v370
      %v729 = vpop.f32.mrb[0].mxu0
      %v730 = vadd.f32 %v255, %v729
      %v731 = vpop.f32.mrb[0].mxu0
      %732 = vmatprep.mubr.f32.mxu0 0.0
      %733 = vmatmul.mubr.f32.gmra.mrb[0].mxu0 %v373
      %v734 = vpop.f32.mrb[0].mxu0
      %v735 = vadd.f32 %v255, %v734
      %v736 = vpop.f32.mrb[0].mxu0
      %737 = vmatprep.mubr.f32.mxu0 0.0
      %738 = vmatmul.mubr.f32.gmra.mrb[0].mxu0 %v376
      %v739 = vpop.f32.mrb[0].mxu0
      %v740 = vadd.f32 %v255, %v739
      %v741 = vpop.f32.mrb[0].mxu0
      %742 = vmatprep.mubr.f32.mxu0 0.0
      %743 = vmatmul.mubr.f32.gmra.mrb[0].mxu0 %v379
      %v744 = vpop.f32.mrb[0].mxu0
      %v745 = vadd.f32 %v255, %v744
      %v746 = vpop.f32.mrb[0].mxu0
      %747 = vmatprep.mubr.f32.mxu0 0.0
      %748 = vmatmul.mubr.f32.gmra.mrb[0].mxu0 %v382
      %v749 = vpop.f32.mrb[0].mxu0
      %v750 = vadd.f32 %v255, %v749
      %v751 = vpop.f32.mrb[0].mxu0
      %752 = vmatprep.mubr.f32.mxu0 0.0
      %753 = vmatmul.mubr.f32.gmra.mrb[0].mxu0 %v385
      %v754 = vpop.f32.mrb[0].mxu0
      %v755 = vadd.f32 %v255, %v754
      %v756 = vpop.f32.mrb[0].mxu0
      %757 = vmatprep.mubr.f32.mxu0 0.0
      %758 = vmatmul.mubr.f32.gmra.mrb[0].mxu0 %v388
      %v759 = vpop.f32.mrb[0].mxu0
      %v760 = vadd.f32 %v255, %v759
      %v761 = vpop.f32.mrb[0].mxu0
      %762 = vmatprep.mubr.f32.mxu0 0.0
      %763 = vmatmul.mubr.f32.gmra.mrb[0].mxu0 %v391
      %v764 = vpop.f32.mrb[0].mxu0
      %v765 = vadd.f32 %v255, %v764
      %v766 = vpop.f32.mrb[0].mxu0
      %767 = vmatprep.mubr.f32.mxu0 0.0
      %768 = vmatmul.mubr.f32.gmra.mrb[0].mxu0 %v394
      %v769 = vpop.f32.mrb[0].mxu0
      %v770 = vadd.f32 %v255, %v769
      %v771 = vpop.f32.mrb[0].mxu0
      %772 = vmatprep.mubr.f32.mxu0 0.0
      %773 = vmatmul.mubr.f32.gmra.mrb[0].mxu0 %v397
      %v774 = vpop.f32.mrb[0].mxu0
      %v775 = vadd.f32 %v255, %v774
      %v776 = vpop.f32.mrb[0].mxu0
      %777 = vmatprep.mubr.f32.mxu0 0.0
      %778 = vmatmul.mubr.f32.gmra.mrb[0].mxu0 %v400
      %v779 = vpop.f32.mrb[0].mxu0
      %v780 = vadd.f32 %v255, %v779
      %v781 = vpop.f32.mrb[0].mxu0
      %782 = vmatprep.mubr.f32.mxu0 0.0
      %783 = vmatmul.mubr.f32.gmra.mrb[0].mxu0 %v403
      %v784 = vpop.f32.mrb[0].mxu0
      %v785 = vadd.f32 %v255, %v784
      %v786 = vpop.f32.mrb[0].mxu0
      %787 = vmatprep.mubr.f32.mxu0 0.0
      %788 = vmatmul.mubr.f32.gmra.mrb[0].mxu0 %v406
      %v789 = vpop.f32.mrb[0].mxu0
      %v790 = vadd.f32 %v255, %v789
      %v791 = vpop.f32.mrb[0].mxu0
      %792 = vmatprep.mubr.f32.mxu0 0.0
      %793 = vmatmul.mubr.f32.gmra.mrb[0].mxu0 %v409
      %v794 = vpop.f32.mrb[0].mxu0
      %v795 = vadd.f32 %v255, %v794
      %v796 = vpop.f32.mrb[0].mxu0
      %797 = vmatprep.mubr.f32.mxu0 0.0
      %798 = vmatmul.mubr.f32.gmra.mrb[0].mxu0 %v412
      %v799 = vpop.f32.mrb[0].mxu0
      %v800 = vadd.f32 %v255, %v799
      %v801 = vpop.f32.mrb[0].mxu0
      %802 = vmatprep.mubr.f32.mxu0 0.0
      %803 = vmatmul.mubr.f32.gmra.mrb[0].mxu0 %v415
      %v804 = vpop.f32.mrb[0].mxu0
      %v805 = vadd.f32 %v255, %v804
      %v806 = vpop.f32.mrb[0].mxu0
      %807 = vmatprep.mubr.f32.mxu0 0.0
      %808 = vmatmul.mubr.f32.gmra.mrb[0].mxu0 %v418
      %v809 = vpop.f32.mrb[0].mxu0
      %v810 = vadd.f32 %v255, %v809
      %v811 = vpop.f32.mrb[0].mxu0
      %812 = vmatprep.mubr.f32.mxu0 0.0
      %813 = vmatmul.mubr.f32.gmra.mrb[0].mxu0 %v421
      %v814 = vpop.f32.mrb[0].mxu0
      %v815 = vadd.f32 %v255, %v814
      %v816 = vpop.f32.mrb[0].mxu0
      %817 = vmatprep.mubr.f32.mxu0 0.0
      %818 = vmatmul.mubr.f32.gmra.mrb[0].mxu0 %v424
      %v819 = vpop.f32.mrb[0].mxu0
      %v820 = vadd.f32 %v255, %v819
      %v821 = vpop.f32.mrb[0].mxu0
      %822 = vmatprep.mubr.f32.mxu0 0.0
      %823 = vmatmul.mubr.f32.gmra.mrb[0].mxu0 %v427
      %v824 = vpop.f32.mrb[0].mxu0
      %v825 = vadd.f32 %v255, %v824
      %v826 = vpop.f32.mrb[0].mxu0
      %827 = vmatprep.mubr.f32.mxu0 0.0
      %828 = vmatmul.mubr.f32.gmra.mrb[0].mxu0 %v430
      %v829 = vpop.f32.mrb[0].mxu0
      %v830 = vadd.f32 %v255, %v829
      %v831 = vpop.f32.mrb[0].mxu0
      %832 = vmatprep.mubr.f32.mxu0 0.0
      %833 = vmatmul.mubr.f32.gmra.mrb[0].mxu0 %v433
      %v834 = vpop.f32.mrb[0].mxu0
      %v835 = vadd.f32 %v255, %v834
      %v836 = vpop.f32.mrb[0].mxu0
      %837 = vmatprep.mubr.f32.mxu0 0.0
      %838 = vmatmul.mubr.f32.gmra.mrb[0].mxu0 %v436
      %v839 = vpop.f32.mrb[0].mxu0
      %v840 = vadd.f32 %v255, %v839
      %v841 = vpop.f32.mrb[0].mxu0
      %842 = vmatprep.mubr.f32.mxu0 0.0
      %843 = vmatmul.mubr.f32.gmra.mrb[0].mxu0 %v439
      %v844 = vpop.f32.mrb[0].mxu0
      %v845 = vadd.f32 %v255, %v844
      %v846 = vpop.f32.mrb[0].mxu0
      %847 = vmatprep.mubr.f32.mxu0 0.0
      %848 = vmatmul.mubr.f32.gmra.mrb[0].mxu0 %v442
      %v849 = vpop.f32.mrb[0].mxu0
      %v850 = vadd.f32 %v255, %v849
      %v851 = vpop.f32.mrb[0].mxu0
      %852 = vmatprep.mubr.f32.mxu0 0.0
      %853 = vmatmul.mubr.f32.gmra.mrb[0].mxu0 %v445
      %v854 = vpop.f32.mrb[0].mxu0
      %v855 = vadd.f32 %v255, %v854
      %v856 = vpop.f32.mrb[0].mxu0
      %857 = vmatprep.mubr.f32.mxu0 0.0
      %858 = vmatmul.mubr.f32.gmra.mrb[0].mxu0 %v448
      %v859 = vpop.f32.mrb[0].mxu0
      %v860 = vadd.f32 %v255, %v859
      %v861 = vpop.f32.mrb[0].mxu0
      %862 = vmatprep.mubr.f32.mxu0 0.0
      %863 = vmatmul.mubr.f32.gmra.mrb[0].mxu0 %v451
      %v864 = vpop.f32.mrb[0].mxu0
      %v865 = vadd.f32 %v255, %v864
      %v866 = vpop.f32.mrb[0].mxu0
      %867 = vmatprep.mubr.f32.mxu0 0.0
      %868 = vmatmul.mubr.f32.gmra.mrb[0].mxu0 %v454
      %v869 = vpop.f32.mrb[0].mxu0
      %v870 = vadd.f32 %v255, %v869
      %v871 = vpop.f32.mrb[0].mxu0
      %872 = vmatprep.mubr.f32.mxu0 0.0
      %873 = vmatmul.mubr.f32.gmra.mrb[0].mxu0 %v457
      %v874 = vpop.f32.mrb[0].mxu0
      %v875 = vadd.f32 %v255, %v874
      %v876 = vpop.f32.mrb[0].mxu0
      %877 = vmatprep.mubr.f32.mxu0 0.0
      %878 = vmatmul.mubr.f32.gmra.mrb[0].mxu0 %v460
      %v879 = vpop.f32.mrb[0].mxu0
      %v880 = vadd.f32 %v255, %v879
      %v881 = vpop.f32.mrb[0].mxu0
      %882 = vmatprep.mubr.f32.mxu0 0.0
      %883 = vmatmul.mubr.f32.gmra.mrb[0].mxu0 %v463
      %v884 = vpop.f32.mrb[0].mxu0
      %v885 = vadd.f32 %v255, %v884
      %v886 = vpop.f32.mrb[0].mxu0
      %887 = vmatprep.mubr.f32.mxu0 0.0
      %888 = vmatmul.mubr.f32.gmra.mrb[0].mxu0 %v466
      %v889 = vpop.f32.mrb[0].mxu0
      %v890 = vadd.f32 %v255, %v889
      %v891 = vpop.f32.mrb[0].mxu0
      %892 = vmatprep.mubr.f32.mxu0 0.0
      %893 = vmatmul.mubr.f32.gmra.mrb[0].mxu0 %v469
      %v894 = vpop.f32.mrb[0].mxu0
      %v895 = vadd.f32 %v255, %v894
      %v896 = vpop.f32.mrb[0].mxu0
      %897 = vmatprep.mubr.f32.mxu0 0.0
      %898 = vmatmul.mubr.f32.gmra.mrb[0].mxu0 %v472
      %v899 = vpop.f32.mrb[0].mxu0
      %v900 = vadd.f32 %v255, %v899
      %v901 = vpop.f32.mrb[0].mxu0
      %902 = vdwg.mxu0
      %v903 = vmax.f32 %v545, 0.0
      %v904 = vmax.f32 %v550, 0.0
      %v905 = vmax.f32 %v555, 0.0
      %v906 = vmax.f32 %v560, 0.0
      %v907 = vmax.f32 %v565, 0.0
      %v908 = vmax.f32 %v570, 0.0
      %v909 = vmax.f32 %v575, 0.0
      %v910 = vmax.f32 %v580, 0.0
      %v911 = vmax.f32 %v585, 0.0
      %v912 = vmax.f32 %v590, 0.0
      %v913 = vmax.f32 %v595, 0.0
      %v914 = vmax.f32 %v600, 0.0
      %v915 = vmax.f32 %v605, 0.0
      %v916 = vmax.f32 %v610, 0.0
      %v917 = vmax.f32 %v615, 0.0
      %v918 = vmax.f32 %v620, 0.0
      %v919 = vmax.f32 %v625, 0.0
      %v920 = vmax.f32 %v630, 0.0
      %v921 = vmax.f32 %v635, 0.0
      %v922 = vmax.f32 %v640, 0.0
      %v923 = vmax.f32 %v645, 0.0
      %v924 = vmax.f32 %v650, 0.0
      %v925 = vmax.f32 %v655, 0.0
      %v926 = vmax.f32 %v660, 0.0
      %v927 = vmax.f32 %v665, 0.0
      %v928 = vmax.f32 %v670, 0.0
      %v929 = vmax.f32 %v675, 0.0
      %v930 = vmax.f32 %v680, 0.0
      %v931 = vmax.f32 %v685, 0.0
      %v932 = vmax.f32 %v690, 0.0
      %v933 = vmax.f32 %v695, 0.0
      %v934 = vmax.f32 %v700, 0.0
      %v935 = vmax.f32 %v705, 0.0
      %v936 = vmax.f32 %v710, 0.0
      %v937 = vmax.f32 %v715, 0.0
      %v938 = vmax.f32 %v720, 0.0
      %v939 = vmax.f32 %v725, 0.0
      %v940 = vmax.f32 %v730, 0.0
      %v941 = vmax.f32 %v735, 0.0
      %v942 = vmax.f32 %v740, 0.0
      %v943 = vmax.f32 %v745, 0.0
      %v944 = vmax.f32 %v750, 0.0
      %v945 = vmax.f32 %v755, 0.0
      %v946 = vmax.f32 %v760, 0.0
      %v947 = vmax.f32 %v765, 0.0
      %v948 = vmax.f32 %v770, 0.0
      %v949 = vmax.f32 %v775, 0.0
      %v950 = vmax.f32 %v780, 0.0
      %v951 = vmax.f32 %v785, 0.0
      %v952 = vmax.f32 %v790, 0.0
      %v953 = vmax.f32 %v795, 0.0
      %v954 = vmax.f32 %v800, 0.0
      %v955 = vmax.f32 %v805, 0.0
      %v956 = vmax.f32 %v810, 0.0
      %v957 = vmax.f32 %v815, 0.0
      %v958 = vmax.f32 %v820, 0.0
      %v959 = vmax.f32 %v825, 0.0
      %v960 = vmax.f32 %v830, 0.0
      %v961 = vmax.f32 %v835, 0.0
      %v962 = vmax.f32 %v840, 0.0
      %v963 = vmax.f32 %v845, 0.0
      %v964 = vmax.f32 %v850, 0.0
      %v965 = vmax.f32 %v855, 0.0
      %v966 = vmax.f32 %v860, 0.0
      %v967 = vmax.f32 %v865, 0.0
      %v968 = vmax.f32 %v870, 0.0
      %v969 = vmax.f32 %v875, 0.0
      %v970 = vmax.f32 %v880, 0.0
      %v971 = vmax.f32 %v885, 0.0
      %v972 = vmax.f32 %v890, 0.0
      %v973 = vmax.f32 %v895, 0.0
      %v974 = vmax.f32 %v900, 0.0
      %v975 = vadd.f32 %v903, 0.0
      %v976 = vadd.f32 %v904, 0.0
      %v977 = vadd.f32 %v905, 0.0
      %v978 = vadd.f32 %v906, 0.0
      %v979 = vadd.f32 %v907, 0.0
      %v980 = vadd.f32 %v908, 0.0
      %v981 = vadd.f32 %v909, 0.0
      %v982 = vadd.f32 %v910, 0.0
      %v983 = vadd.f32 %v911, 0.0
      %v984 = vadd.f32 %v912, 0.0
      %v985 = vadd.f32 %v913, 0.0
      %v986 = vadd.f32 %v914, 0.0
      %v987 = vadd.f32 %v915, 0.0
      %v988 = vadd.f32 %v916, 0.0
      %v989 = vadd.f32 %v917, 0.0
      %v990 = vadd.f32 %v918, 0.0
      %v991 = vadd.f32 %v919, 0.0
      %v992 = vadd.f32 %v920, 0.0
      %v993 = vadd.f32 %v921, 0.0
      %v994 = vadd.f32 %v922, 0.0
      %v995 = vadd.f32 %v923, 0.0
      %v996 = vadd.f32 %v924, 0.0
      %v997 = vadd.f32 %v925, 0.0
      %v998 = vadd.f32 %v926, 0.0
      %v999 = vadd.f32 %v927, 0.0
      %v1000 = vadd.f32 %v928, 0.0
      %v1001 = vadd.f32 %v929, 0.0
      %v1002 = vadd.f32 %v930, 0.0
      %v1003 = vadd.f32 %v931, 0.0
      %v1004 = vadd.f32 %v932, 0.0
      %v1005 = vadd.f32 %v933, 0.0
      %v1006 = vadd.f32 %v934, 0.0
      %v1007 = vadd.f32 %v935, 0.0
      %v1008 = vadd.f32 %v936, 0.0
      %v1009 = vadd.f32 %v937, 0.0
      %v1010 = vadd.f32 %v938, 0.0
      %v1011 = vadd.f32 %v939, 0.0
      %v1012 = vadd.f32 %v940, 0.0
      %v1013 = vadd.f32 %v941, 0.0
      %v1014 = vadd.f32 %v942, 0.0
      %v1015 = vadd.f32 %v943, 0.0
      %v1016 = vadd.f32 %v944, 0.0
      %v1017 = vadd.f32 %v945, 0.0
      %v1018 = vadd.f32 %v946, 0.0
      %v1019 = vadd.f32 %v947, 0.0
      %v1020 = vadd.f32 %v948, 0.0
      %v1021 = vadd.f32 %v949, 0.0
      %v1022 = vadd.f32 %v950, 0.0
      %v1023 = vadd.f32 %v951, 0.0
      %v1024 = vadd.f32 %v952, 0.0
      %v1025 = vadd.f32 %v953, 0.0
      %v1026 = vadd.f32 %v954, 0.0
      %v1027 = vadd.f32 %v955, 0.0
      %v1028 = vadd.f32 %v956, 0.0
      %v1029 = vadd.f32 %v957, 0.0
      %v1030 = vadd.f32 %v958, 0.0
      %v1031 = vadd.f32 %v959, 0.0
      %v1032 = vadd.f32 %v960, 0.0
      %v1033 = vadd.f32 %v961, 0.0
      %v1034 = vadd.f32 %v962, 0.0
      %v1035 = vadd.f32 %v963, 0.0
      %v1036 = vadd.f32 %v964, 0.0
      %v1037 = vadd.f32 %v965, 0.0
      %v1038 = vadd.f32 %v966, 0.0
      %v1039 = vadd.f32 %v967, 0.0
      %v1040 = vadd.f32 %v968, 0.0
      %v1041 = vadd.f32 %v969, 0.0
      %v1042 = vadd.f32 %v970, 0.0
      %v1043 = vadd.f32 %v971, 0.0
      %v1044 = vadd.f32 %v972, 0.0
      %v1045 = vadd.f32 %v973, 0.0
      %v1046 = vadd.f32 %v974, 0.0
      %s1047 = scalar_lea.vmem %s169, 576
      %v1048 = vld [vmem:[%s1047] sm:$0xff]
      %v1049 = vld [vmem:[%s1047 + $0x8] sm:$0xff]
      %v1050 = vld [vmem:[%s1047 + $0x10] sm:$0xff]
      %v1051 = vld [vmem:[%s1047 + $0x18] sm:$0xff]
      %v1052 = vld [vmem:[%s1047 + $0x20] sm:$0xff]
      %v1053 = vld [vmem:[%s1047 + $0x28] sm:$0xff]
      %v1054 = vld [vmem:[%s1047 + $0x30] sm:$0xff]
      %v1055 = vld [vmem:[%s1047 + $0x38] sm:$0xff]
      %v1056 = vld [vmem:[%s1047 + $0x40] sm:$0xff]
      %v1057 = vld [vmem:[%s1047 + $0x48] sm:$0xff]
      %v1058 = vld [vmem:[%s1047 + $0x50] sm:$0xff]
      %v1059 = vld [vmem:[%s1047 + $0x58] sm:$0xff]
      %v1060 = vld [vmem:[%s1047 + $0x60] sm:$0xff]
      %v1061 = vld [vmem:[%s1047 + $0x68] sm:$0xff]
      %v1062 = vld [vmem:[%s1047 + $0x70] sm:$0xff]
      %v1063 = vld [vmem:[%s1047 + $0x78] sm:$0xff]
      %v1064 = vld [vmem:[%s1047 + $0x80] sm:$0xff]
      %v1065 = vld [vmem:[%s1047 + $0x88] sm:$0xff]
      %v1066 = vld [vmem:[%s1047 + $0x90] sm:$0xff]
      %v1067 = vld [vmem:[%s1047 + $0x98] sm:$0xff]
      %v1068 = vld [vmem:[%s1047 + $0xa0] sm:$0xff]
      %v1069 = vld [vmem:[%s1047 + $0xa8] sm:$0xff]
      %v1070 = vld [vmem:[%s1047 + $0xb0] sm:$0xff]
      %v1071 = vld [vmem:[%s1047 + $0xb8] sm:$0xff]
      %v1072 = vld [vmem:[%s1047 + $0xc0] sm:$0xff]
      %v1073 = vld [vmem:[%s1047 + $0xc8] sm:$0xff]
      %v1074 = vld [vmem:[%s1047 + $0xd0] sm:$0xff]
      %v1075 = vld [vmem:[%s1047 + $0xd8] sm:$0xff]
      %v1076 = vld [vmem:[%s1047 + $0xe0] sm:$0xff]
      %v1077 = vld [vmem:[%s1047 + $0xe8] sm:$0xff]
      %v1078 = vld [vmem:[%s1047 + $0xf0] sm:$0xff]
      %v1079 = vld [vmem:[%s1047 + $0xf8] sm:$0xff]
      %v1080 = vld [vmem:[%s1047 + $0x100] sm:$0xff]
      %v1081 = vld [vmem:[%s1047 + $0x108] sm:$0xff]
      %v1082 = vld [vmem:[%s1047 + $0x110] sm:$0xff]
      %v1083 = vld [vmem:[%s1047 + $0x118] sm:$0xff]
      %v1084 = vld [vmem:[%s1047 + $0x120] sm:$0xff]
      %v1085 = vld [vmem:[%s1047 + $0x128] sm:$0xff]
      %v1086 = vld [vmem:[%s1047 + $0x130] sm:$0xff]
      %v1087 = vld [vmem:[%s1047 + $0x138] sm:$0xff]
      %v1088 = vld [vmem:[%s1047 + $0x140] sm:$0xff]
      %v1089 = vld [vmem:[%s1047 + $0x148] sm:$0xff]
      %v1090 = vld [vmem:[%s1047 + $0x150] sm:$0xff]
      %v1091 = vld [vmem:[%s1047 + $0x158] sm:$0xff]
      %v1092 = vld [vmem:[%s1047 + $0x160] sm:$0xff]
      %v1093 = vld [vmem:[%s1047 + $0x168] sm:$0xff]
      %v1094 = vld [vmem:[%s1047 + $0x170] sm:$0xff]
      %v1095 = vld [vmem:[%s1047 + $0x178] sm:$0xff]
      %v1096 = vld [vmem:[%s1047 + $0x180] sm:$0xff]
      %v1097 = vld [vmem:[%s1047 + $0x188] sm:$0xff]
      %v1098 = vld [vmem:[%s1047 + $0x190] sm:$0xff]
      %v1099 = vld [vmem:[%s1047 + $0x198] sm:$0xff]
      %v1100 = vld [vmem:[%s1047 + $0x1a0] sm:$0xff]
      %v1101 = vld [vmem:[%s1047 + $0x1a8] sm:$0xff]
      %v1102 = vld [vmem:[%s1047 + $0x1b0] sm:$0xff]
      %v1103 = vld [vmem:[%s1047 + $0x1b8] sm:$0xff]
      %v1104 = vld [vmem:[%s1047 + $0x1c0] sm:$0xff]
      %v1105 = vld [vmem:[%s1047 + $0x1c8] sm:$0xff]
      %v1106 = vld [vmem:[%s1047 + $0x1d0] sm:$0xff]
      %v1107 = vld [vmem:[%s1047 + $0x1d8] sm:$0xff]
      %v1108 = vld [vmem:[%s1047 + $0x1e0] sm:$0xff]
      %v1109 = vld [vmem:[%s1047 + $0x1e8] sm:$0xff]
      %v1110 = vld [vmem:[%s1047 + $0x1f0] sm:$0xff]
      %v1111 = vld [vmem:[%s1047 + $0x1f8] sm:$0xff]
      %v1112 = vld [vmem:[%s1047 + $0x200] sm:$0xff]
      %v1113 = vld [vmem:[%s1047 + $0x208] sm:$0xff]
      %v1114 = vld [vmem:[%s1047 + $0x210] sm:$0xff]
      %v1115 = vld [vmem:[%s1047 + $0x218] sm:$0xff]
      %v1116 = vld [vmem:[%s1047 + $0x220] sm:$0xff]
      %v1117 = vld [vmem:[%s1047 + $0x228] sm:$0xff]
      %v1118 = vld [vmem:[%s1047 + $0x230] sm:$0xff]
      %v1119 = vld [vmem:[%s1047 + $0x238] sm:$0xff]
      %v1121 = vsel %vm257, %v1048, 0
      %v1124 = vsel %vm257, %v1049, 0
      %v1127 = vsel %vm257, %v1050, 0
      %v1130 = vsel %vm257, %v1051, 0
      %v1133 = vsel %vm257, %v1052, 0
      %v1136 = vsel %vm257, %v1053, 0
      %v1139 = vsel %vm257, %v1054, 0
      %v1142 = vsel %vm257, %v1055, 0
      %v1145 = vsel %vm257, %v1056, 0
      %v1148 = vsel %vm257, %v1057, 0
      %v1151 = vsel %vm257, %v1058, 0
      %v1154 = vsel %vm257, %v1059, 0
      %v1157 = vsel %vm257, %v1060, 0
      %v1160 = vsel %vm257, %v1061, 0
      %v1163 = vsel %vm257, %v1062, 0
      %v1166 = vsel %vm257, %v1063, 0
      %v1169 = vsel %vm257, %v1064, 0
      %v1172 = vsel %vm257, %v1065, 0
      %v1175 = vsel %vm257, %v1066, 0
      %v1178 = vsel %vm257, %v1067, 0
      %v1181 = vsel %vm257, %v1068, 0
      %v1184 = vsel %vm257, %v1069, 0
      %v1187 = vsel %vm257, %v1070, 0
      %v1190 = vsel %vm257, %v1071, 0
      %v1193 = vsel %vm257, %v1072, 0
      %v1196 = vsel %vm257, %v1073, 0
      %v1199 = vsel %vm257, %v1074, 0
      %v1202 = vsel %vm257, %v1075, 0
      %v1205 = vsel %vm257, %v1076, 0
      %v1208 = vsel %vm257, %v1077, 0
      %v1211 = vsel %vm257, %v1078, 0
      %v1214 = vsel %vm257, %v1079, 0
      %v1217 = vsel %vm257, %v1080, 0
      %v1220 = vsel %vm257, %v1081, 0
      %v1223 = vsel %vm257, %v1082, 0
      %v1226 = vsel %vm257, %v1083, 0
      %v1229 = vsel %vm257, %v1084, 0
      %v1232 = vsel %vm257, %v1085, 0
      %v1235 = vsel %vm257, %v1086, 0
      %v1238 = vsel %vm257, %v1087, 0
      %v1241 = vsel %vm257, %v1088, 0
      %v1244 = vsel %vm257, %v1089, 0
      %v1247 = vsel %vm257, %v1090, 0
      %v1250 = vsel %vm257, %v1091, 0
      %v1253 = vsel %vm257, %v1092, 0
      %v1256 = vsel %vm257, %v1093, 0
      %v1259 = vsel %vm257, %v1094, 0
      %v1262 = vsel %vm257, %v1095, 0
      %v1265 = vsel %vm257, %v1096, 0
      %v1268 = vsel %vm257, %v1097, 0
      %v1271 = vsel %vm257, %v1098, 0
      %v1274 = vsel %vm257, %v1099, 0
      %v1277 = vsel %vm257, %v1100, 0
      %v1280 = vsel %vm257, %v1101, 0
      %v1283 = vsel %vm257, %v1102, 0
      %v1286 = vsel %vm257, %v1103, 0
      %v1289 = vsel %vm257, %v1104, 0
      %v1292 = vsel %vm257, %v1105, 0
      %v1295 = vsel %vm257, %v1106, 0
      %v1298 = vsel %vm257, %v1107, 0
      %v1301 = vsel %vm257, %v1108, 0
      %v1304 = vsel %vm257, %v1109, 0
      %v1307 = vsel %vm257, %v1110, 0
      %v1310 = vsel %vm257, %v1111, 0
      %v1313 = vsel %vm257, %v1112, 0
      %v1316 = vsel %vm257, %v1113, 0
      %v1319 = vsel %vm257, %v1114, 0
      %v1322 = vsel %vm257, %v1115, 0
      %v1325 = vsel %vm257, %v1116, 0
      %v1328 = vsel %vm257, %v1117, 0
      %v1331 = vsel %vm257, %v1118, 0
      %v1334 = vsel %vm257, %v1119, 0
      %1336 = vmatprep.subr.mxu0 0.0
      %1337 = vmatpush1.msra.mxu0 %v176
      %1338 = vmatprep.subr.mxu0 0.0
      %1339 = vmatpush1.msra.mxu0 %v476
      %1340 = vmatprep.subr.mxu0 0.0
      %1341 = vmatpush1.msra.mxu0 0.0
      %1342 = vmatprep.subr.mxu0 0.0
      %1343 = vmatpush1.msra.mxu0 0.0
      %1344 = vmatprep.subr.mxu0 0.0
      %1345 = vmatpush1.msra.mxu0 0.0
      %1346 = vmatprep.subr.mxu0 0.0
      %1347 = vmatpush1.msra.mxu0 0.0
      %1348 = vmatprep.subr.mxu0 0.0
      %1349 = vmatpush1.msra.mxu0 0.0
      %1350 = vmatprep.subr.mxu0 0.0
      %1351 = vmatpush1.msra.mxu0 0.0
      %1352 = vmatprep.subr.mxu0 0.0
      %1353 = vmatpush1.msra.mxu0 0.0
      %1354 = vmatprep.subr.mxu0 0.0
      %1355 = vmatpush1.msra.mxu0 0.0
      %1356 = vmatprep.subr.mxu0 0.0
      %1357 = vmatpush1.msra.mxu0 0.0
      %1358 = vmatprep.subr.mxu0 0.0
      %1359 = vmatpush1.msra.mxu0 0.0
      %1360 = vmatprep.subr.mxu0 0.0
      %1361 = vmatpush1.msra.mxu0 0.0
      %1362 = vmatprep.subr.mxu0 0.0
      %1363 = vmatpush1.msra.mxu0 0.0
      %1364 = vmatprep.subr.mxu0 0.0
      %1365 = vmatpush1.msra.mxu0 0.0
      %1366 = vmatprep.subr.mxu0 0.0
      %1367 = vmatpush1.msra.mxu0 0.0
      %1368 = vmatprep.subr.mxu0 0.0
      %1369 = vmatpush1.msra.mxu0 0.0
      %1370 = vmatprep.subr.mxu0 0.0
      %1371 = vmatpush1.msra.mxu0 0.0
      %1372 = vmatprep.subr.mxu0 0.0
      %1373 = vmatpush1.msra.mxu0 0.0
      %1374 = vmatprep.subr.mxu0 0.0
      %1375 = vmatpush1.msra.mxu0 0.0
      %1376 = vmatprep.subr.mxu0 0.0
      %1377 = vmatpush1.msra.mxu0 0.0
      %1378 = vmatprep.subr.mxu0 0.0
      %1379 = vmatpush1.msra.mxu0 0.0
      %1380 = vmatprep.subr.mxu0 0.0
      %1381 = vmatpush1.msra.mxu0 0.0
      %1382 = vmatprep.subr.mxu0 0.0
      %1383 = vmatpush1.msra.mxu0 0.0
      %1384 = vmatprep.subr.mxu0 0.0
      %1385 = vmatpush1.msra.mxu0 0.0
      %1386 = vmatprep.subr.mxu0 0.0
      %1387 = vmatpush1.msra.mxu0 0.0
      %1388 = vmatprep.subr.mxu0 0.0
      %1389 = vmatpush1.msra.mxu0 0.0
      %1390 = vmatprep.subr.mxu0 0.0
      %1391 = vmatpush1.msra.mxu0 0.0
      %1392 = vmatprep.subr.mxu0 0.0
      %1393 = vmatpush1.msra.mxu0 0.0
      %1394 = vmatprep.subr.mxu0 0.0
      %1395 = vmatpush1.msra.mxu0 0.0
      %1396 = vmatprep.subr.mxu0 0.0
      %1397 = vmatpush1.msra.mxu0 0.0
      %1398 = vmatprep.subr.mxu0 0.0
      %1399 = vmatpush1.msra.mxu0 0.0
      %1400 = vmatprep.mubr.f32.mxu0 0.0
      %1401 = vmatmul.mubr.f32.gmra.mrb[0].mxu0 %v1121
      %v1402 = vpop.f32.mrb[0].mxu0
      %v1403 = vadd.f32 %v255, %v1402
      %v1404 = vpop.f32.mrb[0].mxu0
      %1405 = vmatprep.mubr.f32.mxu0 0.0
      %1406 = vmatmul.mubr.f32.gmra.mrb[0].mxu0 %v1124
      %v1407 = vpop.f32.mrb[0].mxu0
      %v1408 = vadd.f32 %v255, %v1407
      %v1409 = vpop.f32.mrb[0].mxu0
      %1410 = vmatprep.mubr.f32.mxu0 0.0
      %1411 = vmatmul.mubr.f32.gmra.mrb[0].mxu0 %v1127
      %v1412 = vpop.f32.mrb[0].mxu0
      %v1413 = vadd.f32 %v255, %v1412
      %v1414 = vpop.f32.mrb[0].mxu0
      %1415 = vmatprep.mubr.f32.mxu0 0.0
      %1416 = vmatmul.mubr.f32.gmra.mrb[0].mxu0 %v1130
      %v1417 = vpop.f32.mrb[0].mxu0
      %v1418 = vadd.f32 %v255, %v1417
      %v1419 = vpop.f32.mrb[0].mxu0
      %1420 = vmatprep.mubr.f32.mxu0 0.0
      %1421 = vmatmul.mubr.f32.gmra.mrb[0].mxu0 %v1133
      %v1422 = vpop.f32.mrb[0].mxu0
      %v1423 = vadd.f32 %v255, %v1422
      %v1424 = vpop.f32.mrb[0].mxu0
      %1425 = vmatprep.mubr.f32.mxu0 0.0
      %1426 = vmatmul.mubr.f32.gmra.mrb[0].mxu0 %v1136
      %v1427 = vpop.f32.mrb[0].mxu0
      %v1428 = vadd.f32 %v255, %v1427
      %v1429 = vpop.f32.mrb[0].mxu0
      %1430 = vmatprep.mubr.f32.mxu0 0.0
      %1431 = vmatmul.mubr.f32.gmra.mrb[0].mxu0 %v1139
      %v1432 = vpop.f32.mrb[0].mxu0
      %v1433 = vadd.f32 %v255, %v1432
      %v1434 = vpop.f32.mrb[0].mxu0
      %1435 = vmatprep.mubr.f32.mxu0 0.0
      %1436 = vmatmul.mubr.f32.gmra.mrb[0].mxu0 %v1142
      %v1437 = vpop.f32.mrb[0].mxu0
      %v1438 = vadd.f32 %v255, %v1437
      %v1439 = vpop.f32.mrb[0].mxu0
      %1440 = vmatprep.mubr.f32.mxu0 0.0
      %1441 = vmatmul.mubr.f32.gmra.mrb[0].mxu0 %v1145
      %v1442 = vpop.f32.mrb[0].mxu0
      %v1443 = vadd.f32 %v255, %v1442
      %v1444 = vpop.f32.mrb[0].mxu0
      %1445 = vmatprep.mubr.f32.mxu0 0.0
      %1446 = vmatmul.mubr.f32.gmra.mrb[0].mxu0 %v1148
      %v1447 = vpop.f32.mrb[0].mxu0
      %v1448 = vadd.f32 %v255, %v1447
      %v1449 = vpop.f32.mrb[0].mxu0
      %1450 = vmatprep.mubr.f32.mxu0 0.0
      %1451 = vmatmul.mubr.f32.gmra.mrb[0].mxu0 %v1151
      %v1452 = vpop.f32.mrb[0].mxu0
      %v1453 = vadd.f32 %v255, %v1452
      %v1454 = vpop.f32.mrb[0].mxu0
      %1455 = vmatprep.mubr.f32.mxu0 0.0
      %1456 = vmatmul.mubr.f32.gmra.mrb[0].mxu0 %v1154
      %v1457 = vpop.f32.mrb[0].mxu0
      %v1458 = vadd.f32 %v255, %v1457
      %v1459 = vpop.f32.mrb[0].mxu0
      %1460 = vmatprep.mubr.f32.mxu0 0.0
      %1461 = vmatmul.mubr.f32.gmra.mrb[0].mxu0 %v1157
      %v1462 = vpop.f32.mrb[0].mxu0
      %v1463 = vadd.f32 %v255, %v1462
      %v1464 = vpop.f32.mrb[0].mxu0
      %1465 = vmatprep.mubr.f32.mxu0 0.0
      %1466 = vmatmul.mubr.f32.gmra.mrb[0].mxu0 %v1160
      %v1467 = vpop.f32.mrb[0].mxu0
      %v1468 = vadd.f32 %v255, %v1467
      %v1469 = vpop.f32.mrb[0].mxu0
      %1470 = vmatprep.mubr.f32.mxu0 0.0
      %1471 = vmatmul.mubr.f32.gmra.mrb[0].mxu0 %v1163
      %v1472 = vpop.f32.mrb[0].mxu0
      %v1473 = vadd.f32 %v255, %v1472
      %v1474 = vpop.f32.mrb[0].mxu0
      %1475 = vmatprep.mubr.f32.mxu0 0.0
      %1476 = vmatmul.mubr.f32.gmra.mrb[0].mxu0 %v1166
      %v1477 = vpop.f32.mrb[0].mxu0
      %v1478 = vadd.f32 %v255, %v1477
      %v1479 = vpop.f32.mrb[0].mxu0
      %1480 = vmatprep.mubr.f32.mxu0 0.0
      %1481 = vmatmul.mubr.f32.gmra.mrb[0].mxu0 %v1169
      %v1482 = vpop.f32.mrb[0].mxu0
      %v1483 = vadd.f32 %v255, %v1482
      %v1484 = vpop.f32.mrb[0].mxu0
      %1485 = vmatprep.mubr.f32.mxu0 0.0
      %1486 = vmatmul.mubr.f32.gmra.mrb[0].mxu0 %v1172
      %v1487 = vpop.f32.mrb[0].mxu0
      %v1488 = vadd.f32 %v255, %v1487
      %v1489 = vpop.f32.mrb[0].mxu0
      %1490 = vmatprep.mubr.f32.mxu0 0.0
      %1491 = vmatmul.mubr.f32.gmra.mrb[0].mxu0 %v1175
      %v1492 = vpop.f32.mrb[0].mxu0
      %v1493 = vadd.f32 %v255, %v1492
      %v1494 = vpop.f32.mrb[0].mxu0
      %1495 = vmatprep.mubr.f32.mxu0 0.0
      %1496 = vmatmul.mubr.f32.gmra.mrb[0].mxu0 %v1178
      %v1497 = vpop.f32.mrb[0].mxu0
      %v1498 = vadd.f32 %v255, %v1497
      %v1499 = vpop.f32.mrb[0].mxu0
      %1500 = vmatprep.mubr.f32.mxu0 0.0
      %1501 = vmatmul.mubr.f32.gmra.mrb[0].mxu0 %v1181
      %v1502 = vpop.f32.mrb[0].mxu0
      %v1503 = vadd.f32 %v255, %v1502
      %v1504 = vpop.f32.mrb[0].mxu0
      %1505 = vmatprep.mubr.f32.mxu0 0.0
      %1506 = vmatmul.mubr.f32.gmra.mrb[0].mxu0 %v1184
      %v1507 = vpop.f32.mrb[0].mxu0
      %v1508 = vadd.f32 %v255, %v1507
      %v1509 = vpop.f32.mrb[0].mxu0
      %1510 = vmatprep.mubr.f32.mxu0 0.0
      %1511 = vmatmul.mubr.f32.gmra.mrb[0].mxu0 %v1187
      %v1512 = vpop.f32.mrb[0].mxu0
      %v1513 = vadd.f32 %v255, %v1512
      %v1514 = vpop.f32.mrb[0].mxu0
      %1515 = vmatprep.mubr.f32.mxu0 0.0
      %1516 = vmatmul.mubr.f32.gmra.mrb[0].mxu0 %v1190
      %v1517 = vpop.f32.mrb[0].mxu0
      %v1518 = vadd.f32 %v255, %v1517
      %v1519 = vpop.f32.mrb[0].mxu0
      %1520 = vmatprep.mubr.f32.mxu0 0.0
      %1521 = vmatmul.mubr.f32.gmra.mrb[0].mxu0 %v1193
      %v1522 = vpop.f32.mrb[0].mxu0
      %v1523 = vadd.f32 %v255, %v1522
      %v1524 = vpop.f32.mrb[0].mxu0
      %1525 = vmatprep.mubr.f32.mxu0 0.0
      %1526 = vmatmul.mubr.f32.gmra.mrb[0].mxu0 %v1196
      %v1527 = vpop.f32.mrb[0].mxu0
      %v1528 = vadd.f32 %v255, %v1527
      %v1529 = vpop.f32.mrb[0].mxu0
      %1530 = vmatprep.mubr.f32.mxu0 0.0
      %1531 = vmatmul.mubr.f32.gmra.mrb[0].mxu0 %v1199
      %v1532 = vpop.f32.mrb[0].mxu0
      %v1533 = vadd.f32 %v255, %v1532
      %v1534 = vpop.f32.mrb[0].mxu0
      %1535 = vmatprep.mubr.f32.mxu0 0.0
      %1536 = vmatmul.mubr.f32.gmra.mrb[0].mxu0 %v1202
      %v1537 = vpop.f32.mrb[0].mxu0
      %v1538 = vadd.f32 %v255, %v1537
      %v1539 = vpop.f32.mrb[0].mxu0
      %1540 = vmatprep.mubr.f32.mxu0 0.0
      %1541 = vmatmul.mubr.f32.gmra.mrb[0].mxu0 %v1205
      %v1542 = vpop.f32.mrb[0].mxu0
      %v1543 = vadd.f32 %v255, %v1542
      %v1544 = vpop.f32.mrb[0].mxu0
      %1545 = vmatprep.mubr.f32.mxu0 0.0
      %1546 = vmatmul.mubr.f32.gmra.mrb[0].mxu0 %v1208
      %v1547 = vpop.f32.mrb[0].mxu0
      %v1548 = vadd.f32 %v255, %v1547
      %v1549 = vpop.f32.mrb[0].mxu0
      %1550 = vmatprep.mubr.f32.mxu0 0.0
      %1551 = vmatmul.mubr.f32.gmra.mrb[0].mxu0 %v1211
      %v1552 = vpop.f32.mrb[0].mxu0
      %v1553 = vadd.f32 %v255, %v1552
      %v1554 = vpop.f32.mrb[0].mxu0
      %1555 = vmatprep.mubr.f32.mxu0 0.0
      %1556 = vmatmul.mubr.f32.gmra.mrb[0].mxu0 %v1214
      %v1557 = vpop.f32.mrb[0].mxu0
      %v1558 = vadd.f32 %v255, %v1557
      %v1559 = vpop.f32.mrb[0].mxu0
      %1560 = vmatprep.mubr.f32.mxu0 0.0
      %1561 = vmatmul.mubr.f32.gmra.mrb[0].mxu0 %v1217
      %v1562 = vpop.f32.mrb[0].mxu0
      %v1563 = vadd.f32 %v255, %v1562
      %v1564 = vpop.f32.mrb[0].mxu0
      %1565 = vmatprep.mubr.f32.mxu0 0.0
      %1566 = vmatmul.mubr.f32.gmra.mrb[0].mxu0 %v1220
      %v1567 = vpop.f32.mrb[0].mxu0
      %v1568 = vadd.f32 %v255, %v1567
      %v1569 = vpop.f32.mrb[0].mxu0
      %1570 = vmatprep.mubr.f32.mxu0 0.0
      %1571 = vmatmul.mubr.f32.gmra.mrb[0].mxu0 %v1223
      %v1572 = vpop.f32.mrb[0].mxu0
      %v1573 = vadd.f32 %v255, %v1572
      %v1574 = vpop.f32.mrb[0].mxu0
      %1575 = vmatprep.mubr.f32.mxu0 0.0
      %1576 = vmatmul.mubr.f32.gmra.mrb[0].mxu0 %v1226
      %v1577 = vpop.f32.mrb[0].mxu0
      %v1578 = vadd.f32 %v255, %v1577
      %v1579 = vpop.f32.mrb[0].mxu0
      %1580 = vmatprep.mubr.f32.mxu0 0.0
      %1581 = vmatmul.mubr.f32.gmra.mrb[0].mxu0 %v1229
      %v1582 = vpop.f32.mrb[0].mxu0
      %v1583 = vadd.f32 %v255, %v1582
      %v1584 = vpop.f32.mrb[0].mxu0
      %1585 = vmatprep.mubr.f32.mxu0 0.0
      %1586 = vmatmul.mubr.f32.gmra.mrb[0].mxu0 %v1232
      %v1587 = vpop.f32.mrb[0].mxu0
      %v1588 = vadd.f32 %v255, %v1587
      %v1589 = vpop.f32.mrb[0].mxu0
      %1590 = vmatprep.mubr.f32.mxu0 0.0
      %1591 = vmatmul.mubr.f32.gmra.mrb[0].mxu0 %v1235
      %v1592 = vpop.f32.mrb[0].mxu0
      %v1593 = vadd.f32 %v255, %v1592
      %v1594 = vpop.f32.mrb[0].mxu0
      %1595 = vmatprep.mubr.f32.mxu0 0.0
      %1596 = vmatmul.mubr.f32.gmra.mrb[0].mxu0 %v1238
      %v1597 = vpop.f32.mrb[0].mxu0
      %v1598 = vadd.f32 %v255, %v1597
      %v1599 = vpop.f32.mrb[0].mxu0
      %1600 = vmatprep.mubr.f32.mxu0 0.0
      %1601 = vmatmul.mubr.f32.gmra.mrb[0].mxu0 %v1241
      %v1602 = vpop.f32.mrb[0].mxu0
      %v1603 = vadd.f32 %v255, %v1602
      %v1604 = vpop.f32.mrb[0].mxu0
      %1605 = vmatprep.mubr.f32.mxu0 0.0
      %1606 = vmatmul.mubr.f32.gmra.mrb[0].mxu0 %v1244
      %v1607 = vpop.f32.mrb[0].mxu0
      %v1608 = vadd.f32 %v255, %v1607
      %v1609 = vpop.f32.mrb[0].mxu0
      %1610 = vmatprep.mubr.f32.mxu0 0.0
      %1611 = vmatmul.mubr.f32.gmra.mrb[0].mxu0 %v1247
      %v1612 = vpop.f32.mrb[0].mxu0
      %v1613 = vadd.f32 %v255, %v1612
      %v1614 = vpop.f32.mrb[0].mxu0
      %1615 = vmatprep.mubr.f32.mxu0 0.0
      %1616 = vmatmul.mubr.f32.gmra.mrb[0].mxu0 %v1250
      %v1617 = vpop.f32.mrb[0].mxu0
      %v1618 = vadd.f32 %v255, %v1617
      %v1619 = vpop.f32.mrb[0].mxu0
      %1620 = vmatprep.mubr.f32.mxu0 0.0
      %1621 = vmatmul.mubr.f32.gmra.mrb[0].mxu0 %v1253
      %v1622 = vpop.f32.mrb[0].mxu0
      %v1623 = vadd.f32 %v255, %v1622
      %v1624 = vpop.f32.mrb[0].mxu0
      %1625 = vmatprep.mubr.f32.mxu0 0.0
      %1626 = vmatmul.mubr.f32.gmra.mrb[0].mxu0 %v1256
      %v1627 = vpop.f32.mrb[0].mxu0
      %v1628 = vadd.f32 %v255, %v1627
      %v1629 = vpop.f32.mrb[0].mxu0
      %1630 = vmatprep.mubr.f32.mxu0 0.0
      %1631 = vmatmul.mubr.f32.gmra.mrb[0].mxu0 %v1259
      %v1632 = vpop.f32.mrb[0].mxu0
      %v1633 = vadd.f32 %v255, %v1632
      %v1634 = vpop.f32.mrb[0].mxu0
      %1635 = vmatprep.mubr.f32.mxu0 0.0
      %1636 = vmatmul.mubr.f32.gmra.mrb[0].mxu0 %v1262
      %v1637 = vpop.f32.mrb[0].mxu0
      %v1638 = vadd.f32 %v255, %v1637
      %v1639 = vpop.f32.mrb[0].mxu0
      %1640 = vmatprep.mubr.f32.mxu0 0.0
      %1641 = vmatmul.mubr.f32.gmra.mrb[0].mxu0 %v1265
      %v1642 = vpop.f32.mrb[0].mxu0
      %v1643 = vadd.f32 %v255, %v1642
      %v1644 = vpop.f32.mrb[0].mxu0
      %1645 = vmatprep.mubr.f32.mxu0 0.0
      %1646 = vmatmul.mubr.f32.gmra.mrb[0].mxu0 %v1268
      %v1647 = vpop.f32.mrb[0].mxu0
      %v1648 = vadd.f32 %v255, %v1647
      %v1649 = vpop.f32.mrb[0].mxu0
      %1650 = vmatprep.mubr.f32.mxu0 0.0
      %1651 = vmatmul.mubr.f32.gmra.mrb[0].mxu0 %v1271
      %v1652 = vpop.f32.mrb[0].mxu0
      %v1653 = vadd.f32 %v255, %v1652
      %v1654 = vpop.f32.mrb[0].mxu0
      %1655 = vmatprep.mubr.f32.mxu0 0.0
      %1656 = vmatmul.mubr.f32.gmra.mrb[0].mxu0 %v1274
      %v1657 = vpop.f32.mrb[0].mxu0
      %v1658 = vadd.f32 %v255, %v1657
      %v1659 = vpop.f32.mrb[0].mxu0
      %1660 = vmatprep.mubr.f32.mxu0 0.0
      %1661 = vmatmul.mubr.f32.gmra.mrb[0].mxu0 %v1277
      %v1662 = vpop.f32.mrb[0].mxu0
      %v1663 = vadd.f32 %v255, %v1662
      %v1664 = vpop.f32.mrb[0].mxu0
      %1665 = vmatprep.mubr.f32.mxu0 0.0
      %1666 = vmatmul.mubr.f32.gmra.mrb[0].mxu0 %v1280
      %v1667 = vpop.f32.mrb[0].mxu0
      %v1668 = vadd.f32 %v255, %v1667
      %v1669 = vpop.f32.mrb[0].mxu0
      %1670 = vmatprep.mubr.f32.mxu0 0.0
      %1671 = vmatmul.mubr.f32.gmra.mrb[0].mxu0 %v1283
      %v1672 = vpop.f32.mrb[0].mxu0
      %v1673 = vadd.f32 %v255, %v1672
      %v1674 = vpop.f32.mrb[0].mxu0
      %1675 = vmatprep.mubr.f32.mxu0 0.0
      %1676 = vmatmul.mubr.f32.gmra.mrb[0].mxu0 %v1286
      %v1677 = vpop.f32.mrb[0].mxu0
      %v1678 = vadd.f32 %v255, %v1677
      %v1679 = vpop.f32.mrb[0].mxu0
      %1680 = vmatprep.mubr.f32.mxu0 0.0
      %1681 = vmatmul.mubr.f32.gmra.mrb[0].mxu0 %v1289
      %v1682 = vpop.f32.mrb[0].mxu0
      %v1683 = vadd.f32 %v255, %v1682
      %v1684 = vpop.f32.mrb[0].mxu0
      %1685 = vmatprep.mubr.f32.mxu0 0.0
      %1686 = vmatmul.mubr.f32.gmra.mrb[0].mxu0 %v1292
      %v1687 = vpop.f32.mrb[0].mxu0
      %v1688 = vadd.f32 %v255, %v1687
      %v1689 = vpop.f32.mrb[0].mxu0
      %1690 = vmatprep.mubr.f32.mxu0 0.0
      %1691 = vmatmul.mubr.f32.gmra.mrb[0].mxu0 %v1295
      %v1692 = vpop.f32.mrb[0].mxu0
      %v1693 = vadd.f32 %v255, %v1692
      %v1694 = vpop.f32.mrb[0].mxu0
      %1695 = vmatprep.mubr.f32.mxu0 0.0
      %1696 = vmatmul.mubr.f32.gmra.mrb[0].mxu0 %v1298
      %v1697 = vpop.f32.mrb[0].mxu0
      %v1698 = vadd.f32 %v255, %v1697
      %v1699 = vpop.f32.mrb[0].mxu0
      %1700 = vmatprep.mubr.f32.mxu0 0.0
      %1701 = vmatmul.mubr.f32.gmra.mrb[0].mxu0 %v1301
      %v1702 = vpop.f32.mrb[0].mxu0
      %v1703 = vadd.f32 %v255, %v1702
      %v1704 = vpop.f32.mrb[0].mxu0
      %1705 = vmatprep.mubr.f32.mxu0 0.0
      %1706 = vmatmul.mubr.f32.gmra.mrb[0].mxu0 %v1304
      %v1707 = vpop.f32.mrb[0].mxu0
      %v1708 = vadd.f32 %v255, %v1707
      %v1709 = vpop.f32.mrb[0].mxu0
      %1710 = vmatprep.mubr.f32.mxu0 0.0
      %1711 = vmatmul.mubr.f32.gmra.mrb[0].mxu0 %v1307
      %v1712 = vpop.f32.mrb[0].mxu0
      %v1713 = vadd.f32 %v255, %v1712
      %v1714 = vpop.f32.mrb[0].mxu0
      %1715 = vmatprep.mubr.f32.mxu0 0.0
      %1716 = vmatmul.mubr.f32.gmra.mrb[0].mxu0 %v1310
      %v1717 = vpop.f32.mrb[0].mxu0
      %v1718 = vadd.f32 %v255, %v1717
      %v1719 = vpop.f32.mrb[0].mxu0
      %1720 = vmatprep.mubr.f32.mxu0 0.0
      %1721 = vmatmul.mubr.f32.gmra.mrb[0].mxu0 %v1313
      %v1722 = vpop.f32.mrb[0].mxu0
      %v1723 = vadd.f32 %v255, %v1722
      %v1724 = vpop.f32.mrb[0].mxu0
      %1725 = vmatprep.mubr.f32.mxu0 0.0
      %1726 = vmatmul.mubr.f32.gmra.mrb[0].mxu0 %v1316
      %v1727 = vpop.f32.mrb[0].mxu0
      %v1728 = vadd.f32 %v255, %v1727
      %v1729 = vpop.f32.mrb[0].mxu0
      %1730 = vmatprep.mubr.f32.mxu0 0.0
      %1731 = vmatmul.mubr.f32.gmra.mrb[0].mxu0 %v1319
      %v1732 = vpop.f32.mrb[0].mxu0
      %v1733 = vadd.f32 %v255, %v1732
      %v1734 = vpop.f32.mrb[0].mxu0
      %1735 = vmatprep.mubr.f32.mxu0 0.0
      %1736 = vmatmul.mubr.f32.gmra.mrb[0].mxu0 %v1322
      %v1737 = vpop.f32.mrb[0].mxu0
      %v1738 = vadd.f32 %v255, %v1737
      %v1739 = vpop.f32.mrb[0].mxu0
      %1740 = vmatprep.mubr.f32.mxu0 0.0
      %1741 = vmatmul.mubr.f32.gmra.mrb[0].mxu0 %v1325
      %v1742 = vpop.f32.mrb[0].mxu0
      %v1743 = vadd.f32 %v255, %v1742
      %v1744 = vpop.f32.mrb[0].mxu0
      %1745 = vmatprep.mubr.f32.mxu0 0.0
      %1746 = vmatmul.mubr.f32.gmra.mrb[0].mxu0 %v1328
      %v1747 = vpop.f32.mrb[0].mxu0
      %v1748 = vadd.f32 %v255, %v1747
      %v1749 = vpop.f32.mrb[0].mxu0
      %1750 = vmatprep.mubr.f32.mxu0 0.0
      %1751 = vmatmul.mubr.f32.gmra.mrb[0].mxu0 %v1331
      %v1752 = vpop.f32.mrb[0].mxu0
      %v1753 = vadd.f32 %v255, %v1752
      %v1754 = vpop.f32.mrb[0].mxu0
      %1755 = vmatprep.mubr.f32.mxu0 0.0
      %1756 = vmatmul.mubr.f32.gmra.mrb[0].mxu0 %v1334
      %v1757 = vpop.f32.mrb[0].mxu0
      %v1758 = vadd.f32 %v255, %v1757
      %v1759 = vpop.f32.mrb[0].mxu0
      %1760 = vdwg.mxu0
      %v1761 = vmax.f32 %v1403, 0.0
      %v1762 = vmax.f32 %v1408, 0.0
      %v1763 = vmax.f32 %v1413, 0.0
      %v1764 = vmax.f32 %v1418, 0.0
      %v1765 = vmax.f32 %v1423, 0.0
      %v1766 = vmax.f32 %v1428, 0.0
      %v1767 = vmax.f32 %v1433, 0.0
      %v1768 = vmax.f32 %v1438, 0.0
      %v1769 = vmax.f32 %v1443, 0.0
      %v1770 = vmax.f32 %v1448, 0.0
      %v1771 = vmax.f32 %v1453, 0.0
      %v1772 = vmax.f32 %v1458, 0.0
      %v1773 = vmax.f32 %v1463, 0.0
      %v1774 = vmax.f32 %v1468, 0.0
      %v1775 = vmax.f32 %v1473, 0.0
      %v1776 = vmax.f32 %v1478, 0.0
      %v1777 = vmax.f32 %v1483, 0.0
      %v1778 = vmax.f32 %v1488, 0.0
      %v1779 = vmax.f32 %v1493, 0.0
      %v1780 = vmax.f32 %v1498, 0.0
      %v1781 = vmax.f32 %v1503, 0.0
      %v1782 = vmax.f32 %v1508, 0.0
      %v1783 = vmax.f32 %v1513, 0.0
      %v1784 = vmax.f32 %v1518, 0.0
      %v1785 = vmax.f32 %v1523, 0.0
      %v1786 = vmax.f32 %v1528, 0.0
      %v1787 = vmax.f32 %v1533, 0.0
      %v1788 = vmax.f32 %v1538, 0.0
      %v1789 = vmax.f32 %v1543, 0.0
      %v1790 = vmax.f32 %v1548, 0.0
      %v1791 = vmax.f32 %v1553, 0.0
      %v1792 = vmax.f32 %v1558, 0.0
      %v1793 = vmax.f32 %v1563, 0.0
      %v1794 = vmax.f32 %v1568, 0.0
      %v1795 = vmax.f32 %v1573, 0.0
      %v1796 = vmax.f32 %v1578, 0.0
      %v1797 = vmax.f32 %v1583, 0.0
      %v1798 = vmax.f32 %v1588, 0.0
      %v1799 = vmax.f32 %v1593, 0.0
      %v1800 = vmax.f32 %v1598, 0.0
      %v1801 = vmax.f32 %v1603, 0.0
      %v1802 = vmax.f32 %v1608, 0.0
      %v1803 = vmax.f32 %v1613, 0.0
      %v1804 = vmax.f32 %v1618, 0.0
      %v1805 = vmax.f32 %v1623, 0.0
      %v1806 = vmax.f32 %v1628, 0.0
      %v1807 = vmax.f32 %v1633, 0.0
      %v1808 = vmax.f32 %v1638, 0.0
      %v1809 = vmax.f32 %v1643, 0.0
      %v1810 = vmax.f32 %v1648, 0.0
      %v1811 = vmax.f32 %v1653, 0.0
      %v1812 = vmax.f32 %v1658, 0.0
      %v1813 = vmax.f32 %v1663, 0.0
      %v1814 = vmax.f32 %v1668, 0.0
      %v1815 = vmax.f32 %v1673, 0.0
      %v1816 = vmax.f32 %v1678, 0.0
      %v1817 = vmax.f32 %v1683, 0.0
      %v1818 = vmax.f32 %v1688, 0.0
      %v1819 = vmax.f32 %v1693, 0.0
      %v1820 = vmax.f32 %v1698, 0.0
      %v1821 = vmax.f32 %v1703, 0.0
      %v1822 = vmax.f32 %v1708, 0.0
      %v1823 = vmax.f32 %v1713, 0.0
      %v1824 = vmax.f32 %v1718, 0.0
      %v1825 = vmax.f32 %v1723, 0.0
      %v1826 = vmax.f32 %v1728, 0.0
      %v1827 = vmax.f32 %v1733, 0.0
      %v1828 = vmax.f32 %v1738, 0.0
      %v1829 = vmax.f32 %v1743, 0.0
      %v1830 = vmax.f32 %v1748, 0.0
      %v1831 = vmax.f32 %v1753, 0.0
      %v1832 = vmax.f32 %v1758, 0.0
      %v1833 = vadd.f32 %v975, %v1761
      %v1834 = vadd.f32 %v976, %v1762
      %v1835 = vadd.f32 %v977, %v1763
      %v1836 = vadd.f32 %v978, %v1764
      %v1837 = vadd.f32 %v979, %v1765
      %v1838 = vadd.f32 %v980, %v1766
      %v1839 = vadd.f32 %v981, %v1767
      %v1840 = vadd.f32 %v982, %v1768
      %v1841 = vadd.f32 %v983, %v1769
      %v1842 = vadd.f32 %v984, %v1770
      %v1843 = vadd.f32 %v985, %v1771
      %v1844 = vadd.f32 %v986, %v1772
      %v1845 = vadd.f32 %v987, %v1773
      %v1846 = vadd.f32 %v988, %v1774
      %v1847 = vadd.f32 %v989, %v1775
      %v1848 = vadd.f32 %v990, %v1776
      %v1849 = vadd.f32 %v991, %v1777
      %v1850 = vadd.f32 %v992, %v1778
      %v1851 = vadd.f32 %v993, %v1779
      %v1852 = vadd.f32 %v994, %v1780
      %v1853 = vadd.f32 %v995, %v1781
      %v1854 = vadd.f32 %v996, %v1782
      %v1855 = vadd.f32 %v997, %v1783
      %v1856 = vadd.f32 %v998, %v1784
      %v1857 = vadd.f32 %v999, %v1785
      %v1858 = vadd.f32 %v1000, %v1786
      %v1859 = vadd.f32 %v1001, %v1787
      %v1860 = vadd.f32 %v1002, %v1788
      %v1861 = vadd.f32 %v1003, %v1789
      %v1862 = vadd.f32 %v1004, %v1790
      %v1863 = vadd.f32 %v1005, %v1791
      %v1864 = vadd.f32 %v1006, %v1792
      %v1865 = vadd.f32 %v1007, %v1793
      %v1866 = vadd.f32 %v1008, %v1794
      %v1867 = vadd.f32 %v1009, %v1795
      %v1868 = vadd.f32 %v1010, %v1796
      %v1869 = vadd.f32 %v1011, %v1797
      %v1870 = vadd.f32 %v1012, %v1798
      %v1871 = vadd.f32 %v1013, %v1799
      %v1872 = vadd.f32 %v1014, %v1800
      %v1873 = vadd.f32 %v1015, %v1801
      %v1874 = vadd.f32 %v1016, %v1802
      %v1875 = vadd.f32 %v1017, %v1803
      %v1876 = vadd.f32 %v1018, %v1804
      %v1877 = vadd.f32 %v1019, %v1805
      %v1878 = vadd.f32 %v1020, %v1806
      %v1879 = vadd.f32 %v1021, %v1807
      %v1880 = vadd.f32 %v1022, %v1808
      %v1881 = vadd.f32 %v1023, %v1809
      %v1882 = vadd.f32 %v1024, %v1810
      %v1883 = vadd.f32 %v1025, %v1811
      %v1884 = vadd.f32 %v1026, %v1812
      %v1885 = vadd.f32 %v1027, %v1813
      %v1886 = vadd.f32 %v1028, %v1814
      %v1887 = vadd.f32 %v1029, %v1815
      %v1888 = vadd.f32 %v1030, %v1816
      %v1889 = vadd.f32 %v1031, %v1817
      %v1890 = vadd.f32 %v1032, %v1818
      %v1891 = vadd.f32 %v1033, %v1819
      %v1892 = vadd.f32 %v1034, %v1820
      %v1893 = vadd.f32 %v1035, %v1821
      %v1894 = vadd.f32 %v1036, %v1822
      %v1895 = vadd.f32 %v1037, %v1823
      %v1896 = vadd.f32 %v1038, %v1824
      %v1897 = vadd.f32 %v1039, %v1825
      %v1898 = vadd.f32 %v1040, %v1826
      %v1899 = vadd.f32 %v1041, %v1827
      %v1900 = vadd.f32 %v1042, %v1828
      %v1901 = vadd.f32 %v1043, %v1829
      %v1902 = vadd.f32 %v1044, %v1830
      %v1903 = vadd.f32 %v1045, %v1831
      %v1904 = vadd.f32 %v1046, %v1832
      %s1905 = scalar_lea.vmem %s169, 1152
      %v1906 = vld [vmem:[%s1905] sm:$0xff]
      %v1907 = vld [vmem:[%s1905 + $0x8] sm:$0xff]
      %v1908 = vld [vmem:[%s1905 + $0x10] sm:$0xff]
      %v1909 = vld [vmem:[%s1905 + $0x18] sm:$0xff]
      %v1910 = vld [vmem:[%s1905 + $0x20] sm:$0xff]
      %v1911 = vld [vmem:[%s1905 + $0x28] sm:$0xff]
      %v1912 = vld [vmem:[%s1905 + $0x30] sm:$0xff]
      %v1913 = vld [vmem:[%s1905 + $0x38] sm:$0xff]
      %v1914 = vld [vmem:[%s1905 + $0x40] sm:$0xff]
      %v1915 = vld [vmem:[%s1905 + $0x48] sm:$0xff]
      %v1916 = vld [vmem:[%s1905 + $0x50] sm:$0xff]
      %v1917 = vld [vmem:[%s1905 + $0x58] sm:$0xff]
      %v1918 = vld [vmem:[%s1905 + $0x60] sm:$0xff]
      %v1919 = vld [vmem:[%s1905 + $0x68] sm:$0xff]
      %v1920 = vld [vmem:[%s1905 + $0x70] sm:$0xff]
      %v1921 = vld [vmem:[%s1905 + $0x78] sm:$0xff]
      %v1922 = vld [vmem:[%s1905 + $0x80] sm:$0xff]
      %v1923 = vld [vmem:[%s1905 + $0x88] sm:$0xff]
      %v1924 = vld [vmem:[%s1905 + $0x90] sm:$0xff]
      %v1925 = vld [vmem:[%s1905 + $0x98] sm:$0xff]
      %v1926 = vld [vmem:[%s1905 + $0xa0] sm:$0xff]
      %v1927 = vld [vmem:[%s1905 + $0xa8] sm:$0xff]
      %v1928 = vld [vmem:[%s1905 + $0xb0] sm:$0xff]
      %v1929 = vld [vmem:[%s1905 + $0xb8] sm:$0xff]
      %v1930 = vld [vmem:[%s1905 + $0xc0] sm:$0xff]
      %v1931 = vld [vmem:[%s1905 + $0xc8] sm:$0xff]
      %v1932 = vld [vmem:[%s1905 + $0xd0] sm:$0xff]
      %v1933 = vld [vmem:[%s1905 + $0xd8] sm:$0xff]
      %v1934 = vld [vmem:[%s1905 + $0xe0] sm:$0xff]
      %v1935 = vld [vmem:[%s1905 + $0xe8] sm:$0xff]
      %v1936 = vld [vmem:[%s1905 + $0xf0] sm:$0xff]
      %v1937 = vld [vmem:[%s1905 + $0xf8] sm:$0xff]
      %v1938 = vld [vmem:[%s1905 + $0x100] sm:$0xff]
      %v1939 = vld [vmem:[%s1905 + $0x108] sm:$0xff]
      %v1940 = vld [vmem:[%s1905 + $0x110] sm:$0xff]
      %v1941 = vld [vmem:[%s1905 + $0x118] sm:$0xff]
      %v1942 = vld [vmem:[%s1905 + $0x120] sm:$0xff]
      %v1943 = vld [vmem:[%s1905 + $0x128] sm:$0xff]
      %v1944 = vld [vmem:[%s1905 + $0x130] sm:$0xff]
      %v1945 = vld [vmem:[%s1905 + $0x138] sm:$0xff]
      %v1946 = vld [vmem:[%s1905 + $0x140] sm:$0xff]
      %v1947 = vld [vmem:[%s1905 + $0x148] sm:$0xff]
      %v1948 = vld [vmem:[%s1905 + $0x150] sm:$0xff]
      %v1949 = vld [vmem:[%s1905 + $0x158] sm:$0xff]
      %v1950 = vld [vmem:[%s1905 + $0x160] sm:$0xff]
      %v1951 = vld [vmem:[%s1905 + $0x168] sm:$0xff]
      %v1952 = vld [vmem:[%s1905 + $0x170] sm:$0xff]
      %v1953 = vld [vmem:[%s1905 + $0x178] sm:$0xff]
      %v1954 = vld [vmem:[%s1905 + $0x180] sm:$0xff]
      %v1955 = vld [vmem:[%s1905 + $0x188] sm:$0xff]
      %v1956 = vld [vmem:[%s1905 + $0x190] sm:$0xff]
      %v1957 = vld [vmem:[%s1905 + $0x198] sm:$0xff]
      %v1958 = vld [vmem:[%s1905 + $0x1a0] sm:$0xff]
      %v1959 = vld [vmem:[%s1905 + $0x1a8] sm:$0xff]
      %v1960 = vld [vmem:[%s1905 + $0x1b0] sm:$0xff]
      %v1961 = vld [vmem:[%s1905 + $0x1b8] sm:$0xff]
      %v1962 = vld [vmem:[%s1905 + $0x1c0] sm:$0xff]
      %v1963 = vld [vmem:[%s1905 + $0x1c8] sm:$0xff]
      %v1964 = vld [vmem:[%s1905 + $0x1d0] sm:$0xff]
      %v1965 = vld [vmem:[%s1905 + $0x1d8] sm:$0xff]
      %v1966 = vld [vmem:[%s1905 + $0x1e0] sm:$0xff]
      %v1967 = vld [vmem:[%s1905 + $0x1e8] sm:$0xff]
      %v1968 = vld [vmem:[%s1905 + $0x1f0] sm:$0xff]
      %v1969 = vld [vmem:[%s1905 + $0x1f8] sm:$0xff]
      %v1970 = vld [vmem:[%s1905 + $0x200] sm:$0xff]
      %v1971 = vld [vmem:[%s1905 + $0x208] sm:$0xff]
      %v1972 = vld [vmem:[%s1905 + $0x210] sm:$0xff]
      %v1973 = vld [vmem:[%s1905 + $0x218] sm:$0xff]
      %v1974 = vld [vmem:[%s1905 + $0x220] sm:$0xff]
      %v1975 = vld [vmem:[%s1905 + $0x228] sm:$0xff]
      %v1976 = vld [vmem:[%s1905 + $0x230] sm:$0xff]
      %v1977 = vld [vmem:[%s1905 + $0x238] sm:$0xff]
      %v1979 = vsel %vm257, %v1906, 0
      %v1982 = vsel %vm257, %v1907, 0
      %v1985 = vsel %vm257, %v1908, 0
      %v1988 = vsel %vm257, %v1909, 0
      %v1991 = vsel %vm257, %v1910, 0
      %v1994 = vsel %vm257, %v1911, 0
      %v1997 = vsel %vm257, %v1912, 0
      %v2000 = vsel %vm257, %v1913, 0
      %v2003 = vsel %vm257, %v1914, 0
      %v2006 = vsel %vm257, %v1915, 0
      %v2009 = vsel %vm257, %v1916, 0
      %v2012 = vsel %vm257, %v1917, 0
      %v2015 = vsel %vm257, %v1918, 0
      %v2018 = vsel %vm257, %v1919, 0
      %v2021 = vsel %vm257, %v1920, 0
      %v2024 = vsel %vm257, %v1921, 0
      %v2027 = vsel %vm257, %v1922, 0
      %v2030 = vsel %vm257, %v1923, 0
      %v2033 = vsel %vm257, %v1924, 0
      %v2036 = vsel %vm257, %v1925, 0
      %v2039 = vsel %vm257, %v1926, 0
      %v2042 = vsel %vm257, %v1927, 0
      %v2045 = vsel %vm257, %v1928, 0
      %v2048 = vsel %vm257, %v1929, 0
      %v2051 = vsel %vm257, %v1930, 0
      %v2054 = vsel %vm257, %v1931, 0
      %v2057 = vsel %vm257, %v1932, 0
      %v2060 = vsel %vm257, %v1933, 0
      %v2063 = vsel %vm257, %v1934, 0
      %v2066 = vsel %vm257, %v1935, 0
      %v2069 = vsel %vm257, %v1936, 0
      %v2072 = vsel %vm257, %v1937, 0
      %v2075 = vsel %vm257, %v1938, 0
      %v2078 = vsel %vm257, %v1939, 0
      %v2081 = vsel %vm257, %v1940, 0
      %v2084 = vsel %vm257, %v1941, 0
      %v2087 = vsel %vm257, %v1942, 0
      %v2090 = vsel %vm257, %v1943, 0
      %v2093 = vsel %vm257, %v1944, 0
      %v2096 = vsel %vm257, %v1945, 0
      %v2099 = vsel %vm257, %v1946, 0
      %v2102 = vsel %vm257, %v1947, 0
      %v2105 = vsel %vm257, %v1948, 0
      %v2108 = vsel %vm257, %v1949, 0
      %v2111 = vsel %vm257, %v1950, 0
      %v2114 = vsel %vm257, %v1951, 0
      %v2117 = vsel %vm257, %v1952, 0
      %v2120 = vsel %vm257, %v1953, 0
      %v2123 = vsel %vm257, %v1954, 0
      %v2126 = vsel %vm257, %v1955, 0
      %v2129 = vsel %vm257, %v1956, 0
      %v2132 = vsel %vm257, %v1957, 0
      %v2135 = vsel %vm257, %v1958, 0
      %v2138 = vsel %vm257, %v1959, 0
      %v2141 = vsel %vm257, %v1960, 0
      %v2144 = vsel %vm257, %v1961, 0
      %v2147 = vsel %vm257, %v1962, 0
      %v2150 = vsel %vm257, %v1963, 0
      %v2153 = vsel %vm257, %v1964, 0
      %v2156 = vsel %vm257, %v1965, 0
      %v2159 = vsel %vm257, %v1966, 0
      %v2162 = vsel %vm257, %v1967, 0
      %v2165 = vsel %vm257, %v1968, 0
      %v2168 = vsel %vm257, %v1969, 0
      %v2171 = vsel %vm257, %v1970, 0
      %v2174 = vsel %vm257, %v1971, 0
      %v2177 = vsel %vm257, %v1972, 0
      %v2180 = vsel %vm257, %v1973, 0
      %v2183 = vsel %vm257, %v1974, 0
      %v2186 = vsel %vm257, %v1975, 0
      %v2189 = vsel %vm257, %v1976, 0
      %v2192 = vsel %vm257, %v1977, 0
      %2194 = vmatprep.subr.mxu0 0.0
      %2195 = vmatpush1.msra.mxu0 %v176
      %2196 = vmatprep.subr.mxu0 0.0
      %2197 = vmatpush1.msra.mxu0 %v476
      %2198 = vmatprep.subr.mxu0 0.0
      %2199 = vmatpush1.msra.mxu0 0.0
      %2200 = vmatprep.subr.mxu0 0.0
      %2201 = vmatpush1.msra.mxu0 0.0
      %2202 = vmatprep.subr.mxu0 0.0
      %2203 = vmatpush1.msra.mxu0 0.0
      %2204 = vmatprep.subr.mxu0 0.0
      %2205 = vmatpush1.msra.mxu0 0.0
      %2206 = vmatprep.subr.mxu0 0.0
      %2207 = vmatpush1.msra.mxu0 0.0
      %2208 = vmatprep.subr.mxu0 0.0
      %2209 = vmatpush1.msra.mxu0 0.0
      %2210 = vmatprep.subr.mxu0 0.0
      %2211 = vmatpush1.msra.mxu0 0.0
      %2212 = vmatprep.subr.mxu0 0.0
      %2213 = vmatpush1.msra.mxu0 0.0
      %2214 = vmatprep.subr.mxu0 0.0
      %2215 = vmatpush1.msra.mxu0 0.0
      %2216 = vmatprep.subr.mxu0 0.0
      %2217 = vmatpush1.msra.mxu0 0.0
      %2218 = vmatprep.subr.mxu0 0.0
      %2219 = vmatpush1.msra.mxu0 0.0
      %2220 = vmatprep.subr.mxu0 0.0
      %2221 = vmatpush1.msra.mxu0 0.0
      %2222 = vmatprep.subr.mxu0 0.0
      %2223 = vmatpush1.msra.mxu0 0.0
      %2224 = vmatprep.subr.mxu0 0.0
      %2225 = vmatpush1.msra.mxu0 0.0
      %2226 = vmatprep.subr.mxu0 0.0
      %2227 = vmatpush1.msra.mxu0 0.0
      %2228 = vmatprep.subr.mxu0 0.0
      %2229 = vmatpush1.msra.mxu0 0.0
      %2230 = vmatprep.subr.mxu0 0.0
      %2231 = vmatpush1.msra.mxu0 0.0
      %2232 = vmatprep.subr.mxu0 0.0
      %2233 = vmatpush1.msra.mxu0 0.0
      %2234 = vmatprep.subr.mxu0 0.0
      %2235 = vmatpush1.msra.mxu0 0.0
      %2236 = vmatprep.subr.mxu0 0.0
      %2237 = vmatpush1.msra.mxu0 0.0
      %2238 = vmatprep.subr.mxu0 0.0
      %2239 = vmatpush1.msra.mxu0 0.0
      %2240 = vmatprep.subr.mxu0 0.0
      %2241 = vmatpush1.msra.mxu0 0.0
      %2242 = vmatprep.subr.mxu0 0.0
      %2243 = vmatpush1.msra.mxu0 0.0
      %2244 = vmatprep.subr.mxu0 0.0
      %2245 = vmatpush1.msra.mxu0 0.0
      %2246 = vmatprep.subr.mxu0 0.0
      %2247 = vmatpush1.msra.mxu0 0.0
      %2248 = vmatprep.subr.mxu0 0.0
      %2249 = vmatpush1.msra.mxu0 0.0
      %2250 = vmatprep.subr.mxu0 0.0
      %2251 = vmatpush1.msra.mxu0 0.0
      %2252 = vmatprep.subr.mxu0 0.0
      %2253 = vmatpush1.msra.mxu0 0.0
      %2254 = vmatprep.subr.mxu0 0.0
      %2255 = vmatpush1.msra.mxu0 0.0
      %2256 = vmatprep.subr.mxu0 0.0
      %2257 = vmatpush1.msra.mxu0 0.0
      %2258 = vmatprep.mubr.f32.mxu0 0.0
      %2259 = vmatmul.mubr.f32.gmra.mrb[0].mxu0 %v1979
      %v2260 = vpop.f32.mrb[0].mxu0
      %v2261 = vadd.f32 %v255, %v2260
      %v2262 = vpop.f32.mrb[0].mxu0
      %2263 = vmatprep.mubr.f32.mxu0 0.0
      %2264 = vmatmul.mubr.f32.gmra.mrb[0].mxu0 %v1982
      %v2265 = vpop.f32.mrb[0].mxu0
      %v2266 = vadd.f32 %v255, %v2265
      %v2267 = vpop.f32.mrb[0].mxu0
      %2268 = vmatprep.mubr.f32.mxu0 0.0
      %2269 = vmatmul.mubr.f32.gmra.mrb[0].mxu0 %v1985
      %v2270 = vpop.f32.mrb[0].mxu0
      %v2271 = vadd.f32 %v255, %v2270
      %v2272 = vpop.f32.mrb[0].mxu0
      %2273 = vmatprep.mubr.f32.mxu0 0.0
      %2274 = vmatmul.mubr.f32.gmra.mrb[0].mxu0 %v1988
      %v2275 = vpop.f32.mrb[0].mxu0
      %v2276 = vadd.f32 %v255, %v2275
      %v2277 = vpop.f32.mrb[0].mxu0
      %2278 = vmatprep.mubr.f32.mxu0 0.0
      %2279 = vmatmul.mubr.f32.gmra.mrb[0].mxu0 %v1991
      %v2280 = vpop.f32.mrb[0].mxu0
      %v2281 = vadd.f32 %v255, %v2280
      %v2282 = vpop.f32.mrb[0].mxu0
      %2283 = vmatprep.mubr.f32.mxu0 0.0
      %2284 = vmatmul.mubr.f32.gmra.mrb[0].mxu0 %v1994
      %v2285 = vpop.f32.mrb[0].mxu0
      %v2286 = vadd.f32 %v255, %v2285
      %v2287 = vpop.f32.mrb[0].mxu0
      %2288 = vmatprep.mubr.f32.mxu0 0.0
      %2289 = vmatmul.mubr.f32.gmra.mrb[0].mxu0 %v1997
      %v2290 = vpop.f32.mrb[0].mxu0
      %v2291 = vadd.f32 %v255, %v2290
      %v2292 = vpop.f32.mrb[0].mxu0
      %2293 = vmatprep.mubr.f32.mxu0 0.0
      %2294 = vmatmul.mubr.f32.gmra.mrb[0].mxu0 %v2000
      %v2295 = vpop.f32.mrb[0].mxu0
      %v2296 = vadd.f32 %v255, %v2295
      %v2297 = vpop.f32.mrb[0].mxu0
      %2298 = vmatprep.mubr.f32.mxu0 0.0
      %2299 = vmatmul.mubr.f32.gmra.mrb[0].mxu0 %v2003
      %v2300 = vpop.f32.mrb[0].mxu0
      %v2301 = vadd.f32 %v255, %v2300
      %v2302 = vpop.f32.mrb[0].mxu0
      %2303 = vmatprep.mubr.f32.mxu0 0.0
      %2304 = vmatmul.mubr.f32.gmra.mrb[0].mxu0 %v2006
      %v2305 = vpop.f32.mrb[0].mxu0
      %v2306 = vadd.f32 %v255, %v2305
      %v2307 = vpop.f32.mrb[0].mxu0
      %2308 = vmatprep.mubr.f32.mxu0 0.0
      %2309 = vmatmul.mubr.f32.gmra.mrb[0].mxu0 %v2009
      %v2310 = vpop.f32.mrb[0].mxu0
      %v2311 = vadd.f32 %v255, %v2310
      %v2312 = vpop.f32.mrb[0].mxu0
      %2313 = vmatprep.mubr.f32.mxu0 0.0
      %2314 = vmatmul.mubr.f32.gmra.mrb[0].mxu0 %v2012
      %v2315 = vpop.f32.mrb[0].mxu0
      %v2316 = vadd.f32 %v255, %v2315
      %v2317 = vpop.f32.mrb[0].mxu0
      %2318 = vmatprep.mubr.f32.mxu0 0.0
      %2319 = vmatmul.mubr.f32.gmra.mrb[0].mxu0 %v2015
      %v2320 = vpop.f32.mrb[0].mxu0
      %v2321 = vadd.f32 %v255, %v2320
      %v2322 = vpop.f32.mrb[0].mxu0
      %2323 = vmatprep.mubr.f32.mxu0 0.0
      %2324 = vmatmul.mubr.f32.gmra.mrb[0].mxu0 %v2018
      %v2325 = vpop.f32.mrb[0].mxu0
      %v2326 = vadd.f32 %v255, %v2325
      %v2327 = vpop.f32.mrb[0].mxu0
      %2328 = vmatprep.mubr.f32.mxu0 0.0
      %2329 = vmatmul.mubr.f32.gmra.mrb[0].mxu0 %v2021
      %v2330 = vpop.f32.mrb[0].mxu0
      %v2331 = vadd.f32 %v255, %v2330
      %v2332 = vpop.f32.mrb[0].mxu0
      %2333 = vmatprep.mubr.f32.mxu0 0.0
      %2334 = vmatmul.mubr.f32.gmra.mrb[0].mxu0 %v2024
      %v2335 = vpop.f32.mrb[0].mxu0
      %v2336 = vadd.f32 %v255, %v2335
      %v2337 = vpop.f32.mrb[0].mxu0
      %2338 = vmatprep.mubr.f32.mxu0 0.0
      %2339 = vmatmul.mubr.f32.gmra.mrb[0].mxu0 %v2027
      %v2340 = vpop.f32.mrb[0].mxu0
      %v2341 = vadd.f32 %v255, %v2340
      %v2342 = vpop.f32.mrb[0].mxu0
      %2343 = vmatprep.mubr.f32.mxu0 0.0
      %2344 = vmatmul.mubr.f32.gmra.mrb[0].mxu0 %v2030
      %v2345 = vpop.f32.mrb[0].mxu0
      %v2346 = vadd.f32 %v255, %v2345
      %v2347 = vpop.f32.mrb[0].mxu0
      %2348 = vmatprep.mubr.f32.mxu0 0.0
      %2349 = vmatmul.mubr.f32.gmra.mrb[0].mxu0 %v2033
      %v2350 = vpop.f32.mrb[0].mxu0
      %v2351 = vadd.f32 %v255, %v2350
      %v2352 = vpop.f32.mrb[0].mxu0
      %2353 = vmatprep.mubr.f32.mxu0 0.0
      %2354 = vmatmul.mubr.f32.gmra.mrb[0].mxu0 %v2036
      %v2355 = vpop.f32.mrb[0].mxu0
      %v2356 = vadd.f32 %v255, %v2355
      %v2357 = vpop.f32.mrb[0].mxu0
      %2358 = vmatprep.mubr.f32.mxu0 0.0
      %2359 = vmatmul.mubr.f32.gmra.mrb[0].mxu0 %v2039
      %v2360 = vpop.f32.mrb[0].mxu0
      %v2361 = vadd.f32 %v255, %v2360
      %v2362 = vpop.f32.mrb[0].mxu0
      %2363 = vmatprep.mubr.f32.mxu0 0.0
      %2364 = vmatmul.mubr.f32.gmra.mrb[0].mxu0 %v2042
      %v2365 = vpop.f32.mrb[0].mxu0
      %v2366 = vadd.f32 %v255, %v2365
      %v2367 = vpop.f32.mrb[0].mxu0
      %2368 = vmatprep.mubr.f32.mxu0 0.0
      %2369 = vmatmul.mubr.f32.gmra.mrb[0].mxu0 %v2045
      %v2370 = vpop.f32.mrb[0].mxu0
      %v2371 = vadd.f32 %v255, %v2370
      %v2372 = vpop.f32.mrb[0].mxu0
      %2373 = vmatprep.mubr.f32.mxu0 0.0
      %2374 = vmatmul.mubr.f32.gmra.mrb[0].mxu0 %v2048
      %v2375 = vpop.f32.mrb[0].mxu0
      %v2376 = vadd.f32 %v255, %v2375
      %v2377 = vpop.f32.mrb[0].mxu0
      %2378 = vmatprep.mubr.f32.mxu0 0.0
      %2379 = vmatmul.mubr.f32.gmra.mrb[0].mxu0 %v2051
      %v2380 = vpop.f32.mrb[0].mxu0
      %v2381 = vadd.f32 %v255, %v2380
      %v2382 = vpop.f32.mrb[0].mxu0
      %2383 = vmatprep.mubr.f32.mxu0 0.0
      %2384 = vmatmul.mubr.f32.gmra.mrb[0].mxu0 %v2054
      %v2385 = vpop.f32.mrb[0].mxu0
      %v2386 = vadd.f32 %v255, %v2385
      %v2387 = vpop.f32.mrb[0].mxu0
      %2388 = vmatprep.mubr.f32.mxu0 0.0
      %2389 = vmatmul.mubr.f32.gmra.mrb[0].mxu0 %v2057
      %v2390 = vpop.f32.mrb[0].mxu0
      %v2391 = vadd.f32 %v255, %v2390
      %v2392 = vpop.f32.mrb[0].mxu0
      %2393 = vmatprep.mubr.f32.mxu0 0.0
      %2394 = vmatmul.mubr.f32.gmra.mrb[0].mxu0 %v2060
      %v2395 = vpop.f32.mrb[0].mxu0
      %v2396 = vadd.f32 %v255, %v2395
      %v2397 = vpop.f32.mrb[0].mxu0
      %2398 = vmatprep.mubr.f32.mxu0 0.0
      %2399 = vmatmul.mubr.f32.gmra.mrb[0].mxu0 %v2063
      %v2400 = vpop.f32.mrb[0].mxu0
      %v2401 = vadd.f32 %v255, %v2400
      %v2402 = vpop.f32.mrb[0].mxu0
      %2403 = vmatprep.mubr.f32.mxu0 0.0
      %2404 = vmatmul.mubr.f32.gmra.mrb[0].mxu0 %v2066
      %v2405 = vpop.f32.mrb[0].mxu0
      %v2406 = vadd.f32 %v255, %v2405
      %v2407 = vpop.f32.mrb[0].mxu0
      %2408 = vmatprep.mubr.f32.mxu0 0.0
      %2409 = vmatmul.mubr.f32.gmra.mrb[0].mxu0 %v2069
      %v2410 = vpop.f32.mrb[0].mxu0
      %v2411 = vadd.f32 %v255, %v2410
      %v2412 = vpop.f32.mrb[0].mxu0
      %2413 = vmatprep.mubr.f32.mxu0 0.0
      %2414 = vmatmul.mubr.f32.gmra.mrb[0].mxu0 %v2072
      %v2415 = vpop.f32.mrb[0].mxu0
      %v2416 = vadd.f32 %v255, %v2415
      %v2417 = vpop.f32.mrb[0].mxu0
      %2418 = vmatprep.mubr.f32.mxu0 0.0
      %2419 = vmatmul.mubr.f32.gmra.mrb[0].mxu0 %v2075
      %v2420 = vpop.f32.mrb[0].mxu0
      %v2421 = vadd.f32 %v255, %v2420
      %v2422 = vpop.f32.mrb[0].mxu0
      %2423 = vmatprep.mubr.f32.mxu0 0.0
      %2424 = vmatmul.mubr.f32.gmra.mrb[0].mxu0 %v2078
      %v2425 = vpop.f32.mrb[0].mxu0
      %v2426 = vadd.f32 %v255, %v2425
      %v2427 = vpop.f32.mrb[0].mxu0
      %2428 = vmatprep.mubr.f32.mxu0 0.0
      %2429 = vmatmul.mubr.f32.gmra.mrb[0].mxu0 %v2081
      %v2430 = vpop.f32.mrb[0].mxu0
      %v2431 = vadd.f32 %v255, %v2430
      %v2432 = vpop.f32.mrb[0].mxu0
      %2433 = vmatprep.mubr.f32.mxu0 0.0
      %2434 = vmatmul.mubr.f32.gmra.mrb[0].mxu0 %v2084
      %v2435 = vpop.f32.mrb[0].mxu0
      %v2436 = vadd.f32 %v255, %v2435
      %v2437 = vpop.f32.mrb[0].mxu0
      %2438 = vmatprep.mubr.f32.mxu0 0.0
      %2439 = vmatmul.mubr.f32.gmra.mrb[0].mxu0 %v2087
      %v2440 = vpop.f32.mrb[0].mxu0
      %v2441 = vadd.f32 %v255, %v2440
      %v2442 = vpop.f32.mrb[0].mxu0
      %2443 = vmatprep.mubr.f32.mxu0 0.0
      %2444 = vmatmul.mubr.f32.gmra.mrb[0].mxu0 %v2090
      %v2445 = vpop.f32.mrb[0].mxu0
      %v2446 = vadd.f32 %v255, %v2445
      %v2447 = vpop.f32.mrb[0].mxu0
      %2448 = vmatprep.mubr.f32.mxu0 0.0
      %2449 = vmatmul.mubr.f32.gmra.mrb[0].mxu0 %v2093
      %v2450 = vpop.f32.mrb[0].mxu0
      %v2451 = vadd.f32 %v255, %v2450
      %v2452 = vpop.f32.mrb[0].mxu0
      %2453 = vmatprep.mubr.f32.mxu0 0.0
      %2454 = vmatmul.mubr.f32.gmra.mrb[0].mxu0 %v2096
      %v2455 = vpop.f32.mrb[0].mxu0
      %v2456 = vadd.f32 %v255, %v2455
      %v2457 = vpop.f32.mrb[0].mxu0
      %2458 = vmatprep.mubr.f32.mxu0 0.0
      %2459 = vmatmul.mubr.f32.gmra.mrb[0].mxu0 %v2099
      %v2460 = vpop.f32.mrb[0].mxu0
      %v2461 = vadd.f32 %v255, %v2460
      %v2462 = vpop.f32.mrb[0].mxu0
      %2463 = vmatprep.mubr.f32.mxu0 0.0
      %2464 = vmatmul.mubr.f32.gmra.mrb[0].mxu0 %v2102
      %v2465 = vpop.f32.mrb[0].mxu0
      %v2466 = vadd.f32 %v255, %v2465
      %v2467 = vpop.f32.mrb[0].mxu0
      %2468 = vmatprep.mubr.f32.mxu0 0.0
      %2469 = vmatmul.mubr.f32.gmra.mrb[0].mxu0 %v2105
      %v2470 = vpop.f32.mrb[0].mxu0
      %v2471 = vadd.f32 %v255, %v2470
      %v2472 = vpop.f32.mrb[0].mxu0
      %2473 = vmatprep.mubr.f32.mxu0 0.0
      %2474 = vmatmul.mubr.f32.gmra.mrb[0].mxu0 %v2108
      %v2475 = vpop.f32.mrb[0].mxu0
      %v2476 = vadd.f32 %v255, %v2475
      %v2477 = vpop.f32.mrb[0].mxu0
      %2478 = vmatprep.mubr.f32.mxu0 0.0
      %2479 = vmatmul.mubr.f32.gmra.mrb[0].mxu0 %v2111
      %v2480 = vpop.f32.mrb[0].mxu0
      %v2481 = vadd.f32 %v255, %v2480
      %v2482 = vpop.f32.mrb[0].mxu0
      %2483 = vmatprep.mubr.f32.mxu0 0.0
      %2484 = vmatmul.mubr.f32.gmra.mrb[0].mxu0 %v2114
      %v2485 = vpop.f32.mrb[0].mxu0
      %v2486 = vadd.f32 %v255, %v2485
      %v2487 = vpop.f32.mrb[0].mxu0
      %2488 = vmatprep.mubr.f32.mxu0 0.0
      %2489 = vmatmul.mubr.f32.gmra.mrb[0].mxu0 %v2117
      %v2490 = vpop.f32.mrb[0].mxu0
      %v2491 = vadd.f32 %v255, %v2490
      %v2492 = vpop.f32.mrb[0].mxu0
      %2493 = vmatprep.mubr.f32.mxu0 0.0
      %2494 = vmatmul.mubr.f32.gmra.mrb[0].mxu0 %v2120
      %v2495 = vpop.f32.mrb[0].mxu0
      %v2496 = vadd.f32 %v255, %v2495
      %v2497 = vpop.f32.mrb[0].mxu0
      %2498 = vmatprep.mubr.f32.mxu0 0.0
      %2499 = vmatmul.mubr.f32.gmra.mrb[0].mxu0 %v2123
      %v2500 = vpop.f32.mrb[0].mxu0
      %v2501 = vadd.f32 %v255, %v2500
      %v2502 = vpop.f32.mrb[0].mxu0
      %2503 = vmatprep.mubr.f32.mxu0 0.0
      %2504 = vmatmul.mubr.f32.gmra.mrb[0].mxu0 %v2126
      %v2505 = vpop.f32.mrb[0].mxu0
      %v2506 = vadd.f32 %v255, %v2505
      %v2507 = vpop.f32.mrb[0].mxu0
      %2508 = vmatprep.mubr.f32.mxu0 0.0
      %2509 = vmatmul.mubr.f32.gmra.mrb[0].mxu0 %v2129
      %v2510 = vpop.f32.mrb[0].mxu0
      %v2511 = vadd.f32 %v255, %v2510
      %v2512 = vpop.f32.mrb[0].mxu0
      %2513 = vmatprep.mubr.f32.mxu0 0.0
      %2514 = vmatmul.mubr.f32.gmra.mrb[0].mxu0 %v2132
      %v2515 = vpop.f32.mrb[0].mxu0
      %v2516 = vadd.f32 %v255, %v2515
      %v2517 = vpop.f32.mrb[0].mxu0
      %2518 = vmatprep.mubr.f32.mxu0 0.0
      %2519 = vmatmul.mubr.f32.gmra.mrb[0].mxu0 %v2135
      %v2520 = vpop.f32.mrb[0].mxu0
      %v2521 = vadd.f32 %v255, %v2520
      %v2522 = vpop.f32.mrb[0].mxu0
      %2523 = vmatprep.mubr.f32.mxu0 0.0
      %2524 = vmatmul.mubr.f32.gmra.mrb[0].mxu0 %v2138
      %v2525 = vpop.f32.mrb[0].mxu0
      %v2526 = vadd.f32 %v255, %v2525
      %v2527 = vpop.f32.mrb[0].mxu0
      %2528 = vmatprep.mubr.f32.mxu0 0.0
      %2529 = vmatmul.mubr.f32.gmra.mrb[0].mxu0 %v2141
      %v2530 = vpop.f32.mrb[0].mxu0
      %v2531 = vadd.f32 %v255, %v2530
      %v2532 = vpop.f32.mrb[0].mxu0
      %2533 = vmatprep.mubr.f32.mxu0 0.0
      %2534 = vmatmul.mubr.f32.gmra.mrb[0].mxu0 %v2144
      %v2535 = vpop.f32.mrb[0].mxu0
      %v2536 = vadd.f32 %v255, %v2535
      %v2537 = vpop.f32.mrb[0].mxu0
      %2538 = vmatprep.mubr.f32.mxu0 0.0
      %2539 = vmatmul.mubr.f32.gmra.mrb[0].mxu0 %v2147
      %v2540 = vpop.f32.mrb[0].mxu0
      %v2541 = vadd.f32 %v255, %v2540
      %v2542 = vpop.f32.mrb[0].mxu0
      %2543 = vmatprep.mubr.f32.mxu0 0.0
      %2544 = vmatmul.mubr.f32.gmra.mrb[0].mxu0 %v2150
      %v2545 = vpop.f32.mrb[0].mxu0
      %v2546 = vadd.f32 %v255, %v2545
      %v2547 = vpop.f32.mrb[0].mxu0
      %2548 = vmatprep.mubr.f32.mxu0 0.0
      %2549 = vmatmul.mubr.f32.gmra.mrb[0].mxu0 %v2153
      %v2550 = vpop.f32.mrb[0].mxu0
      %v2551 = vadd.f32 %v255, %v2550
      %v2552 = vpop.f32.mrb[0].mxu0
      %2553 = vmatprep.mubr.f32.mxu0 0.0
      %2554 = vmatmul.mubr.f32.gmra.mrb[0].mxu0 %v2156
      %v2555 = vpop.f32.mrb[0].mxu0
      %v2556 = vadd.f32 %v255, %v2555
      %v2557 = vpop.f32.mrb[0].mxu0
      %2558 = vmatprep.mubr.f32.mxu0 0.0
      %2559 = vmatmul.mubr.f32.gmra.mrb[0].mxu0 %v2159
      %v2560 = vpop.f32.mrb[0].mxu0
      %v2561 = vadd.f32 %v255, %v2560
      %v2562 = vpop.f32.mrb[0].mxu0
      %2563 = vmatprep.mubr.f32.mxu0 0.0
      %2564 = vmatmul.mubr.f32.gmra.mrb[0].mxu0 %v2162
      %v2565 = vpop.f32.mrb[0].mxu0
      %v2566 = vadd.f32 %v255, %v2565
      %v2567 = vpop.f32.mrb[0].mxu0
      %2568 = vmatprep.mubr.f32.mxu0 0.0
      %2569 = vmatmul.mubr.f32.gmra.mrb[0].mxu0 %v2165
      %v2570 = vpop.f32.mrb[0].mxu0
      %v2571 = vadd.f32 %v255, %v2570
      %v2572 = vpop.f32.mrb[0].mxu0
      %2573 = vmatprep.mubr.f32.mxu0 0.0
      %2574 = vmatmul.mubr.f32.gmra.mrb[0].mxu0 %v2168
      %v2575 = vpop.f32.mrb[0].mxu0
      %v2576 = vadd.f32 %v255, %v2575
      %v2577 = vpop.f32.mrb[0].mxu0
      %2578 = vmatprep.mubr.f32.mxu0 0.0
      %2579 = vmatmul.mubr.f32.gmra.mrb[0].mxu0 %v2171
      %v2580 = vpop.f32.mrb[0].mxu0
      %v2581 = vadd.f32 %v255, %v2580
      %v2582 = vpop.f32.mrb[0].mxu0
      %2583 = vmatprep.mubr.f32.mxu0 0.0
      %2584 = vmatmul.mubr.f32.gmra.mrb[0].mxu0 %v2174
      %v2585 = vpop.f32.mrb[0].mxu0
      %v2586 = vadd.f32 %v255, %v2585
      %v2587 = vpop.f32.mrb[0].mxu0
      %2588 = vmatprep.mubr.f32.mxu0 0.0
      %2589 = vmatmul.mubr.f32.gmra.mrb[0].mxu0 %v2177
      %v2590 = vpop.f32.mrb[0].mxu0
      %v2591 = vadd.f32 %v255, %v2590
      %v2592 = vpop.f32.mrb[0].mxu0
      %2593 = vmatprep.mubr.f32.mxu0 0.0
      %2594 = vmatmul.mubr.f32.gmra.mrb[0].mxu0 %v2180
      %v2595 = vpop.f32.mrb[0].mxu0
      %v2596 = vadd.f32 %v255, %v2595
      %v2597 = vpop.f32.mrb[0].mxu0
      %2598 = vmatprep.mubr.f32.mxu0 0.0
      %2599 = vmatmul.mubr.f32.gmra.mrb[0].mxu0 %v2183
      %v2600 = vpop.f32.mrb[0].mxu0
      %v2601 = vadd.f32 %v255, %v2600
      %v2602 = vpop.f32.mrb[0].mxu0
      %2603 = vmatprep.mubr.f32.mxu0 0.0
      %2604 = vmatmul.mubr.f32.gmra.mrb[0].mxu0 %v2186
      %v2605 = vpop.f32.mrb[0].mxu0
      %v2606 = vadd.f32 %v255, %v2605
      %v2607 = vpop.f32.mrb[0].mxu0
      %2608 = vmatprep.mubr.f32.mxu0 0.0
      %2609 = vmatmul.mubr.f32.gmra.mrb[0].mxu0 %v2189
      %v2610 = vpop.f32.mrb[0].mxu0
      %v2611 = vadd.f32 %v255, %v2610
      %v2612 = vpop.f32.mrb[0].mxu0
      %2613 = vmatprep.mubr.f32.mxu0 0.0
      %2614 = vmatmul.mubr.f32.gmra.mrb[0].mxu0 %v2192
      %v2615 = vpop.f32.mrb[0].mxu0
      %v2616 = vadd.f32 %v255, %v2615
      %v2617 = vpop.f32.mrb[0].mxu0
      %2618 = vdwg.mxu0
      %v2619 = vmax.f32 %v2261, 0.0
      %v2620 = vmax.f32 %v2266, 0.0
      %v2621 = vmax.f32 %v2271, 0.0
      %v2622 = vmax.f32 %v2276, 0.0
      %v2623 = vmax.f32 %v2281, 0.0
      %v2624 = vmax.f32 %v2286, 0.0
      %v2625 = vmax.f32 %v2291, 0.0
      %v2626 = vmax.f32 %v2296, 0.0
      %v2627 = vmax.f32 %v2301, 0.0
      %v2628 = vmax.f32 %v2306, 0.0
      %v2629 = vmax.f32 %v2311, 0.0
      %v2630 = vmax.f32 %v2316, 0.0
      %v2631 = vmax.f32 %v2321, 0.0
      %v2632 = vmax.f32 %v2326, 0.0
      %v2633 = vmax.f32 %v2331, 0.0
      %v2634 = vmax.f32 %v2336, 0.0
      %v2635 = vmax.f32 %v2341, 0.0
      %v2636 = vmax.f32 %v2346, 0.0
      %v2637 = vmax.f32 %v2351, 0.0
      %v2638 = vmax.f32 %v2356, 0.0
      %v2639 = vmax.f32 %v2361, 0.0
      %v2640 = vmax.f32 %v2366, 0.0
      %v2641 = vmax.f32 %v2371, 0.0
      %v2642 = vmax.f32 %v2376, 0.0
      %v2643 = vmax.f32 %v2381, 0.0
      %v2644 = vmax.f32 %v2386, 0.0
      %v2645 = vmax.f32 %v2391, 0.0
      %v2646 = vmax.f32 %v2396, 0.0
      %v2647 = vmax.f32 %v2401, 0.0
      %v2648 = vmax.f32 %v2406, 0.0
      %v2649 = vmax.f32 %v2411, 0.0
      %v2650 = vmax.f32 %v2416, 0.0
      %v2651 = vmax.f32 %v2421, 0.0
      %v2652 = vmax.f32 %v2426, 0.0
      %v2653 = vmax.f32 %v2431, 0.0
      %v2654 = vmax.f32 %v2436, 0.0
      %v2655 = vmax.f32 %v2441, 0.0
      %v2656 = vmax.f32 %v2446, 0.0
      %v2657 = vmax.f32 %v2451, 0.0
      %v2658 = vmax.f32 %v2456, 0.0
      %v2659 = vmax.f32 %v2461, 0.0
      %v2660 = vmax.f32 %v2466, 0.0
      %v2661 = vmax.f32 %v2471, 0.0
      %v2662 = vmax.f32 %v2476, 0.0
      %v2663 = vmax.f32 %v2481, 0.0
      %v2664 = vmax.f32 %v2486, 0.0
      %v2665 = vmax.f32 %v2491, 0.0
      %v2666 = vmax.f32 %v2496, 0.0
      %v2667 = vmax.f32 %v2501, 0.0
      %v2668 = vmax.f32 %v2506, 0.0
      %v2669 = vmax.f32 %v2511, 0.0
      %v2670 = vmax.f32 %v2516, 0.0
      %v2671 = vmax.f32 %v2521, 0.0
      %v2672 = vmax.f32 %v2526, 0.0
      %v2673 = vmax.f32 %v2531, 0.0
      %v2674 = vmax.f32 %v2536, 0.0
      %v2675 = vmax.f32 %v2541, 0.0
      %v2676 = vmax.f32 %v2546, 0.0
      %v2677 = vmax.f32 %v2551, 0.0
      %v2678 = vmax.f32 %v2556, 0.0
      %v2679 = vmax.f32 %v2561, 0.0
      %v2680 = vmax.f32 %v2566, 0.0
      %v2681 = vmax.f32 %v2571, 0.0
      %v2682 = vmax.f32 %v2576, 0.0
      %v2683 = vmax.f32 %v2581, 0.0
      %v2684 = vmax.f32 %v2586, 0.0
      %v2685 = vmax.f32 %v2591, 0.0
      %v2686 = vmax.f32 %v2596, 0.0
      %v2687 = vmax.f32 %v2601, 0.0
      %v2688 = vmax.f32 %v2606, 0.0
      %v2689 = vmax.f32 %v2611, 0.0
      %v2690 = vmax.f32 %v2616, 0.0
      %v2691 = vadd.f32 %v1833, %v2619
      %v2692 = vadd.f32 %v1834, %v2620
      %v2693 = vadd.f32 %v1835, %v2621
      %v2694 = vadd.f32 %v1836, %v2622
      %v2695 = vadd.f32 %v1837, %v2623
      %v2696 = vadd.f32 %v1838, %v2624
      %v2697 = vadd.f32 %v1839, %v2625
      %v2698 = vadd.f32 %v1840, %v2626
      %v2699 = vadd.f32 %v1841, %v2627
      %v2700 = vadd.f32 %v1842, %v2628
      %v2701 = vadd.f32 %v1843, %v2629
      %v2702 = vadd.f32 %v1844, %v2630
      %v2703 = vadd.f32 %v1845, %v2631
      %v2704 = vadd.f32 %v1846, %v2632
      %v2705 = vadd.f32 %v1847, %v2633
      %v2706 = vadd.f32 %v1848, %v2634
      %v2707 = vadd.f32 %v1849, %v2635
      %v2708 = vadd.f32 %v1850, %v2636
      %v2709 = vadd.f32 %v1851, %v2637
      %v2710 = vadd.f32 %v1852, %v2638
      %v2711 = vadd.f32 %v1853, %v2639
      %v2712 = vadd.f32 %v1854, %v2640
      %v2713 = vadd.f32 %v1855, %v2641
      %v2714 = vadd.f32 %v1856, %v2642
      %v2715 = vadd.f32 %v1857, %v2643
      %v2716 = vadd.f32 %v1858, %v2644
      %v2717 = vadd.f32 %v1859, %v2645
      %v2718 = vadd.f32 %v1860, %v2646
      %v2719 = vadd.f32 %v1861, %v2647
      %v2720 = vadd.f32 %v1862, %v2648
      %v2721 = vadd.f32 %v1863, %v2649
      %v2722 = vadd.f32 %v1864, %v2650
      %v2723 = vadd.f32 %v1865, %v2651
      %v2724 = vadd.f32 %v1866, %v2652
      %v2725 = vadd.f32 %v1867, %v2653
      %v2726 = vadd.f32 %v1868, %v2654
      %v2727 = vadd.f32 %v1869, %v2655
      %v2728 = vadd.f32 %v1870, %v2656
      %v2729 = vadd.f32 %v1871, %v2657
      %v2730 = vadd.f32 %v1872, %v2658
      %v2731 = vadd.f32 %v1873, %v2659
      %v2732 = vadd.f32 %v1874, %v2660
      %v2733 = vadd.f32 %v1875, %v2661
      %v2734 = vadd.f32 %v1876, %v2662
      %v2735 = vadd.f32 %v1877, %v2663
      %v2736 = vadd.f32 %v1878, %v2664
      %v2737 = vadd.f32 %v1879, %v2665
      %v2738 = vadd.f32 %v1880, %v2666
      %v2739 = vadd.f32 %v1881, %v2667
      %v2740 = vadd.f32 %v1882, %v2668
      %v2741 = vadd.f32 %v1883, %v2669
      %v2742 = vadd.f32 %v1884, %v2670
      %v2743 = vadd.f32 %v1885, %v2671
      %v2744 = vadd.f32 %v1886, %v2672
      %v2745 = vadd.f32 %v1887, %v2673
      %v2746 = vadd.f32 %v1888, %v2674
      %v2747 = vadd.f32 %v1889, %v2675
      %v2748 = vadd.f32 %v1890, %v2676
      %v2749 = vadd.f32 %v1891, %v2677
      %v2750 = vadd.f32 %v1892, %v2678
      %v2751 = vadd.f32 %v1893, %v2679
      %v2752 = vadd.f32 %v1894, %v2680
      %v2753 = vadd.f32 %v1895, %v2681
      %v2754 = vadd.f32 %v1896, %v2682
      %v2755 = vadd.f32 %v1897, %v2683
      %v2756 = vadd.f32 %v1898, %v2684
      %v2757 = vadd.f32 %v1899, %v2685
      %v2758 = vadd.f32 %v1900, %v2686
      %v2759 = vadd.f32 %v1901, %v2687
      %v2760 = vadd.f32 %v1902, %v2688
      %v2761 = vadd.f32 %v1903, %v2689
      %v2762 = vadd.f32 %v1904, %v2690
      %s2763 = scalar_lea.vmem %s169, 1728
      %v2764 = vld [vmem:[%s2763] sm:$0xff]
      %v2765 = vld [vmem:[%s2763 + $0x8] sm:$0xff]
      %v2766 = vld [vmem:[%s2763 + $0x10] sm:$0xff]
      %v2767 = vld [vmem:[%s2763 + $0x18] sm:$0xff]
      %v2768 = vld [vmem:[%s2763 + $0x20] sm:$0xff]
      %v2769 = vld [vmem:[%s2763 + $0x28] sm:$0xff]
      %v2770 = vld [vmem:[%s2763 + $0x30] sm:$0xff]
      %v2771 = vld [vmem:[%s2763 + $0x38] sm:$0xff]
      %v2772 = vld [vmem:[%s2763 + $0x40] sm:$0xff]
      %v2773 = vld [vmem:[%s2763 + $0x48] sm:$0xff]
      %v2774 = vld [vmem:[%s2763 + $0x50] sm:$0xff]
      %v2775 = vld [vmem:[%s2763 + $0x58] sm:$0xff]
      %v2776 = vld [vmem:[%s2763 + $0x60] sm:$0xff]
      %v2777 = vld [vmem:[%s2763 + $0x68] sm:$0xff]
      %v2778 = vld [vmem:[%s2763 + $0x70] sm:$0xff]
      %v2779 = vld [vmem:[%s2763 + $0x78] sm:$0xff]
      %v2780 = vld [vmem:[%s2763 + $0x80] sm:$0xff]
      %v2781 = vld [vmem:[%s2763 + $0x88] sm:$0xff]
      %v2782 = vld [vmem:[%s2763 + $0x90] sm:$0xff]
      %v2783 = vld [vmem:[%s2763 + $0x98] sm:$0xff]
      %v2784 = vld [vmem:[%s2763 + $0xa0] sm:$0xff]
      %v2785 = vld [vmem:[%s2763 + $0xa8] sm:$0xff]
      %v2786 = vld [vmem:[%s2763 + $0xb0] sm:$0xff]
      %v2787 = vld [vmem:[%s2763 + $0xb8] sm:$0xff]
      %v2788 = vld [vmem:[%s2763 + $0xc0] sm:$0xff]
      %v2789 = vld [vmem:[%s2763 + $0xc8] sm:$0xff]
      %v2790 = vld [vmem:[%s2763 + $0xd0] sm:$0xff]
      %v2791 = vld [vmem:[%s2763 + $0xd8] sm:$0xff]
      %v2792 = vld [vmem:[%s2763 + $0xe0] sm:$0xff]
      %v2793 = vld [vmem:[%s2763 + $0xe8] sm:$0xff]
      %v2794 = vld [vmem:[%s2763 + $0xf0] sm:$0xff]
      %v2795 = vld [vmem:[%s2763 + $0xf8] sm:$0xff]
      %v2796 = vld [vmem:[%s2763 + $0x100] sm:$0xff]
      %v2797 = vld [vmem:[%s2763 + $0x108] sm:$0xff]
      %v2798 = vld [vmem:[%s2763 + $0x110] sm:$0xff]
      %v2799 = vld [vmem:[%s2763 + $0x118] sm:$0xff]
      %v2800 = vld [vmem:[%s2763 + $0x120] sm:$0xff]
      %v2801 = vld [vmem:[%s2763 + $0x128] sm:$0xff]
      %v2802 = vld [vmem:[%s2763 + $0x130] sm:$0xff]
      %v2803 = vld [vmem:[%s2763 + $0x138] sm:$0xff]
      %v2804 = vld [vmem:[%s2763 + $0x140] sm:$0xff]
      %v2805 = vld [vmem:[%s2763 + $0x148] sm:$0xff]
      %v2806 = vld [vmem:[%s2763 + $0x150] sm:$0xff]
      %v2807 = vld [vmem:[%s2763 + $0x158] sm:$0xff]
      %v2808 = vld [vmem:[%s2763 + $0x160] sm:$0xff]
      %v2809 = vld [vmem:[%s2763 + $0x168] sm:$0xff]
      %v2810 = vld [vmem:[%s2763 + $0x170] sm:$0xff]
      %v2811 = vld [vmem:[%s2763 + $0x178] sm:$0xff]
      %v2812 = vld [vmem:[%s2763 + $0x180] sm:$0xff]
      %v2813 = vld [vmem:[%s2763 + $0x188] sm:$0xff]
      %v2814 = vld [vmem:[%s2763 + $0x190] sm:$0xff]
      %v2815 = vld [vmem:[%s2763 + $0x198] sm:$0xff]
      %v2816 = vld [vmem:[%s2763 + $0x1a0] sm:$0xff]
      %v2817 = vld [vmem:[%s2763 + $0x1a8] sm:$0xff]
      %v2818 = vld [vmem:[%s2763 + $0x1b0] sm:$0xff]
      %v2819 = vld [vmem:[%s2763 + $0x1b8] sm:$0xff]
      %v2820 = vld [vmem:[%s2763 + $0x1c0] sm:$0xff]
      %v2821 = vld [vmem:[%s2763 + $0x1c8] sm:$0xff]
      %v2822 = vld [vmem:[%s2763 + $0x1d0] sm:$0xff]
      %v2823 = vld [vmem:[%s2763 + $0x1d8] sm:$0xff]
      %v2824 = vld [vmem:[%s2763 + $0x1e0] sm:$0xff]
      %v2825 = vld [vmem:[%s2763 + $0x1e8] sm:$0xff]
      %v2826 = vld [vmem:[%s2763 + $0x1f0] sm:$0xff]
      %v2827 = vld [vmem:[%s2763 + $0x1f8] sm:$0xff]
      %v2828 = vld [vmem:[%s2763 + $0x200] sm:$0xff]
      %v2829 = vld [vmem:[%s2763 + $0x208] sm:$0xff]
      %v2830 = vld [vmem:[%s2763 + $0x210] sm:$0xff]
      %v2831 = vld [vmem:[%s2763 + $0x218] sm:$0xff]
      %v2832 = vld [vmem:[%s2763 + $0x220] sm:$0xff]
      %v2833 = vld [vmem:[%s2763 + $0x228] sm:$0xff]
      %v2834 = vld [vmem:[%s2763 + $0x230] sm:$0xff]
      %v2835 = vld [vmem:[%s2763 + $0x238] sm:$0xff]
      %v2837 = vsel %vm257, %v2764, 0
      %v2840 = vsel %vm257, %v2765, 0
      %v2843 = vsel %vm257, %v2766, 0
      %v2846 = vsel %vm257, %v2767, 0
      %v2849 = vsel %vm257, %v2768, 0
      %v2852 = vsel %vm257, %v2769, 0
      %v2855 = vsel %vm257, %v2770, 0
      %v2858 = vsel %vm257, %v2771, 0
      %v2861 = vsel %vm257, %v2772, 0
      %v2864 = vsel %vm257, %v2773, 0
      %v2867 = vsel %vm257, %v2774, 0
      %v2870 = vsel %vm257, %v2775, 0
      %v2873 = vsel %vm257, %v2776, 0
      %v2876 = vsel %vm257, %v2777, 0
      %v2879 = vsel %vm257, %v2778, 0
      %v2882 = vsel %vm257, %v2779, 0
      %v2885 = vsel %vm257, %v2780, 0
      %v2888 = vsel %vm257, %v2781, 0
      %v2891 = vsel %vm257, %v2782, 0
      %v2894 = vsel %vm257, %v2783, 0
      %v2897 = vsel %vm257, %v2784, 0
      %v2900 = vsel %vm257, %v2785, 0
      %v2903 = vsel %vm257, %v2786, 0
      %v2906 = vsel %vm257, %v2787, 0
      %v2909 = vsel %vm257, %v2788, 0
      %v2912 = vsel %vm257, %v2789, 0
      %v2915 = vsel %vm257, %v2790, 0
      %v2918 = vsel %vm257, %v2791, 0
      %v2921 = vsel %vm257, %v2792, 0
      %v2924 = vsel %vm257, %v2793, 0
      %v2927 = vsel %vm257, %v2794, 0
      %v2930 = vsel %vm257, %v2795, 0
      %v2933 = vsel %vm257, %v2796, 0
      %v2936 = vsel %vm257, %v2797, 0
      %v2939 = vsel %vm257, %v2798, 0
      %v2942 = vsel %vm257, %v2799, 0
      %v2945 = vsel %vm257, %v2800, 0
      %v2948 = vsel %vm257, %v2801, 0
      %v2951 = vsel %vm257, %v2802, 0
      %v2954 = vsel %vm257, %v2803, 0
      %v2957 = vsel %vm257, %v2804, 0
      %v2960 = vsel %vm257, %v2805, 0
      %v2963 = vsel %vm257, %v2806, 0
      %v2966 = vsel %vm257, %v2807, 0
      %v2969 = vsel %vm257, %v2808, 0
      %v2972 = vsel %vm257, %v2809, 0
      %v2975 = vsel %vm257, %v2810, 0
      %v2978 = vsel %vm257, %v2811, 0
      %v2981 = vsel %vm257, %v2812, 0
      %v2984 = vsel %vm257, %v2813, 0
      %v2987 = vsel %vm257, %v2814, 0
      %v2990 = vsel %vm257, %v2815, 0
      %v2993 = vsel %vm257, %v2816, 0
      %v2996 = vsel %vm257, %v2817, 0
      %v2999 = vsel %vm257, %v2818, 0
      %v3002 = vsel %vm257, %v2819, 0
      %v3005 = vsel %vm257, %v2820, 0
      %v3008 = vsel %vm257, %v2821, 0
      %v3011 = vsel %vm257, %v2822, 0
      %v3014 = vsel %vm257, %v2823, 0
      %v3017 = vsel %vm257, %v2824, 0
      %v3020 = vsel %vm257, %v2825, 0
      %v3023 = vsel %vm257, %v2826, 0
      %v3026 = vsel %vm257, %v2827, 0
      %v3029 = vsel %vm257, %v2828, 0
      %v3032 = vsel %vm257, %v2829, 0
      %v3035 = vsel %vm257, %v2830, 0
      %v3038 = vsel %vm257, %v2831, 0
      %v3041 = vsel %vm257, %v2832, 0
      %v3044 = vsel %vm257, %v2833, 0
      %v3047 = vsel %vm257, %v2834, 0
      %v3050 = vsel %vm257, %v2835, 0
      %3052 = vmatprep.subr.mxu0 0.0
      %3053 = vmatpush1.msra.mxu0 %v176
      %3054 = vmatprep.subr.mxu0 0.0
      %3055 = vmatpush1.msra.mxu0 %v476
      %3056 = vmatprep.subr.mxu0 0.0
      %3057 = vmatpush1.msra.mxu0 0.0
      %3058 = vmatprep.subr.mxu0 0.0
      %3059 = vmatpush1.msra.mxu0 0.0
      %3060 = vmatprep.subr.mxu0 0.0
      %3061 = vmatpush1.msra.mxu0 0.0
      %3062 = vmatprep.subr.mxu0 0.0
      %3063 = vmatpush1.msra.mxu0 0.0
      %3064 = vmatprep.subr.mxu0 0.0
      %3065 = vmatpush1.msra.mxu0 0.0
      %3066 = vmatprep.subr.mxu0 0.0
      %3067 = vmatpush1.msra.mxu0 0.0
      %3068 = vmatprep.subr.mxu0 0.0
      %3069 = vmatpush1.msra.mxu0 0.0
      %3070 = vmatprep.subr.mxu0 0.0
      %3071 = vmatpush1.msra.mxu0 0.0
      %3072 = vmatprep.subr.mxu0 0.0
      %3073 = vmatpush1.msra.mxu0 0.0
      %3074 = vmatprep.subr.mxu0 0.0
      %3075 = vmatpush1.msra.mxu0 0.0
      %3076 = vmatprep.subr.mxu0 0.0
      %3077 = vmatpush1.msra.mxu0 0.0
      %3078 = vmatprep.subr.mxu0 0.0
      %3079 = vmatpush1.msra.mxu0 0.0
      %3080 = vmatprep.subr.mxu0 0.0
      %3081 = vmatpush1.msra.mxu0 0.0
      %3082 = vmatprep.subr.mxu0 0.0
      %3083 = vmatpush1.msra.mxu0 0.0
      %3084 = vmatprep.subr.mxu0 0.0
      %3085 = vmatpush1.msra.mxu0 0.0
      %3086 = vmatprep.subr.mxu0 0.0
      %3087 = vmatpush1.msra.mxu0 0.0
      %3088 = vmatprep.subr.mxu0 0.0
      %3089 = vmatpush1.msra.mxu0 0.0
      %3090 = vmatprep.subr.mxu0 0.0
      %3091 = vmatpush1.msra.mxu0 0.0
      %3092 = vmatprep.subr.mxu0 0.0
      %3093 = vmatpush1.msra.mxu0 0.0
      %3094 = vmatprep.subr.mxu0 0.0
      %3095 = vmatpush1.msra.mxu0 0.0
      %3096 = vmatprep.subr.mxu0 0.0
      %3097 = vmatpush1.msra.mxu0 0.0
      %3098 = vmatprep.subr.mxu0 0.0
      %3099 = vmatpush1.msra.mxu0 0.0
      %3100 = vmatprep.subr.mxu0 0.0
      %3101 = vmatpush1.msra.mxu0 0.0
      %3102 = vmatprep.subr.mxu0 0.0
      %3103 = vmatpush1.msra.mxu0 0.0
      %3104 = vmatprep.subr.mxu0 0.0
      %3105 = vmatpush1.msra.mxu0 0.0
      %3106 = vmatprep.subr.mxu0 0.0
      %3107 = vmatpush1.msra.mxu0 0.0
      %3108 = vmatprep.subr.mxu0 0.0
      %3109 = vmatpush1.msra.mxu0 0.0
      %3110 = vmatprep.subr.mxu0 0.0
      %3111 = vmatpush1.msra.mxu0 0.0
      %3112 = vmatprep.subr.mxu0 0.0
      %3113 = vmatpush1.msra.mxu0 0.0
      %3114 = vmatprep.subr.mxu0 0.0
      %3115 = vmatpush1.msra.mxu0 0.0
      %3116 = vmatprep.mubr.f32.mxu0 0.0
      %3117 = vmatmul.mubr.f32.gmra.mrb[0].mxu0 %v2837
      %v3118 = vpop.f32.mrb[0].mxu0
      %v3119 = vadd.f32 %v255, %v3118
      %v3120 = vpop.f32.mrb[0].mxu0
      %3121 = vmatprep.mubr.f32.mxu0 0.0
      %3122 = vmatmul.mubr.f32.gmra.mrb[0].mxu0 %v2840
      %v3123 = vpop.f32.mrb[0].mxu0
      %v3124 = vadd.f32 %v255, %v3123
      %v3125 = vpop.f32.mrb[0].mxu0
      %3126 = vmatprep.mubr.f32.mxu0 0.0
      %3127 = vmatmul.mubr.f32.gmra.mrb[0].mxu0 %v2843
      %v3128 = vpop.f32.mrb[0].mxu0
      %v3129 = vadd.f32 %v255, %v3128
      %v3130 = vpop.f32.mrb[0].mxu0
      %3131 = vmatprep.mubr.f32.mxu0 0.0
      %3132 = vmatmul.mubr.f32.gmra.mrb[0].mxu0 %v2846
      %v3133 = vpop.f32.mrb[0].mxu0
      %v3134 = vadd.f32 %v255, %v3133
      %v3135 = vpop.f32.mrb[0].mxu0
      %3136 = vmatprep.mubr.f32.mxu0 0.0
      %3137 = vmatmul.mubr.f32.gmra.mrb[0].mxu0 %v2849
      %v3138 = vpop.f32.mrb[0].mxu0
      %v3139 = vadd.f32 %v255, %v3138
      %v3140 = vpop.f32.mrb[0].mxu0
      %3141 = vmatprep.mubr.f32.mxu0 0.0
      %3142 = vmatmul.mubr.f32.gmra.mrb[0].mxu0 %v2852
      %v3143 = vpop.f32.mrb[0].mxu0
      %v3144 = vadd.f32 %v255, %v3143
      %v3145 = vpop.f32.mrb[0].mxu0
      %3146 = vmatprep.mubr.f32.mxu0 0.0
      %3147 = vmatmul.mubr.f32.gmra.mrb[0].mxu0 %v2855
      %v3148 = vpop.f32.mrb[0].mxu0
      %v3149 = vadd.f32 %v255, %v3148
      %v3150 = vpop.f32.mrb[0].mxu0
      %3151 = vmatprep.mubr.f32.mxu0 0.0
      %3152 = vmatmul.mubr.f32.gmra.mrb[0].mxu0 %v2858
      %v3153 = vpop.f32.mrb[0].mxu0
      %v3154 = vadd.f32 %v255, %v3153
      %v3155 = vpop.f32.mrb[0].mxu0
      %3156 = vmatprep.mubr.f32.mxu0 0.0
      %3157 = vmatmul.mubr.f32.gmra.mrb[0].mxu0 %v2861
      %v3158 = vpop.f32.mrb[0].mxu0
      %v3159 = vadd.f32 %v255, %v3158
      %v3160 = vpop.f32.mrb[0].mxu0
      %3161 = vmatprep.mubr.f32.mxu0 0.0
      %3162 = vmatmul.mubr.f32.gmra.mrb[0].mxu0 %v2864
      %v3163 = vpop.f32.mrb[0].mxu0
      %v3164 = vadd.f32 %v255, %v3163
      %v3165 = vpop.f32.mrb[0].mxu0
      %3166 = vmatprep.mubr.f32.mxu0 0.0
      %3167 = vmatmul.mubr.f32.gmra.mrb[0].mxu0 %v2867
      %v3168 = vpop.f32.mrb[0].mxu0
      %v3169 = vadd.f32 %v255, %v3168
      %v3170 = vpop.f32.mrb[0].mxu0
      %3171 = vmatprep.mubr.f32.mxu0 0.0
      %3172 = vmatmul.mubr.f32.gmra.mrb[0].mxu0 %v2870
      %v3173 = vpop.f32.mrb[0].mxu0
      %v3174 = vadd.f32 %v255, %v3173
      %v3175 = vpop.f32.mrb[0].mxu0
      %3176 = vmatprep.mubr.f32.mxu0 0.0
      %3177 = vmatmul.mubr.f32.gmra.mrb[0].mxu0 %v2873
      %v3178 = vpop.f32.mrb[0].mxu0
      %v3179 = vadd.f32 %v255, %v3178
      %v3180 = vpop.f32.mrb[0].mxu0
      %3181 = vmatprep.mubr.f32.mxu0 0.0
      %3182 = vmatmul.mubr.f32.gmra.mrb[0].mxu0 %v2876
      %v3183 = vpop.f32.mrb[0].mxu0
      %v3184 = vadd.f32 %v255, %v3183
      %v3185 = vpop.f32.mrb[0].mxu0
      %3186 = vmatprep.mubr.f32.mxu0 0.0
      %3187 = vmatmul.mubr.f32.gmra.mrb[0].mxu0 %v2879
      %v3188 = vpop.f32.mrb[0].mxu0
      %v3189 = vadd.f32 %v255, %v3188
      %v3190 = vpop.f32.mrb[0].mxu0
      %3191 = vmatprep.mubr.f32.mxu0 0.0
      %3192 = vmatmul.mubr.f32.gmra.mrb[0].mxu0 %v2882
      %v3193 = vpop.f32.mrb[0].mxu0
      %v3194 = vadd.f32 %v255, %v3193
      %v3195 = vpop.f32.mrb[0].mxu0
      %3196 = vmatprep.mubr.f32.mxu0 0.0
      %3197 = vmatmul.mubr.f32.gmra.mrb[0].mxu0 %v2885
      %v3198 = vpop.f32.mrb[0].mxu0
      %v3199 = vadd.f32 %v255, %v3198
      %v3200 = vpop.f32.mrb[0].mxu0
      %3201 = vmatprep.mubr.f32.mxu0 0.0
      %3202 = vmatmul.mubr.f32.gmra.mrb[0].mxu0 %v2888
      %v3203 = vpop.f32.mrb[0].mxu0
      %v3204 = vadd.f32 %v255, %v3203
      %v3205 = vpop.f32.mrb[0].mxu0
      %3206 = vmatprep.mubr.f32.mxu0 0.0
      %3207 = vmatmul.mubr.f32.gmra.mrb[0].mxu0 %v2891
      %v3208 = vpop.f32.mrb[0].mxu0
      %v3209 = vadd.f32 %v255, %v3208
      %v3210 = vpop.f32.mrb[0].mxu0
      %3211 = vmatprep.mubr.f32.mxu0 0.0
      %3212 = vmatmul.mubr.f32.gmra.mrb[0].mxu0 %v2894
      %v3213 = vpop.f32.mrb[0].mxu0
      %v3214 = vadd.f32 %v255, %v3213
      %v3215 = vpop.f32.mrb[0].mxu0
      %3216 = vmatprep.mubr.f32.mxu0 0.0
      %3217 = vmatmul.mubr.f32.gmra.mrb[0].mxu0 %v2897
      %v3218 = vpop.f32.mrb[0].mxu0
      %v3219 = vadd.f32 %v255, %v3218
      %v3220 = vpop.f32.mrb[0].mxu0
      %3221 = vmatprep.mubr.f32.mxu0 0.0
      %3222 = vmatmul.mubr.f32.gmra.mrb[0].mxu0 %v2900
      %v3223 = vpop.f32.mrb[0].mxu0
      %v3224 = vadd.f32 %v255, %v3223
      %v3225 = vpop.f32.mrb[0].mxu0
      %3226 = vmatprep.mubr.f32.mxu0 0.0
      %3227 = vmatmul.mubr.f32.gmra.mrb[0].mxu0 %v2903
      %v3228 = vpop.f32.mrb[0].mxu0
      %v3229 = vadd.f32 %v255, %v3228
      %v3230 = vpop.f32.mrb[0].mxu0
      %3231 = vmatprep.mubr.f32.mxu0 0.0
      %3232 = vmatmul.mubr.f32.gmra.mrb[0].mxu0 %v2906
      %v3233 = vpop.f32.mrb[0].mxu0
      %v3234 = vadd.f32 %v255, %v3233
      %v3235 = vpop.f32.mrb[0].mxu0
      %3236 = vmatprep.mubr.f32.mxu0 0.0
      %3237 = vmatmul.mubr.f32.gmra.mrb[0].mxu0 %v2909
      %v3238 = vpop.f32.mrb[0].mxu0
      %v3239 = vadd.f32 %v255, %v3238
      %v3240 = vpop.f32.mrb[0].mxu0
      %3241 = vmatprep.mubr.f32.mxu0 0.0
      %3242 = vmatmul.mubr.f32.gmra.mrb[0].mxu0 %v2912
      %v3243 = vpop.f32.mrb[0].mxu0
      %v3244 = vadd.f32 %v255, %v3243
      %v3245 = vpop.f32.mrb[0].mxu0
      %3246 = vmatprep.mubr.f32.mxu0 0.0
      %3247 = vmatmul.mubr.f32.gmra.mrb[0].mxu0 %v2915
      %v3248 = vpop.f32.mrb[0].mxu0
      %v3249 = vadd.f32 %v255, %v3248
      %v3250 = vpop.f32.mrb[0].mxu0
      %3251 = vmatprep.mubr.f32.mxu0 0.0
      %3252 = vmatmul.mubr.f32.gmra.mrb[0].mxu0 %v2918
      %v3253 = vpop.f32.mrb[0].mxu0
      %v3254 = vadd.f32 %v255, %v3253
      %v3255 = vpop.f32.mrb[0].mxu0
      %3256 = vmatprep.mubr.f32.mxu0 0.0
      %3257 = vmatmul.mubr.f32.gmra.mrb[0].mxu0 %v2921
      %v3258 = vpop.f32.mrb[0].mxu0
      %v3259 = vadd.f32 %v255, %v3258
      %v3260 = vpop.f32.mrb[0].mxu0
      %3261 = vmatprep.mubr.f32.mxu0 0.0
      %3262 = vmatmul.mubr.f32.gmra.mrb[0].mxu0 %v2924
      %v3263 = vpop.f32.mrb[0].mxu0
      %v3264 = vadd.f32 %v255, %v3263
      %v3265 = vpop.f32.mrb[0].mxu0
      %3266 = vmatprep.mubr.f32.mxu0 0.0
      %3267 = vmatmul.mubr.f32.gmra.mrb[0].mxu0 %v2927
      %v3268 = vpop.f32.mrb[0].mxu0
      %v3269 = vadd.f32 %v255, %v3268
      %v3270 = vpop.f32.mrb[0].mxu0
      %3271 = vmatprep.mubr.f32.mxu0 0.0
      %3272 = vmatmul.mubr.f32.gmra.mrb[0].mxu0 %v2930
      %v3273 = vpop.f32.mrb[0].mxu0
      %v3274 = vadd.f32 %v255, %v3273
      %v3275 = vpop.f32.mrb[0].mxu0
      %3276 = vmatprep.mubr.f32.mxu0 0.0
      %3277 = vmatmul.mubr.f32.gmra.mrb[0].mxu0 %v2933
      %v3278 = vpop.f32.mrb[0].mxu0
      %v3279 = vadd.f32 %v255, %v3278
      %v3280 = vpop.f32.mrb[0].mxu0
      %3281 = vmatprep.mubr.f32.mxu0 0.0
      %3282 = vmatmul.mubr.f32.gmra.mrb[0].mxu0 %v2936
      %v3283 = vpop.f32.mrb[0].mxu0
      %v3284 = vadd.f32 %v255, %v3283
      %v3285 = vpop.f32.mrb[0].mxu0
      %3286 = vmatprep.mubr.f32.mxu0 0.0
      %3287 = vmatmul.mubr.f32.gmra.mrb[0].mxu0 %v2939
      %v3288 = vpop.f32.mrb[0].mxu0
      %v3289 = vadd.f32 %v255, %v3288
      %v3290 = vpop.f32.mrb[0].mxu0
      %3291 = vmatprep.mubr.f32.mxu0 0.0
      %3292 = vmatmul.mubr.f32.gmra.mrb[0].mxu0 %v2942
      %v3293 = vpop.f32.mrb[0].mxu0
      %v3294 = vadd.f32 %v255, %v3293
      %v3295 = vpop.f32.mrb[0].mxu0
      %3296 = vmatprep.mubr.f32.mxu0 0.0
      %3297 = vmatmul.mubr.f32.gmra.mrb[0].mxu0 %v2945
      %v3298 = vpop.f32.mrb[0].mxu0
      %v3299 = vadd.f32 %v255, %v3298
      %v3300 = vpop.f32.mrb[0].mxu0
      %3301 = vmatprep.mubr.f32.mxu0 0.0
      %3302 = vmatmul.mubr.f32.gmra.mrb[0].mxu0 %v2948
      %v3303 = vpop.f32.mrb[0].mxu0
      %v3304 = vadd.f32 %v255, %v3303
      %v3305 = vpop.f32.mrb[0].mxu0
      %3306 = vmatprep.mubr.f32.mxu0 0.0
      %3307 = vmatmul.mubr.f32.gmra.mrb[0].mxu0 %v2951
      %v3308 = vpop.f32.mrb[0].mxu0
      %v3309 = vadd.f32 %v255, %v3308
      %v3310 = vpop.f32.mrb[0].mxu0
      %3311 = vmatprep.mubr.f32.mxu0 0.0
      %3312 = vmatmul.mubr.f32.gmra.mrb[0].mxu0 %v2954
      %v3313 = vpop.f32.mrb[0].mxu0
      %v3314 = vadd.f32 %v255, %v3313
      %v3315 = vpop.f32.mrb[0].mxu0
      %3316 = vmatprep.mubr.f32.mxu0 0.0
      %3317 = vmatmul.mubr.f32.gmra.mrb[0].mxu0 %v2957
      %v3318 = vpop.f32.mrb[0].mxu0
      %v3319 = vadd.f32 %v255, %v3318
      %v3320 = vpop.f32.mrb[0].mxu0
      %3321 = vmatprep.mubr.f32.mxu0 0.0
      %3322 = vmatmul.mubr.f32.gmra.mrb[0].mxu0 %v2960
      %v3323 = vpop.f32.mrb[0].mxu0
      %v3324 = vadd.f32 %v255, %v3323
      %v3325 = vpop.f32.mrb[0].mxu0
      %3326 = vmatprep.mubr.f32.mxu0 0.0
      %3327 = vmatmul.mubr.f32.gmra.mrb[0].mxu0 %v2963
      %v3328 = vpop.f32.mrb[0].mxu0
      %v3329 = vadd.f32 %v255, %v3328
      %v3330 = vpop.f32.mrb[0].mxu0
      %3331 = vmatprep.mubr.f32.mxu0 0.0
      %3332 = vmatmul.mubr.f32.gmra.mrb[0].mxu0 %v2966
      %v3333 = vpop.f32.mrb[0].mxu0
      %v3334 = vadd.f32 %v255, %v3333
      %v3335 = vpop.f32.mrb[0].mxu0
      %3336 = vmatprep.mubr.f32.mxu0 0.0
      %3337 = vmatmul.mubr.f32.gmra.mrb[0].mxu0 %v2969
      %v3338 = vpop.f32.mrb[0].mxu0
      %v3339 = vadd.f32 %v255, %v3338
      %v3340 = vpop.f32.mrb[0].mxu0
      %3341 = vmatprep.mubr.f32.mxu0 0.0
      %3342 = vmatmul.mubr.f32.gmra.mrb[0].mxu0 %v2972
      %v3343 = vpop.f32.mrb[0].mxu0
      %v3344 = vadd.f32 %v255, %v3343
      %v3345 = vpop.f32.mrb[0].mxu0
      %3346 = vmatprep.mubr.f32.mxu0 0.0
      %3347 = vmatmul.mubr.f32.gmra.mrb[0].mxu0 %v2975
      %v3348 = vpop.f32.mrb[0].mxu0
      %v3349 = vadd.f32 %v255, %v3348
      %v3350 = vpop.f32.mrb[0].mxu0
      %3351 = vmatprep.mubr.f32.mxu0 0.0
      %3352 = vmatmul.mubr.f32.gmra.mrb[0].mxu0 %v2978
      %v3353 = vpop.f32.mrb[0].mxu0
      %v3354 = vadd.f32 %v255, %v3353
      %v3355 = vpop.f32.mrb[0].mxu0
      %3356 = vmatprep.mubr.f32.mxu0 0.0
      %3357 = vmatmul.mubr.f32.gmra.mrb[0].mxu0 %v2981
      %v3358 = vpop.f32.mrb[0].mxu0
      %v3359 = vadd.f32 %v255, %v3358
      %v3360 = vpop.f32.mrb[0].mxu0
      %3361 = vmatprep.mubr.f32.mxu0 0.0
      %3362 = vmatmul.mubr.f32.gmra.mrb[0].mxu0 %v2984
      %v3363 = vpop.f32.mrb[0].mxu0
      %v3364 = vadd.f32 %v255, %v3363
      %v3365 = vpop.f32.mrb[0].mxu0
      %3366 = vmatprep.mubr.f32.mxu0 0.0
      %3367 = vmatmul.mubr.f32.gmra.mrb[0].mxu0 %v2987
      %v3368 = vpop.f32.mrb[0].mxu0
      %v3369 = vadd.f32 %v255, %v3368
      %v3370 = vpop.f32.mrb[0].mxu0
      %3371 = vmatprep.mubr.f32.mxu0 0.0
      %3372 = vmatmul.mubr.f32.gmra.mrb[0].mxu0 %v2990
      %v3373 = vpop.f32.mrb[0].mxu0
      %v3374 = vadd.f32 %v255, %v3373
      %v3375 = vpop.f32.mrb[0].mxu0
      %3376 = vmatprep.mubr.f32.mxu0 0.0
      %3377 = vmatmul.mubr.f32.gmra.mrb[0].mxu0 %v2993
      %v3378 = vpop.f32.mrb[0].mxu0
      %v3379 = vadd.f32 %v255, %v3378
      %v3380 = vpop.f32.mrb[0].mxu0
      %3381 = vmatprep.mubr.f32.mxu0 0.0
      %3382 = vmatmul.mubr.f32.gmra.mrb[0].mxu0 %v2996
      %v3383 = vpop.f32.mrb[0].mxu0
      %v3384 = vadd.f32 %v255, %v3383
      %v3385 = vpop.f32.mrb[0].mxu0
      %3386 = vmatprep.mubr.f32.mxu0 0.0
      %3387 = vmatmul.mubr.f32.gmra.mrb[0].mxu0 %v2999
      %v3388 = vpop.f32.mrb[0].mxu0
      %v3389 = vadd.f32 %v255, %v3388
      %v3390 = vpop.f32.mrb[0].mxu0
      %3391 = vmatprep.mubr.f32.mxu0 0.0
      %3392 = vmatmul.mubr.f32.gmra.mrb[0].mxu0 %v3002
      %v3393 = vpop.f32.mrb[0].mxu0
      %v3394 = vadd.f32 %v255, %v3393
      %v3395 = vpop.f32.mrb[0].mxu0
      %3396 = vmatprep.mubr.f32.mxu0 0.0
      %3397 = vmatmul.mubr.f32.gmra.mrb[0].mxu0 %v3005
      %v3398 = vpop.f32.mrb[0].mxu0
      %v3399 = vadd.f32 %v255, %v3398
      %v3400 = vpop.f32.mrb[0].mxu0
      %3401 = vmatprep.mubr.f32.mxu0 0.0
      %3402 = vmatmul.mubr.f32.gmra.mrb[0].mxu0 %v3008
      %v3403 = vpop.f32.mrb[0].mxu0
      %v3404 = vadd.f32 %v255, %v3403
      %v3405 = vpop.f32.mrb[0].mxu0
      %3406 = vmatprep.mubr.f32.mxu0 0.0
      %3407 = vmatmul.mubr.f32.gmra.mrb[0].mxu0 %v3011
      %v3408 = vpop.f32.mrb[0].mxu0
      %v3409 = vadd.f32 %v255, %v3408
      %v3410 = vpop.f32.mrb[0].mxu0
      %3411 = vmatprep.mubr.f32.mxu0 0.0
      %3412 = vmatmul.mubr.f32.gmra.mrb[0].mxu0 %v3014
      %v3413 = vpop.f32.mrb[0].mxu0
      %v3414 = vadd.f32 %v255, %v3413
      %v3415 = vpop.f32.mrb[0].mxu0
      %3416 = vmatprep.mubr.f32.mxu0 0.0
      %3417 = vmatmul.mubr.f32.gmra.mrb[0].mxu0 %v3017
      %v3418 = vpop.f32.mrb[0].mxu0
      %v3419 = vadd.f32 %v255, %v3418
      %v3420 = vpop.f32.mrb[0].mxu0
      %3421 = vmatprep.mubr.f32.mxu0 0.0
      %3422 = vmatmul.mubr.f32.gmra.mrb[0].mxu0 %v3020
      %v3423 = vpop.f32.mrb[0].mxu0
      %v3424 = vadd.f32 %v255, %v3423
      %v3425 = vpop.f32.mrb[0].mxu0
      %3426 = vmatprep.mubr.f32.mxu0 0.0
      %3427 = vmatmul.mubr.f32.gmra.mrb[0].mxu0 %v3023
      %v3428 = vpop.f32.mrb[0].mxu0
      %v3429 = vadd.f32 %v255, %v3428
      %v3430 = vpop.f32.mrb[0].mxu0
      %3431 = vmatprep.mubr.f32.mxu0 0.0
      %3432 = vmatmul.mubr.f32.gmra.mrb[0].mxu0 %v3026
      %v3433 = vpop.f32.mrb[0].mxu0
      %v3434 = vadd.f32 %v255, %v3433
      %v3435 = vpop.f32.mrb[0].mxu0
      %3436 = vmatprep.mubr.f32.mxu0 0.0
      %3437 = vmatmul.mubr.f32.gmra.mrb[0].mxu0 %v3029
      %v3438 = vpop.f32.mrb[0].mxu0
      %v3439 = vadd.f32 %v255, %v3438
      %v3440 = vpop.f32.mrb[0].mxu0
      %3441 = vmatprep.mubr.f32.mxu0 0.0
      %3442 = vmatmul.mubr.f32.gmra.mrb[0].mxu0 %v3032
      %v3443 = vpop.f32.mrb[0].mxu0
      %v3444 = vadd.f32 %v255, %v3443
      %v3445 = vpop.f32.mrb[0].mxu0
      %3446 = vmatprep.mubr.f32.mxu0 0.0
      %3447 = vmatmul.mubr.f32.gmra.mrb[0].mxu0 %v3035
      %v3448 = vpop.f32.mrb[0].mxu0
      %v3449 = vadd.f32 %v255, %v3448
      %v3450 = vpop.f32.mrb[0].mxu0
      %3451 = vmatprep.mubr.f32.mxu0 0.0
      %3452 = vmatmul.mubr.f32.gmra.mrb[0].mxu0 %v3038
      %v3453 = vpop.f32.mrb[0].mxu0
      %v3454 = vadd.f32 %v255, %v3453
      %v3455 = vpop.f32.mrb[0].mxu0
      %3456 = vmatprep.mubr.f32.mxu0 0.0
      %3457 = vmatmul.mubr.f32.gmra.mrb[0].mxu0 %v3041
      %v3458 = vpop.f32.mrb[0].mxu0
      %v3459 = vadd.f32 %v255, %v3458
      %v3460 = vpop.f32.mrb[0].mxu0
      %3461 = vmatprep.mubr.f32.mxu0 0.0
      %3462 = vmatmul.mubr.f32.gmra.mrb[0].mxu0 %v3044
      %v3463 = vpop.f32.mrb[0].mxu0
      %v3464 = vadd.f32 %v255, %v3463
      %v3465 = vpop.f32.mrb[0].mxu0
      %3466 = vmatprep.mubr.f32.mxu0 0.0
      %3467 = vmatmul.mubr.f32.gmra.mrb[0].mxu0 %v3047
      %v3468 = vpop.f32.mrb[0].mxu0
      %v3469 = vadd.f32 %v255, %v3468
      %v3470 = vpop.f32.mrb[0].mxu0
      %3471 = vmatprep.mubr.f32.mxu0 0.0
      %3472 = vmatmul.mubr.f32.gmra.mrb[0].mxu0 %v3050
      %v3473 = vpop.f32.mrb[0].mxu0
      %v3474 = vadd.f32 %v255, %v3473
      %v3475 = vpop.f32.mrb[0].mxu0
      %3476 = vdwg.mxu0
      %v3477 = vmax.f32 %v3119, 0.0
      %v3478 = vmax.f32 %v3124, 0.0
      %v3479 = vmax.f32 %v3129, 0.0
      %v3480 = vmax.f32 %v3134, 0.0
      %v3481 = vmax.f32 %v3139, 0.0
      %v3482 = vmax.f32 %v3144, 0.0
      %v3483 = vmax.f32 %v3149, 0.0
      %v3484 = vmax.f32 %v3154, 0.0
      %v3485 = vmax.f32 %v3159, 0.0
      %v3486 = vmax.f32 %v3164, 0.0
      %v3487 = vmax.f32 %v3169, 0.0
      %v3488 = vmax.f32 %v3174, 0.0
      %v3489 = vmax.f32 %v3179, 0.0
      %v3490 = vmax.f32 %v3184, 0.0
      %v3491 = vmax.f32 %v3189, 0.0
      %v3492 = vmax.f32 %v3194, 0.0
      %v3493 = vmax.f32 %v3199, 0.0
      %v3494 = vmax.f32 %v3204, 0.0
      %v3495 = vmax.f32 %v3209, 0.0
      %v3496 = vmax.f32 %v3214, 0.0
      %v3497 = vmax.f32 %v3219, 0.0
      %v3498 = vmax.f32 %v3224, 0.0
      %v3499 = vmax.f32 %v3229, 0.0
      %v3500 = vmax.f32 %v3234, 0.0
      %v3501 = vmax.f32 %v3239, 0.0
      %v3502 = vmax.f32 %v3244, 0.0
      %v3503 = vmax.f32 %v3249, 0.0
      %v3504 = vmax.f32 %v3254, 0.0
      %v3505 = vmax.f32 %v3259, 0.0
      %v3506 = vmax.f32 %v3264, 0.0
      %v3507 = vmax.f32 %v3269, 0.0
      %v3508 = vmax.f32 %v3274, 0.0
      %v3509 = vmax.f32 %v3279, 0.0
      %v3510 = vmax.f32 %v3284, 0.0
      %v3511 = vmax.f32 %v3289, 0.0
      %v3512 = vmax.f32 %v3294, 0.0
      %v3513 = vmax.f32 %v3299, 0.0
      %v3514 = vmax.f32 %v3304, 0.0
      %v3515 = vmax.f32 %v3309, 0.0
      %v3516 = vmax.f32 %v3314, 0.0
      %v3517 = vmax.f32 %v3319, 0.0
      %v3518 = vmax.f32 %v3324, 0.0
      %v3519 = vmax.f32 %v3329, 0.0
      %v3520 = vmax.f32 %v3334, 0.0
      %v3521 = vmax.f32 %v3339, 0.0
      %v3522 = vmax.f32 %v3344, 0.0
      %v3523 = vmax.f32 %v3349, 0.0
      %v3524 = vmax.f32 %v3354, 0.0
      %v3525 = vmax.f32 %v3359, 0.0
      %v3526 = vmax.f32 %v3364, 0.0
      %v3527 = vmax.f32 %v3369, 0.0
      %v3528 = vmax.f32 %v3374, 0.0
      %v3529 = vmax.f32 %v3379, 0.0
      %v3530 = vmax.f32 %v3384, 0.0
      %v3531 = vmax.f32 %v3389, 0.0
      %v3532 = vmax.f32 %v3394, 0.0
      %v3533 = vmax.f32 %v3399, 0.0
      %v3534 = vmax.f32 %v3404, 0.0
      %v3535 = vmax.f32 %v3409, 0.0
      %v3536 = vmax.f32 %v3414, 0.0
      %v3537 = vmax.f32 %v3419, 0.0
      %v3538 = vmax.f32 %v3424, 0.0
      %v3539 = vmax.f32 %v3429, 0.0
      %v3540 = vmax.f32 %v3434, 0.0
      %v3541 = vmax.f32 %v3439, 0.0
      %v3542 = vmax.f32 %v3444, 0.0
      %v3543 = vmax.f32 %v3449, 0.0
      %v3544 = vmax.f32 %v3454, 0.0
      %v3545 = vmax.f32 %v3459, 0.0
      %v3546 = vmax.f32 %v3464, 0.0
      %v3547 = vmax.f32 %v3469, 0.0
      %v3548 = vmax.f32 %v3474, 0.0
      %v3549 = vadd.f32 %v2691, %v3477
      %v3550 = vadd.f32 %v2692, %v3478
      %v3551 = vadd.f32 %v2693, %v3479
      %v3552 = vadd.f32 %v2694, %v3480
      %v3553 = vadd.f32 %v2695, %v3481
      %v3554 = vadd.f32 %v2696, %v3482
      %v3555 = vadd.f32 %v2697, %v3483
      %v3556 = vadd.f32 %v2698, %v3484
      %v3557 = vadd.f32 %v2699, %v3485
      %v3558 = vadd.f32 %v2700, %v3486
      %v3559 = vadd.f32 %v2701, %v3487
      %v3560 = vadd.f32 %v2702, %v3488
      %v3561 = vadd.f32 %v2703, %v3489
      %v3562 = vadd.f32 %v2704, %v3490
      %v3563 = vadd.f32 %v2705, %v3491
      %v3564 = vadd.f32 %v2706, %v3492
      %v3565 = vadd.f32 %v2707, %v3493
      %v3566 = vadd.f32 %v2708, %v3494
      %v3567 = vadd.f32 %v2709, %v3495
      %v3568 = vadd.f32 %v2710, %v3496
      %v3569 = vadd.f32 %v2711, %v3497
      %v3570 = vadd.f32 %v2712, %v3498
      %v3571 = vadd.f32 %v2713, %v3499
      %v3572 = vadd.f32 %v2714, %v3500
      %v3573 = vadd.f32 %v2715, %v3501
      %v3574 = vadd.f32 %v2716, %v3502
      %v3575 = vadd.f32 %v2717, %v3503
      %v3576 = vadd.f32 %v2718, %v3504
      %v3577 = vadd.f32 %v2719, %v3505
      %v3578 = vadd.f32 %v2720, %v3506
      %v3579 = vadd.f32 %v2721, %v3507
      %v3580 = vadd.f32 %v2722, %v3508
      %v3581 = vadd.f32 %v2723, %v3509
      %v3582 = vadd.f32 %v2724, %v3510
      %v3583 = vadd.f32 %v2725, %v3511
      %v3584 = vadd.f32 %v2726, %v3512
      %v3585 = vadd.f32 %v2727, %v3513
      %v3586 = vadd.f32 %v2728, %v3514
      %v3587 = vadd.f32 %v2729, %v3515
      %v3588 = vadd.f32 %v2730, %v3516
      %v3589 = vadd.f32 %v2731, %v3517
      %v3590 = vadd.f32 %v2732, %v3518
      %v3591 = vadd.f32 %v2733, %v3519
      %v3592 = vadd.f32 %v2734, %v3520
      %v3593 = vadd.f32 %v2735, %v3521
      %v3594 = vadd.f32 %v2736, %v3522
      %v3595 = vadd.f32 %v2737, %v3523
      %v3596 = vadd.f32 %v2738, %v3524
      %v3597 = vadd.f32 %v2739, %v3525
      %v3598 = vadd.f32 %v2740, %v3526
      %v3599 = vadd.f32 %v2741, %v3527
      %v3600 = vadd.f32 %v2742, %v3528
      %v3601 = vadd.f32 %v2743, %v3529
      %v3602 = vadd.f32 %v2744, %v3530
      %v3603 = vadd.f32 %v2745, %v3531
      %v3604 = vadd.f32 %v2746, %v3532
      %v3605 = vadd.f32 %v2747, %v3533
      %v3606 = vadd.f32 %v2748, %v3534
      %v3607 = vadd.f32 %v2749, %v3535
      %v3608 = vadd.f32 %v2750, %v3536
      %v3609 = vadd.f32 %v2751, %v3537
      %v3610 = vadd.f32 %v2752, %v3538
      %v3611 = vadd.f32 %v2753, %v3539
      %v3612 = vadd.f32 %v2754, %v3540
      %v3613 = vadd.f32 %v2755, %v3541
      %v3614 = vadd.f32 %v2756, %v3542
      %v3615 = vadd.f32 %v2757, %v3543
      %v3616 = vadd.f32 %v2758, %v3544
      %v3617 = vadd.f32 %v2759, %v3545
      %v3618 = vadd.f32 %v2760, %v3546
      %v3619 = vadd.f32 %v2761, %v3547
      %v3620 = vadd.f32 %v2762, %v3548
      %v3621 = vmul.f32 %v3549, 0.25
      %v3622 = vmul.f32 %v3550, 0.25
      %v3623 = vmul.f32 %v3551, 0.25
      %v3624 = vmul.f32 %v3552, 0.25
      %v3625 = vmul.f32 %v3553, 0.25
      %v3626 = vmul.f32 %v3554, 0.25
      %v3627 = vmul.f32 %v3555, 0.25
      %v3628 = vmul.f32 %v3556, 0.25
      %v3629 = vmul.f32 %v3557, 0.25
      %v3630 = vmul.f32 %v3558, 0.25
      %v3631 = vmul.f32 %v3559, 0.25
      %v3632 = vmul.f32 %v3560, 0.25
      %v3633 = vmul.f32 %v3561, 0.25
      %v3634 = vmul.f32 %v3562, 0.25
      %v3635 = vmul.f32 %v3563, 0.25
      %v3636 = vmul.f32 %v3564, 0.25
      %v3637 = vmul.f32 %v3565, 0.25
      %v3638 = vmul.f32 %v3566, 0.25
      %v3639 = vmul.f32 %v3567, 0.25
      %v3640 = vmul.f32 %v3568, 0.25
      %v3641 = vmul.f32 %v3569, 0.25
      %v3642 = vmul.f32 %v3570, 0.25
      %v3643 = vmul.f32 %v3571, 0.25
      %v3644 = vmul.f32 %v3572, 0.25
      %v3645 = vmul.f32 %v3573, 0.25
      %v3646 = vmul.f32 %v3574, 0.25
      %v3647 = vmul.f32 %v3575, 0.25
      %v3648 = vmul.f32 %v3576, 0.25
      %v3649 = vmul.f32 %v3577, 0.25
      %v3650 = vmul.f32 %v3578, 0.25
      %v3651 = vmul.f32 %v3579, 0.25
      %v3652 = vmul.f32 %v3580, 0.25
      %v3653 = vmul.f32 %v3581, 0.25
      %v3654 = vmul.f32 %v3582, 0.25
      %v3655 = vmul.f32 %v3583, 0.25
      %v3656 = vmul.f32 %v3584, 0.25
      %v3657 = vmul.f32 %v3585, 0.25
      %v3658 = vmul.f32 %v3586, 0.25
      %v3659 = vmul.f32 %v3587, 0.25
      %v3660 = vmul.f32 %v3588, 0.25
      %v3661 = vmul.f32 %v3589, 0.25
      %v3662 = vmul.f32 %v3590, 0.25
      %v3663 = vmul.f32 %v3591, 0.25
      %v3664 = vmul.f32 %v3592, 0.25
      %v3665 = vmul.f32 %v3593, 0.25
      %v3666 = vmul.f32 %v3594, 0.25
      %v3667 = vmul.f32 %v3595, 0.25
      %v3668 = vmul.f32 %v3596, 0.25
      %v3669 = vmul.f32 %v3597, 0.25
      %v3670 = vmul.f32 %v3598, 0.25
      %v3671 = vmul.f32 %v3599, 0.25
      %v3672 = vmul.f32 %v3600, 0.25
      %v3673 = vmul.f32 %v3601, 0.25
      %v3674 = vmul.f32 %v3602, 0.25
      %v3675 = vmul.f32 %v3603, 0.25
      %v3676 = vmul.f32 %v3604, 0.25
      %v3677 = vmul.f32 %v3605, 0.25
      %v3678 = vmul.f32 %v3606, 0.25
      %v3679 = vmul.f32 %v3607, 0.25
      %v3680 = vmul.f32 %v3608, 0.25
      %v3681 = vmul.f32 %v3609, 0.25
      %v3682 = vmul.f32 %v3610, 0.25
      %v3683 = vmul.f32 %v3611, 0.25
      %v3684 = vmul.f32 %v3612, 0.25
      %v3685 = vmul.f32 %v3613, 0.25
      %v3686 = vmul.f32 %v3614, 0.25
      %v3687 = vmul.f32 %v3615, 0.25
      %v3688 = vmul.f32 %v3616, 0.25
      %v3689 = vmul.f32 %v3617, 0.25
      %v3690 = vmul.f32 %v3618, 0.25
      %v3691 = vmul.f32 %v3619, 0.25
      %v3692 = vmul.f32 %v3620, 0.25
      %vm3693 = vcmask 261120
      %3694 = vst.msk [vmem:[%s175] sm:$0xff] %vm3693, %v3621
      %3695 = vst.msk [vmem:[%s175 + $0x8] sm:$0xff] %vm3693, %v3622
      %3696 = vst.msk [vmem:[%s175 + $0x10] sm:$0xff] %vm3693, %v3623
      %3697 = vst.msk [vmem:[%s175 + $0x18] sm:$0xff] %vm3693, %v3624
      %3698 = vst.msk [vmem:[%s175 + $0x20] sm:$0xff] %vm3693, %v3625
      %3699 = vst.msk [vmem:[%s175 + $0x28] sm:$0xff] %vm3693, %v3626
      %3700 = vst.msk [vmem:[%s175 + $0x30] sm:$0xff] %vm3693, %v3627
      %3701 = vst.msk [vmem:[%s175 + $0x38] sm:$0xff] %vm3693, %v3628
      %3702 = vst.msk [vmem:[%s175 + $0x40] sm:$0xff] %vm3693, %v3629
      %3703 = vst.msk [vmem:[%s175 + $0x48] sm:$0xff] %vm3693, %v3630
      %3704 = vst.msk [vmem:[%s175 + $0x50] sm:$0xff] %vm3693, %v3631
      %3705 = vst.msk [vmem:[%s175 + $0x58] sm:$0xff] %vm3693, %v3632
      %3706 = vst.msk [vmem:[%s175 + $0x60] sm:$0xff] %vm3693, %v3633
      %3707 = vst.msk [vmem:[%s175 + $0x68] sm:$0xff] %vm3693, %v3634
      %3708 = vst.msk [vmem:[%s175 + $0x70] sm:$0xff] %vm3693, %v3635
      %3709 = vst.msk [vmem:[%s175 + $0x78] sm:$0xff] %vm3693, %v3636
      %3710 = vst.msk [vmem:[%s175 + $0x80] sm:$0xff] %vm3693, %v3637
      %3711 = vst.msk [vmem:[%s175 + $0x88] sm:$0xff] %vm3693, %v3638
      %3712 = vst.msk [vmem:[%s175 + $0x90] sm:$0xff] %vm3693, %v3639
      %3713 = vst.msk [vmem:[%s175 + $0x98] sm:$0xff] %vm3693, %v3640
      %3714 = vst.msk [vmem:[%s175 + $0xa0] sm:$0xff] %vm3693, %v3641
      %3715 = vst.msk [vmem:[%s175 + $0xa8] sm:$0xff] %vm3693, %v3642
      %3716 = vst.msk [vmem:[%s175 + $0xb0] sm:$0xff] %vm3693, %v3643
      %3717 = vst.msk [vmem:[%s175 + $0xb8] sm:$0xff] %vm3693, %v3644
      %3718 = vst.msk [vmem:[%s175 + $0xc0] sm:$0xff] %vm3693, %v3645
      %3719 = vst.msk [vmem:[%s175 + $0xc8] sm:$0xff] %vm3693, %v3646
      %3720 = vst.msk [vmem:[%s175 + $0xd0] sm:$0xff] %vm3693, %v3647
      %3721 = vst.msk [vmem:[%s175 + $0xd8] sm:$0xff] %vm3693, %v3648
      %3722 = vst.msk [vmem:[%s175 + $0xe0] sm:$0xff] %vm3693, %v3649
      %3723 = vst.msk [vmem:[%s175 + $0xe8] sm:$0xff] %vm3693, %v3650
      %3724 = vst.msk [vmem:[%s175 + $0xf0] sm:$0xff] %vm3693, %v3651
      %3725 = vst.msk [vmem:[%s175 + $0xf8] sm:$0xff] %vm3693, %v3652
      %3726 = vst.msk [vmem:[%s175 + $0x100] sm:$0xff] %vm3693, %v3653
      %3727 = vst.msk [vmem:[%s175 + $0x108] sm:$0xff] %vm3693, %v3654
      %3728 = vst.msk [vmem:[%s175 + $0x110] sm:$0xff] %vm3693, %v3655
      %3729 = vst.msk [vmem:[%s175 + $0x118] sm:$0xff] %vm3693, %v3656
      %3730 = vst.msk [vmem:[%s175 + $0x120] sm:$0xff] %vm3693, %v3657
      %3731 = vst.msk [vmem:[%s175 + $0x128] sm:$0xff] %vm3693, %v3658
      %3732 = vst.msk [vmem:[%s175 + $0x130] sm:$0xff] %vm3693, %v3659
      %3733 = vst.msk [vmem:[%s175 + $0x138] sm:$0xff] %vm3693, %v3660
      %3734 = vst.msk [vmem:[%s175 + $0x140] sm:$0xff] %vm3693, %v3661
      %3735 = vst.msk [vmem:[%s175 + $0x148] sm:$0xff] %vm3693, %v3662
      %3736 = vst.msk [vmem:[%s175 + $0x150] sm:$0xff] %vm3693, %v3663
      %3737 = vst.msk [vmem:[%s175 + $0x158] sm:$0xff] %vm3693, %v3664
      %3738 = vst.msk [vmem:[%s175 + $0x160] sm:$0xff] %vm3693, %v3665
      %3739 = vst.msk [vmem:[%s175 + $0x168] sm:$0xff] %vm3693, %v3666
      %3740 = vst.msk [vmem:[%s175 + $0x170] sm:$0xff] %vm3693, %v3667
      %3741 = vst.msk [vmem:[%s175 + $0x178] sm:$0xff] %vm3693, %v3668
      %3742 = vst.msk [vmem:[%s175 + $0x180] sm:$0xff] %vm3693, %v3669
      %3743 = vst.msk [vmem:[%s175 + $0x188] sm:$0xff] %vm3693, %v3670
      %3744 = vst.msk [vmem:[%s175 + $0x190] sm:$0xff] %vm3693, %v3671
      %3745 = vst.msk [vmem:[%s175 + $0x198] sm:$0xff] %vm3693, %v3672
      %3746 = vst.msk [vmem:[%s175 + $0x1a0] sm:$0xff] %vm3693, %v3673
      %3747 = vst.msk [vmem:[%s175 + $0x1a8] sm:$0xff] %vm3693, %v3674
      %3748 = vst.msk [vmem:[%s175 + $0x1b0] sm:$0xff] %vm3693, %v3675
      %3749 = vst.msk [vmem:[%s175 + $0x1b8] sm:$0xff] %vm3693, %v3676
      %3750 = vst.msk [vmem:[%s175 + $0x1c0] sm:$0xff] %vm3693, %v3677
      %3751 = vst.msk [vmem:[%s175 + $0x1c8] sm:$0xff] %vm3693, %v3678
      %3752 = vst.msk [vmem:[%s175 + $0x1d0] sm:$0xff] %vm3693, %v3679
      %3753 = vst.msk [vmem:[%s175 + $0x1d8] sm:$0xff] %vm3693, %v3680
      %3754 = vst.msk [vmem:[%s175 + $0x1e0] sm:$0xff] %vm3693, %v3681
      %3755 = vst.msk [vmem:[%s175 + $0x1e8] sm:$0xff] %vm3693, %v3682
      %3756 = vst.msk [vmem:[%s175 + $0x1f0] sm:$0xff] %vm3693, %v3683
      %3757 = vst.msk [vmem:[%s175 + $0x1f8] sm:$0xff] %vm3693, %v3684
      %3758 = vst.msk [vmem:[%s175 + $0x200] sm:$0xff] %vm3693, %v3685
      %3759 = vst.msk [vmem:[%s175 + $0x208] sm:$0xff] %vm3693, %v3686
      %3760 = vst.msk [vmem:[%s175 + $0x210] sm:$0xff] %vm3693, %v3687
      %3761 = vst.msk [vmem:[%s175 + $0x218] sm:$0xff] %vm3693, %v3688
      %3762 = vst.msk [vmem:[%s175 + $0x220] sm:$0xff] %vm3693, %v3689
      %3763 = vst.msk [vmem:[%s175 + $0x228] sm:$0xff] %vm3693, %v3690
      %3764 = vst.msk [vmem:[%s175 + $0x230] sm:$0xff] %vm3693, %v3691
      %3765 = vst.msk [vmem:[%s175 + $0x238] sm:$0xff] %vm3693, %v3692
      %p3766 = scmp.lt.s32.totalorder %s14, 1
      %s3767 = scalar_select %p3766, %s14, 1
      %s3768 = smul.addr %s3767, 72
      %s3769 = smul.addr %s3768, 8
      %s3770 = scalar_lea.vmem %s3, %s3769
      // Predicated region
      $region33: #{skipcnn1_forward.3} parent=31 // pred_check
        %p3771 = pneg %p100
      $region34: #{skipcnn1_forward.3} parent=31 // pred_check_branch
        %3773 = sbr.rel (%p3771) target = $region36
      $region35: #{skipcnn1_forward.3} parent=31 // pred_region
        _
      $region36: #{skipcnn1_forward.3} parent=31 // pred_fallthru
        _
    $region32: #{skipcnn1_forward.3} parent=5 // pred_fallthru
      _
    %p3774 = scmp.le.s32.totalorder 2, %s9
    // Predicated region
    $region37: #{skipcnn1_forward.3} parent=5 // pred_check
      %p3775 = pneg %p3774
    $region38: #{skipcnn1_forward.3} parent=5 // pred_check_branch
      %3777 = sbr.rel (%p3775) target = $region40
    $region39: #{skipcnn1_forward.3} parent=5 // pred_region
      %s3778 = ssub.s32 %s9, 2
      // Predicated region
      $region41: #{skipcnn1_forward.3} parent=39 // pred_check
        %p3779 = pneg %p106
      $region42: #{skipcnn1_forward.3} parent=39 // pred_check_branch
        %3781 = sbr.rel (%p3779) target = $region44
      $region43: #{skipcnn1_forward.3} parent=39 // pred_region
        %p3782 = scmp.lt.s32.totalorder %s15, 1
        %s3783 = scalar_select %p3782, %s15, 1
        %s3784 = smul.addr %s3783, 72
        %s3785 = smul.addr %s3784, 8
        %s3786 = scalar_lea.vmem %s3, %s3785
      $region44: #{skipcnn1_forward.3} parent=39 // pred_fallthru
        _
    $region40: #{skipcnn1_forward.3} parent=5 // pred_fallthru
      _
  $region6: #{skipcnn1_forward.3} parent=0 // loop_footer
    %s13 = sadd.s32 1, %s9
  $region7: #{skipcnn1_forward.3} parent=0 // loop_footer_branch
    %8 = sbr.rel target = $region3
  $region8: #{skipcnn1_forward.3} parent=0 // loop_exit
    _

// kernel: skipcnn1_forward.4
$region0: #{skipcnn1_forward.4}
  #allocation0 [shape = 'u32[]', space=smem, size = 0x4, offset = 0x4, fixed_abs, tag = 'smem constant byte address 0x4 - core index']
  #allocation1 [shape = 'u32[144,128]{1,0:T(1,128)}', space=vmem, size = 0x12000, scoped, tag = 'internal scratch']
  %s0 = inlined_call_operand.vmem [shape: f32[8,144,288], index: 0, kind: input, shape index: {}]
  %s1 = inlined_call_operand.vmem [shape: f32[8,144,32], index: 1, kind: input, shape index: {}]
  %s2 = inlined_call_operand.vmem [shape: f32[288,32], index: 2, kind: input, shape index: {}]
  %s3 = inlined_call_operand.vmem [shape: f32[1,32], index: 3, kind: input, shape index: {}]
  %s4 = inlined_call_operand.vmem [shape: f32[2,144,32], index: 4, kind: output, shape index: {}]
  %s5 = sld [smem:[#allocation0]]
  $region49: #{skipcnn1_forward.4} parent=0
    _
  %s7 = ssub.s32 1, %s5
  %s8 = scalar_select 0, %s7, %s5
  loop: start=0, step=1, limit=4
  $region2: #{skipcnn1_forward.4} parent=0 // loop_pre_header
    _
  $region3: #{skipcnn1_forward.4} parent=0 // loop_header
    %s10 = sphi 0, %s14
    %p11 = scmp.ge.s32.totalorder %s10, 4
    %s20 = sphi 0, %s22
    %s23 = sphi 0, %s20
    %s24 = sphi 0, %s23
    %s40 = sphi 0, %s24
    %s46 = sphi 0, %s48
    %s49 = sphi 0, %s46
    %s50 = sphi 0, %s49
    %s66 = sphi 0, %s50
    %s70 = sphi 0, %s70
    %s72 = sphi 0, %s70
    %s73 = sphi 0, %s72
    %s87 = sphi 0, %s73
    %s91 = sphi 0, %s91
    %s93 = sphi 0, %s91
    %s94 = sphi 0, %s93
    %s108 = sphi 0, %s94
    %s114 = sphi 0, %s116
    %s117 = sphi 0, %s114
    %s118 = sphi 0, %s117
    %s134 = sphi 0, %s118
  $region4: #{skipcnn1_forward.4} parent=0 // loop_header_branch
    %13 = sbr.rel (%p11) target = $region8
  $region5: #{skipcnn1_forward.4} parent=0 // loop_body
    %s15 = ssub.s32 %s10, 1
    %s16 = ssub.s32 %s10, 2
    %s17 = sadd.s32 %s10, 1
    %s18 = ssub.s32 %s10, %s17
    %p19 = scmp.eq.s32.totalorder %s18, 0
    %s21 = sadd.s32 %s20, 1
    %s22 = scalar_select %p19, %s20, %s21
    %p25 = pneg %p19
    %p26 = scmp.eq.s32.totalorder %s10, 1
    %p27 = por %p25, %p26
    %p28 = scmp.ne.s32.totalorder %s20, %s23
    %p29 = scmp.eq.s32.totalorder %s10, 0
    %p30 = por %p28, %p29
    %p31 = scmp.ne.s32.totalorder %s20, %s23
    %p32 = scmp.eq.s32.totalorder %s15, 1
    %p33 = por %p31, %p32
    %p34 = scmp.ne.s32.totalorder %s23, %s24
    %p35 = scmp.eq.s32.totalorder %s15, 0
    %p36 = por %p34, %p35
    %p37 = scmp.ne.s32.totalorder %s23, %s24
    %p38 = scmp.eq.s32.totalorder %s16, 1
    %p39 = por %p37, %p38
    %p41 = scmp.ne.s32.totalorder %s24, %s40
    %p42 = scmp.eq.s32.totalorder %s16, 0
    %p43 = por %p41, %p42
    %s44 = ssub.s32 %s10, %s17
    %p45 = scmp.eq.s32.totalorder %s44, 0
    %s47 = sadd.s32 %s46, 1
    %s48 = scalar_select %p45, %s46, %s47
    %p51 = pneg %p45
    %p52 = scmp.eq.s32.totalorder %s10, 1
    %p53 = por %p51, %p52
    %p54 = scmp.ne.s32.totalorder %s46, %s49
    %p55 = scmp.eq.s32.totalorder %s10, 0
    %p56 = por %p54, %p55
    %p57 = scmp.ne.s32.totalorder %s46, %s49
    %p58 = scmp.eq.s32.totalorder %s15, 1
    %p59 = por %p57, %p58
    %p60 = scmp.ne.s32.totalorder %s49, %s50
    %p61 = scmp.eq.s32.totalorder %s15, 0
    %p62 = por %p60, %p61
    %p63 = scmp.ne.s32.totalorder %s49, %s50
    %p64 = scmp.eq.s32.totalorder %s16, 1
    %p65 = por %p63, %p64
    %p67 = scmp.ne.s32.totalorder %s50, %s66
    %p68 = scmp.eq.s32.totalorder %s16, 0
    %p69 = por %p67, %p68
    %s71 = sadd.s32 %s70, 1
    %p74 = scmp.eq.s32.totalorder %s10, 1
    %p75 = scmp.ne.s32.totalorder %s70, %s72
    %p76 = scmp.eq.s32.totalorder %s10, 0
    %p77 = por %p75, %p76
    %p78 = scmp.ne.s32.totalorder %s70, %s72
    %p79 = scmp.eq.s32.totalorder %s15, 1
    %p80 = por %p78, %p79
    %p81 = scmp.ne.s32.totalorder %s72, %s73
    %p82 = scmp.eq.s32.totalorder %s15, 0
    %p83 = por %p81, %p82
    %p84 = scmp.ne.s32.totalorder %s72, %s73
    %p85 = scmp.eq.s32.totalorder %s16, 1
    %p86 = por %p84, %p85
    %p88 = scmp.ne.s32.totalorder %s73, %s87
    %p89 = scmp.eq.s32.totalorder %s16, 0
    %p90 = por %p88, %p89
    %s92 = sadd.s32 %s91, 1
    %p95 = scmp.eq.s32.totalorder %s10, 1
    %p96 = scmp.ne.s32.totalorder %s91, %s93
    %p97 = scmp.eq.s32.totalorder %s10, 0
    %p98 = por %p96, %p97
    %p99 = scmp.ne.s32.totalorder %s91, %s93
    %p100 = scmp.eq.s32.totalorder %s15, 1
    %p101 = por %p99, %p100
    %p102 = scmp.ne.s32.totalorder %s93, %s94
    %p103 = scmp.eq.s32.totalorder %s15, 0
    %p104 = por %p102, %p103
    %p105 = scmp.ne.s32.totalorder %s93, %s94
    %p106 = scmp.eq.s32.totalorder %s16, 1
    %p107 = por %p105, %p106
    %p109 = scmp.ne.s32.totalorder %s94, %s108
    %p110 = scmp.eq.s32.totalorder %s16, 0
    %p111 = por %p109, %p110
    %s112 = ssub.s32 %s10, %s17
    %p113 = scmp.eq.s32.totalorder %s112, 0
    %s115 = sadd.s32 %s114, 1
    %s116 = scalar_select %p113, %s114, %s115
    %p119 = pneg %p113
    %p120 = scmp.eq.s32.totalorder %s10, 1
    %p121 = por %p119, %p120
    %p122 = scmp.ne.s32.totalorder %s114, %s117
    %p123 = scmp.eq.s32.totalorder %s10, 0
    %p124 = por %p122, %p123
    %p125 = scmp.ne.s32.totalorder %s114, %s117
    %p126 = scmp.eq.s32.totalorder %s15, 1
    %p127 = por %p125, %p126
    %p128 = scmp.ne.s32.totalorder %s117, %s118
    %p129 = scmp.eq.s32.totalorder %s15, 0
    %p130 = por %p128, %p129
    %p131 = scmp.ne.s32.totalorder %s117, %s118
    %p132 = scmp.eq.s32.totalorder %s16, 1
    %p133 = por %p131, %p132
    %p135 = scmp.ne.s32.totalorder %s118, %s134
    %p136 = scmp.eq.s32.totalorder %s16, 0
    %p137 = por %p135, %p136
    %p138 = scmp.le.s32.totalorder 1, %s10
    %p139 = scmp.lt.s32.totalorder %s10, 3
    %p140 = pnand %p138, %p139
    %p141 = pneg %p140
    // Predicated region
    $region9: #{skipcnn1_forward.4} parent=5 // pred_check
      _
    $region10: #{skipcnn1_forward.4} parent=5 // pred_check_branch
      %143 = sbr.rel (%p140) target = $region12
    $region11: #{skipcnn1_forward.4} parent=5 // pred_region
      %s144 = ssub.s32 %s10, 1
      // Predicated region
      $region13: #{skipcnn1_forward.4} parent=11 // pred_check
        %p145 = pneg %p83
      $region14: #{skipcnn1_forward.4} parent=11 // pred_check_branch
        %147 = sbr.rel (%p145) target = $region16
      $region15: #{skipcnn1_forward.4} parent=11 // pred_region
        _
      $region16: #{skipcnn1_forward.4} parent=11 // pred_fallthru
        _
      // Predicated region
      $region17: #{skipcnn1_forward.4} parent=11 // pred_check
        %p148 = pneg %p104
      $region18: #{skipcnn1_forward.4} parent=11 // pred_check_branch
        %150 = sbr.rel (%p148) target = $region20
      $region19: #{skipcnn1_forward.4} parent=11 // pred_region
        _
      $region20: #{skipcnn1_forward.4} parent=11 // pred_fallthru
        _
    $region12: #{skipcnn1_forward.4} parent=5 // pred_fallthru
      _
    %p151 = scmp.lt.s32.totalorder %s10, 2
    // Predicated region
    $region21: #{skipcnn1_forward.4} parent=5 // pred_check
      %p152 = pneg %p151
    $region22: #{skipcnn1_forward.4} parent=5 // pred_check_branch
      %154 = sbr.rel (%p152) target = $region24
    $region23: #{skipcnn1_forward.4} parent=5 // pred_region
      // Predicated region
      $region25: #{skipcnn1_forward.4} parent=23 // pred_check
        %p155 = pneg %p30
      $region26: #{skipcnn1_forward.4} parent=23 // pred_check_branch
        %157 = sbr.rel (%p155) target = $region28
      $region27: #{skipcnn1_forward.4} parent=23 // pred_region
        %s158 = smul.u32 4, %s10
        %p159 = scmp.lt.s32.totalorder %s158, 7
        %s160 = scalar_select %p159, %s158, 7
        %s161 = smul.addr %s160, 54
        %s162 = smul.addr %s161, 8
        %s163 = scalar_lea.vmem %s0, %s162
        %s164 = smul.u32 4, %s10
      $region28: #{skipcnn1_forward.4} parent=23 // pred_fallthru
        _
      // Predicated region
      $region29: #{skipcnn1_forward.4} parent=23 // pred_check
        %p165 = pneg %p56
      $region30: #{skipcnn1_forward.4} parent=23 // pred_check_branch
        %167 = sbr.rel (%p165) target = $region32
      $region31: #{skipcnn1_forward.4} parent=23 // pred_region
        %s168 = smul.u32 4, %s10
        %p169 = scmp.lt.s32.totalorder %s168, 7
        %s170 = scalar_select %p169, %s168, 7
        %s171 = smul.addr %s170, 18
        %s172 = smul.addr %s171, 8
        %s173 = scalar_lea.vmem %s1, %s172
        %s174 = smul.u32 4, %s10
      $region32: #{skipcnn1_forward.4} parent=23 // pred_fallthru
        _
    $region24: #{skipcnn1_forward.4} parent=5 // pred_fallthru
      _
    %p175 = scmp.le.s32.totalorder 1, %s10
    %p176 = scmp.lt.s32.totalorder %s10, 3
    %p177 = pnand %p175, %p176
    %p178 = pneg %p177
    // Predicated region
    $region33: #{skipcnn1_forward.4} parent=5 // pred_check
      _
    $region34: #{skipcnn1_forward.4} parent=5 // pred_check_branch
      %180 = sbr.rel (%p177) target = $region36
    $region35: #{skipcnn1_forward.4} parent=5 // pred_region
      %s181 = ssub.s32 %s10, 1
      %s182 = smul.u32 4, %s15
      %p183 = scmp.lt.s32.totalorder %s182, 7
      %s184 = scalar_select %p183, %s182, 7
      %s185 = smul.addr %s184, 54
      %s186 = smul.addr %s185, 8
      %s187 = scalar_lea.vmem %s0, %s186
      %p188 = pneg %p36
      %p189 = pneg %p33
      %s190 = smul.u32 4, %s15
      %p191 = scmp.lt.s32.totalorder %s190, 7
      %s192 = scalar_select %p191, %s190, 7
      %s193 = smul.addr %s192, 18
      %s194 = smul.addr %s193, 8
      %s195 = scalar_lea.vmem %s1, %s194
      %p196 = pneg %p62
      %p197 = pneg %p59
      %p198 = pneg %p83
      %p199 = pneg %p80
      %p200 = pneg %p104
      %p201 = pneg %p101
      %p202 = pneg %p130
      %p203 = pneg %p127
      %p204 = scmp.lt.s32.totalorder %s15, 1
      %s205 = scalar_select %p204, %s15, 1
      %s206 = smul.addr %s205, 18
      %s207 = smul.addr %s206, 8
      %s208 = scalar_lea.vmem %s4, %s207
      %s209 = smul.u32 4, %s15
      %p210 = scmp.lt.s32.totalorder %s209, 7
      %s211 = scalar_select %p210, %s209, 7
      %s212 = smul.addr %s211, 54
      %s213 = smul.addr %s212, 8
      %s214 = scalar_lea.vmem %s0, %s213
      %s215 = smul.u32 4, %s15
      %s216 = smul.u32 4, %s15
      %p217 = scmp.lt.s32.totalorder %s216, 7
      %s218 = scalar_select %p217, %s216, 7
      %s219 = smul.addr %s218, 18
      %s220 = smul.addr %s219, 8
      %s221 = scalar_lea.vmem %s1, %s220
      %s222 = smul.u32 4, %s15
      %p223 = scmp.lt.s32.totalorder %s15, 1
      %s224 = scalar_select %p223, %s15, 1
      %s225 = smul.addr %s224, 18
      %s226 = smul.addr %s225, 8
      %s227 = scalar_lea.vmem %s4, %s226
      %v228 = vld [vmem:[%s2] sm:$0xff]
      %v229 = vld [vmem:[%s2 + $0x8] sm:$0xff]
      %v230 = vld [vmem:[%s2 + $0x10] sm:$0xff]
      %v231 = vld [vmem:[%s2 + $0x18] sm:$0xff]
      %v232 = vld [vmem:[%s2 + $0x20] sm:$0xff]
      %v233 = vld [vmem:[%s2 + $0x28] sm:$0xff]
      %v234 = vld [vmem:[%s2 + $0x30] sm:$0xff]
      %v235 = vld [vmem:[%s2 + $0x38] sm:$0xff]
      %v236 = vld [vmem:[%s2 + $0x40] sm:$0xff]
      %v237 = vld [vmem:[%s2 + $0x48] sm:$0xff]
      %v238 = vld [vmem:[%s2 + $0x50] sm:$0xff]
      %v239 = vld [vmem:[%s2 + $0x58] sm:$0xff]
      %v240 = vld [vmem:[%s2 + $0x60] sm:$0xff]
      %v241 = vld [vmem:[%s2 + $0x68] sm:$0xff]
      %v242 = vld [vmem:[%s2 + $0x70] sm:$0xff]
      %v243 = vld [vmem:[%s2 + $0x78] sm:$0xff]
      %v244 = vld [vmem:[%s2 + $0x80] sm:$0xff]
      %v245 = vld [vmem:[%s2 + $0x88] sm:$0xff]
      %v246 = vld [vmem:[%s2 + $0x90] sm:$0xff]
      %v247 = vld [vmem:[%s2 + $0x98] sm:$0xff]
      %v248 = vld [vmem:[%s2 + $0xa0] sm:$0xff]
      %v249 = vld [vmem:[%s2 + $0xa8] sm:$0xff]
      %v250 = vld [vmem:[%s2 + $0xb0] sm:$0xff]
      %v251 = vld [vmem:[%s2 + $0xb8] sm:$0xff]
      %v252 = vld [vmem:[%s2 + $0xc0] sm:$0xff]
      %v253 = vld [vmem:[%s2 + $0xc8] sm:$0xff]
      %v254 = vld [vmem:[%s2 + $0xd0] sm:$0xff]
      %v255 = vld [vmem:[%s2 + $0xd8] sm:$0xff]
      %v256 = vld [vmem:[%s2 + $0xe0] sm:$0xff]
      %v257 = vld [vmem:[%s2 + $0xe8] sm:$0xff]
      %v258 = vld [vmem:[%s2 + $0xf0] sm:$0xff]
      %v259 = vld [vmem:[%s2 + $0xf8] sm:$0xff]
      %v260 = vld [vmem:[%s2 + $0x100] sm:$0xff]
      %v261 = vld [vmem:[%s2 + $0x108] sm:$0xff]
      %v262 = vld [vmem:[%s2 + $0x110] sm:$0xff]
      %v263 = vld [vmem:[%s2 + $0x118] sm:$0xff]
      %v264 = vld [vmem:[%s3] sm:$0x1]
      %v265 = vld [vmem:[%s214] sm:$0xff]
      %v266 = vld [vmem:[%s214 + $0x8] sm:$0xff]
      %v267 = vld [vmem:[%s214 + $0x10] sm:$0xff]
      %v268 = vld [vmem:[%s214 + $0x18] sm:$0xff]
      %v269 = vld [vmem:[%s214 + $0x20] sm:$0xff]
      %v270 = vld [vmem:[%s214 + $0x28] sm:$0xff]
      %v271 = vld [vmem:[%s214 + $0x30] sm:$0xff]
      %v272 = vld [vmem:[%s214 + $0x38] sm:$0xff]
      %v273 = vld [vmem:[%s214 + $0x40] sm:$0xff]
      %v274 = vld [vmem:[%s214 + $0x48] sm:$0xff]
      %v275 = vld [vmem:[%s214 + $0x50] sm:$0xff]
      %v276 = vld [vmem:[%s214 + $0x58] sm:$0xff]
      %v277 = vld [vmem:[%s214 + $0x60] sm:$0xff]
      %v278 = vld [vmem:[%s214 + $0x68] sm:$0xff]
      %v279 = vld [vmem:[%s214 + $0x70] sm:$0xff]
      %v280 = vld [vmem:[%s214 + $0x78] sm:$0xff]
      %v281 = vld [vmem:[%s214 + $0x80] sm:$0xff]
      %v282 = vld [vmem:[%s214 + $0x88] sm:$0xff]
      %v283 = vld [vmem:[%s214 + $0x90] sm:$0xff]
      %v284 = vld [vmem:[%s214 + $0x98] sm:$0xff]
      %v285 = vld [vmem:[%s214 + $0xa0] sm:$0xff]
      %v286 = vld [vmem:[%s214 + $0xa8] sm:$0xff]
      %v287 = vld [vmem:[%s214 + $0xb0] sm:$0xff]
      %v288 = vld [vmem:[%s214 + $0xb8] sm:$0xff]
      %v289 = vld [vmem:[%s214 + $0xc0] sm:$0xff]
      %v290 = vld [vmem:[%s214 + $0xc8] sm:$0xff]
      %v291 = vld [vmem:[%s214 + $0xd0] sm:$0xff]
      %v292 = vld [vmem:[%s214 + $0xd8] sm:$0xff]
      %v293 = vld [vmem:[%s214 + $0xe0] sm:$0xff]
      %v294 = vld [vmem:[%s214 + $0xe8] sm:$0xff]
      %v295 = vld [vmem:[%s214 + $0xf0] sm:$0xff]
      %v296 = vld [vmem:[%s214 + $0xf8] sm:$0xff]
      %v297 = vld [vmem:[%s214 + $0x100] sm:$0xff]
      %v298 = vld [vmem:[%s214 + $0x108] sm:$0xff]
      %v299 = vld [vmem:[%s214 + $0x110] sm:$0xff]
      %v300 = vld [vmem:[%s214 + $0x118] sm:$0xff]
      %v301 = vld [vmem:[%s214 + $0x120] sm:$0xff]
      %v302 = vld [vmem:[%s214 + $0x128] sm:$0xff]
      %v303 = vld [vmem:[%s214 + $0x130] sm:$0xff]
      %v304 = vld [vmem:[%s214 + $0x138] sm:$0xff]
      %v305 = vld [vmem:[%s214 + $0x140] sm:$0xff]
      %v306 = vld [vmem:[%s214 + $0x148] sm:$0xff]
      %v307 = vld [vmem:[%s214 + $0x150] sm:$0xff]
      %v308 = vld [vmem:[%s214 + $0x158] sm:$0xff]
      %v309 = vld [vmem:[%s214 + $0x160] sm:$0xff]
      %v310 = vld [vmem:[%s214 + $0x168] sm:$0xff]
      %v311 = vld [vmem:[%s214 + $0x170] sm:$0xff]
      %v312 = vld [vmem:[%s214 + $0x178] sm:$0xff]
      %v313 = vld [vmem:[%s214 + $0x180] sm:$0xff]
      %v314 = vld [vmem:[%s214 + $0x188] sm:$0xff]
      %v315 = vld [vmem:[%s214 + $0x190] sm:$0xff]
      %v316 = vld [vmem:[%s214 + $0x198] sm:$0xff]
      %v317 = vld [vmem:[%s214 + $0x1a0] sm:$0xff]
      %v318 = vld [vmem:[%s214 + $0x1a8] sm:$0xff]
      %v320 = vlaneseq
      %v321 = vshrl.u32 %v320, 7
      %v322 = vsub.s32 0, %v321
      %v323 = vrot.slane %v264, %v322
      %vm325 = vcmask 261120
      %v327 = vsel %vm325, %v267, 0
      %v330 = vsel %vm325, %v270, 0
      %v333 = vsel %vm325, %v273, 0
      %v336 = vsel %vm325, %v276, 0
      %v339 = vsel %vm325, %v279, 0
      %v342 = vsel %vm325, %v282, 0
      %v345 = vsel %vm325, %v285, 0
      %v348 = vsel %vm325, %v288, 0
      %v351 = vsel %vm325, %v291, 0
      %v354 = vsel %vm325, %v294, 0
      %v357 = vsel %vm325, %v297, 0
      %v360 = vsel %vm325, %v300, 0
      %v363 = vsel %vm325, %v303, 0
      %v366 = vsel %vm325, %v306, 0
      %v369 = vsel %vm325, %v309, 0
      %v372 = vsel %vm325, %v312, 0
      %v375 = vsel %vm325, %v315, 0
      %v378 = vsel %vm325, %v318, 0
      %380 = vmatprep.subr.mxu0 0.0
      %381 = vmatpush1.msra.mxu0 %v228
      %382 = vmatprep.subr.mxu0 0.0
      %383 = vmatpush1.msra.mxu0 %v229
      %384 = vmatprep.subr.mxu0 0.0
      %385 = vmatpush1.msra.mxu0 %v230
      %386 = vmatprep.subr.mxu0 0.0
      %387 = vmatpush1.msra.mxu0 %v231
      %388 = vmatprep.subr.mxu0 0.0
      %389 = vmatpush1.msra.mxu0 %v232
      %390 = vmatprep.subr.mxu0 0.0
      %391 = vmatpush1.msra.mxu0 %v233
      %392 = vmatprep.subr.mxu0 0.0
      %393 = vmatpush1.msra.mxu0 %v234
      %394 = vmatprep.subr.mxu0 0.0
      %395 = vmatpush1.msra.mxu0 %v235
      %396 = vmatprep.subr.mxu0 0.0
      %397 = vmatpush1.msra.mxu0 %v236
      %398 = vmatprep.subr.mxu0 0.0
      %399 = vmatpush1.msra.mxu0 %v237
      %400 = vmatprep.subr.mxu0 0.0
      %401 = vmatpush1.msra.mxu0 %v238
      %402 = vmatprep.subr.mxu0 0.0
      %403 = vmatpush1.msra.mxu0 %v239
      %404 = vmatprep.subr.mxu0 0.0
      %405 = vmatpush1.msra.mxu0 %v240
      %406 = vmatprep.subr.mxu0 0.0
      %407 = vmatpush1.msra.mxu0 %v241
      %408 = vmatprep.subr.mxu0 0.0
      %409 = vmatpush1.msra.mxu0 %v242
      %410 = vmatprep.subr.mxu0 0.0
      %411 = vmatpush1.msra.mxu0 %v243
      %412 = vmatprep.subr.mxu0 0.0
      %413 = vmatpush1.msra.mxu0 %v244
      %414 = vmatprep.subr.mxu0 0.0
      %415 = vmatpush1.msra.mxu0 %v245
      %416 = vmatprep.subr.mxu0 0.0
      %417 = vmatpush1.msra.mxu0 %v246
      %418 = vmatprep.subr.mxu0 0.0
      %419 = vmatpush1.msra.mxu0 %v247
      %420 = vmatprep.subr.mxu0 0.0
      %421 = vmatpush1.msra.mxu0 %v248
      %422 = vmatprep.subr.mxu0 0.0
      %423 = vmatpush1.msra.mxu0 %v249
      %424 = vmatprep.subr.mxu0 0.0
      %425 = vmatpush1.msra.mxu0 %v250
      %426 = vmatprep.subr.mxu0 0.0
      %427 = vmatpush1.msra.mxu0 %v251
      %428 = vmatprep.subr.mxu0 0.0
      %429 = vmatpush1.msra.mxu0 %v252
      %430 = vmatprep.subr.mxu0 0.0
      %431 = vmatpush1.msra.mxu0 %v253
      %432 = vmatprep.subr.mxu0 0.0
      %433 = vmatpush1.msra.mxu0 %v254
      %434 = vmatprep.subr.mxu0 0.0
      %435 = vmatpush1.msra.mxu0 %v255
      %436 = vmatprep.subr.mxu0 0.0
      %437 = vmatpush1.msra.mxu0 %v256
      %438 = vmatprep.subr.mxu0 0.0
      %439 = vmatpush1.msra.mxu0 %v257
      %440 = vmatprep.subr.mxu0 0.0
      %441 = vmatpush1.msra.mxu0 %v258
      %442 = vmatprep.subr.mxu0 0.0
      %443 = vmatpush1.msra.mxu0 %v259
      %444 = vmatprep.mubr.f32.mxu0 %v266
      %445 = vmatmul.mubr.f32.gmra.mrb[0].mxu0 %v265
      %v446 = vpop.f32.mrb[0].mxu0
      %v447 = vadd.f32 %v323, %v446
      %v448 = vpop.f32.mrb[0].mxu0
      %449 = vmatprep.mubr.f32.mxu0 %v269
      %450 = vmatmul.mubr.f32.gmra.mrb[0].mxu0 %v268
      %v451 = vpop.f32.mrb[0].mxu0
      %v452 = vadd.f32 %v323, %v451
      %v453 = vpop.f32.mrb[0].mxu0
      %454 = vmatprep.mubr.f32.mxu0 %v272
      %455 = vmatmul.mubr.f32.gmra.mrb[0].mxu0 %v271
      %v456 = vpop.f32.mrb[0].mxu0
      %v457 = vadd.f32 %v323, %v456
      %v458 = vpop.f32.mrb[0].mxu0
      %459 = vmatprep.mubr.f32.mxu0 %v275
      %460 = vmatmul.mubr.f32.gmra.mrb[0].mxu0 %v274
      %v461 = vpop.f32.mrb[0].mxu0
      %v462 = vadd.f32 %v323, %v461
      %v463 = vpop.f32.mrb[0].mxu0
      %464 = vmatprep.mubr.f32.mxu0 %v278
      %465 = vmatmul.mubr.f32.gmra.mrb[0].mxu0 %v277
      %v466 = vpop.f32.mrb[0].mxu0
      %v467 = vadd.f32 %v323, %v466
      %v468 = vpop.f32.mrb[0].mxu0
      %469 = vmatprep.mubr.f32.mxu0 %v281
      %470 = vmatmul.mubr.f32.gmra.mrb[0].mxu0 %v280
      %v471 = vpop.f32.mrb[0].mxu0
      %v472 = vadd.f32 %v323, %v471
      %v473 = vpop.f32.mrb[0].mxu0
      %474 = vmatprep.mubr.f32.mxu0 %v284
      %475 = vmatmul.mubr.f32.gmra.mrb[0].mxu0 %v283
      %v476 = vpop.f32.mrb[0].mxu0
      %v477 = vadd.f32 %v323, %v476
      %v478 = vpop.f32.mrb[0].mxu0
      %479 = vmatprep.mubr.f32.mxu0 %v287
      %480 = vmatmul.mubr.f32.gmra.mrb[0].mxu0 %v286
      %v481 = vpop.f32.mrb[0].mxu0
      %v482 = vadd.f32 %v323, %v481
      %v483 = vpop.f32.mrb[0].mxu0
      %484 = vmatprep.mubr.f32.mxu0 %v290
      %485 = vmatmul.mubr.f32.gmra.mrb[0].mxu0 %v289
      %v486 = vpop.f32.mrb[0].mxu0
      %v487 = vadd.f32 %v323, %v486
      %v488 = vpop.f32.mrb[0].mxu0
      %489 = vmatprep.mubr.f32.mxu0 %v293
      %490 = vmatmul.mubr.f32.gmra.mrb[0].mxu0 %v292
      %v491 = vpop.f32.mrb[0].mxu0
      %v492 = vadd.f32 %v323, %v491
      %v493 = vpop.f32.mrb[0].mxu0
      %494 = vmatprep.mubr.f32.mxu0 %v296
      %495 = vmatmul.mubr.f32.gmra.mrb[0].mxu0 %v295
      %v496 = vpop.f32.mrb[0].mxu0
      %v497 = vadd.f32 %v323, %v496
      %v498 = vpop.f32.mrb[0].mxu0
      %499 = vmatprep.mubr.f32.mxu0 %v299
      %500 = vmatmul.mubr.f32.gmra.mrb[0].mxu0 %v298
      %v501 = vpop.f32.mrb[0].mxu0
      %v502 = vadd.f32 %v323, %v501
      %v503 = vpop.f32.mrb[0].mxu0
      %504 = vmatprep.mubr.f32.mxu0 %v302
      %505 = vmatmul.mubr.f32.gmra.mrb[0].mxu0 %v301
      %v506 = vpop.f32.mrb[0].mxu0
      %v507 = vadd.f32 %v323, %v506
      %v508 = vpop.f32.mrb[0].mxu0
      %509 = vmatprep.mubr.f32.mxu0 %v305
      %510 = vmatmul.mubr.f32.gmra.mrb[0].mxu0 %v304
      %v511 = vpop.f32.mrb[0].mxu0
      %v512 = vadd.f32 %v323, %v511
      %v513 = vpop.f32.mrb[0].mxu0
      %514 = vmatprep.mubr.f32.mxu0 %v308
      %515 = vmatmul.mubr.f32.gmra.mrb[0].mxu0 %v307
      %v516 = vpop.f32.mrb[0].mxu0
      %v517 = vadd.f32 %v323, %v516
      %v518 = vpop.f32.mrb[0].mxu0
      %519 = vmatprep.mubr.f32.mxu0 %v311
      %520 = vmatmul.mubr.f32.gmra.mrb[0].mxu0 %v310
      %v521 = vpop.f32.mrb[0].mxu0
      %v522 = vadd.f32 %v323, %v521
      %v523 = vpop.f32.mrb[0].mxu0
      %524 = vmatprep.mubr.f32.mxu0 %v314
      %525 = vmatmul.mubr.f32.gmra.mrb[0].mxu0 %v313
      %v526 = vpop.f32.mrb[0].mxu0
      %v527 = vadd.f32 %v323, %v526
      %v528 = vpop.f32.mrb[0].mxu0
      %529 = vmatprep.mubr.f32.mxu0 %v317
      %530 = vmatmul.mubr.f32.gmra.mrb[0].mxu0 %v316
      %v531 = vpop.f32.mrb[0].mxu0
      %v532 = vadd.f32 %v323, %v531
      %v533 = vpop.f32.mrb[0].mxu0
      %534 = vdwg.mxu0
      %535 = vmatprep.subr.mxu0 0.0
      %536 = vmatpush1.msra.mxu0 %v260
      %537 = vmatprep.subr.mxu0 0.0
      %538 = vmatpush1.msra.mxu0 %v261
      %539 = vmatprep.subr.mxu0 0.0
      %540 = vmatpush1.msra.mxu0 %v262
      %541 = vmatprep.subr.mxu0 0.0
      %542 = vmatpush1.msra.mxu0 %v263
      %543 = vmatprep.subr.mxu0 0.0
      %544 = vmatpush1.msra.mxu0 0.0
      %545 = vmatprep.subr.mxu0 0.0
      %546 = vmatpush1.msra.mxu0 0.0
      %547 = vmatprep.subr.mxu0 0.0
      %548 = vmatpush1.msra.mxu0 0.0
      %549 = vmatprep.subr.mxu0 0.0
      %550 = vmatpush1.msra.mxu0 0.0
      %551 = vmatprep.subr.mxu0 0.0
      %552 = vmatpush1.msra.mxu0 0.0
      %553 = vmatprep.subr.mxu0 0.0
      %554 = vmatpush1.msra.mxu0 0.0
      %555 = vmatprep.subr.mxu0 0.0
      %556 = vmatpush1.msra.mxu0 0.0
      %557 = vmatprep.subr.mxu0 0.0
      %558 = vmatpush1.msra.mxu0 0.0
      %559 = vmatprep.subr.mxu0 0.0
      %560 = vmatpush1.msra.mxu0 0.0
      %561 = vmatprep.subr.mxu0 0.0
      %562 = vmatpush1.msra.mxu0 0.0
      %563 = vmatprep.subr.mxu0 0.0
      %564 = vmatpush1.msra.mxu0 0.0
      %565 = vmatprep.subr.mxu0 0.0
      %566 = vmatpush1.msra.mxu0 0.0
      %567 = vmatprep.subr.mxu0 0.0
      %568 = vmatpush1.msra.mxu0 0.0
      %569 = vmatprep.subr.mxu0 0.0
      %570 = vmatpush1.msra.mxu0 0.0
      %571 = vmatprep.subr.mxu0 0.0
      %572 = vmatpush1.msra.mxu0 0.0
      %573 = vmatprep.subr.mxu0 0.0
      %574 = vmatpush1.msra.mxu0 0.0
      %575 = vmatprep.subr.mxu0 0.0
      %576 = vmatpush1.msra.mxu0 0.0
      %577 = vmatprep.subr.mxu0 0.0
      %578 = vmatpush1.msra.mxu0 0.0
      %579 = vmatprep.subr.mxu0 0.0
      %580 = vmatpush1.msra.mxu0 0.0
      %581 = vmatprep.subr.mxu0 0.0
      %582 = vmatpush1.msra.mxu0 0.0
      %583 = vmatprep.subr.mxu0 0.0
      %584 = vmatpush1.msra.mxu0 0.0
      %585 = vmatprep.subr.mxu0 0.0
      %586 = vmatpush1.msra.mxu0 0.0
      %587 = vmatprep.subr.mxu0 0.0
      %588 = vmatpush1.msra.mxu0 0.0
      %589 = vmatprep.subr.mxu0 0.0
      %590 = vmatpush1.msra.mxu0 0.0
      %591 = vmatprep.subr.mxu0 0.0
      %592 = vmatpush1.msra.mxu0 0.0
      %593 = vmatprep.subr.mxu0 0.0
      %594 = vmatpush1.msra.mxu0 0.0
      %595 = vmatprep.subr.mxu0 0.0
      %596 = vmatpush1.msra.mxu0 0.0
      %597 = vmatprep.subr.mxu0 0.0
      %598 = vmatpush1.msra.mxu0 0.0
      %599 = vmatprep.mubr.f32.mxu0 0.0
      %600 = vmatmul.mubr.f32.gmra.mrb[0].mxu0 %v327
      %v601 = vpop.f32.mrb[0].mxu0
      %v602 = vadd.f32 %v447, %v601
      %v603 = vpop.f32.mrb[0].mxu0
      %604 = vmatprep.mubr.f32.mxu0 0.0
      %605 = vmatmul.mubr.f32.gmra.mrb[0].mxu0 %v330
      %v606 = vpop.f32.mrb[0].mxu0
      %v607 = vadd.f32 %v452, %v606
      %v608 = vpop.f32.mrb[0].mxu0
      %609 = vmatprep.mubr.f32.mxu0 0.0
      %610 = vmatmul.mubr.f32.gmra.mrb[0].mxu0 %v333
      %v611 = vpop.f32.mrb[0].mxu0
      %v612 = vadd.f32 %v457, %v611
      %v613 = vpop.f32.mrb[0].mxu0
      %614 = vmatprep.mubr.f32.mxu0 0.0
      %615 = vmatmul.mubr.f32.gmra.mrb[0].mxu0 %v336
      %v616 = vpop.f32.mrb[0].mxu0
      %v617 = vadd.f32 %v462, %v616
      %v618 = vpop.f32.mrb[0].mxu0
      %619 = vmatprep.mubr.f32.mxu0 0.0
      %620 = vmatmul.mubr.f32.gmra.mrb[0].mxu0 %v339
      %v621 = vpop.f32.mrb[0].mxu0
      %v622 = vadd.f32 %v467, %v621
      %v623 = vpop.f32.mrb[0].mxu0
      %624 = vmatprep.mubr.f32.mxu0 0.0
      %625 = vmatmul.mubr.f32.gmra.mrb[0].mxu0 %v342
      %v626 = vpop.f32.mrb[0].mxu0
      %v627 = vadd.f32 %v472, %v626
      %v628 = vpop.f32.mrb[0].mxu0
      %629 = vmatprep.mubr.f32.mxu0 0.0
      %630 = vmatmul.mubr.f32.gmra.mrb[0].mxu0 %v345
      %v631 = vpop.f32.mrb[0].mxu0
      %v632 = vadd.f32 %v477, %v631
      %v633 = vpop.f32.mrb[0].mxu0
      %634 = vmatprep.mubr.f32.mxu0 0.0
      %635 = vmatmul.mubr.f32.gmra.mrb[0].mxu0 %v348
      %v636 = vpop.f32.mrb[0].mxu0
      %v637 = vadd.f32 %v482, %v636
      %v638 = vpop.f32.mrb[0].mxu0
      %639 = vmatprep.mubr.f32.mxu0 0.0
      %640 = vmatmul.mubr.f32.gmra.mrb[0].mxu0 %v351
      %v641 = vpop.f32.mrb[0].mxu0
      %v642 = vadd.f32 %v487, %v641
      %v643 = vpop.f32.mrb[0].mxu0
      %644 = vmatprep.mubr.f32.mxu0 0.0
      %645 = vmatmul.mubr.f32.gmra.mrb[0].mxu0 %v354
      %v646 = vpop.f32.mrb[0].mxu0
      %v647 = vadd.f32 %v492, %v646
      %v648 = vpop.f32.mrb[0].mxu0
      %649 = vmatprep.mubr.f32.mxu0 0.0
      %650 = vmatmul.mubr.f32.gmra.mrb[0].mxu0 %v357
      %v651 = vpop.f32.mrb[0].mxu0
      %v652 = vadd.f32 %v497, %v651
      %v653 = vpop.f32.mrb[0].mxu0
      %654 = vmatprep.mubr.f32.mxu0 0.0
      %655 = vmatmul.mubr.f32.gmra.mrb[0].mxu0 %v360
      %v656 = vpop.f32.mrb[0].mxu0
      %v657 = vadd.f32 %v502, %v656
      %v658 = vpop.f32.mrb[0].mxu0
      %659 = vmatprep.mubr.f32.mxu0 0.0
      %660 = vmatmul.mubr.f32.gmra.mrb[0].mxu0 %v363
      %v661 = vpop.f32.mrb[0].mxu0
      %v662 = vadd.f32 %v507, %v661
      %v663 = vpop.f32.mrb[0].mxu0
      %664 = vmatprep.mubr.f32.mxu0 0.0
      %665 = vmatmul.mubr.f32.gmra.mrb[0].mxu0 %v366
      %v666 = vpop.f32.mrb[0].mxu0
      %v667 = vadd.f32 %v512, %v666
      %v668 = vpop.f32.mrb[0].mxu0
      %669 = vmatprep.mubr.f32.mxu0 0.0
      %670 = vmatmul.mubr.f32.gmra.mrb[0].mxu0 %v369
      %v671 = vpop.f32.mrb[0].mxu0
      %v672 = vadd.f32 %v517, %v671
      %v673 = vpop.f32.mrb[0].mxu0
      %674 = vmatprep.mubr.f32.mxu0 0.0
      %675 = vmatmul.mubr.f32.gmra.mrb[0].mxu0 %v372
      %v676 = vpop.f32.mrb[0].mxu0
      %v677 = vadd.f32 %v522, %v676
      %v678 = vpop.f32.mrb[0].mxu0
      %679 = vmatprep.mubr.f32.mxu0 0.0
      %680 = vmatmul.mubr.f32.gmra.mrb[0].mxu0 %v375
      %v681 = vpop.f32.mrb[0].mxu0
      %v682 = vadd.f32 %v527, %v681
      %v683 = vpop.f32.mrb[0].mxu0
      %684 = vmatprep.mubr.f32.mxu0 0.0
      %685 = vmatmul.mubr.f32.gmra.mrb[0].mxu0 %v378
      %v686 = vpop.f32.mrb[0].mxu0
      %v687 = vadd.f32 %v532, %v686
      %v688 = vpop.f32.mrb[0].mxu0
      %689 = vdwg.mxu0
      %v690 = vld [vmem:[%s221] sm:$0xff]
      %v691 = vld [vmem:[%s221 + $0x8] sm:$0xff]
      %v692 = vld [vmem:[%s221 + $0x10] sm:$0xff]
      %v693 = vld [vmem:[%s221 + $0x18] sm:$0xff]
      %v694 = vld [vmem:[%s221 + $0x20] sm:$0xff]
      %v695 = vld [vmem:[%s221 + $0x28] sm:$0xff]
      %v696 = vld [vmem:[%s221 + $0x30] sm:$0xff]
      %v697 = vld [vmem:[%s221 + $0x38] sm:$0xff]
      %v698 = vld [vmem:[%s221 + $0x40] sm:$0xff]
      %v699 = vld [vmem:[%s221 + $0x48] sm:$0xff]
      %v700 = vld [vmem:[%s221 + $0x50] sm:$0xff]
      %v701 = vld [vmem:[%s221 + $0x58] sm:$0xff]
      %v702 = vld [vmem:[%s221 + $0x60] sm:$0xff]
      %v703 = vld [vmem:[%s221 + $0x68] sm:$0xff]
      %v704 = vld [vmem:[%s221 + $0x70] sm:$0xff]
      %v705 = vld [vmem:[%s221 + $0x78] sm:$0xff]
      %v706 = vld [vmem:[%s221 + $0x80] sm:$0xff]
      %v707 = vld [vmem:[%s221 + $0x88] sm:$0xff]
      %v708 = vadd.f32 %v602, %v690
      %v709 = vadd.f32 %v607, %v691
      %v710 = vadd.f32 %v612, %v692
      %v711 = vadd.f32 %v617, %v693
      %v712 = vadd.f32 %v622, %v694
      %v713 = vadd.f32 %v627, %v695
      %v714 = vadd.f32 %v632, %v696
      %v715 = vadd.f32 %v637, %v697
      %v716 = vadd.f32 %v642, %v698
      %v717 = vadd.f32 %v647, %v699
      %v718 = vadd.f32 %v652, %v700
      %v719 = vadd.f32 %v657, %v701
      %v720 = vadd.f32 %v662, %v702
      %v721 = vadd.f32 %v667, %v703
      %v722 = vadd.f32 %v672, %v704
      %v723 = vadd.f32 %v677, %v705
      %v724 = vadd.f32 %v682, %v706
      %v725 = vadd.f32 %v687, %v707
      %v726 = vmax.f32 %v708, 0.0
      %v727 = vmax.f32 %v709, 0.0
      %v728 = vmax.f32 %v710, 0.0
      %v729 = vmax.f32 %v711, 0.0
      %v730 = vmax.f32 %v712, 0.0
      %v731 = vmax.f32 %v713, 0.0
      %v732 = vmax.f32 %v714, 0.0
      %v733 = vmax.f32 %v715, 0.0
      %v734 = vmax.f32 %v716, 0.0
      %v735 = vmax.f32 %v717, 0.0
      %v736 = vmax.f32 %v718, 0.0
      %v737 = vmax.f32 %v719, 0.0
      %v738 = vmax.f32 %v720, 0.0
      %v739 = vmax.f32 %v721, 0.0
      %v740 = vmax.f32 %v722, 0.0
      %v741 = vmax.f32 %v723, 0.0
      %v742 = vmax.f32 %v724, 0.0
      %v743 = vmax.f32 %v725, 0.0
      %v744 = vadd.f32 %v726, 0.0
      %v745 = vadd.f32 %v727, 0.0
      %v746 = vadd.f32 %v728, 0.0
      %v747 = vadd.f32 %v729, 0.0
      %v748 = vadd.f32 %v730, 0.0
      %v749 = vadd.f32 %v731, 0.0
      %v750 = vadd.f32 %v732, 0.0
      %v751 = vadd.f32 %v733, 0.0
      %v752 = vadd.f32 %v734, 0.0
      %v753 = vadd.f32 %v735, 0.0
      %v754 = vadd.f32 %v736, 0.0
      %v755 = vadd.f32 %v737, 0.0
      %v756 = vadd.f32 %v738, 0.0
      %v757 = vadd.f32 %v739, 0.0
      %v758 = vadd.f32 %v740, 0.0
      %v759 = vadd.f32 %v741, 0.0
      %v760 = vadd.f32 %v742, 0.0
      %v761 = vadd.f32 %v743, 0.0
      %s762 = scalar_lea.vmem %s214, 432
      %v763 = vld [vmem:[%s762] sm:$0xff]
      %v764 = vld [vmem:[%s762 + $0x8] sm:$0xff]
      %v765 = vld [vmem:[%s762 + $0x10] sm:$0xff]
      %v766 = vld [vmem:[%s762 + $0x18] sm:$0xff]
      %v767 = vld [vmem:[%s762 + $0x20] sm:$0xff]
      %v768 = vld [vmem:[%s762 + $0x28] sm:$0xff]
      %v769 = vld [vmem:[%s762 + $0x30] sm:$0xff]
      %v770 = vld [vmem:[%s762 + $0x38] sm:$0xff]
      %v771 = vld [vmem:[%s762 + $0x40] sm:$0xff]
      %v772 = vld [vmem:[%s762 + $0x48] sm:$0xff]
      %v773 = vld [vmem:[%s762 + $0x50] sm:$0xff]
      %v774 = vld [vmem:[%s762 + $0x58] sm:$0xff]
      %v775 = vld [vmem:[%s762 + $0x60] sm:$0xff]
      %v776 = vld [vmem:[%s762 + $0x68] sm:$0xff]
      %v777 = vld [vmem:[%s762 + $0x70] sm:$0xff]
      %v778 = vld [vmem:[%s762 + $0x78] sm:$0xff]
      %v779 = vld [vmem:[%s762 + $0x80] sm:$0xff]
      %v780 = vld [vmem:[%s762 + $0x88] sm:$0xff]
      %v781 = vld [vmem:[%s762 + $0x90] sm:$0xff]
      %v782 = vld [vmem:[%s762 + $0x98] sm:$0xff]
      %v783 = vld [vmem:[%s762 + $0xa0] sm:$0xff]
      %v784 = vld [vmem:[%s762 + $0xa8] sm:$0xff]
      %v785 = vld [vmem:[%s762 + $0xb0] sm:$0xff]
      %v786 = vld [vmem:[%s762 + $0xb8] sm:$0xff]
      %v787 = vld [vmem:[%s762 + $0xc0] sm:$0xff]
      %v788 = vld [vmem:[%s762 + $0xc8] sm:$0xff]
      %v789 = vld [vmem:[%s762 + $0xd0] sm:$0xff]
      %v790 = vld [vmem:[%s762 + $0xd8] sm:$0xff]
      %v791 = vld [vmem:[%s762 + $0xe0] sm:$0xff]
      %v792 = vld [vmem:[%s762 + $0xe8] sm:$0xff]
      %v793 = vld [vmem:[%s762 + $0xf0] sm:$0xff]
      %v794 = vld [vmem:[%s762 + $0xf8] sm:$0xff]
      %v795 = vld [vmem:[%s762 + $0x100] sm:$0xff]
      %v796 = vld [vmem:[%s762 + $0x108] sm:$0xff]
      %v797 = vld [vmem:[%s762 + $0x110] sm:$0xff]
      %v798 = vld [vmem:[%s762 + $0x118] sm:$0xff]
      %v799 = vld [vmem:[%s762 + $0x120] sm:$0xff]
      %v800 = vld [vmem:[%s762 + $0x128] sm:$0xff]
      %v801 = vld [vmem:[%s762 + $0x130] sm:$0xff]
      %v802 = vld [vmem:[%s762 + $0x138] sm:$0xff]
      %v803 = vld [vmem:[%s762 + $0x140] sm:$0xff]
      %v804 = vld [vmem:[%s762 + $0x148] sm:$0xff]
      %v805 = vld [vmem:[%s762 + $0x150] sm:$0xff]
      %v806 = vld [vmem:[%s762 + $0x158] sm:$0xff]
      %v807 = vld [vmem:[%s762 + $0x160] sm:$0xff]
      %v808 = vld [vmem:[%s762 + $0x168] sm:$0xff]
      %v809 = vld [vmem:[%s762 + $0x170] sm:$0xff]
      %v810 = vld [vmem:[%s762 + $0x178] sm:$0xff]
      %v811 = vld [vmem:[%s762 + $0x180] sm:$0xff]
      %v812 = vld [vmem:[%s762 + $0x188] sm:$0xff]
      %v813 = vld [vmem:[%s762 + $0x190] sm:$0xff]
      %v814 = vld [vmem:[%s762 + $0x198] sm:$0xff]
      %v815 = vld [vmem:[%s762 + $0x1a0] sm:$0xff]
      %v816 = vld [vmem:[%s762 + $0x1a8] sm:$0xff]
      %v818 = vsel %vm325, %v765, 0
      %v821 = vsel %vm325, %v768, 0
      %v824 = vsel %vm325, %v771, 0
      %v827 = vsel %vm325, %v774, 0
      %v830 = vsel %vm325, %v777, 0
      %v833 = vsel %vm325, %v780, 0
      %v836 = vsel %vm325, %v783, 0
      %v839 = vsel %vm325, %v786, 0
      %v842 = vsel %vm325, %v789, 0
      %v845 = vsel %vm325, %v792, 0
      %v848 = vsel %vm325, %v795, 0
      %v851 = vsel %vm325, %v798, 0
      %v854 = vsel %vm325, %v801, 0
      %v857 = vsel %vm325, %v804, 0
      %v860 = vsel %vm325, %v807, 0
      %v863 = vsel %vm325, %v810, 0
      %v866 = vsel %vm325, %v813, 0
      %v869 = vsel %vm325, %v816, 0
      %871 = vmatprep.subr.mxu0 0.0
      %872 = vmatpush1.msra.mxu0 %v228
      %873 = vmatprep.subr.mxu0 0.0
      %874 = vmatpush1.msra.mxu0 %v229
      %875 = vmatprep.subr.mxu0 0.0
      %876 = vmatpush1.msra.mxu0 %v230
      %877 = vmatprep.subr.mxu0 0.0
      %878 = vmatpush1.msra.mxu0 %v231
      %879 = vmatprep.subr.mxu0 0.0
      %880 = vmatpush1.msra.mxu0 %v232
      %881 = vmatprep.subr.mxu0 0.0
      %882 = vmatpush1.msra.mxu0 %v233
      %883 = vmatprep.subr.mxu0 0.0
      %884 = vmatpush1.msra.mxu0 %v234
      %885 = vmatprep.subr.mxu0 0.0
      %886 = vmatpush1.msra.mxu0 %v235
      %887 = vmatprep.subr.mxu0 0.0
      %888 = vmatpush1.msra.mxu0 %v236
      %889 = vmatprep.subr.mxu0 0.0
      %890 = vmatpush1.msra.mxu0 %v237
      %891 = vmatprep.subr.mxu0 0.0
      %892 = vmatpush1.msra.mxu0 %v238
      %893 = vmatprep.subr.mxu0 0.0
      %894 = vmatpush1.msra.mxu0 %v239
      %895 = vmatprep.subr.mxu0 0.0
      %896 = vmatpush1.msra.mxu0 %v240
      %897 = vmatprep.subr.mxu0 0.0
      %898 = vmatpush1.msra.mxu0 %v241
      %899 = vmatprep.subr.mxu0 0.0
      %900 = vmatpush1.msra.mxu0 %v242
      %901 = vmatprep.subr.mxu0 0.0
      %902 = vmatpush1.msra.mxu0 %v243
      %903 = vmatprep.subr.mxu0 0.0
      %904 = vmatpush1.msra.mxu0 %v244
      %905 = vmatprep.subr.mxu0 0.0
      %906 = vmatpush1.msra.mxu0 %v245
      %907 = vmatprep.subr.mxu0 0.0
      %908 = vmatpush1.msra.mxu0 %v246
      %909 = vmatprep.subr.mxu0 0.0
      %910 = vmatpush1.msra.mxu0 %v247
      %911 = vmatprep.subr.mxu0 0.0
      %912 = vmatpush1.msra.mxu0 %v248
      %913 = vmatprep.subr.mxu0 0.0
      %914 = vmatpush1.msra.mxu0 %v249
      %915 = vmatprep.subr.mxu0 0.0
      %916 = vmatpush1.msra.mxu0 %v250
      %917 = vmatprep.subr.mxu0 0.0
      %918 = vmatpush1.msra.mxu0 %v251
      %919 = vmatprep.subr.mxu0 0.0
      %920 = vmatpush1.msra.mxu0 %v252
      %921 = vmatprep.subr.mxu0 0.0
      %922 = vmatpush1.msra.mxu0 %v253
      %923 = vmatprep.subr.mxu0 0.0
      %924 = vmatpush1.msra.mxu0 %v254
      %925 = vmatprep.subr.mxu0 0.0
      %926 = vmatpush1.msra.mxu0 %v255
      %927 = vmatprep.subr.mxu0 0.0
      %928 = vmatpush1.msra.mxu0 %v256
      %929 = vmatprep.subr.mxu0 0.0
      %930 = vmatpush1.msra.mxu0 %v257
      %931 = vmatprep.subr.mxu0 0.0
      %932 = vmatpush1.msra.mxu0 %v258
      %933 = vmatprep.subr.mxu0 0.0
      %934 = vmatpush1.msra.mxu0 %v259
      %935 = vmatprep.mubr.f32.mxu0 %v764
      %936 = vmatmul.mubr.f32.gmra.mrb[0].mxu0 %v763
      %v937 = vpop.f32.mrb[0].mxu0
      %v938 = vadd.f32 %v323, %v937
      %v939 = vpop.f32.mrb[0].mxu0
      %940 = vmatprep.mubr.f32.mxu0 %v767
      %941 = vmatmul.mubr.f32.gmra.mrb[0].mxu0 %v766
      %v942 = vpop.f32.mrb[0].mxu0
      %v943 = vadd.f32 %v323, %v942
      %v944 = vpop.f32.mrb[0].mxu0
      %945 = vmatprep.mubr.f32.mxu0 %v770
      %946 = vmatmul.mubr.f32.gmra.mrb[0].mxu0 %v769
      %v947 = vpop.f32.mrb[0].mxu0
      %v948 = vadd.f32 %v323, %v947
      %v949 = vpop.f32.mrb[0].mxu0
      %950 = vmatprep.mubr.f32.mxu0 %v773
      %951 = vmatmul.mubr.f32.gmra.mrb[0].mxu0 %v772
      %v952 = vpop.f32.mrb[0].mxu0
      %v953 = vadd.f32 %v323, %v952
      %v954 = vpop.f32.mrb[0].mxu0
      %955 = vmatprep.mubr.f32.mxu0 %v776
      %956 = vmatmul.mubr.f32.gmra.mrb[0].mxu0 %v775
      %v957 = vpop.f32.mrb[0].mxu0
      %v958 = vadd.f32 %v323, %v957
      %v959 = vpop.f32.mrb[0].mxu0
      %960 = vmatprep.mubr.f32.mxu0 %v779
      %961 = vmatmul.mubr.f32.gmra.mrb[0].mxu0 %v778
      %v962 = vpop.f32.mrb[0].mxu0
      %v963 = vadd.f32 %v323, %v962
      %v964 = vpop.f32.mrb[0].mxu0
      %965 = vmatprep.mubr.f32.mxu0 %v782
      %966 = vmatmul.mubr.f32.gmra.mrb[0].mxu0 %v781
      %v967 = vpop.f32.mrb[0].mxu0
      %v968 = vadd.f32 %v323, %v967
      %v969 = vpop.f32.mrb[0].mxu0
      %970 = vmatprep.mubr.f32.mxu0 %v785
      %971 = vmatmul.mubr.f32.gmra.mrb[0].mxu0 %v784
      %v972 = vpop.f32.mrb[0].mxu0
      %v973 = vadd.f32 %v323, %v972
      %v974 = vpop.f32.mrb[0].mxu0
      %975 = vmatprep.mubr.f32.mxu0 %v788
      %976 = vmatmul.mubr.f32.gmra.mrb[0].mxu0 %v787
      %v977 = vpop.f32.mrb[0].mxu0
      %v978 = vadd.f32 %v323, %v977
      %v979 = vpop.f32.mrb[0].mxu0
      %980 = vmatprep.mubr.f32.mxu0 %v791
      %981 = vmatmul.mubr.f32.gmra.mrb[0].mxu0 %v790
      %v982 = vpop.f32.mrb[0].mxu0
      %v983 = vadd.f32 %v323, %v982
      %v984 = vpop.f32.mrb[0].mxu0
      %985 = vmatprep.mubr.f32.mxu0 %v794
      %986 = vmatmul.mubr.f32.gmra.mrb[0].mxu0 %v793
      %v987 = vpop.f32.mrb[0].mxu0
      %v988 = vadd.f32 %v323, %v987
      %v989 = vpop.f32.mrb[0].mxu0
      %990 = vmatprep.mubr.f32.mxu0 %v797
      %991 = vmatmul.mubr.f32.gmra.mrb[0].mxu0 %v796
      %v992 = vpop.f32.mrb[0].mxu0
      %v993 = vadd.f32 %v323, %v992
      %v994 = vpop.f32.mrb[0].mxu0
      %995 = vmatprep.mubr.f32.mxu0 %v800
      %996 = vmatmul.mubr.f32.gmra.mrb[0].mxu0 %v799
      %v997 = vpop.f32.mrb[0].mxu0
      %v998 = vadd.f32 %v323, %v997
      %v999 = vpop.f32.mrb[0].mxu0
      %1000 = vmatprep.mubr.f32.mxu0 %v803
      %1001 = vmatmul.mubr.f32.gmra.mrb[0].mxu0 %v802
      %v1002 = vpop.f32.mrb[0].mxu0
      %v1003 = vadd.f32 %v323, %v1002
      %v1004 = vpop.f32.mrb[0].mxu0
      %1005 = vmatprep.mubr.f32.mxu0 %v806
      %1006 = vmatmul.mubr.f32.gmra.mrb[0].mxu0 %v805
      %v1007 = vpop.f32.mrb[0].mxu0
      %v1008 = vadd.f32 %v323, %v1007
      %v1009 = vpop.f32.mrb[0].mxu0
      %1010 = vmatprep.mubr.f32.mxu0 %v809
      %1011 = vmatmul.mubr.f32.gmra.mrb[0].mxu0 %v808
      %v1012 = vpop.f32.mrb[0].mxu0
      %v1013 = vadd.f32 %v323, %v1012
      %v1014 = vpop.f32.mrb[0].mxu0
      %1015 = vmatprep.mubr.f32.mxu0 %v812
      %1016 = vmatmul.mubr.f32.gmra.mrb[0].mxu0 %v811
      %v1017 = vpop.f32.mrb[0].mxu0
      %v1018 = vadd.f32 %v323, %v1017
      %v1019 = vpop.f32.mrb[0].mxu0
      %1020 = vmatprep.mubr.f32.mxu0 %v815
      %1021 = vmatmul.mubr.f32.gmra.mrb[0].mxu0 %v814
      %v1022 = vpop.f32.mrb[0].mxu0
      %v1023 = vadd.f32 %v323, %v1022
      %v1024 = vpop.f32.mrb[0].mxu0
      %1025 = vdwg.mxu0
      %1026 = vmatprep.subr.mxu0 0.0
      %1027 = vmatpush1.msra.mxu0 %v260
      %1028 = vmatprep.subr.mxu0 0.0
      %1029 = vmatpush1.msra.mxu0 %v261
      %1030 = vmatprep.subr.mxu0 0.0
      %1031 = vmatpush1.msra.mxu0 %v262
      %1032 = vmatprep.subr.mxu0 0.0
      %1033 = vmatpush1.msra.mxu0 %v263
      %1034 = vmatprep.subr.mxu0 0.0
      %1035 = vmatpush1.msra.mxu0 0.0
      %1036 = vmatprep.subr.mxu0 0.0
      %1037 = vmatpush1.msra.mxu0 0.0
      %1038 = vmatprep.subr.mxu0 0.0
      %1039 = vmatpush1.msra.mxu0 0.0
      %1040 = vmatprep.subr.mxu0 0.0
      %1041 = vmatpush1.msra.mxu0 0.0
      %1042 = vmatprep.subr.mxu0 0.0
      %1043 = vmatpush1.msra.mxu0 0.0
      %1044 = vmatprep.subr.mxu0 0.0
      %1045 = vmatpush1.msra.mxu0 0.0
      %1046 = vmatprep.subr.mxu0 0.0
      %1047 = vmatpush1.msra.mxu0 0.0
      %1048 = vmatprep.subr.mxu0 0.0
      %1049 = vmatpush1.msra.mxu0 0.0
      %1050 = vmatprep.subr.mxu0 0.0
      %1051 = vmatpush1.msra.mxu0 0.0
      %1052 = vmatprep.subr.mxu0 0.0
      %1053 = vmatpush1.msra.mxu0 0.0
      %1054 = vmatprep.subr.mxu0 0.0
      %1055 = vmatpush1.msra.mxu0 0.0
      %1056 = vmatprep.subr.mxu0 0.0
      %1057 = vmatpush1.msra.mxu0 0.0
      %1058 = vmatprep.subr.mxu0 0.0
      %1059 = vmatpush1.msra.mxu0 0.0
      %1060 = vmatprep.subr.mxu0 0.0
      %1061 = vmatpush1.msra.mxu0 0.0
      %1062 = vmatprep.subr.mxu0 0.0
      %1063 = vmatpush1.msra.mxu0 0.0
      %1064 = vmatprep.subr.mxu0 0.0
      %1065 = vmatpush1.msra.mxu0 0.0
      %1066 = vmatprep.subr.mxu0 0.0
      %1067 = vmatpush1.msra.mxu0 0.0
      %1068 = vmatprep.subr.mxu0 0.0
      %1069 = vmatpush1.msra.mxu0 0.0
      %1070 = vmatprep.subr.mxu0 0.0
      %1071 = vmatpush1.msra.mxu0 0.0
      %1072 = vmatprep.subr.mxu0 0.0
      %1073 = vmatpush1.msra.mxu0 0.0
      %1074 = vmatprep.subr.mxu0 0.0
      %1075 = vmatpush1.msra.mxu0 0.0
      %1076 = vmatprep.subr.mxu0 0.0
      %1077 = vmatpush1.msra.mxu0 0.0
      %1078 = vmatprep.subr.mxu0 0.0
      %1079 = vmatpush1.msra.mxu0 0.0
      %1080 = vmatprep.subr.mxu0 0.0
      %1081 = vmatpush1.msra.mxu0 0.0
      %1082 = vmatprep.subr.mxu0 0.0
      %1083 = vmatpush1.msra.mxu0 0.0
      %1084 = vmatprep.subr.mxu0 0.0
      %1085 = vmatpush1.msra.mxu0 0.0
      %1086 = vmatprep.subr.mxu0 0.0
      %1087 = vmatpush1.msra.mxu0 0.0
      %1088 = vmatprep.subr.mxu0 0.0
      %1089 = vmatpush1.msra.mxu0 0.0
      %1090 = vmatprep.mubr.f32.mxu0 0.0
      %1091 = vmatmul.mubr.f32.gmra.mrb[0].mxu0 %v818
      %v1092 = vpop.f32.mrb[0].mxu0
      %v1093 = vadd.f32 %v938, %v1092
      %v1094 = vpop.f32.mrb[0].mxu0
      %1095 = vmatprep.mubr.f32.mxu0 0.0
      %1096 = vmatmul.mubr.f32.gmra.mrb[0].mxu0 %v821
      %v1097 = vpop.f32.mrb[0].mxu0
      %v1098 = vadd.f32 %v943, %v1097
      %v1099 = vpop.f32.mrb[0].mxu0
      %1100 = vmatprep.mubr.f32.mxu0 0.0
      %1101 = vmatmul.mubr.f32.gmra.mrb[0].mxu0 %v824
      %v1102 = vpop.f32.mrb[0].mxu0
      %v1103 = vadd.f32 %v948, %v1102
      %v1104 = vpop.f32.mrb[0].mxu0
      %1105 = vmatprep.mubr.f32.mxu0 0.0
      %1106 = vmatmul.mubr.f32.gmra.mrb[0].mxu0 %v827
      %v1107 = vpop.f32.mrb[0].mxu0
      %v1108 = vadd.f32 %v953, %v1107
      %v1109 = vpop.f32.mrb[0].mxu0
      %1110 = vmatprep.mubr.f32.mxu0 0.0
      %1111 = vmatmul.mubr.f32.gmra.mrb[0].mxu0 %v830
      %v1112 = vpop.f32.mrb[0].mxu0
      %v1113 = vadd.f32 %v958, %v1112
      %v1114 = vpop.f32.mrb[0].mxu0
      %1115 = vmatprep.mubr.f32.mxu0 0.0
      %1116 = vmatmul.mubr.f32.gmra.mrb[0].mxu0 %v833
      %v1117 = vpop.f32.mrb[0].mxu0
      %v1118 = vadd.f32 %v963, %v1117
      %v1119 = vpop.f32.mrb[0].mxu0
      %1120 = vmatprep.mubr.f32.mxu0 0.0
      %1121 = vmatmul.mubr.f32.gmra.mrb[0].mxu0 %v836
      %v1122 = vpop.f32.mrb[0].mxu0
      %v1123 = vadd.f32 %v968, %v1122
      %v1124 = vpop.f32.mrb[0].mxu0
      %1125 = vmatprep.mubr.f32.mxu0 0.0
      %1126 = vmatmul.mubr.f32.gmra.mrb[0].mxu0 %v839
      %v1127 = vpop.f32.mrb[0].mxu0
      %v1128 = vadd.f32 %v973, %v1127
      %v1129 = vpop.f32.mrb[0].mxu0
      %1130 = vmatprep.mubr.f32.mxu0 0.0
      %1131 = vmatmul.mubr.f32.gmra.mrb[0].mxu0 %v842
      %v1132 = vpop.f32.mrb[0].mxu0
      %v1133 = vadd.f32 %v978, %v1132
      %v1134 = vpop.f32.mrb[0].mxu0
      %1135 = vmatprep.mubr.f32.mxu0 0.0
      %1136 = vmatmul.mubr.f32.gmra.mrb[0].mxu0 %v845
      %v1137 = vpop.f32.mrb[0].mxu0
      %v1138 = vadd.f32 %v983, %v1137
      %v1139 = vpop.f32.mrb[0].mxu0
      %1140 = vmatprep.mubr.f32.mxu0 0.0
      %1141 = vmatmul.mubr.f32.gmra.mrb[0].mxu0 %v848
      %v1142 = vpop.f32.mrb[0].mxu0
      %v1143 = vadd.f32 %v988, %v1142
      %v1144 = vpop.f32.mrb[0].mxu0
      %1145 = vmatprep.mubr.f32.mxu0 0.0
      %1146 = vmatmul.mubr.f32.gmra.mrb[0].mxu0 %v851
      %v1147 = vpop.f32.mrb[0].mxu0
      %v1148 = vadd.f32 %v993, %v1147
      %v1149 = vpop.f32.mrb[0].mxu0
      %1150 = vmatprep.mubr.f32.mxu0 0.0
      %1151 = vmatmul.mubr.f32.gmra.mrb[0].mxu0 %v854
      %v1152 = vpop.f32.mrb[0].mxu0
      %v1153 = vadd.f32 %v998, %v1152
      %v1154 = vpop.f32.mrb[0].mxu0
      %1155 = vmatprep.mubr.f32.mxu0 0.0
      %1156 = vmatmul.mubr.f32.gmra.mrb[0].mxu0 %v857
      %v1157 = vpop.f32.mrb[0].mxu0
      %v1158 = vadd.f32 %v1003, %v1157
      %v1159 = vpop.f32.mrb[0].mxu0
      %1160 = vmatprep.mubr.f32.mxu0 0.0
      %1161 = vmatmul.mubr.f32.gmra.mrb[0].mxu0 %v860
      %v1162 = vpop.f32.mrb[0].mxu0
      %v1163 = vadd.f32 %v1008, %v1162
      %v1164 = vpop.f32.mrb[0].mxu0
      %1165 = vmatprep.mubr.f32.mxu0 0.0
      %1166 = vmatmul.mubr.f32.gmra.mrb[0].mxu0 %v863
      %v1167 = vpop.f32.mrb[0].mxu0
      %v1168 = vadd.f32 %v1013, %v1167
      %v1169 = vpop.f32.mrb[0].mxu0
      %1170 = vmatprep.mubr.f32.mxu0 0.0
      %1171 = vmatmul.mubr.f32.gmra.mrb[0].mxu0 %v866
      %v1172 = vpop.f32.mrb[0].mxu0
      %v1173 = vadd.f32 %v1018, %v1172
      %v1174 = vpop.f32.mrb[0].mxu0
      %1175 = vmatprep.mubr.f32.mxu0 0.0
      %1176 = vmatmul.mubr.f32.gmra.mrb[0].mxu0 %v869
      %v1177 = vpop.f32.mrb[0].mxu0
      %v1178 = vadd.f32 %v1023, %v1177
      %v1179 = vpop.f32.mrb[0].mxu0
      %1180 = vdwg.mxu0
      %s1181 = scalar_lea.vmem %s221, 144
      %v1182 = vld [vmem:[%s1181] sm:$0xff]
      %v1183 = vld [vmem:[%s1181 + $0x8] sm:$0xff]
      %v1184 = vld [vmem:[%s1181 + $0x10] sm:$0xff]
      %v1185 = vld [vmem:[%s1181 + $0x18] sm:$0xff]
      %v1186 = vld [vmem:[%s1181 + $0x20] sm:$0xff]
      %v1187 = vld [vmem:[%s1181 + $0x28] sm:$0xff]
      %v1188 = vld [vmem:[%s1181 + $0x30] sm:$0xff]
      %v1189 = vld [vmem:[%s1181 + $0x38] sm:$0xff]
      %v1190 = vld [vmem:[%s1181 + $0x40] sm:$0xff]
      %v1191 = vld [vmem:[%s1181 + $0x48] sm:$0xff]
      %v1192 = vld [vmem:[%s1181 + $0x50] sm:$0xff]
      %v1193 = vld [vmem:[%s1181 + $0x58] sm:$0xff]
      %v1194 = vld [vmem:[%s1181 + $0x60] sm:$0xff]
      %v1195 = vld [vmem:[%s1181 + $0x68] sm:$0xff]
      %v1196 = vld [vmem:[%s1181 + $0x70] sm:$0xff]
      %v1197 = vld [vmem:[%s1181 + $0x78] sm:$0xff]
      %v1198 = vld [vmem:[%s1181 + $0x80] sm:$0xff]
      %v1199 = vld [vmem:[%s1181 + $0x88] sm:$0xff]
      %v1200 = vadd.f32 %v1093, %v1182
      %v1201 = vadd.f32 %v1098, %v1183
      %v1202 = vadd.f32 %v1103, %v1184
      %v1203 = vadd.f32 %v1108, %v1185
      %v1204 = vadd.f32 %v1113, %v1186
      %v1205 = vadd.f32 %v1118, %v1187
      %v1206 = vadd.f32 %v1123, %v1188
      %v1207 = vadd.f32 %v1128, %v1189
      %v1208 = vadd.f32 %v1133, %v1190
      %v1209 = vadd.f32 %v1138, %v1191
      %v1210 = vadd.f32 %v1143, %v1192
      %v1211 = vadd.f32 %v1148, %v1193
      %v1212 = vadd.f32 %v1153, %v1194
      %v1213 = vadd.f32 %v1158, %v1195
      %v1214 = vadd.f32 %v1163, %v1196
      %v1215 = vadd.f32 %v1168, %v1197
      %v1216 = vadd.f32 %v1173, %v1198
      %v1217 = vadd.f32 %v1178, %v1199
      %v1218 = vmax.f32 %v1200, 0.0
      %v1219 = vmax.f32 %v1201, 0.0
      %v1220 = vmax.f32 %v1202, 0.0
      %v1221 = vmax.f32 %v1203, 0.0
      %v1222 = vmax.f32 %v1204, 0.0
      %v1223 = vmax.f32 %v1205, 0.0
      %v1224 = vmax.f32 %v1206, 0.0
      %v1225 = vmax.f32 %v1207, 0.0
      %v1226 = vmax.f32 %v1208, 0.0
      %v1227 = vmax.f32 %v1209, 0.0
      %v1228 = vmax.f32 %v1210, 0.0
      %v1229 = vmax.f32 %v1211, 0.0
      %v1230 = vmax.f32 %v1212, 0.0
      %v1231 = vmax.f32 %v1213, 0.0
      %v1232 = vmax.f32 %v1214, 0.0
      %v1233 = vmax.f32 %v1215, 0.0
      %v1234 = vmax.f32 %v1216, 0.0
      %v1235 = vmax.f32 %v1217, 0.0
      %v1236 = vadd.f32 %v744, %v1218
      %v1237 = vadd.f32 %v745, %v1219
      %v1238 = vadd.f32 %v746, %v1220
      %v1239 = vadd.f32 %v747, %v1221
      %v1240 = vadd.f32 %v748, %v1222
      %v1241 = vadd.f32 %v749, %v1223
      %v1242 = vadd.f32 %v750, %v1224
      %v1243 = vadd.f32 %v751, %v1225
      %v1244 = vadd.f32 %v752, %v1226
      %v1245 = vadd.f32 %v753, %v1227
      %v1246 = vadd.f32 %v754, %v1228
      %v1247 = vadd.f32 %v755, %v1229
      %v1248 = vadd.f32 %v756, %v1230
      %v1249 = vadd.f32 %v757, %v1231
      %v1250 = vadd.f32 %v758, %v1232
      %v1251 = vadd.f32 %v759, %v1233
      %v1252 = vadd.f32 %v760, %v1234
      %v1253 = vadd.f32 %v761, %v1235
      %s1254 = scalar_lea.vmem %s214, 864
      %v1255 = vld [vmem:[%s1254] sm:$0xff]
      %v1256 = vld [vmem:[%s1254 + $0x8] sm:$0xff]
      %v1257 = vld [vmem:[%s1254 + $0x10] sm:$0xff]
      %v1258 = vld [vmem:[%s1254 + $0x18] sm:$0xff]
      %v1259 = vld [vmem:[%s1254 + $0x20] sm:$0xff]
      %v1260 = vld [vmem:[%s1254 + $0x28] sm:$0xff]
      %v1261 = vld [vmem:[%s1254 + $0x30] sm:$0xff]
      %v1262 = vld [vmem:[%s1254 + $0x38] sm:$0xff]
      %v1263 = vld [vmem:[%s1254 + $0x40] sm:$0xff]
      %v1264 = vld [vmem:[%s1254 + $0x48] sm:$0xff]
      %v1265 = vld [vmem:[%s1254 + $0x50] sm:$0xff]
      %v1266 = vld [vmem:[%s1254 + $0x58] sm:$0xff]
      %v1267 = vld [vmem:[%s1254 + $0x60] sm:$0xff]
      %v1268 = vld [vmem:[%s1254 + $0x68] sm:$0xff]
      %v1269 = vld [vmem:[%s1254 + $0x70] sm:$0xff]
      %v1270 = vld [vmem:[%s1254 + $0x78] sm:$0xff]
      %v1271 = vld [vmem:[%s1254 + $0x80] sm:$0xff]
      %v1272 = vld [vmem:[%s1254 + $0x88] sm:$0xff]
      %v1273 = vld [vmem:[%s1254 + $0x90] sm:$0xff]
      %v1274 = vld [vmem:[%s1254 + $0x98] sm:$0xff]
      %v1275 = vld [vmem:[%s1254 + $0xa0] sm:$0xff]
      %v1276 = vld [vmem:[%s1254 + $0xa8] sm:$0xff]
      %v1277 = vld [vmem:[%s1254 + $0xb0] sm:$0xff]
      %v1278 = vld [vmem:[%s1254 + $0xb8] sm:$0xff]
      %v1279 = vld [vmem:[%s1254 + $0xc0] sm:$0xff]
      %v1280 = vld [vmem:[%s1254 + $0xc8] sm:$0xff]
      %v1281 = vld [vmem:[%s1254 + $0xd0] sm:$0xff]
      %v1282 = vld [vmem:[%s1254 + $0xd8] sm:$0xff]
      %v1283 = vld [vmem:[%s1254 + $0xe0] sm:$0xff]
      %v1284 = vld [vmem:[%s1254 + $0xe8] sm:$0xff]
      %v1285 = vld [vmem:[%s1254 + $0xf0] sm:$0xff]
      %v1286 = vld [vmem:[%s1254 + $0xf8] sm:$0xff]
      %v1287 = vld [vmem:[%s1254 + $0x100] sm:$0xff]
      %v1288 = vld [vmem:[%s1254 + $0x108] sm:$0xff]
      %v1289 = vld [vmem:[%s1254 + $0x110] sm:$0xff]
      %v1290 = vld [vmem:[%s1254 + $0x118] sm:$0xff]
      %v1291 = vld [vmem:[%s1254 + $0x120] sm:$0xff]
      %v1292 = vld [vmem:[%s1254 + $0x128] sm:$0xff]
      %v1293 = vld [vmem:[%s1254 + $0x130] sm:$0xff]
      %v1294 = vld [vmem:[%s1254 + $0x138] sm:$0xff]
      %v1295 = vld [vmem:[%s1254 + $0x140] sm:$0xff]
      %v1296 = vld [vmem:[%s1254 + $0x148] sm:$0xff]
      %v1297 = vld [vmem:[%s1254 + $0x150] sm:$0xff]
      %v1298 = vld [vmem:[%s1254 + $0x158] sm:$0xff]
      %v1299 = vld [vmem:[%s1254 + $0x160] sm:$0xff]
      %v1300 = vld [vmem:[%s1254 + $0x168] sm:$0xff]
      %v1301 = vld [vmem:[%s1254 + $0x170] sm:$0xff]
      %v1302 = vld [vmem:[%s1254 + $0x178] sm:$0xff]
      %v1303 = vld [vmem:[%s1254 + $0x180] sm:$0xff]
      %v1304 = vld [vmem:[%s1254 + $0x188] sm:$0xff]
      %v1305 = vld [vmem:[%s1254 + $0x190] sm:$0xff]
      %v1306 = vld [vmem:[%s1254 + $0x198] sm:$0xff]
      %v1307 = vld [vmem:[%s1254 + $0x1a0] sm:$0xff]
      %v1308 = vld [vmem:[%s1254 + $0x1a8] sm:$0xff]
      %v1310 = vsel %vm325, %v1257, 0
      %v1313 = vsel %vm325, %v1260, 0
      %v1316 = vsel %vm325, %v1263, 0
      %v1319 = vsel %vm325, %v1266, 0
      %v1322 = vsel %vm325, %v1269, 0
      %v1325 = vsel %vm325, %v1272, 0
      %v1328 = vsel %vm325, %v1275, 0
      %v1331 = vsel %vm325, %v1278, 0
      %v1334 = vsel %vm325, %v1281, 0
      %v1337 = vsel %vm325, %v1284, 0
      %v1340 = vsel %vm325, %v1287, 0
      %v1343 = vsel %vm325, %v1290, 0
      %v1346 = vsel %vm325, %v1293, 0
      %v1349 = vsel %vm325, %v1296, 0
      %v1352 = vsel %vm325, %v1299, 0
      %v1355 = vsel %vm325, %v1302, 0
      %v1358 = vsel %vm325, %v1305, 0
      %v1361 = vsel %vm325, %v1308, 0
      %1363 = vmatprep.subr.mxu0 0.0
      %1364 = vmatpush1.msra.mxu0 %v228
      %1365 = vmatprep.subr.mxu0 0.0
      %1366 = vmatpush1.msra.mxu0 %v229
      %1367 = vmatprep.subr.mxu0 0.0
      %1368 = vmatpush1.msra.mxu0 %v230
      %1369 = vmatprep.subr.mxu0 0.0
      %1370 = vmatpush1.msra.mxu0 %v231
      %1371 = vmatprep.subr.mxu0 0.0
      %1372 = vmatpush1.msra.mxu0 %v232
      %1373 = vmatprep.subr.mxu0 0.0
      %1374 = vmatpush1.msra.mxu0 %v233
      %1375 = vmatprep.subr.mxu0 0.0
      %1376 = vmatpush1.msra.mxu0 %v234
      %1377 = vmatprep.subr.mxu0 0.0
      %1378 = vmatpush1.msra.mxu0 %v235
      %1379 = vmatprep.subr.mxu0 0.0
      %1380 = vmatpush1.msra.mxu0 %v236
      %1381 = vmatprep.subr.mxu0 0.0
      %1382 = vmatpush1.msra.mxu0 %v237
      %1383 = vmatprep.subr.mxu0 0.0
      %1384 = vmatpush1.msra.mxu0 %v238
      %1385 = vmatprep.subr.mxu0 0.0
      %1386 = vmatpush1.msra.mxu0 %v239
      %1387 = vmatprep.subr.mxu0 0.0
      %1388 = vmatpush1.msra.mxu0 %v240
      %1389 = vmatprep.subr.mxu0 0.0
      %1390 = vmatpush1.msra.mxu0 %v241
      %1391 = vmatprep.subr.mxu0 0.0
      %1392 = vmatpush1.msra.mxu0 %v242
      %1393 = vmatprep.subr.mxu0 0.0
      %1394 = vmatpush1.msra.mxu0 %v243
      %1395 = vmatprep.subr.mxu0 0.0
      %1396 = vmatpush1.msra.mxu0 %v244
      %1397 = vmatprep.subr.mxu0 0.0
      %1398 = vmatpush1.msra.mxu0 %v245
      %1399 = vmatprep.subr.mxu0 0.0
      %1400 = vmatpush1.msra.mxu0 %v246
      %1401 = vmatprep.subr.mxu0 0.0
      %1402 = vmatpush1.msra.mxu0 %v247
      %1403 = vmatprep.subr.mxu0 0.0
      %1404 = vmatpush1.msra.mxu0 %v248
      %1405 = vmatprep.subr.mxu0 0.0
      %1406 = vmatpush1.msra.mxu0 %v249
      %1407 = vmatprep.subr.mxu0 0.0
      %1408 = vmatpush1.msra.mxu0 %v250
      %1409 = vmatprep.subr.mxu0 0.0
      %1410 = vmatpush1.msra.mxu0 %v251
      %1411 = vmatprep.subr.mxu0 0.0
      %1412 = vmatpush1.msra.mxu0 %v252
      %1413 = vmatprep.subr.mxu0 0.0
      %1414 = vmatpush1.msra.mxu0 %v253
      %1415 = vmatprep.subr.mxu0 0.0
      %1416 = vmatpush1.msra.mxu0 %v254
      %1417 = vmatprep.subr.mxu0 0.0
      %1418 = vmatpush1.msra.mxu0 %v255
      %1419 = vmatprep.subr.mxu0 0.0
      %1420 = vmatpush1.msra.mxu0 %v256
      %1421 = vmatprep.subr.mxu0 0.0
      %1422 = vmatpush1.msra.mxu0 %v257
      %1423 = vmatprep.subr.mxu0 0.0
      %1424 = vmatpush1.msra.mxu0 %v258
      %1425 = vmatprep.subr.mxu0 0.0
      %1426 = vmatpush1.msra.mxu0 %v259
      %1427 = vmatprep.mubr.f32.mxu0 %v1256
      %1428 = vmatmul.mubr.f32.gmra.mrb[0].mxu0 %v1255
      %v1429 = vpop.f32.mrb[0].mxu0
      %v1430 = vadd.f32 %v323, %v1429
      %v1431 = vpop.f32.mrb[0].mxu0
      %1432 = vmatprep.mubr.f32.mxu0 %v1259
      %1433 = vmatmul.mubr.f32.gmra.mrb[0].mxu0 %v1258
      %v1434 = vpop.f32.mrb[0].mxu0
      %v1435 = vadd.f32 %v323, %v1434
      %v1436 = vpop.f32.mrb[0].mxu0
      %1437 = vmatprep.mubr.f32.mxu0 %v1262
      %1438 = vmatmul.mubr.f32.gmra.mrb[0].mxu0 %v1261
      %v1439 = vpop.f32.mrb[0].mxu0
      %v1440 = vadd.f32 %v323, %v1439
      %v1441 = vpop.f32.mrb[0].mxu0
      %1442 = vmatprep.mubr.f32.mxu0 %v1265
      %1443 = vmatmul.mubr.f32.gmra.mrb[0].mxu0 %v1264
      %v1444 = vpop.f32.mrb[0].mxu0
      %v1445 = vadd.f32 %v323, %v1444
      %v1446 = vpop.f32.mrb[0].mxu0
      %1447 = vmatprep.mubr.f32.mxu0 %v1268
      %1448 = vmatmul.mubr.f32.gmra.mrb[0].mxu0 %v1267
      %v1449 = vpop.f32.mrb[0].mxu0
      %v1450 = vadd.f32 %v323, %v1449
      %v1451 = vpop.f32.mrb[0].mxu0
      %1452 = vmatprep.mubr.f32.mxu0 %v1271
      %1453 = vmatmul.mubr.f32.gmra.mrb[0].mxu0 %v1270
      %v1454 = vpop.f32.mrb[0].mxu0
      %v1455 = vadd.f32 %v323, %v1454
      %v1456 = vpop.f32.mrb[0].mxu0
      %1457 = vmatprep.mubr.f32.mxu0 %v1274
      %1458 = vmatmul.mubr.f32.gmra.mrb[0].mxu0 %v1273
      %v1459 = vpop.f32.mrb[0].mxu0
      %v1460 = vadd.f32 %v323, %v1459
      %v1461 = vpop.f32.mrb[0].mxu0
      %1462 = vmatprep.mubr.f32.mxu0 %v1277
      %1463 = vmatmul.mubr.f32.gmra.mrb[0].mxu0 %v1276
      %v1464 = vpop.f32.mrb[0].mxu0
      %v1465 = vadd.f32 %v323, %v1464
      %v1466 = vpop.f32.mrb[0].mxu0
      %1467 = vmatprep.mubr.f32.mxu0 %v1280
      %1468 = vmatmul.mubr.f32.gmra.mrb[0].mxu0 %v1279
      %v1469 = vpop.f32.mrb[0].mxu0
      %v1470 = vadd.f32 %v323, %v1469
      %v1471 = vpop.f32.mrb[0].mxu0
      %1472 = vmatprep.mubr.f32.mxu0 %v1283
      %1473 = vmatmul.mubr.f32.gmra.mrb[0].mxu0 %v1282
      %v1474 = vpop.f32.mrb[0].mxu0
      %v1475 = vadd.f32 %v323, %v1474
      %v1476 = vpop.f32.mrb[0].mxu0
      %1477 = vmatprep.mubr.f32.mxu0 %v1286
      %1478 = vmatmul.mubr.f32.gmra.mrb[0].mxu0 %v1285
      %v1479 = vpop.f32.mrb[0].mxu0
      %v1480 = vadd.f32 %v323, %v1479
      %v1481 = vpop.f32.mrb[0].mxu0
      %1482 = vmatprep.mubr.f32.mxu0 %v1289
      %1483 = vmatmul.mubr.f32.gmra.mrb[0].mxu0 %v1288
      %v1484 = vpop.f32.mrb[0].mxu0
      %v1485 = vadd.f32 %v323, %v1484
      %v1486 = vpop.f32.mrb[0].mxu0
      %1487 = vmatprep.mubr.f32.mxu0 %v1292
      %1488 = vmatmul.mubr.f32.gmra.mrb[0].mxu0 %v1291
      %v1489 = vpop.f32.mrb[0].mxu0
      %v1490 = vadd.f32 %v323, %v1489
      %v1491 = vpop.f32.mrb[0].mxu0
      %1492 = vmatprep.mubr.f32.mxu0 %v1295
      %1493 = vmatmul.mubr.f32.gmra.mrb[0].mxu0 %v1294
      %v1494 = vpop.f32.mrb[0].mxu0
      %v1495 = vadd.f32 %v323, %v1494
      %v1496 = vpop.f32.mrb[0].mxu0
      %1497 = vmatprep.mubr.f32.mxu0 %v1298
      %1498 = vmatmul.mubr.f32.gmra.mrb[0].mxu0 %v1297
      %v1499 = vpop.f32.mrb[0].mxu0
      %v1500 = vadd.f32 %v323, %v1499
      %v1501 = vpop.f32.mrb[0].mxu0
      %1502 = vmatprep.mubr.f32.mxu0 %v1301
      %1503 = vmatmul.mubr.f32.gmra.mrb[0].mxu0 %v1300
      %v1504 = vpop.f32.mrb[0].mxu0
      %v1505 = vadd.f32 %v323, %v1504
      %v1506 = vpop.f32.mrb[0].mxu0
      %1507 = vmatprep.mubr.f32.mxu0 %v1304
      %1508 = vmatmul.mubr.f32.gmra.mrb[0].mxu0 %v1303
      %v1509 = vpop.f32.mrb[0].mxu0
      %v1510 = vadd.f32 %v323, %v1509
      %v1511 = vpop.f32.mrb[0].mxu0
      %1512 = vmatprep.mubr.f32.mxu0 %v1307
      %1513 = vmatmul.mubr.f32.gmra.mrb[0].mxu0 %v1306
      %v1514 = vpop.f32.mrb[0].mxu0
      %v1515 = vadd.f32 %v323, %v1514
      %v1516 = vpop.f32.mrb[0].mxu0
      %1517 = vdwg.mxu0
      %1518 = vmatprep.subr.mxu0 0.0
      %1519 = vmatpush1.msra.mxu0 %v260
      %1520 = vmatprep.subr.mxu0 0.0
      %1521 = vmatpush1.msra.mxu0 %v261
      %1522 = vmatprep.subr.mxu0 0.0
      %1523 = vmatpush1.msra.mxu0 %v262
      %1524 = vmatprep.subr.mxu0 0.0
      %1525 = vmatpush1.msra.mxu0 %v263
      %1526 = vmatprep.subr.mxu0 0.0
      %1527 = vmatpush1.msra.mxu0 0.0
      %1528 = vmatprep.subr.mxu0 0.0
      %1529 = vmatpush1.msra.mxu0 0.0
      %1530 = vmatprep.subr.mxu0 0.0
      %1531 = vmatpush1.msra.mxu0 0.0
      %1532 = vmatprep.subr.mxu0 0.0
      %1533 = vmatpush1.msra.mxu0 0.0
      %1534 = vmatprep.subr.mxu0 0.0
      %1535 = vmatpush1.msra.mxu0 0.0
      %1536 = vmatprep.subr.mxu0 0.0
      %1537 = vmatpush1.msra.mxu0 0.0
      %1538 = vmatprep.subr.mxu0 0.0
      %1539 = vmatpush1.msra.mxu0 0.0
      %1540 = vmatprep.subr.mxu0 0.0
      %1541 = vmatpush1.msra.mxu0 0.0
      %1542 = vmatprep.subr.mxu0 0.0
      %1543 = vmatpush1.msra.mxu0 0.0
      %1544 = vmatprep.subr.mxu0 0.0
      %1545 = vmatpush1.msra.mxu0 0.0
      %1546 = vmatprep.subr.mxu0 0.0
      %1547 = vmatpush1.msra.mxu0 0.0
      %1548 = vmatprep.subr.mxu0 0.0
      %1549 = vmatpush1.msra.mxu0 0.0
      %1550 = vmatprep.subr.mxu0 0.0
      %1551 = vmatpush1.msra.mxu0 0.0
      %1552 = vmatprep.subr.mxu0 0.0
      %1553 = vmatpush1.msra.mxu0 0.0
      %1554 = vmatprep.subr.mxu0 0.0
      %1555 = vmatpush1.msra.mxu0 0.0
      %1556 = vmatprep.subr.mxu0 0.0
      %1557 = vmatpush1.msra.mxu0 0.0
      %1558 = vmatprep.subr.mxu0 0.0
      %1559 = vmatpush1.msra.mxu0 0.0
      %1560 = vmatprep.subr.mxu0 0.0
      %1561 = vmatpush1.msra.mxu0 0.0
      %1562 = vmatprep.subr.mxu0 0.0
      %1563 = vmatpush1.msra.mxu0 0.0
      %1564 = vmatprep.subr.mxu0 0.0
      %1565 = vmatpush1.msra.mxu0 0.0
      %1566 = vmatprep.subr.mxu0 0.0
      %1567 = vmatpush1.msra.mxu0 0.0
      %1568 = vmatprep.subr.mxu0 0.0
      %1569 = vmatpush1.msra.mxu0 0.0
      %1570 = vmatprep.subr.mxu0 0.0
      %1571 = vmatpush1.msra.mxu0 0.0
      %1572 = vmatprep.subr.mxu0 0.0
      %1573 = vmatpush1.msra.mxu0 0.0
      %1574 = vmatprep.subr.mxu0 0.0
      %1575 = vmatpush1.msra.mxu0 0.0
      %1576 = vmatprep.subr.mxu0 0.0
      %1577 = vmatpush1.msra.mxu0 0.0
      %1578 = vmatprep.subr.mxu0 0.0
      %1579 = vmatpush1.msra.mxu0 0.0
      %1580 = vmatprep.subr.mxu0 0.0
      %1581 = vmatpush1.msra.mxu0 0.0
      %1582 = vmatprep.mubr.f32.mxu0 0.0
      %1583 = vmatmul.mubr.f32.gmra.mrb[0].mxu0 %v1310
      %v1584 = vpop.f32.mrb[0].mxu0
      %v1585 = vadd.f32 %v1430, %v1584
      %v1586 = vpop.f32.mrb[0].mxu0
      %1587 = vmatprep.mubr.f32.mxu0 0.0
      %1588 = vmatmul.mubr.f32.gmra.mrb[0].mxu0 %v1313
      %v1589 = vpop.f32.mrb[0].mxu0
      %v1590 = vadd.f32 %v1435, %v1589
      %v1591 = vpop.f32.mrb[0].mxu0
      %1592 = vmatprep.mubr.f32.mxu0 0.0
      %1593 = vmatmul.mubr.f32.gmra.mrb[0].mxu0 %v1316
      %v1594 = vpop.f32.mrb[0].mxu0
      %v1595 = vadd.f32 %v1440, %v1594
      %v1596 = vpop.f32.mrb[0].mxu0
      %1597 = vmatprep.mubr.f32.mxu0 0.0
      %1598 = vmatmul.mubr.f32.gmra.mrb[0].mxu0 %v1319
      %v1599 = vpop.f32.mrb[0].mxu0
      %v1600 = vadd.f32 %v1445, %v1599
      %v1601 = vpop.f32.mrb[0].mxu0
      %1602 = vmatprep.mubr.f32.mxu0 0.0
      %1603 = vmatmul.mubr.f32.gmra.mrb[0].mxu0 %v1322
      %v1604 = vpop.f32.mrb[0].mxu0
      %v1605 = vadd.f32 %v1450, %v1604
      %v1606 = vpop.f32.mrb[0].mxu0
      %1607 = vmatprep.mubr.f32.mxu0 0.0
      %1608 = vmatmul.mubr.f32.gmra.mrb[0].mxu0 %v1325
      %v1609 = vpop.f32.mrb[0].mxu0
      %v1610 = vadd.f32 %v1455, %v1609
      %v1611 = vpop.f32.mrb[0].mxu0
      %1612 = vmatprep.mubr.f32.mxu0 0.0
      %1613 = vmatmul.mubr.f32.gmra.mrb[0].mxu0 %v1328
      %v1614 = vpop.f32.mrb[0].mxu0
      %v1615 = vadd.f32 %v1460, %v1614
      %v1616 = vpop.f32.mrb[0].mxu0
      %1617 = vmatprep.mubr.f32.mxu0 0.0
      %1618 = vmatmul.mubr.f32.gmra.mrb[0].mxu0 %v1331
      %v1619 = vpop.f32.mrb[0].mxu0
      %v1620 = vadd.f32 %v1465, %v1619
      %v1621 = vpop.f32.mrb[0].mxu0
      %1622 = vmatprep.mubr.f32.mxu0 0.0
      %1623 = vmatmul.mubr.f32.gmra.mrb[0].mxu0 %v1334
      %v1624 = vpop.f32.mrb[0].mxu0
      %v1625 = vadd.f32 %v1470, %v1624
      %v1626 = vpop.f32.mrb[0].mxu0
      %1627 = vmatprep.mubr.f32.mxu0 0.0
      %1628 = vmatmul.mubr.f32.gmra.mrb[0].mxu0 %v1337
      %v1629 = vpop.f32.mrb[0].mxu0
      %v1630 = vadd.f32 %v1475, %v1629
      %v1631 = vpop.f32.mrb[0].mxu0
      %1632 = vmatprep.mubr.f32.mxu0 0.0
      %1633 = vmatmul.mubr.f32.gmra.mrb[0].mxu0 %v1340
      %v1634 = vpop.f32.mrb[0].mxu0
      %v1635 = vadd.f32 %v1480, %v1634
      %v1636 = vpop.f32.mrb[0].mxu0
      %1637 = vmatprep.mubr.f32.mxu0 0.0
      %1638 = vmatmul.mubr.f32.gmra.mrb[0].mxu0 %v1343
      %v1639 = vpop.f32.mrb[0].mxu0
      %v1640 = vadd.f32 %v1485, %v1639
      %v1641 = vpop.f32.mrb[0].mxu0
      %1642 = vmatprep.mubr.f32.mxu0 0.0
      %1643 = vmatmul.mubr.f32.gmra.mrb[0].mxu0 %v1346
      %v1644 = vpop.f32.mrb[0].mxu0
      %v1645 = vadd.f32 %v1490, %v1644
      %v1646 = vpop.f32.mrb[0].mxu0
      %1647 = vmatprep.mubr.f32.mxu0 0.0
      %1648 = vmatmul.mubr.f32.gmra.mrb[0].mxu0 %v1349
      %v1649 = vpop.f32.mrb[0].mxu0
      %v1650 = vadd.f32 %v1495, %v1649
      %v1651 = vpop.f32.mrb[0].mxu0
      %1652 = vmatprep.mubr.f32.mxu0 0.0
      %1653 = vmatmul.mubr.f32.gmra.mrb[0].mxu0 %v1352
      %v1654 = vpop.f32.mrb[0].mxu0
      %v1655 = vadd.f32 %v1500, %v1654
      %v1656 = vpop.f32.mrb[0].mxu0
      %1657 = vmatprep.mubr.f32.mxu0 0.0
      %1658 = vmatmul.mubr.f32.gmra.mrb[0].mxu0 %v1355
      %v1659 = vpop.f32.mrb[0].mxu0
      %v1660 = vadd.f32 %v1505, %v1659
      %v1661 = vpop.f32.mrb[0].mxu0
      %1662 = vmatprep.mubr.f32.mxu0 0.0
      %1663 = vmatmul.mubr.f32.gmra.mrb[0].mxu0 %v1358
      %v1664 = vpop.f32.mrb[0].mxu0
      %v1665 = vadd.f32 %v1510, %v1664
      %v1666 = vpop.f32.mrb[0].mxu0
      %1667 = vmatprep.mubr.f32.mxu0 0.0
      %1668 = vmatmul.mubr.f32.gmra.mrb[0].mxu0 %v1361
      %v1669 = vpop.f32.mrb[0].mxu0
      %v1670 = vadd.f32 %v1515, %v1669
      %v1671 = vpop.f32.mrb[0].mxu0
      %1672 = vdwg.mxu0
      %s1673 = scalar_lea.vmem %s221, 288
      %v1674 = vld [vmem:[%s1673] sm:$0xff]
      %v1675 = vld [vmem:[%s1673 + $0x8] sm:$0xff]
      %v1676 = vld [vmem:[%s1673 + $0x10] sm:$0xff]
      %v1677 = vld [vmem:[%s1673 + $0x18] sm:$0xff]
      %v1678 = vld [vmem:[%s1673 + $0x20] sm:$0xff]
      %v1679 = vld [vmem:[%s1673 + $0x28] sm:$0xff]
      %v1680 = vld [vmem:[%s1673 + $0x30] sm:$0xff]
      %v1681 = vld [vmem:[%s1673 + $0x38] sm:$0xff]
      %v1682 = vld [vmem:[%s1673 + $0x40] sm:$0xff]
      %v1683 = vld [vmem:[%s1673 + $0x48] sm:$0xff]
      %v1684 = vld [vmem:[%s1673 + $0x50] sm:$0xff]
      %v1685 = vld [vmem:[%s1673 + $0x58] sm:$0xff]
      %v1686 = vld [vmem:[%s1673 + $0x60] sm:$0xff]
      %v1687 = vld [vmem:[%s1673 + $0x68] sm:$0xff]
      %v1688 = vld [vmem:[%s1673 + $0x70] sm:$0xff]
      %v1689 = vld [vmem:[%s1673 + $0x78] sm:$0xff]
      %v1690 = vld [vmem:[%s1673 + $0x80] sm:$0xff]
      %v1691 = vld [vmem:[%s1673 + $0x88] sm:$0xff]
      %v1692 = vadd.f32 %v1585, %v1674
      %v1693 = vadd.f32 %v1590, %v1675
      %v1694 = vadd.f32 %v1595, %v1676
      %v1695 = vadd.f32 %v1600, %v1677
      %v1696 = vadd.f32 %v1605, %v1678
      %v1697 = vadd.f32 %v1610, %v1679
      %v1698 = vadd.f32 %v1615, %v1680
      %v1699 = vadd.f32 %v1620, %v1681
      %v1700 = vadd.f32 %v1625, %v1682
      %v1701 = vadd.f32 %v1630, %v1683
      %v1702 = vadd.f32 %v1635, %v1684
      %v1703 = vadd.f32 %v1640, %v1685
      %v1704 = vadd.f32 %v1645, %v1686
      %v1705 = vadd.f32 %v1650, %v1687
      %v1706 = vadd.f32 %v1655, %v1688
      %v1707 = vadd.f32 %v1660, %v1689
      %v1708 = vadd.f32 %v1665, %v1690
      %v1709 = vadd.f32 %v1670, %v1691
      %v1710 = vmax.f32 %v1692, 0.0
      %v1711 = vmax.f32 %v1693, 0.0
      %v1712 = vmax.f32 %v1694, 0.0
      %v1713 = vmax.f32 %v1695, 0.0
      %v1714 = vmax.f32 %v1696, 0.0
      %v1715 = vmax.f32 %v1697, 0.0
      %v1716 = vmax.f32 %v1698, 0.0
      %v1717 = vmax.f32 %v1699, 0.0
      %v1718 = vmax.f32 %v1700, 0.0
      %v1719 = vmax.f32 %v1701, 0.0
      %v1720 = vmax.f32 %v1702, 0.0
      %v1721 = vmax.f32 %v1703, 0.0
      %v1722 = vmax.f32 %v1704, 0.0
      %v1723 = vmax.f32 %v1705, 0.0
      %v1724 = vmax.f32 %v1706, 0.0
      %v1725 = vmax.f32 %v1707, 0.0
      %v1726 = vmax.f32 %v1708, 0.0
      %v1727 = vmax.f32 %v1709, 0.0
      %v1728 = vadd.f32 %v1236, %v1710
      %v1729 = vadd.f32 %v1237, %v1711
      %v1730 = vadd.f32 %v1238, %v1712
      %v1731 = vadd.f32 %v1239, %v1713
      %v1732 = vadd.f32 %v1240, %v1714
      %v1733 = vadd.f32 %v1241, %v1715
      %v1734 = vadd.f32 %v1242, %v1716
      %v1735 = vadd.f32 %v1243, %v1717
      %v1736 = vadd.f32 %v1244, %v1718
      %v1737 = vadd.f32 %v1245, %v1719
      %v1738 = vadd.f32 %v1246, %v1720
      %v1739 = vadd.f32 %v1247, %v1721
      %v1740 = vadd.f32 %v1248, %v1722
      %v1741 = vadd.f32 %v1249, %v1723
      %v1742 = vadd.f32 %v1250, %v1724
      %v1743 = vadd.f32 %v1251, %v1725
      %v1744 = vadd.f32 %v1252, %v1726
      %v1745 = vadd.f32 %v1253, %v1727
      %s1746 = scalar_lea.vmem %s214, 1296
      %v1747 = vld [vmem:[%s1746] sm:$0xff]
      %v1748 = vld [vmem:[%s1746 + $0x8] sm:$0xff]
      %v1749 = vld [vmem:[%s1746 + $0x10] sm:$0xff]
      %v1750 = vld [vmem:[%s1746 + $0x18] sm:$0xff]
      %v1751 = vld [vmem:[%s1746 + $0x20] sm:$0xff]
      %v1752 = vld [vmem:[%s1746 + $0x28] sm:$0xff]
      %v1753 = vld [vmem:[%s1746 + $0x30] sm:$0xff]
      %v1754 = vld [vmem:[%s1746 + $0x38] sm:$0xff]
      %v1755 = vld [vmem:[%s1746 + $0x40] sm:$0xff]
      %v1756 = vld [vmem:[%s1746 + $0x48] sm:$0xff]
      %v1757 = vld [vmem:[%s1746 + $0x50] sm:$0xff]
      %v1758 = vld [vmem:[%s1746 + $0x58] sm:$0xff]
      %v1759 = vld [vmem:[%s1746 + $0x60] sm:$0xff]
      %v1760 = vld [vmem:[%s1746 + $0x68] sm:$0xff]
      %v1761 = vld [vmem:[%s1746 + $0x70] sm:$0xff]
      %v1762 = vld [vmem:[%s1746 + $0x78] sm:$0xff]
      %v1763 = vld [vmem:[%s1746 + $0x80] sm:$0xff]
      %v1764 = vld [vmem:[%s1746 + $0x88] sm:$0xff]
      %v1765 = vld [vmem:[%s1746 + $0x90] sm:$0xff]
      %v1766 = vld [vmem:[%s1746 + $0x98] sm:$0xff]
      %v1767 = vld [vmem:[%s1746 + $0xa0] sm:$0xff]
      %v1768 = vld [vmem:[%s1746 + $0xa8] sm:$0xff]
      %v1769 = vld [vmem:[%s1746 + $0xb0] sm:$0xff]
      %v1770 = vld [vmem:[%s1746 + $0xb8] sm:$0xff]
      %v1771 = vld [vmem:[%s1746 + $0xc0] sm:$0xff]
      %v1772 = vld [vmem:[%s1746 + $0xc8] sm:$0xff]
      %v1773 = vld [vmem:[%s1746 + $0xd0] sm:$0xff]
      %v1774 = vld [vmem:[%s1746 + $0xd8] sm:$0xff]
      %v1775 = vld [vmem:[%s1746 + $0xe0] sm:$0xff]
      %v1776 = vld [vmem:[%s1746 + $0xe8] sm:$0xff]
      %v1777 = vld [vmem:[%s1746 + $0xf0] sm:$0xff]
      %v1778 = vld [vmem:[%s1746 + $0xf8] sm:$0xff]
      %v1779 = vld [vmem:[%s1746 + $0x100] sm:$0xff]
      %v1780 = vld [vmem:[%s1746 + $0x108] sm:$0xff]
      %v1781 = vld [vmem:[%s1746 + $0x110] sm:$0xff]
      %v1782 = vld [vmem:[%s1746 + $0x118] sm:$0xff]
      %v1783 = vld [vmem:[%s1746 + $0x120] sm:$0xff]
      %v1784 = vld [vmem:[%s1746 + $0x128] sm:$0xff]
      %v1785 = vld [vmem:[%s1746 + $0x130] sm:$0xff]
      %v1786 = vld [vmem:[%s1746 + $0x138] sm:$0xff]
      %v1787 = vld [vmem:[%s1746 + $0x140] sm:$0xff]
      %v1788 = vld [vmem:[%s1746 + $0x148] sm:$0xff]
      %v1789 = vld [vmem:[%s1746 + $0x150] sm:$0xff]
      %v1790 = vld [vmem:[%s1746 + $0x158] sm:$0xff]
      %v1791 = vld [vmem:[%s1746 + $0x160] sm:$0xff]
      %v1792 = vld [vmem:[%s1746 + $0x168] sm:$0xff]
      %v1793 = vld [vmem:[%s1746 + $0x170] sm:$0xff]
      %v1794 = vld [vmem:[%s1746 + $0x178] sm:$0xff]
      %v1795 = vld [vmem:[%s1746 + $0x180] sm:$0xff]
      %v1796 = vld [vmem:[%s1746 + $0x188] sm:$0xff]
      %v1797 = vld [vmem:[%s1746 + $0x190] sm:$0xff]
      %v1798 = vld [vmem:[%s1746 + $0x198] sm:$0xff]
      %v1799 = vld [vmem:[%s1746 + $0x1a0] sm:$0xff]
      %v1800 = vld [vmem:[%s1746 + $0x1a8] sm:$0xff]
      %v1802 = vsel %vm325, %v1749, 0
      %v1805 = vsel %vm325, %v1752, 0
      %v1808 = vsel %vm325, %v1755, 0
      %v1811 = vsel %vm325, %v1758, 0
      %v1814 = vsel %vm325, %v1761, 0
      %v1817 = vsel %vm325, %v1764, 0
      %v1820 = vsel %vm325, %v1767, 0
      %v1823 = vsel %vm325, %v1770, 0
      %v1826 = vsel %vm325, %v1773, 0
      %v1829 = vsel %vm325, %v1776, 0
      %v1832 = vsel %vm325, %v1779, 0
      %v1835 = vsel %vm325, %v1782, 0
      %v1838 = vsel %vm325, %v1785, 0
      %v1841 = vsel %vm325, %v1788, 0
      %v1844 = vsel %vm325, %v1791, 0
      %v1847 = vsel %vm325, %v1794, 0
      %v1850 = vsel %vm325, %v1797, 0
      %v1853 = vsel %vm325, %v1800, 0
      %1855 = vmatprep.subr.mxu0 0.0
      %1856 = vmatpush1.msra.mxu0 %v228
      %1857 = vmatprep.subr.mxu0 0.0
      %1858 = vmatpush1.msra.mxu0 %v229
      %1859 = vmatprep.subr.mxu0 0.0
      %1860 = vmatpush1.msra.mxu0 %v230
      %1861 = vmatprep.subr.mxu0 0.0
      %1862 = vmatpush1.msra.mxu0 %v231
      %1863 = vmatprep.subr.mxu0 0.0
      %1864 = vmatpush1.msra.mxu0 %v232
      %1865 = vmatprep.subr.mxu0 0.0
      %1866 = vmatpush1.msra.mxu0 %v233
      %1867 = vmatprep.subr.mxu0 0.0
      %1868 = vmatpush1.msra.mxu0 %v234
      %1869 = vmatprep.subr.mxu0 0.0
      %1870 = vmatpush1.msra.mxu0 %v235
      %1871 = vmatprep.subr.mxu0 0.0
      %1872 = vmatpush1.msra.mxu0 %v236
      %1873 = vmatprep.subr.mxu0 0.0
      %1874 = vmatpush1.msra.mxu0 %v237
      %1875 = vmatprep.subr.mxu0 0.0
      %1876 = vmatpush1.msra.mxu0 %v238
      %1877 = vmatprep.subr.mxu0 0.0
      %1878 = vmatpush1.msra.mxu0 %v239
      %1879 = vmatprep.subr.mxu0 0.0
      %1880 = vmatpush1.msra.mxu0 %v240
      %1881 = vmatprep.subr.mxu0 0.0
      %1882 = vmatpush1.msra.mxu0 %v241
      %1883 = vmatprep.subr.mxu0 0.0
      %1884 = vmatpush1.msra.mxu0 %v242
      %1885 = vmatprep.subr.mxu0 0.0
      %1886 = vmatpush1.msra.mxu0 %v243
      %1887 = vmatprep.subr.mxu0 0.0
      %1888 = vmatpush1.msra.mxu0 %v244
      %1889 = vmatprep.subr.mxu0 0.0
      %1890 = vmatpush1.msra.mxu0 %v245
      %1891 = vmatprep.subr.mxu0 0.0
      %1892 = vmatpush1.msra.mxu0 %v246
      %1893 = vmatprep.subr.mxu0 0.0
      %1894 = vmatpush1.msra.mxu0 %v247
      %1895 = vmatprep.subr.mxu0 0.0
      %1896 = vmatpush1.msra.mxu0 %v248
      %1897 = vmatprep.subr.mxu0 0.0
      %1898 = vmatpush1.msra.mxu0 %v249
      %1899 = vmatprep.subr.mxu0 0.0
      %1900 = vmatpush1.msra.mxu0 %v250
      %1901 = vmatprep.subr.mxu0 0.0
      %1902 = vmatpush1.msra.mxu0 %v251
      %1903 = vmatprep.subr.mxu0 0.0
      %1904 = vmatpush1.msra.mxu0 %v252
      %1905 = vmatprep.subr.mxu0 0.0
      %1906 = vmatpush1.msra.mxu0 %v253
      %1907 = vmatprep.subr.mxu0 0.0
      %1908 = vmatpush1.msra.mxu0 %v254
      %1909 = vmatprep.subr.mxu0 0.0
      %1910 = vmatpush1.msra.mxu0 %v255
      %1911 = vmatprep.subr.mxu0 0.0
      %1912 = vmatpush1.msra.mxu0 %v256
      %1913 = vmatprep.subr.mxu0 0.0
      %1914 = vmatpush1.msra.mxu0 %v257
      %1915 = vmatprep.subr.mxu0 0.0
      %1916 = vmatpush1.msra.mxu0 %v258
      %1917 = vmatprep.subr.mxu0 0.0
      %1918 = vmatpush1.msra.mxu0 %v259
      %1919 = vmatprep.mubr.f32.mxu0 %v1748
      %1920 = vmatmul.mubr.f32.gmra.mrb[0].mxu0 %v1747
      %v1921 = vpop.f32.mrb[0].mxu0
      %v1922 = vadd.f32 %v323, %v1921
      %v1923 = vpop.f32.mrb[0].mxu0
      %1924 = vmatprep.mubr.f32.mxu0 %v1751
      %1925 = vmatmul.mubr.f32.gmra.mrb[0].mxu0 %v1750
      %v1926 = vpop.f32.mrb[0].mxu0
      %v1927 = vadd.f32 %v323, %v1926
      %v1928 = vpop.f32.mrb[0].mxu0
      %1929 = vmatprep.mubr.f32.mxu0 %v1754
      %1930 = vmatmul.mubr.f32.gmra.mrb[0].mxu0 %v1753
      %v1931 = vpop.f32.mrb[0].mxu0
      %v1932 = vadd.f32 %v323, %v1931
      %v1933 = vpop.f32.mrb[0].mxu0
      %1934 = vmatprep.mubr.f32.mxu0 %v1757
      %1935 = vmatmul.mubr.f32.gmra.mrb[0].mxu0 %v1756
      %v1936 = vpop.f32.mrb[0].mxu0
      %v1937 = vadd.f32 %v323, %v1936
      %v1938 = vpop.f32.mrb[0].mxu0
      %1939 = vmatprep.mubr.f32.mxu0 %v1760
      %1940 = vmatmul.mubr.f32.gmra.mrb[0].mxu0 %v1759
      %v1941 = vpop.f32.mrb[0].mxu0
      %v1942 = vadd.f32 %v323, %v1941
      %v1943 = vpop.f32.mrb[0].mxu0
      %1944 = vmatprep.mubr.f32.mxu0 %v1763
      %1945 = vmatmul.mubr.f32.gmra.mrb[0].mxu0 %v1762
      %v1946 = vpop.f32.mrb[0].mxu0
      %v1947 = vadd.f32 %v323, %v1946
      %v1948 = vpop.f32.mrb[0].mxu0
      %1949 = vmatprep.mubr.f32.mxu0 %v1766
      %1950 = vmatmul.mubr.f32.gmra.mrb[0].mxu0 %v1765
      %v1951 = vpop.f32.mrb[0].mxu0
      %v1952 = vadd.f32 %v323, %v1951
      %v1953 = vpop.f32.mrb[0].mxu0
      %1954 = vmatprep.mubr.f32.mxu0 %v1769
      %1955 = vmatmul.mubr.f32.gmra.mrb[0].mxu0 %v1768
      %v1956 = vpop.f32.mrb[0].mxu0
      %v1957 = vadd.f32 %v323, %v1956
      %v1958 = vpop.f32.mrb[0].mxu0
      %1959 = vmatprep.mubr.f32.mxu0 %v1772
      %1960 = vmatmul.mubr.f32.gmra.mrb[0].mxu0 %v1771
      %v1961 = vpop.f32.mrb[0].mxu0
      %v1962 = vadd.f32 %v323, %v1961
      %v1963 = vpop.f32.mrb[0].mxu0
      %1964 = vmatprep.mubr.f32.mxu0 %v1775
      %1965 = vmatmul.mubr.f32.gmra.mrb[0].mxu0 %v1774
      %v1966 = vpop.f32.mrb[0].mxu0
      %v1967 = vadd.f32 %v323, %v1966
      %v1968 = vpop.f32.mrb[0].mxu0
      %1969 = vmatprep.mubr.f32.mxu0 %v1778
      %1970 = vmatmul.mubr.f32.gmra.mrb[0].mxu0 %v1777
      %v1971 = vpop.f32.mrb[0].mxu0
      %v1972 = vadd.f32 %v323, %v1971
      %v1973 = vpop.f32.mrb[0].mxu0
      %1974 = vmatprep.mubr.f32.mxu0 %v1781
      %1975 = vmatmul.mubr.f32.gmra.mrb[0].mxu0 %v1780
      %v1976 = vpop.f32.mrb[0].mxu0
      %v1977 = vadd.f32 %v323, %v1976
      %v1978 = vpop.f32.mrb[0].mxu0
      %1979 = vmatprep.mubr.f32.mxu0 %v1784
      %1980 = vmatmul.mubr.f32.gmra.mrb[0].mxu0 %v1783
      %v1981 = vpop.f32.mrb[0].mxu0
      %v1982 = vadd.f32 %v323, %v1981
      %v1983 = vpop.f32.mrb[0].mxu0
      %1984 = vmatprep.mubr.f32.mxu0 %v1787
      %1985 = vmatmul.mubr.f32.gmra.mrb[0].mxu0 %v1786
      %v1986 = vpop.f32.mrb[0].mxu0
      %v1987 = vadd.f32 %v323, %v1986
      %v1988 = vpop.f32.mrb[0].mxu0
      %1989 = vmatprep.mubr.f32.mxu0 %v1790
      %1990 = vmatmul.mubr.f32.gmra.mrb[0].mxu0 %v1789
      %v1991 = vpop.f32.mrb[0].mxu0
      %v1992 = vadd.f32 %v323, %v1991
      %v1993 = vpop.f32.mrb[0].mxu0
      %1994 = vmatprep.mubr.f32.mxu0 %v1793
      %1995 = vmatmul.mubr.f32.gmra.mrb[0].mxu0 %v1792
      %v1996 = vpop.f32.mrb[0].mxu0
      %v1997 = vadd.f32 %v323, %v1996
      %v1998 = vpop.f32.mrb[0].mxu0
      %1999 = vmatprep.mubr.f32.mxu0 %v1796
      %2000 = vmatmul.mubr.f32.gmra.mrb[0].mxu0 %v1795
      %v2001 = vpop.f32.mrb[0].mxu0
      %v2002 = vadd.f32 %v323, %v2001
      %v2003 = vpop.f32.mrb[0].mxu0
      %2004 = vmatprep.mubr.f32.mxu0 %v1799
      %2005 = vmatmul.mubr.f32.gmra.mrb[0].mxu0 %v1798
      %v2006 = vpop.f32.mrb[0].mxu0
      %v2007 = vadd.f32 %v323, %v2006
      %v2008 = vpop.f32.mrb[0].mxu0
      %2009 = vdwg.mxu0
      %2010 = vmatprep.subr.mxu0 0.0
      %2011 = vmatpush1.msra.mxu0 %v260
      %2012 = vmatprep.subr.mxu0 0.0
      %2013 = vmatpush1.msra.mxu0 %v261
      %2014 = vmatprep.subr.mxu0 0.0
      %2015 = vmatpush1.msra.mxu0 %v262
      %2016 = vmatprep.subr.mxu0 0.0
      %2017 = vmatpush1.msra.mxu0 %v263
      %2018 = vmatprep.subr.mxu0 0.0
      %2019 = vmatpush1.msra.mxu0 0.0
      %2020 = vmatprep.subr.mxu0 0.0
      %2021 = vmatpush1.msra.mxu0 0.0
      %2022 = vmatprep.subr.mxu0 0.0
      %2023 = vmatpush1.msra.mxu0 0.0
      %2024 = vmatprep.subr.mxu0 0.0
      %2025 = vmatpush1.msra.mxu0 0.0
      %2026 = vmatprep.subr.mxu0 0.0
      %2027 = vmatpush1.msra.mxu0 0.0
      %2028 = vmatprep.subr.mxu0 0.0
      %2029 = vmatpush1.msra.mxu0 0.0
      %2030 = vmatprep.subr.mxu0 0.0
      %2031 = vmatpush1.msra.mxu0 0.0
      %2032 = vmatprep.subr.mxu0 0.0
      %2033 = vmatpush1.msra.mxu0 0.0
      %2034 = vmatprep.subr.mxu0 0.0
      %2035 = vmatpush1.msra.mxu0 0.0
      %2036 = vmatprep.subr.mxu0 0.0
      %2037 = vmatpush1.msra.mxu0 0.0
      %2038 = vmatprep.subr.mxu0 0.0
      %2039 = vmatpush1.msra.mxu0 0.0
      %2040 = vmatprep.subr.mxu0 0.0
      %2041 = vmatpush1.msra.mxu0 0.0
      %2042 = vmatprep.subr.mxu0 0.0
      %2043 = vmatpush1.msra.mxu0 0.0
      %2044 = vmatprep.subr.mxu0 0.0
      %2045 = vmatpush1.msra.mxu0 0.0
      %2046 = vmatprep.subr.mxu0 0.0
      %2047 = vmatpush1.msra.mxu0 0.0
      %2048 = vmatprep.subr.mxu0 0.0
      %2049 = vmatpush1.msra.mxu0 0.0
      %2050 = vmatprep.subr.mxu0 0.0
      %2051 = vmatpush1.msra.mxu0 0.0
      %2052 = vmatprep.subr.mxu0 0.0
      %2053 = vmatpush1.msra.mxu0 0.0
      %2054 = vmatprep.subr.mxu0 0.0
      %2055 = vmatpush1.msra.mxu0 0.0
      %2056 = vmatprep.subr.mxu0 0.0
      %2057 = vmatpush1.msra.mxu0 0.0
      %2058 = vmatprep.subr.mxu0 0.0
      %2059 = vmatpush1.msra.mxu0 0.0
      %2060 = vmatprep.subr.mxu0 0.0
      %2061 = vmatpush1.msra.mxu0 0.0
      %2062 = vmatprep.subr.mxu0 0.0
      %2063 = vmatpush1.msra.mxu0 0.0
      %2064 = vmatprep.subr.mxu0 0.0
      %2065 = vmatpush1.msra.mxu0 0.0
      %2066 = vmatprep.subr.mxu0 0.0
      %2067 = vmatpush1.msra.mxu0 0.0
      %2068 = vmatprep.subr.mxu0 0.0
      %2069 = vmatpush1.msra.mxu0 0.0
      %2070 = vmatprep.subr.mxu0 0.0
      %2071 = vmatpush1.msra.mxu0 0.0
      %2072 = vmatprep.subr.mxu0 0.0
      %2073 = vmatpush1.msra.mxu0 0.0
      %2074 = vmatprep.mubr.f32.mxu0 0.0
      %2075 = vmatmul.mubr.f32.gmra.mrb[0].mxu0 %v1802
      %v2076 = vpop.f32.mrb[0].mxu0
      %v2077 = vadd.f32 %v1922, %v2076
      %v2078 = vpop.f32.mrb[0].mxu0
      %2079 = vmatprep.mubr.f32.mxu0 0.0
      %2080 = vmatmul.mubr.f32.gmra.mrb[0].mxu0 %v1805
      %v2081 = vpop.f32.mrb[0].mxu0
      %v2082 = vadd.f32 %v1927, %v2081
      %v2083 = vpop.f32.mrb[0].mxu0
      %2084 = vmatprep.mubr.f32.mxu0 0.0
      %2085 = vmatmul.mubr.f32.gmra.mrb[0].mxu0 %v1808
      %v2086 = vpop.f32.mrb[0].mxu0
      %v2087 = vadd.f32 %v1932, %v2086
      %v2088 = vpop.f32.mrb[0].mxu0
      %2089 = vmatprep.mubr.f32.mxu0 0.0
      %2090 = vmatmul.mubr.f32.gmra.mrb[0].mxu0 %v1811
      %v2091 = vpop.f32.mrb[0].mxu0
      %v2092 = vadd.f32 %v1937, %v2091
      %v2093 = vpop.f32.mrb[0].mxu0
      %2094 = vmatprep.mubr.f32.mxu0 0.0
      %2095 = vmatmul.mubr.f32.gmra.mrb[0].mxu0 %v1814
      %v2096 = vpop.f32.mrb[0].mxu0
      %v2097 = vadd.f32 %v1942, %v2096
      %v2098 = vpop.f32.mrb[0].mxu0
      %2099 = vmatprep.mubr.f32.mxu0 0.0
      %2100 = vmatmul.mubr.f32.gmra.mrb[0].mxu0 %v1817
      %v2101 = vpop.f32.mrb[0].mxu0
      %v2102 = vadd.f32 %v1947, %v2101
      %v2103 = vpop.f32.mrb[0].mxu0
      %2104 = vmatprep.mubr.f32.mxu0 0.0
      %2105 = vmatmul.mubr.f32.gmra.mrb[0].mxu0 %v1820
      %v2106 = vpop.f32.mrb[0].mxu0
      %v2107 = vadd.f32 %v1952, %v2106
      %v2108 = vpop.f32.mrb[0].mxu0
      %2109 = vmatprep.mubr.f32.mxu0 0.0
      %2110 = vmatmul.mubr.f32.gmra.mrb[0].mxu0 %v1823
      %v2111 = vpop.f32.mrb[0].mxu0
      %v2112 = vadd.f32 %v1957, %v2111
      %v2113 = vpop.f32.mrb[0].mxu0
      %2114 = vmatprep.mubr.f32.mxu0 0.0
      %2115 = vmatmul.mubr.f32.gmra.mrb[0].mxu0 %v1826
      %v2116 = vpop.f32.mrb[0].mxu0
      %v2117 = vadd.f32 %v1962, %v2116
      %v2118 = vpop.f32.mrb[0].mxu0
      %2119 = vmatprep.mubr.f32.mxu0 0.0
      %2120 = vmatmul.mubr.f32.gmra.mrb[0].mxu0 %v1829
      %v2121 = vpop.f32.mrb[0].mxu0
      %v2122 = vadd.f32 %v1967, %v2121
      %v2123 = vpop.f32.mrb[0].mxu0
      %2124 = vmatprep.mubr.f32.mxu0 0.0
      %2125 = vmatmul.mubr.f32.gmra.mrb[0].mxu0 %v1832
      %v2126 = vpop.f32.mrb[0].mxu0
      %v2127 = vadd.f32 %v1972, %v2126
      %v2128 = vpop.f32.mrb[0].mxu0
      %2129 = vmatprep.mubr.f32.mxu0 0.0
      %2130 = vmatmul.mubr.f32.gmra.mrb[0].mxu0 %v1835
      %v2131 = vpop.f32.mrb[0].mxu0
      %v2132 = vadd.f32 %v1977, %v2131
      %v2133 = vpop.f32.mrb[0].mxu0
      %2134 = vmatprep.mubr.f32.mxu0 0.0
      %2135 = vmatmul.mubr.f32.gmra.mrb[0].mxu0 %v1838
      %v2136 = vpop.f32.mrb[0].mxu0
      %v2137 = vadd.f32 %v1982, %v2136
      %v2138 = vpop.f32.mrb[0].mxu0
      %2139 = vmatprep.mubr.f32.mxu0 0.0
      %2140 = vmatmul.mubr.f32.gmra.mrb[0].mxu0 %v1841
      %v2141 = vpop.f32.mrb[0].mxu0
      %v2142 = vadd.f32 %v1987, %v2141
      %v2143 = vpop.f32.mrb[0].mxu0
      %2144 = vmatprep.mubr.f32.mxu0 0.0
      %2145 = vmatmul.mubr.f32.gmra.mrb[0].mxu0 %v1844
      %v2146 = vpop.f32.mrb[0].mxu0
      %v2147 = vadd.f32 %v1992, %v2146
      %v2148 = vpop.f32.mrb[0].mxu0
      %2149 = vmatprep.mubr.f32.mxu0 0.0
      %2150 = vmatmul.mubr.f32.gmra.mrb[0].mxu0 %v1847
      %v2151 = vpop.f32.mrb[0].mxu0
      %v2152 = vadd.f32 %v1997, %v2151
      %v2153 = vpop.f32.mrb[0].mxu0
      %2154 = vmatprep.mubr.f32.mxu0 0.0
      %2155 = vmatmul.mubr.f32.gmra.mrb[0].mxu0 %v1850
      %v2156 = vpop.f32.mrb[0].mxu0
      %v2157 = vadd.f32 %v2002, %v2156
      %v2158 = vpop.f32.mrb[0].mxu0
      %2159 = vmatprep.mubr.f32.mxu0 0.0
      %2160 = vmatmul.mubr.f32.gmra.mrb[0].mxu0 %v1853
      %v2161 = vpop.f32.mrb[0].mxu0
      %v2162 = vadd.f32 %v2007, %v2161
      %v2163 = vpop.f32.mrb[0].mxu0
      %2164 = vdwg.mxu0
      %s2165 = scalar_lea.vmem %s221, 432
      %v2166 = vld [vmem:[%s2165] sm:$0xff]
      %v2167 = vld [vmem:[%s2165 + $0x8] sm:$0xff]
      %v2168 = vld [vmem:[%s2165 + $0x10] sm:$0xff]
      %v2169 = vld [vmem:[%s2165 + $0x18] sm:$0xff]
      %v2170 = vld [vmem:[%s2165 + $0x20] sm:$0xff]
      %v2171 = vld [vmem:[%s2165 + $0x28] sm:$0xff]
      %v2172 = vld [vmem:[%s2165 + $0x30] sm:$0xff]
      %v2173 = vld [vmem:[%s2165 + $0x38] sm:$0xff]
      %v2174 = vld [vmem:[%s2165 + $0x40] sm:$0xff]
      %v2175 = vld [vmem:[%s2165 + $0x48] sm:$0xff]
      %v2176 = vld [vmem:[%s2165 + $0x50] sm:$0xff]
      %v2177 = vld [vmem:[%s2165 + $0x58] sm:$0xff]
      %v2178 = vld [vmem:[%s2165 + $0x60] sm:$0xff]
      %v2179 = vld [vmem:[%s2165 + $0x68] sm:$0xff]
      %v2180 = vld [vmem:[%s2165 + $0x70] sm:$0xff]
      %v2181 = vld [vmem:[%s2165 + $0x78] sm:$0xff]
      %v2182 = vld [vmem:[%s2165 + $0x80] sm:$0xff]
      %v2183 = vld [vmem:[%s2165 + $0x88] sm:$0xff]
      %v2184 = vadd.f32 %v2077, %v2166
      %v2185 = vadd.f32 %v2082, %v2167
      %v2186 = vadd.f32 %v2087, %v2168
      %v2187 = vadd.f32 %v2092, %v2169
      %v2188 = vadd.f32 %v2097, %v2170
      %v2189 = vadd.f32 %v2102, %v2171
      %v2190 = vadd.f32 %v2107, %v2172
      %v2191 = vadd.f32 %v2112, %v2173
      %v2192 = vadd.f32 %v2117, %v2174
      %v2193 = vadd.f32 %v2122, %v2175
      %v2194 = vadd.f32 %v2127, %v2176
      %v2195 = vadd.f32 %v2132, %v2177
      %v2196 = vadd.f32 %v2137, %v2178
      %v2197 = vadd.f32 %v2142, %v2179
      %v2198 = vadd.f32 %v2147, %v2180
      %v2199 = vadd.f32 %v2152, %v2181
      %v2200 = vadd.f32 %v2157, %v2182
      %v2201 = vadd.f32 %v2162, %v2183
      %v2202 = vmax.f32 %v2184, 0.0
      %v2203 = vmax.f32 %v2185, 0.0
      %v2204 = vmax.f32 %v2186, 0.0
      %v2205 = vmax.f32 %v2187, 0.0
      %v2206 = vmax.f32 %v2188, 0.0
      %v2207 = vmax.f32 %v2189, 0.0
      %v2208 = vmax.f32 %v2190, 0.0
      %v2209 = vmax.f32 %v2191, 0.0
      %v2210 = vmax.f32 %v2192, 0.0
      %v2211 = vmax.f32 %v2193, 0.0
      %v2212 = vmax.f32 %v2194, 0.0
      %v2213 = vmax.f32 %v2195, 0.0
      %v2214 = vmax.f32 %v2196, 0.0
      %v2215 = vmax.f32 %v2197, 0.0
      %v2216 = vmax.f32 %v2198, 0.0
      %v2217 = vmax.f32 %v2199, 0.0
      %v2218 = vmax.f32 %v2200, 0.0
      %v2219 = vmax.f32 %v2201, 0.0
      %v2220 = vadd.f32 %v1728, %v2202
      %v2221 = vadd.f32 %v1729, %v2203
      %v2222 = vadd.f32 %v1730, %v2204
      %v2223 = vadd.f32 %v1731, %v2205
      %v2224 = vadd.f32 %v1732, %v2206
      %v2225 = vadd.f32 %v1733, %v2207
      %v2226 = vadd.f32 %v1734, %v2208
      %v2227 = vadd.f32 %v1735, %v2209
      %v2228 = vadd.f32 %v1736, %v2210
      %v2229 = vadd.f32 %v1737, %v2211
      %v2230 = vadd.f32 %v1738, %v2212
      %v2231 = vadd.f32 %v1739, %v2213
      %v2232 = vadd.f32 %v1740, %v2214
      %v2233 = vadd.f32 %v1741, %v2215
      %v2234 = vadd.f32 %v1742, %v2216
      %v2235 = vadd.f32 %v1743, %v2217
      %v2236 = vadd.f32 %v1744, %v2218
      %v2237 = vadd.f32 %v1745, %v2219
      %v2238 = vmul.f32 %v2220, 0.25
      %v2239 = vmul.f32 %v2221, 0.25
      %v2240 = vmul.f32 %v2222, 0.25
      %v2241 = vmul.f32 %v2223, 0.25
      %v2242 = vmul.f32 %v2224, 0.25
      %v2243 = vmul.f32 %v2225, 0.25
      %v2244 = vmul.f32 %v2226, 0.25
      %v2245 = vmul.f32 %v2227, 0.25
      %v2246 = vmul.f32 %v2228, 0.25
      %v2247 = vmul.f32 %v2229, 0.25
      %v2248 = vmul.f32 %v2230, 0.25
      %v2249 = vmul.f32 %v2231, 0.25
      %v2250 = vmul.f32 %v2232, 0.25
      %v2251 = vmul.f32 %v2233, 0.25
      %v2252 = vmul.f32 %v2234, 0.25
      %v2253 = vmul.f32 %v2235, 0.25
      %v2254 = vmul.f32 %v2236, 0.25
      %v2255 = vmul.f32 %v2237, 0.25
      %2256 = vst.msk [vmem:[%s227] sm:$0xff] %vm325, %v2238
      %2257 = vst.msk [vmem:[%s227 + $0x8] sm:$0xff] %vm325, %v2239
      %2258 = vst.msk [vmem:[%s227 + $0x10] sm:$0xff] %vm325, %v2240
      %2259 = vst.msk [vmem:[%s227 + $0x18] sm:$0xff] %vm325, %v2241
      %2260 = vst.msk [vmem:[%s227 + $0x20] sm:$0xff] %vm325, %v2242
      %2261 = vst.msk [vmem:[%s227 + $0x28] sm:$0xff] %vm325, %v2243
      %2262 = vst.msk [vmem:[%s227 + $0x30] sm:$0xff] %vm325, %v2244
      %2263 = vst.msk [vmem:[%s227 + $0x38] sm:$0xff] %vm325, %v2245
      %2264 = vst.msk [vmem:[%s227 + $0x40] sm:$0xff] %vm325, %v2246
      %2265 = vst.msk [vmem:[%s227 + $0x48] sm:$0xff] %vm325, %v2247
      %2266 = vst.msk [vmem:[%s227 + $0x50] sm:$0xff] %vm325, %v2248
      %2267 = vst.msk [vmem:[%s227 + $0x58] sm:$0xff] %vm325, %v2249
      %2268 = vst.msk [vmem:[%s227 + $0x60] sm:$0xff] %vm325, %v2250
      %2269 = vst.msk [vmem:[%s227 + $0x68] sm:$0xff] %vm325, %v2251
      %2270 = vst.msk [vmem:[%s227 + $0x70] sm:$0xff] %vm325, %v2252
      %2271 = vst.msk [vmem:[%s227 + $0x78] sm:$0xff] %vm325, %v2253
      %2272 = vst.msk [vmem:[%s227 + $0x80] sm:$0xff] %vm325, %v2254
      %2273 = vst.msk [vmem:[%s227 + $0x88] sm:$0xff] %vm325, %v2255
      %p2274 = scmp.lt.s32.totalorder %s15, 1
      %s2275 = scalar_select %p2274, %s15, 1
      %s2276 = smul.addr %s2275, 18
      %s2277 = smul.addr %s2276, 8
      %s2278 = scalar_lea.vmem %s4, %s2277
      // Predicated region
      $region37: #{skipcnn1_forward.4} parent=35 // pred_check
        %p2279 = pneg %p127
      $region38: #{skipcnn1_forward.4} parent=35 // pred_check_branch
        %2281 = sbr.rel (%p2279) target = $region40
      $region39: #{skipcnn1_forward.4} parent=35 // pred_region
        _
      $region40: #{skipcnn1_forward.4} parent=35 // pred_fallthru
        _
    $region36: #{skipcnn1_forward.4} parent=5 // pred_fallthru
      _
    %p2282 = scmp.le.s32.totalorder 2, %s10
    // Predicated region
    $region41: #{skipcnn1_forward.4} parent=5 // pred_check
      %p2283 = pneg %p2282
    $region42: #{skipcnn1_forward.4} parent=5 // pred_check_branch
      %2285 = sbr.rel (%p2283) target = $region44
    $region43: #{skipcnn1_forward.4} parent=5 // pred_region
      %s2286 = ssub.s32 %s10, 2
      // Predicated region
      $region45: #{skipcnn1_forward.4} parent=43 // pred_check
        %p2287 = pneg %p133
      $region46: #{skipcnn1_forward.4} parent=43 // pred_check_branch
        %2289 = sbr.rel (%p2287) target = $region48
      $region47: #{skipcnn1_forward.4} parent=43 // pred_region
        %p2290 = scmp.lt.s32.totalorder %s16, 1
        %s2291 = scalar_select %p2290, %s16, 1
        %s2292 = smul.addr %s2291, 18
        %s2293 = smul.addr %s2292, 8
        %s2294 = scalar_lea.vmem %s4, %s2293
      $region48: #{skipcnn1_forward.4} parent=43 // pred_fallthru
        _
    $region44: #{skipcnn1_forward.4} parent=5 // pred_fallthru
      _
  $region6: #{skipcnn1_forward.4} parent=0 // loop_footer
    %s14 = sadd.s32 1, %s10
  $region7: #{skipcnn1_forward.4} parent=0 // loop_footer_branch
    %9 = sbr.rel target = $region3
  $region8: #{skipcnn1_forward.4} parent=0 // loop_exit
    _

// kernel: skipcnn1_forward.5
$region0: #{skipcnn1_forward.5}
  #allocation0 [shape = 'u32[]', space=smem, size = 0x4, offset = 0x4, fixed_abs, tag = 'smem constant byte address 0x4 - core index']
  #allocation1 [shape = 'u32[144,128]{1,0:T(1,128)}', space=vmem, size = 0x12000, scoped, tag = 'internal scratch']
  %s0 = inlined_call_operand.vmem [shape: f32[2,4608], index: 0, kind: input, shape index: {}]
  %s1 = inlined_call_operand.vmem [shape: f32[4608,128], index: 1, kind: input, shape index: {}]
  %s2 = inlined_call_operand.vmem [shape: f32[1,128], index: 2, kind: input, shape index: {}]
  %s3 = inlined_call_operand.vmem [shape: f32[128,128], index: 3, kind: input, shape index: {}]
  %s4 = inlined_call_operand.vmem [shape: f32[1,128], index: 4, kind: input, shape index: {}]
  %s5 = inlined_call_operand.hbm [shape: f32[2,128], index: 5, kind: output, shape index: {}]
  %s6 = sld [smem:[#allocation0]]
  $region30: #{skipcnn1_forward.5} parent=0
    _
  %s8 = ssub.s32 1, %s6
  %s9 = scalar_select 0, %s8, %s6
  $region1: #{skipcnn1_forward.5} parent=0
    #allocation2 [shape = 'u8[1024]{0}', space=vmem, size = 0x400, scoped, tag = 'output window, operand 0, single buffered']
    #allocation3 [shape = 's32[1]{0}', space=sflag, size = 0x4, scoped, tag = 'scoped memory for skipcnn1_forward.5']
    %10 = vsyncpa [#allocation3], 0
    // Predicated region
    $region2: #{skipcnn1_forward.5} parent=1 // pred_check
      _
    $region3: #{skipcnn1_forward.5} parent=1 // pred_check_branch
      %12 = sbr.rel (0) target = $region5
    $region4: #{skipcnn1_forward.5} parent=1 // pred_region
      _
    $region5: #{skipcnn1_forward.5} parent=1 // pred_fallthru
      _
    // Predicated region
    $region6: #{skipcnn1_forward.5} parent=1 // pred_check
      _
    $region7: #{skipcnn1_forward.5} parent=1 // pred_check_branch
      %14 = sbr.rel (0) target = $region9
    $region8: #{skipcnn1_forward.5} parent=1 // pred_region
      _
    $region9: #{skipcnn1_forward.5} parent=1 // pred_fallthru
      _
    // Predicated region
    $region10: #{skipcnn1_forward.5} parent=1 // pred_check
      _
    $region11: #{skipcnn1_forward.5} parent=1 // pred_check_branch
      %16 = sbr.rel (0) target = $region13
    $region12: #{skipcnn1_forward.5} parent=1 // pred_region
      _
    $region13: #{skipcnn1_forward.5} parent=1 // pred_fallthru
      _
    // Predicated region
    $region14: #{skipcnn1_forward.5} parent=1 // pred_check
      _
    $region15: #{skipcnn1_forward.5} parent=1 // pred_check_branch
      %18 = sbr.rel (0) target = $region17
    $region16: #{skipcnn1_forward.5} parent=1 // pred_region
      _
    $region17: #{skipcnn1_forward.5} parent=1 // pred_fallthru
      _
    // Predicated region
    $region18: #{skipcnn1_forward.5} parent=1 // pred_check
      _
    $region19: #{skipcnn1_forward.5} parent=1 // pred_check_branch
      %20 = sbr.rel (0) target = $region21
    $region20: #{skipcnn1_forward.5} parent=1 // pred_region
      _
    $region21: #{skipcnn1_forward.5} parent=1 // pred_fallthru
      _
    %v21 = vld [vmem:[%s0] sm:$0xff]
    %v22 = vld [vmem:[%s0 + $0x8] sm:$0xff]
    %v23 = vld [vmem:[%s0 + $0x10] sm:$0xff]
    %v24 = vld [vmem:[%s0 + $0x18] sm:$0xff]
    %v25 = vld [vmem:[%s0 + $0x20] sm:$0xff]
    %v26 = vld [vmem:[%s0 + $0x28] sm:$0xff]
    %v27 = vld [vmem:[%s0 + $0x30] sm:$0xff]
    %v28 = vld [vmem:[%s0 + $0x38] sm:$0xff]
    %v29 = vld [vmem:[%s0 + $0x40] sm:$0xff]
    %v30 = vld [vmem:[%s1] sm:$0xff]
    %v31 = vld [vmem:[%s1 + $0x8] sm:$0xff]
    %v32 = vld [vmem:[%s1 + $0x10] sm:$0xff]
    %v33 = vld [vmem:[%s1 + $0x18] sm:$0xff]
    %v34 = vld [vmem:[%s1 + $0x20] sm:$0xff]
    %v35 = vld [vmem:[%s1 + $0x28] sm:$0xff]
    %v36 = vld [vmem:[%s1 + $0x30] sm:$0xff]
    %v37 = vld [vmem:[%s1 + $0x38] sm:$0xff]
    %v38 = vld [vmem:[%s1 + $0x40] sm:$0xff]
    %v39 = vld [vmem:[%s1 + $0x48] sm:$0xff]
    %v40 = vld [vmem:[%s1 + $0x50] sm:$0xff]
    %v41 = vld [vmem:[%s1 + $0x58] sm:$0xff]
    %v42 = vld [vmem:[%s1 + $0x60] sm:$0xff]
    %v43 = vld [vmem:[%s1 + $0x68] sm:$0xff]
    %v44 = vld [vmem:[%s1 + $0x70] sm:$0xff]
    %v45 = vld [vmem:[%s1 + $0x78] sm:$0xff]
    %v46 = vld [vmem:[%s1 + $0x80] sm:$0xff]
    %v47 = vld [vmem:[%s1 + $0x88] sm:$0xff]
    %v48 = vld [vmem:[%s1 + $0x90] sm:$0xff]
    %v49 = vld [vmem:[%s1 + $0x98] sm:$0xff]
    %v50 = vld [vmem:[%s1 + $0xa0] sm:$0xff]
    %v51 = vld [vmem:[%s1 + $0xa8] sm:$0xff]
    %v52 = vld [vmem:[%s1 + $0xb0] sm:$0xff]
    %v53 = vld [vmem:[%s1 + $0xb8] sm:$0xff]
    %v54 = vld [vmem:[%s1 + $0xc0] sm:$0xff]
    %v55 = vld [vmem:[%s1 + $0xc8] sm:$0xff]
    %v56 = vld [vmem:[%s1 + $0xd0] sm:$0xff]
    %v57 = vld [vmem:[%s1 + $0xd8] sm:$0xff]
    %v58 = vld [vmem:[%s1 + $0xe0] sm:$0xff]
    %v59 = vld [vmem:[%s1 + $0xe8] sm:$0xff]
    %v60 = vld [vmem:[%s1 + $0xf0] sm:$0xff]
    %v61 = vld [vmem:[%s1 + $0xf8] sm:$0xff]
    %v62 = vld [vmem:[%s1 + $0x100] sm:$0xff]
    %v63 = vld [vmem:[%s1 + $0x108] sm:$0xff]
    %v64 = vld [vmem:[%s1 + $0x110] sm:$0xff]
    %v65 = vld [vmem:[%s1 + $0x118] sm:$0xff]
    %v66 = vld [vmem:[%s1 + $0x120] sm:$0xff]
    %v67 = vld [vmem:[%s1 + $0x128] sm:$0xff]
    %v68 = vld [vmem:[%s1 + $0x130] sm:$0xff]
    %v69 = vld [vmem:[%s1 + $0x138] sm:$0xff]
    %v70 = vld [vmem:[%s1 + $0x140] sm:$0xff]
    %v71 = vld [vmem:[%s1 + $0x148] sm:$0xff]
    %v72 = vld [vmem:[%s1 + $0x150] sm:$0xff]
    %v73 = vld [vmem:[%s1 + $0x158] sm:$0xff]
    %v74 = vld [vmem:[%s1 + $0x160] sm:$0xff]
    %v75 = vld [vmem:[%s1 + $0x168] sm:$0xff]
    %v76 = vld [vmem:[%s1 + $0x170] sm:$0xff]
    %v77 = vld [vmem:[%s1 + $0x178] sm:$0xff]
    %v78 = vld [vmem:[%s1 + $0x180] sm:$0xff]
    %v79 = vld [vmem:[%s1 + $0x188] sm:$0xff]
    %v80 = vld [vmem:[%s1 + $0x190] sm:$0xff]
    %v81 = vld [vmem:[%s1 + $0x198] sm:$0xff]
    %v82 = vld [vmem:[%s1 + $0x1a0] sm:$0xff]
    %v83 = vld [vmem:[%s1 + $0x1a8] sm:$0xff]
    %v84 = vld [vmem:[%s1 + $0x1b0] sm:$0xff]
    %v85 = vld [vmem:[%s1 + $0x1b8] sm:$0xff]
    %v86 = vld [vmem:[%s1 + $0x1c0] sm:$0xff]
    %v87 = vld [vmem:[%s1 + $0x1c8] sm:$0xff]
    %v88 = vld [vmem:[%s1 + $0x1d0] sm:$0xff]
    %v89 = vld [vmem:[%s1 + $0x1d8] sm:$0xff]
    %v90 = vld [vmem:[%s1 + $0x1e0] sm:$0xff]
    %v91 = vld [vmem:[%s1 + $0x1e8] sm:$0xff]
    %v92 = vld [vmem:[%s1 + $0x1f0] sm:$0xff]
    %v93 = vld [vmem:[%s1 + $0x1f8] sm:$0xff]
    %v94 = vld [vmem:[%s1 + $0x200] sm:$0xff]
    %v95 = vld [vmem:[%s1 + $0x208] sm:$0xff]
    %v96 = vld [vmem:[%s1 + $0x210] sm:$0xff]
    %v97 = vld [vmem:[%s1 + $0x218] sm:$0xff]
    %v98 = vld [vmem:[%s1 + $0x220] sm:$0xff]
    %v99 = vld [vmem:[%s1 + $0x228] sm:$0xff]
    %v100 = vld [vmem:[%s1 + $0x230] sm:$0xff]
    %v101 = vld [vmem:[%s1 + $0x238] sm:$0xff]
    %v102 = vld [vmem:[%s1 + $0x240] sm:$0xff]
    %v103 = vld [vmem:[%s1 + $0x248] sm:$0xff]
    %v104 = vld [vmem:[%s1 + $0x250] sm:$0xff]
    %v105 = vld [vmem:[%s1 + $0x258] sm:$0xff]
    %v106 = vld [vmem:[%s1 + $0x260] sm:$0xff]
    %v107 = vld [vmem:[%s1 + $0x268] sm:$0xff]
    %v108 = vld [vmem:[%s1 + $0x270] sm:$0xff]
    %v109 = vld [vmem:[%s1 + $0x278] sm:$0xff]
    %v110 = vld [vmem:[%s1 + $0x280] sm:$0xff]
    %v111 = vld [vmem:[%s1 + $0x288] sm:$0xff]
    %v112 = vld [vmem:[%s1 + $0x290] sm:$0xff]
    %v113 = vld [vmem:[%s1 + $0x298] sm:$0xff]
    %v114 = vld [vmem:[%s1 + $0x2a0] sm:$0xff]
    %v115 = vld [vmem:[%s1 + $0x2a8] sm:$0xff]
    %v116 = vld [vmem:[%s1 + $0x2b0] sm:$0xff]
    %v117 = vld [vmem:[%s1 + $0x2b8] sm:$0xff]
    %v118 = vld [vmem:[%s1 + $0x2c0] sm:$0xff]
    %v119 = vld [vmem:[%s1 + $0x2c8] sm:$0xff]
    %v120 = vld [vmem:[%s1 + $0x2d0] sm:$0xff]
    %v121 = vld [vmem:[%s1 + $0x2d8] sm:$0xff]
    %v122 = vld [vmem:[%s1 + $0x2e0] sm:$0xff]
    %v123 = vld [vmem:[%s1 + $0x2e8] sm:$0xff]
    %v124 = vld [vmem:[%s1 + $0x2f0] sm:$0xff]
    %v125 = vld [vmem:[%s1 + $0x2f8] sm:$0xff]
    %v126 = vld [vmem:[%s1 + $0x300] sm:$0xff]
    %v127 = vld [vmem:[%s1 + $0x308] sm:$0xff]
    %v128 = vld [vmem:[%s1 + $0x310] sm:$0xff]
    %v129 = vld [vmem:[%s1 + $0x318] sm:$0xff]
    %v130 = vld [vmem:[%s1 + $0x320] sm:$0xff]
    %v131 = vld [vmem:[%s1 + $0x328] sm:$0xff]
    %v132 = vld [vmem:[%s1 + $0x330] sm:$0xff]
    %v133 = vld [vmem:[%s1 + $0x338] sm:$0xff]
    %v134 = vld [vmem:[%s1 + $0x340] sm:$0xff]
    %v135 = vld [vmem:[%s1 + $0x348] sm:$0xff]
    %v136 = vld [vmem:[%s1 + $0x350] sm:$0xff]
    %v137 = vld [vmem:[%s1 + $0x358] sm:$0xff]
    %v138 = vld [vmem:[%s1 + $0x360] sm:$0xff]
    %v139 = vld [vmem:[%s1 + $0x368] sm:$0xff]
    %v140 = vld [vmem:[%s1 + $0x370] sm:$0xff]
    %v141 = vld [vmem:[%s1 + $0x378] sm:$0xff]
    %v142 = vld [vmem:[%s1 + $0x380] sm:$0xff]
    %v143 = vld [vmem:[%s1 + $0x388] sm:$0xff]
    %v144 = vld [vmem:[%s1 + $0x390] sm:$0xff]
    %v145 = vld [vmem:[%s1 + $0x398] sm:$0xff]
    %v146 = vld [vmem:[%s1 + $0x3a0] sm:$0xff]
    %v147 = vld [vmem:[%s1 + $0x3a8] sm:$0xff]
    %v148 = vld [vmem:[%s1 + $0x3b0] sm:$0xff]
    %v149 = vld [vmem:[%s1 + $0x3b8] sm:$0xff]
    %v150 = vld [vmem:[%s1 + $0x3c0] sm:$0xff]
    %v151 = vld [vmem:[%s1 + $0x3c8] sm:$0xff]
    %v152 = vld [vmem:[%s1 + $0x3d0] sm:$0xff]
    %v153 = vld [vmem:[%s1 + $0x3d8] sm:$0xff]
    %v154 = vld [vmem:[%s1 + $0x3e0] sm:$0xff]
    %v155 = vld [vmem:[%s1 + $0x3e8] sm:$0xff]
    %v156 = vld [vmem:[%s1 + $0x3f0] sm:$0xff]
    %v157 = vld [vmem:[%s1 + $0x3f8] sm:$0xff]
    %v158 = vld [vmem:[%s1 + $0x400] sm:$0xff]
    %v159 = vld [vmem:[%s1 + $0x408] sm:$0xff]
    %v160 = vld [vmem:[%s1 + $0x410] sm:$0xff]
    %v161 = vld [vmem:[%s1 + $0x418] sm:$0xff]
    %v162 = vld [vmem:[%s1 + $0x420] sm:$0xff]
    %v163 = vld [vmem:[%s1 + $0x428] sm:$0xff]
    %v164 = vld [vmem:[%s1 + $0x430] sm:$0xff]
    %v165 = vld [vmem:[%s1 + $0x438] sm:$0xff]
    %v166 = vld [vmem:[%s1 + $0x440] sm:$0xff]
    %v167 = vld [vmem:[%s1 + $0x448] sm:$0xff]
    %v168 = vld [vmem:[%s1 + $0x450] sm:$0xff]
    %v169 = vld [vmem:[%s1 + $0x458] sm:$0xff]
    %v170 = vld [vmem:[%s1 + $0x460] sm:$0xff]
    %v171 = vld [vmem:[%s1 + $0x468] sm:$0xff]
    %v172 = vld [vmem:[%s1 + $0x470] sm:$0xff]
    %v173 = vld [vmem:[%s1 + $0x478] sm:$0xff]
    %v174 = vld [vmem:[%s1 + $0x480] sm:$0xff]
    %v175 = vld [vmem:[%s1 + $0x488] sm:$0xff]
    %v176 = vld [vmem:[%s1 + $0x490] sm:$0xff]
    %v177 = vld [vmem:[%s1 + $0x498] sm:$0xff]
    %v178 = vld [vmem:[%s1 + $0x4a0] sm:$0xff]
    %v179 = vld [vmem:[%s1 + $0x4a8] sm:$0xff]
    %v180 = vld [vmem:[%s1 + $0x4b0] sm:$0xff]
    %v181 = vld [vmem:[%s1 + $0x4b8] sm:$0xff]
    %v182 = vld [vmem:[%s1 + $0x4c0] sm:$0xff]
    %v183 = vld [vmem:[%s1 + $0x4c8] sm:$0xff]
    %v184 = vld [vmem:[%s1 + $0x4d0] sm:$0xff]
    %v185 = vld [vmem:[%s1 + $0x4d8] sm:$0xff]
    %v186 = vld [vmem:[%s1 + $0x4e0] sm:$0xff]
    %v187 = vld [vmem:[%s1 + $0x4e8] sm:$0xff]
    %v188 = vld [vmem:[%s1 + $0x4f0] sm:$0xff]
    %v189 = vld [vmem:[%s1 + $0x4f8] sm:$0xff]
    %v190 = vld [vmem:[%s1 + $0x500] sm:$0xff]
    %v191 = vld [vmem:[%s1 + $0x508] sm:$0xff]
    %v192 = vld [vmem:[%s1 + $0x510] sm:$0xff]
    %v193 = vld [vmem:[%s1 + $0x518] sm:$0xff]
    %v194 = vld [vmem:[%s1 + $0x520] sm:$0xff]
    %v195 = vld [vmem:[%s1 + $0x528] sm:$0xff]
    %v196 = vld [vmem:[%s1 + $0x530] sm:$0xff]
    %v197 = vld [vmem:[%s1 + $0x538] sm:$0xff]
    %v198 = vld [vmem:[%s1 + $0x540] sm:$0xff]
    %v199 = vld [vmem:[%s1 + $0x548] sm:$0xff]
    %v200 = vld [vmem:[%s1 + $0x550] sm:$0xff]
    %v201 = vld [vmem:[%s1 + $0x558] sm:$0xff]
    %v202 = vld [vmem:[%s1 + $0x560] sm:$0xff]
    %v203 = vld [vmem:[%s1 + $0x568] sm:$0xff]
    %v204 = vld [vmem:[%s1 + $0x570] sm:$0xff]
    %v205 = vld [vmem:[%s1 + $0x578] sm:$0xff]
    %v206 = vld [vmem:[%s1 + $0x580] sm:$0xff]
    %v207 = vld [vmem:[%s1 + $0x588] sm:$0xff]
    %v208 = vld [vmem:[%s1 + $0x590] sm:$0xff]
    %v209 = vld [vmem:[%s1 + $0x598] sm:$0xff]
    %v210 = vld [vmem:[%s1 + $0x5a0] sm:$0xff]
    %v211 = vld [vmem:[%s1 + $0x5a8] sm:$0xff]
    %v212 = vld [vmem:[%s1 + $0x5b0] sm:$0xff]
    %v213 = vld [vmem:[%s1 + $0x5b8] sm:$0xff]
    %v214 = vld [vmem:[%s1 + $0x5c0] sm:$0xff]
    %v215 = vld [vmem:[%s1 + $0x5c8] sm:$0xff]
    %v216 = vld [vmem:[%s1 + $0x5d0] sm:$0xff]
    %v217 = vld [vmem:[%s1 + $0x5d8] sm:$0xff]
    %v218 = vld [vmem:[%s1 + $0x5e0] sm:$0xff]
    %v219 = vld [vmem:[%s1 + $0x5e8] sm:$0xff]
    %v220 = vld [vmem:[%s1 + $0x5f0] sm:$0xff]
    %v221 = vld [vmem:[%s1 + $0x5f8] sm:$0xff]
    %v222 = vld [vmem:[%s1 + $0x600] sm:$0xff]
    %v223 = vld [vmem:[%s1 + $0x608] sm:$0xff]
    %v224 = vld [vmem:[%s1 + $0x610] sm:$0xff]
    %v225 = vld [vmem:[%s1 + $0x618] sm:$0xff]
    %v226 = vld [vmem:[%s1 + $0x620] sm:$0xff]
    %v227 = vld [vmem:[%s1 + $0x628] sm:$0xff]
    %v228 = vld [vmem:[%s1 + $0x630] sm:$0xff]
    %v229 = vld [vmem:[%s1 + $0x638] sm:$0xff]
    %v230 = vld [vmem:[%s1 + $0x640] sm:$0xff]
    %v231 = vld [vmem:[%s1 + $0x648] sm:$0xff]
    %v232 = vld [vmem:[%s1 + $0x650] sm:$0xff]
    %v233 = vld [vmem:[%s1 + $0x658] sm:$0xff]
    %v234 = vld [vmem:[%s1 + $0x660] sm:$0xff]
    %v235 = vld [vmem:[%s1 + $0x668] sm:$0xff]
    %v236 = vld [vmem:[%s1 + $0x670] sm:$0xff]
    %v237 = vld [vmem:[%s1 + $0x678] sm:$0xff]
    %v238 = vld [vmem:[%s1 + $0x680] sm:$0xff]
    %v239 = vld [vmem:[%s1 + $0x688] sm:$0xff]
    %v240 = vld [vmem:[%s1 + $0x690] sm:$0xff]
    %v241 = vld [vmem:[%s1 + $0x698] sm:$0xff]
    %v242 = vld [vmem:[%s1 + $0x6a0] sm:$0xff]
    %v243 = vld [vmem:[%s1 + $0x6a8] sm:$0xff]
    %v244 = vld [vmem:[%s1 + $0x6b0] sm:$0xff]
    %v245 = vld [vmem:[%s1 + $0x6b8] sm:$0xff]
    %v246 = vld [vmem:[%s1 + $0x6c0] sm:$0xff]
    %v247 = vld [vmem:[%s1 + $0x6c8] sm:$0xff]
    %v248 = vld [vmem:[%s1 + $0x6d0] sm:$0xff]
    %v249 = vld [vmem:[%s1 + $0x6d8] sm:$0xff]
    %v250 = vld [vmem:[%s1 + $0x6e0] sm:$0xff]
    %v251 = vld [vmem:[%s1 + $0x6e8] sm:$0xff]
    %v252 = vld [vmem:[%s1 + $0x6f0] sm:$0xff]
    %v253 = vld [vmem:[%s1 + $0x6f8] sm:$0xff]
    %v254 = vld [vmem:[%s1 + $0x700] sm:$0xff]
    %v255 = vld [vmem:[%s1 + $0x708] sm:$0xff]
    %v256 = vld [vmem:[%s1 + $0x710] sm:$0xff]
    %v257 = vld [vmem:[%s1 + $0x718] sm:$0xff]
    %v258 = vld [vmem:[%s1 + $0x720] sm:$0xff]
    %v259 = vld [vmem:[%s1 + $0x728] sm:$0xff]
    %v260 = vld [vmem:[%s1 + $0x730] sm:$0xff]
    %v261 = vld [vmem:[%s1 + $0x738] sm:$0xff]
    %v262 = vld [vmem:[%s1 + $0x740] sm:$0xff]
    %v263 = vld [vmem:[%s1 + $0x748] sm:$0xff]
    %v264 = vld [vmem:[%s1 + $0x750] sm:$0xff]
    %v265 = vld [vmem:[%s1 + $0x758] sm:$0xff]
    %v266 = vld [vmem:[%s1 + $0x760] sm:$0xff]
    %v267 = vld [vmem:[%s1 + $0x768] sm:$0xff]
    %v268 = vld [vmem:[%s1 + $0x770] sm:$0xff]
    %v269 = vld [vmem:[%s1 + $0x778] sm:$0xff]
    %v270 = vld [vmem:[%s1 + $0x780] sm:$0xff]
    %v271 = vld [vmem:[%s1 + $0x788] sm:$0xff]
    %v272 = vld [vmem:[%s1 + $0x790] sm:$0xff]
    %v273 = vld [vmem:[%s1 + $0x798] sm:$0xff]
    %v274 = vld [vmem:[%s1 + $0x7a0] sm:$0xff]
    %v275 = vld [vmem:[%s1 + $0x7a8] sm:$0xff]
    %v276 = vld [vmem:[%s1 + $0x7b0] sm:$0xff]
    %v277 = vld [vmem:[%s1 + $0x7b8] sm:$0xff]
    %v278 = vld [vmem:[%s1 + $0x7c0] sm:$0xff]
    %v279 = vld [vmem:[%s1 + $0x7c8] sm:$0xff]
    %v280 = vld [vmem:[%s1 + $0x7d0] sm:$0xff]
    %v281 = vld [vmem:[%s1 + $0x7d8] sm:$0xff]
    %v282 = vld [vmem:[%s1 + $0x7e0] sm:$0xff]
    %v283 = vld [vmem:[%s1 + $0x7e8] sm:$0xff]
    %v284 = vld [vmem:[%s1 + $0x7f0] sm:$0xff]
    %v285 = vld [vmem:[%s1 + $0x7f8] sm:$0xff]
    %v286 = vld [vmem:[%s1 + $0x800] sm:$0xff]
    %v287 = vld [vmem:[%s1 + $0x808] sm:$0xff]
    %v288 = vld [vmem:[%s1 + $0x810] sm:$0xff]
    %v289 = vld [vmem:[%s1 + $0x818] sm:$0xff]
    %v290 = vld [vmem:[%s1 + $0x820] sm:$0xff]
    %v291 = vld [vmem:[%s1 + $0x828] sm:$0xff]
    %v292 = vld [vmem:[%s1 + $0x830] sm:$0xff]
    %v293 = vld [vmem:[%s1 + $0x838] sm:$0xff]
    %v294 = vld [vmem:[%s1 + $0x840] sm:$0xff]
    %v295 = vld [vmem:[%s1 + $0x848] sm:$0xff]
    %v296 = vld [vmem:[%s1 + $0x850] sm:$0xff]
    %v297 = vld [vmem:[%s1 + $0x858] sm:$0xff]
    %v298 = vld [vmem:[%s1 + $0x860] sm:$0xff]
    %v299 = vld [vmem:[%s1 + $0x868] sm:$0xff]
    %v300 = vld [vmem:[%s1 + $0x870] sm:$0xff]
    %v301 = vld [vmem:[%s1 + $0x878] sm:$0xff]
    %v302 = vld [vmem:[%s1 + $0x880] sm:$0xff]
    %v303 = vld [vmem:[%s1 + $0x888] sm:$0xff]
    %v304 = vld [vmem:[%s1 + $0x890] sm:$0xff]
    %v305 = vld [vmem:[%s1 + $0x898] sm:$0xff]
    %v306 = vld [vmem:[%s1 + $0x8a0] sm:$0xff]
    %v307 = vld [vmem:[%s1 + $0x8a8] sm:$0xff]
    %v308 = vld [vmem:[%s1 + $0x8b0] sm:$0xff]
    %v309 = vld [vmem:[%s1 + $0x8b8] sm:$0xff]
    %v310 = vld [vmem:[%s1 + $0x8c0] sm:$0xff]
    %v311 = vld [vmem:[%s1 + $0x8c8] sm:$0xff]
    %v312 = vld [vmem:[%s1 + $0x8d0] sm:$0xff]
    %v313 = vld [vmem:[%s1 + $0x8d8] sm:$0xff]
    %v314 = vld [vmem:[%s1 + $0x8e0] sm:$0xff]
    %v315 = vld [vmem:[%s1 + $0x8e8] sm:$0xff]
    %v316 = vld [vmem:[%s1 + $0x8f0] sm:$0xff]
    %v317 = vld [vmem:[%s1 + $0x8f8] sm:$0xff]
    %v318 = vld [vmem:[%s1 + $0x900] sm:$0xff]
    %v319 = vld [vmem:[%s1 + $0x908] sm:$0xff]
    %v320 = vld [vmem:[%s1 + $0x910] sm:$0xff]
    %v321 = vld [vmem:[%s1 + $0x918] sm:$0xff]
    %v322 = vld [vmem:[%s1 + $0x920] sm:$0xff]
    %v323 = vld [vmem:[%s1 + $0x928] sm:$0xff]
    %v324 = vld [vmem:[%s1 + $0x930] sm:$0xff]
    %v325 = vld [vmem:[%s1 + $0x938] sm:$0xff]
    %v326 = vld [vmem:[%s1 + $0x940] sm:$0xff]
    %v327 = vld [vmem:[%s1 + $0x948] sm:$0xff]
    %v328 = vld [vmem:[%s1 + $0x950] sm:$0xff]
    %v329 = vld [vmem:[%s1 + $0x958] sm:$0xff]
    %v330 = vld [vmem:[%s1 + $0x960] sm:$0xff]
    %v331 = vld [vmem:[%s1 + $0x968] sm:$0xff]
    %v332 = vld [vmem:[%s1 + $0x970] sm:$0xff]
    %v333 = vld [vmem:[%s1 + $0x978] sm:$0xff]
    %v334 = vld [vmem:[%s1 + $0x980] sm:$0xff]
    %v335 = vld [vmem:[%s1 + $0x988] sm:$0xff]
    %v336 = vld [vmem:[%s1 + $0x990] sm:$0xff]
    %v337 = vld [vmem:[%s1 + $0x998] sm:$0xff]
    %v338 = vld [vmem:[%s1 + $0x9a0] sm:$0xff]
    %v339 = vld [vmem:[%s1 + $0x9a8] sm:$0xff]
    %v340 = vld [vmem:[%s1 + $0x9b0] sm:$0xff]
    %v341 = vld [vmem:[%s1 + $0x9b8] sm:$0xff]
    %v342 = vld [vmem:[%s1 + $0x9c0] sm:$0xff]
    %v343 = vld [vmem:[%s1 + $0x9c8] sm:$0xff]
    %v344 = vld [vmem:[%s1 + $0x9d0] sm:$0xff]
    %v345 = vld [vmem:[%s1 + $0x9d8] sm:$0xff]
    %v346 = vld [vmem:[%s1 + $0x9e0] sm:$0xff]
    %v347 = vld [vmem:[%s1 + $0x9e8] sm:$0xff]
    %v348 = vld [vmem:[%s1 + $0x9f0] sm:$0xff]
    %v349 = vld [vmem:[%s1 + $0x9f8] sm:$0xff]
    %v350 = vld [vmem:[%s1 + $0xa00] sm:$0xff]
    %v351 = vld [vmem:[%s1 + $0xa08] sm:$0xff]
    %v352 = vld [vmem:[%s1 + $0xa10] sm:$0xff]
    %v353 = vld [vmem:[%s1 + $0xa18] sm:$0xff]
    %v354 = vld [vmem:[%s1 + $0xa20] sm:$0xff]
    %v355 = vld [vmem:[%s1 + $0xa28] sm:$0xff]
    %v356 = vld [vmem:[%s1 + $0xa30] sm:$0xff]
    %v357 = vld [vmem:[%s1 + $0xa38] sm:$0xff]
    %v358 = vld [vmem:[%s1 + $0xa40] sm:$0xff]
    %v359 = vld [vmem:[%s1 + $0xa48] sm:$0xff]
    %v360 = vld [vmem:[%s1 + $0xa50] sm:$0xff]
    %v361 = vld [vmem:[%s1 + $0xa58] sm:$0xff]
    %v362 = vld [vmem:[%s1 + $0xa60] sm:$0xff]
    %v363 = vld [vmem:[%s1 + $0xa68] sm:$0xff]
    %v364 = vld [vmem:[%s1 + $0xa70] sm:$0xff]
    %v365 = vld [vmem:[%s1 + $0xa78] sm:$0xff]
    %v366 = vld [vmem:[%s1 + $0xa80] sm:$0xff]
    %v367 = vld [vmem:[%s1 + $0xa88] sm:$0xff]
    %v368 = vld [vmem:[%s1 + $0xa90] sm:$0xff]
    %v369 = vld [vmem:[%s1 + $0xa98] sm:$0xff]
    %v370 = vld [vmem:[%s1 + $0xaa0] sm:$0xff]
    %v371 = vld [vmem:[%s1 + $0xaa8] sm:$0xff]
    %v372 = vld [vmem:[%s1 + $0xab0] sm:$0xff]
    %v373 = vld [vmem:[%s1 + $0xab8] sm:$0xff]
    %v374 = vld [vmem:[%s1 + $0xac0] sm:$0xff]
    %v375 = vld [vmem:[%s1 + $0xac8] sm:$0xff]
    %v376 = vld [vmem:[%s1 + $0xad0] sm:$0xff]
    %v377 = vld [vmem:[%s1 + $0xad8] sm:$0xff]
    %v378 = vld [vmem:[%s1 + $0xae0] sm:$0xff]
    %v379 = vld [vmem:[%s1 + $0xae8] sm:$0xff]
    %v380 = vld [vmem:[%s1 + $0xaf0] sm:$0xff]
    %v381 = vld [vmem:[%s1 + $0xaf8] sm:$0xff]
    %v382 = vld [vmem:[%s1 + $0xb00] sm:$0xff]
    %v383 = vld [vmem:[%s1 + $0xb08] sm:$0xff]
    %v384 = vld [vmem:[%s1 + $0xb10] sm:$0xff]
    %v385 = vld [vmem:[%s1 + $0xb18] sm:$0xff]
    %v386 = vld [vmem:[%s1 + $0xb20] sm:$0xff]
    %v387 = vld [vmem:[%s1 + $0xb28] sm:$0xff]
    %v388 = vld [vmem:[%s1 + $0xb30] sm:$0xff]
    %v389 = vld [vmem:[%s1 + $0xb38] sm:$0xff]
    %v390 = vld [vmem:[%s1 + $0xb40] sm:$0xff]
    %v391 = vld [vmem:[%s1 + $0xb48] sm:$0xff]
    %v392 = vld [vmem:[%s1 + $0xb50] sm:$0xff]
    %v393 = vld [vmem:[%s1 + $0xb58] sm:$0xff]
    %v394 = vld [vmem:[%s1 + $0xb60] sm:$0xff]
    %v395 = vld [vmem:[%s1 + $0xb68] sm:$0xff]
    %v396 = vld [vmem:[%s1 + $0xb70] sm:$0xff]
    %v397 = vld [vmem:[%s1 + $0xb78] sm:$0xff]
    %v398 = vld [vmem:[%s1 + $0xb80] sm:$0xff]
    %v399 = vld [vmem:[%s1 + $0xb88] sm:$0xff]
    %v400 = vld [vmem:[%s1 + $0xb90] sm:$0xff]
    %v401 = vld [vmem:[%s1 + $0xb98] sm:$0xff]
    %v402 = vld [vmem:[%s1 + $0xba0] sm:$0xff]
    %v403 = vld [vmem:[%s1 + $0xba8] sm:$0xff]
    %v404 = vld [vmem:[%s1 + $0xbb0] sm:$0xff]
    %v405 = vld [vmem:[%s1 + $0xbb8] sm:$0xff]
    %v406 = vld [vmem:[%s1 + $0xbc0] sm:$0xff]
    %v407 = vld [vmem:[%s1 + $0xbc8] sm:$0xff]
    %v408 = vld [vmem:[%s1 + $0xbd0] sm:$0xff]
    %v409 = vld [vmem:[%s1 + $0xbd8] sm:$0xff]
    %v410 = vld [vmem:[%s1 + $0xbe0] sm:$0xff]
    %v411 = vld [vmem:[%s1 + $0xbe8] sm:$0xff]
    %v412 = vld [vmem:[%s1 + $0xbf0] sm:$0xff]
    %v413 = vld [vmem:[%s1 + $0xbf8] sm:$0xff]
    %v414 = vld [vmem:[%s1 + $0xc00] sm:$0xff]
    %v415 = vld [vmem:[%s1 + $0xc08] sm:$0xff]
    %v416 = vld [vmem:[%s1 + $0xc10] sm:$0xff]
    %v417 = vld [vmem:[%s1 + $0xc18] sm:$0xff]
    %v418 = vld [vmem:[%s1 + $0xc20] sm:$0xff]
    %v419 = vld [vmem:[%s1 + $0xc28] sm:$0xff]
    %v420 = vld [vmem:[%s1 + $0xc30] sm:$0xff]
    %v421 = vld [vmem:[%s1 + $0xc38] sm:$0xff]
    %v422 = vld [vmem:[%s1 + $0xc40] sm:$0xff]
    %v423 = vld [vmem:[%s1 + $0xc48] sm:$0xff]
    %v424 = vld [vmem:[%s1 + $0xc50] sm:$0xff]
    %v425 = vld [vmem:[%s1 + $0xc58] sm:$0xff]
    %v426 = vld [vmem:[%s1 + $0xc60] sm:$0xff]
    %v427 = vld [vmem:[%s1 + $0xc68] sm:$0xff]
    %v428 = vld [vmem:[%s1 + $0xc70] sm:$0xff]
    %v429 = vld [vmem:[%s1 + $0xc78] sm:$0xff]
    %v430 = vld [vmem:[%s1 + $0xc80] sm:$0xff]
    %v431 = vld [vmem:[%s1 + $0xc88] sm:$0xff]
    %v432 = vld [vmem:[%s1 + $0xc90] sm:$0xff]
    %v433 = vld [vmem:[%s1 + $0xc98] sm:$0xff]
    %v434 = vld [vmem:[%s1 + $0xca0] sm:$0xff]
    %v435 = vld [vmem:[%s1 + $0xca8] sm:$0xff]
    %v436 = vld [vmem:[%s1 + $0xcb0] sm:$0xff]
    %v437 = vld [vmem:[%s1 + $0xcb8] sm:$0xff]
    %v438 = vld [vmem:[%s1 + $0xcc0] sm:$0xff]
    %v439 = vld [vmem:[%s1 + $0xcc8] sm:$0xff]
    %v440 = vld [vmem:[%s1 + $0xcd0] sm:$0xff]
    %v441 = vld [vmem:[%s1 + $0xcd8] sm:$0xff]
    %v442 = vld [vmem:[%s1 + $0xce0] sm:$0xff]
    %v443 = vld [vmem:[%s1 + $0xce8] sm:$0xff]
    %v444 = vld [vmem:[%s1 + $0xcf0] sm:$0xff]
    %v445 = vld [vmem:[%s1 + $0xcf8] sm:$0xff]
    %v446 = vld [vmem:[%s1 + $0xd00] sm:$0xff]
    %v447 = vld [vmem:[%s1 + $0xd08] sm:$0xff]
    %v448 = vld [vmem:[%s1 + $0xd10] sm:$0xff]
    %v449 = vld [vmem:[%s1 + $0xd18] sm:$0xff]
    %v450 = vld [vmem:[%s1 + $0xd20] sm:$0xff]
    %v451 = vld [vmem:[%s1 + $0xd28] sm:$0xff]
    %v452 = vld [vmem:[%s1 + $0xd30] sm:$0xff]
    %v453 = vld [vmem:[%s1 + $0xd38] sm:$0xff]
    %v454 = vld [vmem:[%s1 + $0xd40] sm:$0xff]
    %v455 = vld [vmem:[%s1 + $0xd48] sm:$0xff]
    %v456 = vld [vmem:[%s1 + $0xd50] sm:$0xff]
    %v457 = vld [vmem:[%s1 + $0xd58] sm:$0xff]
    %v458 = vld [vmem:[%s1 + $0xd60] sm:$0xff]
    %v459 = vld [vmem:[%s1 + $0xd68] sm:$0xff]
    %v460 = vld [vmem:[%s1 + $0xd70] sm:$0xff]
    %v461 = vld [vmem:[%s1 + $0xd78] sm:$0xff]
    %v462 = vld [vmem:[%s1 + $0xd80] sm:$0xff]
    %v463 = vld [vmem:[%s1 + $0xd88] sm:$0xff]
    %v464 = vld [vmem:[%s1 + $0xd90] sm:$0xff]
    %v465 = vld [vmem:[%s1 + $0xd98] sm:$0xff]
    %v466 = vld [vmem:[%s1 + $0xda0] sm:$0xff]
    %v467 = vld [vmem:[%s1 + $0xda8] sm:$0xff]
    %v468 = vld [vmem:[%s1 + $0xdb0] sm:$0xff]
    %v469 = vld [vmem:[%s1 + $0xdb8] sm:$0xff]
    %v470 = vld [vmem:[%s1 + $0xdc0] sm:$0xff]
    %v471 = vld [vmem:[%s1 + $0xdc8] sm:$0xff]
    %v472 = vld [vmem:[%s1 + $0xdd0] sm:$0xff]
    %v473 = vld [vmem:[%s1 + $0xdd8] sm:$0xff]
    %v474 = vld [vmem:[%s1 + $0xde0] sm:$0xff]
    %v475 = vld [vmem:[%s1 + $0xde8] sm:$0xff]
    %v476 = vld [vmem:[%s1 + $0xdf0] sm:$0xff]
    %v477 = vld [vmem:[%s1 + $0xdf8] sm:$0xff]
    %v478 = vld [vmem:[%s1 + $0xe00] sm:$0xff]
    %v479 = vld [vmem:[%s1 + $0xe08] sm:$0xff]
    %v480 = vld [vmem:[%s1 + $0xe10] sm:$0xff]
    %v481 = vld [vmem:[%s1 + $0xe18] sm:$0xff]
    %v482 = vld [vmem:[%s1 + $0xe20] sm:$0xff]
    %v483 = vld [vmem:[%s1 + $0xe28] sm:$0xff]
    %v484 = vld [vmem:[%s1 + $0xe30] sm:$0xff]
    %v485 = vld [vmem:[%s1 + $0xe38] sm:$0xff]
    %v486 = vld [vmem:[%s1 + $0xe40] sm:$0xff]
    %v487 = vld [vmem:[%s1 + $0xe48] sm:$0xff]
    %v488 = vld [vmem:[%s1 + $0xe50] sm:$0xff]
    %v489 = vld [vmem:[%s1 + $0xe58] sm:$0xff]
    %v490 = vld [vmem:[%s1 + $0xe60] sm:$0xff]
    %v491 = vld [vmem:[%s1 + $0xe68] sm:$0xff]
    %v492 = vld [vmem:[%s1 + $0xe70] sm:$0xff]
    %v493 = vld [vmem:[%s1 + $0xe78] sm:$0xff]
    %v494 = vld [vmem:[%s1 + $0xe80] sm:$0xff]
    %v495 = vld [vmem:[%s1 + $0xe88] sm:$0xff]
    %v496 = vld [vmem:[%s1 + $0xe90] sm:$0xff]
    %v497 = vld [vmem:[%s1 + $0xe98] sm:$0xff]
    %v498 = vld [vmem:[%s1 + $0xea0] sm:$0xff]
    %v499 = vld [vmem:[%s1 + $0xea8] sm:$0xff]
    %v500 = vld [vmem:[%s1 + $0xeb0] sm:$0xff]
    %v501 = vld [vmem:[%s1 + $0xeb8] sm:$0xff]
    %v502 = vld [vmem:[%s1 + $0xec0] sm:$0xff]
    %v503 = vld [vmem:[%s1 + $0xec8] sm:$0xff]
    %v504 = vld [vmem:[%s1 + $0xed0] sm:$0xff]
    %v505 = vld [vmem:[%s1 + $0xed8] sm:$0xff]
    %v506 = vld [vmem:[%s1 + $0xee0] sm:$0xff]
    %v507 = vld [vmem:[%s1 + $0xee8] sm:$0xff]
    %v508 = vld [vmem:[%s1 + $0xef0] sm:$0xff]
    %v509 = vld [vmem:[%s1 + $0xef8] sm:$0xff]
    %v510 = vld [vmem:[%s1 + $0xf00] sm:$0xff]
    %v511 = vld [vmem:[%s1 + $0xf08] sm:$0xff]
    %v512 = vld [vmem:[%s1 + $0xf10] sm:$0xff]
    %v513 = vld [vmem:[%s1 + $0xf18] sm:$0xff]
    %v514 = vld [vmem:[%s1 + $0xf20] sm:$0xff]
    %v515 = vld [vmem:[%s1 + $0xf28] sm:$0xff]
    %v516 = vld [vmem:[%s1 + $0xf30] sm:$0xff]
    %v517 = vld [vmem:[%s1 + $0xf38] sm:$0xff]
    %v518 = vld [vmem:[%s1 + $0xf40] sm:$0xff]
    %v519 = vld [vmem:[%s1 + $0xf48] sm:$0xff]
    %v520 = vld [vmem:[%s1 + $0xf50] sm:$0xff]
    %v521 = vld [vmem:[%s1 + $0xf58] sm:$0xff]
    %v522 = vld [vmem:[%s1 + $0xf60] sm:$0xff]
    %v523 = vld [vmem:[%s1 + $0xf68] sm:$0xff]
    %v524 = vld [vmem:[%s1 + $0xf70] sm:$0xff]
    %v525 = vld [vmem:[%s1 + $0xf78] sm:$0xff]
    %v526 = vld [vmem:[%s1 + $0xf80] sm:$0xff]
    %v527 = vld [vmem:[%s1 + $0xf88] sm:$0xff]
    %v528 = vld [vmem:[%s1 + $0xf90] sm:$0xff]
    %v529 = vld [vmem:[%s1 + $0xf98] sm:$0xff]
    %v530 = vld [vmem:[%s1 + $0xfa0] sm:$0xff]
    %v531 = vld [vmem:[%s1 + $0xfa8] sm:$0xff]
    %v532 = vld [vmem:[%s1 + $0xfb0] sm:$0xff]
    %v533 = vld [vmem:[%s1 + $0xfb8] sm:$0xff]
    %v534 = vld [vmem:[%s1 + $0xfc0] sm:$0xff]
    %v535 = vld [vmem:[%s1 + $0xfc8] sm:$0xff]
    %v536 = vld [vmem:[%s1 + $0xfd0] sm:$0xff]
    %v537 = vld [vmem:[%s1 + $0xfd8] sm:$0xff]
    %v538 = vld [vmem:[%s1 + $0xfe0] sm:$0xff]
    %v539 = vld [vmem:[%s1 + $0xfe8] sm:$0xff]
    %v540 = vld [vmem:[%s1 + $0xff0] sm:$0xff]
    %v541 = vld [vmem:[%s1 + $0xff8] sm:$0xff]
    %v542 = vld [vmem:[%s1 + $0x1000] sm:$0xff]
    %v543 = vld [vmem:[%s1 + $0x1008] sm:$0xff]
    %v544 = vld [vmem:[%s1 + $0x1010] sm:$0xff]
    %v545 = vld [vmem:[%s1 + $0x1018] sm:$0xff]
    %v546 = vld [vmem:[%s1 + $0x1020] sm:$0xff]
    %v547 = vld [vmem:[%s1 + $0x1028] sm:$0xff]
    %v548 = vld [vmem:[%s1 + $0x1030] sm:$0xff]
    %v549 = vld [vmem:[%s1 + $0x1038] sm:$0xff]
    %v550 = vld [vmem:[%s1 + $0x1040] sm:$0xff]
    %v551 = vld [vmem:[%s1 + $0x1048] sm:$0xff]
    %v552 = vld [vmem:[%s1 + $0x1050] sm:$0xff]
    %v553 = vld [vmem:[%s1 + $0x1058] sm:$0xff]
    %v554 = vld [vmem:[%s1 + $0x1060] sm:$0xff]
    %v555 = vld [vmem:[%s1 + $0x1068] sm:$0xff]
    %v556 = vld [vmem:[%s1 + $0x1070] sm:$0xff]
    %v557 = vld [vmem:[%s1 + $0x1078] sm:$0xff]
    %v558 = vld [vmem:[%s1 + $0x1080] sm:$0xff]
    %v559 = vld [vmem:[%s1 + $0x1088] sm:$0xff]
    %v560 = vld [vmem:[%s1 + $0x1090] sm:$0xff]
    %v561 = vld [vmem:[%s1 + $0x1098] sm:$0xff]
    %v562 = vld [vmem:[%s1 + $0x10a0] sm:$0xff]
    %v563 = vld [vmem:[%s1 + $0x10a8] sm:$0xff]
    %v564 = vld [vmem:[%s1 + $0x10b0] sm:$0xff]
    %v565 = vld [vmem:[%s1 + $0x10b8] sm:$0xff]
    %v566 = vld [vmem:[%s1 + $0x10c0] sm:$0xff]
    %v567 = vld [vmem:[%s1 + $0x10c8] sm:$0xff]
    %v568 = vld [vmem:[%s1 + $0x10d0] sm:$0xff]
    %v569 = vld [vmem:[%s1 + $0x10d8] sm:$0xff]
    %v570 = vld [vmem:[%s1 + $0x10e0] sm:$0xff]
    %v571 = vld [vmem:[%s1 + $0x10e8] sm:$0xff]
    %v572 = vld [vmem:[%s1 + $0x10f0] sm:$0xff]
    %v573 = vld [vmem:[%s1 + $0x10f8] sm:$0xff]
    %v574 = vld [vmem:[%s1 + $0x1100] sm:$0xff]
    %v575 = vld [vmem:[%s1 + $0x1108] sm:$0xff]
    %v576 = vld [vmem:[%s1 + $0x1110] sm:$0xff]
    %v577 = vld [vmem:[%s1 + $0x1118] sm:$0xff]
    %v578 = vld [vmem:[%s1 + $0x1120] sm:$0xff]
    %v579 = vld [vmem:[%s1 + $0x1128] sm:$0xff]
    %v580 = vld [vmem:[%s1 + $0x1130] sm:$0xff]
    %v581 = vld [vmem:[%s1 + $0x1138] sm:$0xff]
    %v582 = vld [vmem:[%s1 + $0x1140] sm:$0xff]
    %v583 = vld [vmem:[%s1 + $0x1148] sm:$0xff]
    %v584 = vld [vmem:[%s1 + $0x1150] sm:$0xff]
    %v585 = vld [vmem:[%s1 + $0x1158] sm:$0xff]
    %v586 = vld [vmem:[%s1 + $0x1160] sm:$0xff]
    %v587 = vld [vmem:[%s1 + $0x1168] sm:$0xff]
    %v588 = vld [vmem:[%s1 + $0x1170] sm:$0xff]
    %v589 = vld [vmem:[%s1 + $0x1178] sm:$0xff]
    %v590 = vld [vmem:[%s1 + $0x1180] sm:$0xff]
    %v591 = vld [vmem:[%s1 + $0x1188] sm:$0xff]
    %v592 = vld [vmem:[%s1 + $0x1190] sm:$0xff]
    %v593 = vld [vmem:[%s1 + $0x1198] sm:$0xff]
    %v594 = vld [vmem:[%s1 + $0x11a0] sm:$0xff]
    %v595 = vld [vmem:[%s1 + $0x11a8] sm:$0xff]
    %v596 = vld [vmem:[%s1 + $0x11b0] sm:$0xff]
    %v597 = vld [vmem:[%s1 + $0x11b8] sm:$0xff]
    %v598 = vld [vmem:[%s1 + $0x11c0] sm:$0xff]
    %v599 = vld [vmem:[%s1 + $0x11c8] sm:$0xff]
    %v600 = vld [vmem:[%s1 + $0x11d0] sm:$0xff]
    %v601 = vld [vmem:[%s1 + $0x11d8] sm:$0xff]
    %v602 = vld [vmem:[%s1 + $0x11e0] sm:$0xff]
    %v603 = vld [vmem:[%s1 + $0x11e8] sm:$0xff]
    %v604 = vld [vmem:[%s1 + $0x11f0] sm:$0xff]
    %v605 = vld [vmem:[%s1 + $0x11f8] sm:$0xff]
    %v606 = vld [vmem:[%s2] sm:$0x1]
    %v608 = vlaneseq
    %v609 = vshrl.u32 %v608, 7
    %v610 = vsub.s32 0, %v609
    %v611 = vrot.slane %v606, %v610
    %v622 = vcombine.high %v21, %v21
    %v624 = vunpack.c.l.s4 1983009808
    %v625 = vunpack.c.0.s8 %v624
    %v626 = vlaneseq
    %v627 = vshrl.u32 %v626, 7
    %v628 = vsub.s32 %v625, %v627
    %v629 = vrot.slane %v21, %v628
    %v631 = vunpack.c.l.s4 1983009808
    %v632 = vunpack.c.0.s8 %v631
    %v633 = vlaneseq
    %v634 = vshrl.u32 %v633, 7
    %v635 = vsub.s32 %v632, %v634
    %v636 = vrot.slane %v622, %v635
    %v637 = vcombine.high %v629, %v629
    %v638 = vcombine.high %v636, %v636
    %v639 = vcombine.high %v22, %v22
    %v641 = vunpack.c.l.s4 1983009808
    %v642 = vunpack.c.0.s8 %v641
    %v643 = vlaneseq
    %v644 = vshrl.u32 %v643, 7
    %v645 = vsub.s32 %v642, %v644
    %v646 = vrot.slane %v22, %v645
    %v648 = vunpack.c.l.s4 1983009808
    %v649 = vunpack.c.0.s8 %v648
    %v650 = vlaneseq
    %v651 = vshrl.u32 %v650, 7
    %v652 = vsub.s32 %v649, %v651
    %v653 = vrot.slane %v639, %v652
    %v654 = vcombine.high %v646, %v646
    %v655 = vcombine.high %v653, %v653
    %v656 = vcombine.high %v23, %v23
    %v658 = vunpack.c.l.s4 1983009808
    %v659 = vunpack.c.0.s8 %v658
    %v660 = vlaneseq
    %v661 = vshrl.u32 %v660, 7
    %v662 = vsub.s32 %v659, %v661
    %v663 = vrot.slane %v23, %v662
    %v665 = vunpack.c.l.s4 1983009808
    %v666 = vunpack.c.0.s8 %v665
    %v667 = vlaneseq
    %v668 = vshrl.u32 %v667, 7
    %v669 = vsub.s32 %v666, %v668
    %v670 = vrot.slane %v656, %v669
    %v671 = vcombine.high %v663, %v663
    %v672 = vcombine.high %v670, %v670
    %v673 = vcombine.high %v24, %v24
    %v675 = vunpack.c.l.s4 1983009808
    %v676 = vunpack.c.0.s8 %v675
    %v677 = vlaneseq
    %v678 = vshrl.u32 %v677, 7
    %v679 = vsub.s32 %v676, %v678
    %v680 = vrot.slane %v24, %v679
    %v682 = vunpack.c.l.s4 1983009808
    %v683 = vunpack.c.0.s8 %v682
    %v684 = vlaneseq
    %v685 = vshrl.u32 %v684, 7
    %v686 = vsub.s32 %v683, %v685
    %v687 = vrot.slane %v673, %v686
    %v688 = vcombine.high %v680, %v680
    %v689 = vcombine.high %v687, %v687
    %v690 = vcombine.high %v25, %v25
    %v692 = vunpack.c.l.s4 1983009808
    %v693 = vunpack.c.0.s8 %v692
    %v694 = vlaneseq
    %v695 = vshrl.u32 %v694, 7
    %v696 = vsub.s32 %v693, %v695
    %v697 = vrot.slane %v25, %v696
    %v699 = vunpack.c.l.s4 1983009808
    %v700 = vunpack.c.0.s8 %v699
    %v701 = vlaneseq
    %v702 = vshrl.u32 %v701, 7
    %v703 = vsub.s32 %v700, %v702
    %v704 = vrot.slane %v690, %v703
    %v705 = vcombine.high %v697, %v697
    %v706 = vcombine.high %v704, %v704
    %v707 = vcombine.high %v26, %v26
    %v709 = vunpack.c.l.s4 1983009808
    %v710 = vunpack.c.0.s8 %v709
    %v711 = vlaneseq
    %v712 = vshrl.u32 %v711, 7
    %v713 = vsub.s32 %v710, %v712
    %v714 = vrot.slane %v26, %v713
    %v716 = vunpack.c.l.s4 1983009808
    %v717 = vunpack.c.0.s8 %v716
    %v718 = vlaneseq
    %v719 = vshrl.u32 %v718, 7
    %v720 = vsub.s32 %v717, %v719
    %v721 = vrot.slane %v707, %v720
    %v722 = vcombine.high %v714, %v714
    %v723 = vcombine.high %v721, %v721
    %v724 = vcombine.high %v27, %v27
    %v726 = vunpack.c.l.s4 1983009808
    %v727 = vunpack.c.0.s8 %v726
    %v728 = vlaneseq
    %v729 = vshrl.u32 %v728, 7
    %v730 = vsub.s32 %v727, %v729
    %v731 = vrot.slane %v27, %v730
    %v733 = vunpack.c.l.s4 1983009808
    %v734 = vunpack.c.0.s8 %v733
    %v735 = vlaneseq
    %v736 = vshrl.u32 %v735, 7
    %v737 = vsub.s32 %v734, %v736
    %v738 = vrot.slane %v724, %v737
    %v739 = vcombine.high %v731, %v731
    %v740 = vcombine.high %v738, %v738
    %v741 = vcombine.high %v28, %v28
    %v743 = vunpack.c.l.s4 1983009808
    %v744 = vunpack.c.0.s8 %v743
    %v745 = vlaneseq
    %v746 = vshrl.u32 %v745, 7
    %v747 = vsub.s32 %v744, %v746
    %v748 = vrot.slane %v28, %v747
    %v750 = vunpack.c.l.s4 1983009808
    %v751 = vunpack.c.0.s8 %v750
    %v752 = vlaneseq
    %v753 = vshrl.u32 %v752, 7
    %v754 = vsub.s32 %v751, %v753
    %v755 = vrot.slane %v741, %v754
    %v756 = vcombine.high %v748, %v748
    %v757 = vcombine.high %v755, %v755
    %v758 = vcombine.high %v29, %v29
    %v760 = vunpack.c.l.s4 1983009808
    %v761 = vunpack.c.0.s8 %v760
    %v762 = vlaneseq
    %v763 = vshrl.u32 %v762, 7
    %v764 = vsub.s32 %v761, %v763
    %v765 = vrot.slane %v29, %v764
    %v767 = vunpack.c.l.s4 1983009808
    %v768 = vunpack.c.0.s8 %v767
    %v769 = vlaneseq
    %v770 = vshrl.u32 %v769, 7
    %v771 = vsub.s32 %v768, %v770
    %v772 = vrot.slane %v758, %v771
    %v773 = vcombine.high %v765, %v765
    %v774 = vcombine.high %v772, %v772
    %811 = vmatprep.subr.mxu0 0.0
    %812 = vmatpush1.msra.mxu0 %v30
    %813 = vmatprep.subr.mxu0 0.0
    %814 = vmatpush1.msra.mxu0 %v31
    %815 = vmatprep.subr.mxu0 0.0
    %816 = vmatpush1.msra.mxu0 %v32
    %817 = vmatprep.subr.mxu0 0.0
    %818 = vmatpush1.msra.mxu0 %v33
    %819 = vmatprep.subr.mxu0 0.0
    %820 = vmatpush1.msra.mxu0 %v34
    %821 = vmatprep.subr.mxu0 0.0
    %822 = vmatpush1.msra.mxu0 %v35
    %823 = vmatprep.subr.mxu0 0.0
    %824 = vmatpush1.msra.mxu0 %v36
    %825 = vmatprep.subr.mxu0 0.0
    %826 = vmatpush1.msra.mxu0 %v37
    %827 = vmatprep.subr.mxu0 0.0
    %828 = vmatpush1.msra.mxu0 %v38
    %829 = vmatprep.subr.mxu0 0.0
    %830 = vmatpush1.msra.mxu0 %v39
    %831 = vmatprep.subr.mxu0 0.0
    %832 = vmatpush1.msra.mxu0 %v40
    %833 = vmatprep.subr.mxu0 0.0
    %834 = vmatpush1.msra.mxu0 %v41
    %835 = vmatprep.subr.mxu0 0.0
    %836 = vmatpush1.msra.mxu0 %v42
    %837 = vmatprep.subr.mxu0 0.0
    %838 = vmatpush1.msra.mxu0 %v43
    %839 = vmatprep.subr.mxu0 0.0
    %840 = vmatpush1.msra.mxu0 %v44
    %841 = vmatprep.subr.mxu0 0.0
    %842 = vmatpush1.msra.mxu0 %v45
    %843 = vmatprep.subr.mxu0 0.0
    %844 = vmatpush1.msra.mxu0 %v46
    %845 = vmatprep.subr.mxu0 0.0
    %846 = vmatpush1.msra.mxu0 %v47
    %847 = vmatprep.subr.mxu0 0.0
    %848 = vmatpush1.msra.mxu0 %v48
    %849 = vmatprep.subr.mxu0 0.0
    %850 = vmatpush1.msra.mxu0 %v49
    %851 = vmatprep.subr.mxu0 0.0
    %852 = vmatpush1.msra.mxu0 %v50
    %853 = vmatprep.subr.mxu0 0.0
    %854 = vmatpush1.msra.mxu0 %v51
    %855 = vmatprep.subr.mxu0 0.0
    %856 = vmatpush1.msra.mxu0 %v52
    %857 = vmatprep.subr.mxu0 0.0
    %858 = vmatpush1.msra.mxu0 %v53
    %859 = vmatprep.subr.mxu0 0.0
    %860 = vmatpush1.msra.mxu0 %v54
    %861 = vmatprep.subr.mxu0 0.0
    %862 = vmatpush1.msra.mxu0 %v55
    %863 = vmatprep.subr.mxu0 0.0
    %864 = vmatpush1.msra.mxu0 %v56
    %865 = vmatprep.subr.mxu0 0.0
    %866 = vmatpush1.msra.mxu0 %v57
    %867 = vmatprep.subr.mxu0 0.0
    %868 = vmatpush1.msra.mxu0 %v58
    %869 = vmatprep.subr.mxu0 0.0
    %870 = vmatpush1.msra.mxu0 %v59
    %871 = vmatprep.subr.mxu0 0.0
    %872 = vmatpush1.msra.mxu0 %v60
    %873 = vmatprep.subr.mxu0 0.0
    %874 = vmatpush1.msra.mxu0 %v61
    %875 = vmatprep.mubr.f32.mxu0 %v637
    %876 = vmatmul.mubr.f32.gmra.mrb[0].mxu0 %v629
    %v877 = vpop.f32.mrb[0].mxu0
    %v878 = vadd.f32 %v611, %v877
    %v879 = vpop.f32.mrb[0].mxu0
    %880 = vdwg.mxu0
    %881 = vmatprep.subr.mxu0 0.0
    %882 = vmatpush1.msra.mxu0 %v62
    %883 = vmatprep.subr.mxu0 0.0
    %884 = vmatpush1.msra.mxu0 %v63
    %885 = vmatprep.subr.mxu0 0.0
    %886 = vmatpush1.msra.mxu0 %v64
    %887 = vmatprep.subr.mxu0 0.0
    %888 = vmatpush1.msra.mxu0 %v65
    %889 = vmatprep.subr.mxu0 0.0
    %890 = vmatpush1.msra.mxu0 %v66
    %891 = vmatprep.subr.mxu0 0.0
    %892 = vmatpush1.msra.mxu0 %v67
    %893 = vmatprep.subr.mxu0 0.0
    %894 = vmatpush1.msra.mxu0 %v68
    %895 = vmatprep.subr.mxu0 0.0
    %896 = vmatpush1.msra.mxu0 %v69
    %897 = vmatprep.subr.mxu0 0.0
    %898 = vmatpush1.msra.mxu0 %v70
    %899 = vmatprep.subr.mxu0 0.0
    %900 = vmatpush1.msra.mxu0 %v71
    %901 = vmatprep.subr.mxu0 0.0
    %902 = vmatpush1.msra.mxu0 %v72
    %903 = vmatprep.subr.mxu0 0.0
    %904 = vmatpush1.msra.mxu0 %v73
    %905 = vmatprep.subr.mxu0 0.0
    %906 = vmatpush1.msra.mxu0 %v74
    %907 = vmatprep.subr.mxu0 0.0
    %908 = vmatpush1.msra.mxu0 %v75
    %909 = vmatprep.subr.mxu0 0.0
    %910 = vmatpush1.msra.mxu0 %v76
    %911 = vmatprep.subr.mxu0 0.0
    %912 = vmatpush1.msra.mxu0 %v77
    %913 = vmatprep.subr.mxu0 0.0
    %914 = vmatpush1.msra.mxu0 %v78
    %915 = vmatprep.subr.mxu0 0.0
    %916 = vmatpush1.msra.mxu0 %v79
    %917 = vmatprep.subr.mxu0 0.0
    %918 = vmatpush1.msra.mxu0 %v80
    %919 = vmatprep.subr.mxu0 0.0
    %920 = vmatpush1.msra.mxu0 %v81
    %921 = vmatprep.subr.mxu0 0.0
    %922 = vmatpush1.msra.mxu0 %v82
    %923 = vmatprep.subr.mxu0 0.0
    %924 = vmatpush1.msra.mxu0 %v83
    %925 = vmatprep.subr.mxu0 0.0
    %926 = vmatpush1.msra.mxu0 %v84
    %927 = vmatprep.subr.mxu0 0.0
    %928 = vmatpush1.msra.mxu0 %v85
    %929 = vmatprep.subr.mxu0 0.0
    %930 = vmatpush1.msra.mxu0 %v86
    %931 = vmatprep.subr.mxu0 0.0
    %932 = vmatpush1.msra.mxu0 %v87
    %933 = vmatprep.subr.mxu0 0.0
    %934 = vmatpush1.msra.mxu0 %v88
    %935 = vmatprep.subr.mxu0 0.0
    %936 = vmatpush1.msra.mxu0 %v89
    %937 = vmatprep.subr.mxu0 0.0
    %938 = vmatpush1.msra.mxu0 %v90
    %939 = vmatprep.subr.mxu0 0.0
    %940 = vmatpush1.msra.mxu0 %v91
    %941 = vmatprep.subr.mxu0 0.0
    %942 = vmatpush1.msra.mxu0 %v92
    %943 = vmatprep.subr.mxu0 0.0
    %944 = vmatpush1.msra.mxu0 %v93
    %945 = vmatprep.mubr.f32.mxu0 %v638
    %946 = vmatmul.mubr.f32.gmra.mrb[0].mxu0 %v636
    %v947 = vpop.f32.mrb[0].mxu0
    %v948 = vadd.f32 %v878, %v947
    %v949 = vpop.f32.mrb[0].mxu0
    %950 = vdwg.mxu0
    %951 = vmatprep.subr.mxu0 0.0
    %952 = vmatpush1.msra.mxu0 %v94
    %953 = vmatprep.subr.mxu0 0.0
    %954 = vmatpush1.msra.mxu0 %v95
    %955 = vmatprep.subr.mxu0 0.0
    %956 = vmatpush1.msra.mxu0 %v96
    %957 = vmatprep.subr.mxu0 0.0
    %958 = vmatpush1.msra.mxu0 %v97
    %959 = vmatprep.subr.mxu0 0.0
    %960 = vmatpush1.msra.mxu0 %v98
    %961 = vmatprep.subr.mxu0 0.0
    %962 = vmatpush1.msra.mxu0 %v99
    %963 = vmatprep.subr.mxu0 0.0
    %964 = vmatpush1.msra.mxu0 %v100
    %965 = vmatprep.subr.mxu0 0.0
    %966 = vmatpush1.msra.mxu0 %v101
    %967 = vmatprep.subr.mxu0 0.0
    %968 = vmatpush1.msra.mxu0 %v102
    %969 = vmatprep.subr.mxu0 0.0
    %970 = vmatpush1.msra.mxu0 %v103
    %971 = vmatprep.subr.mxu0 0.0
    %972 = vmatpush1.msra.mxu0 %v104
    %973 = vmatprep.subr.mxu0 0.0
    %974 = vmatpush1.msra.mxu0 %v105
    %975 = vmatprep.subr.mxu0 0.0
    %976 = vmatpush1.msra.mxu0 %v106
    %977 = vmatprep.subr.mxu0 0.0
    %978 = vmatpush1.msra.mxu0 %v107
    %979 = vmatprep.subr.mxu0 0.0
    %980 = vmatpush1.msra.mxu0 %v108
    %981 = vmatprep.subr.mxu0 0.0
    %982 = vmatpush1.msra.mxu0 %v109
    %983 = vmatprep.subr.mxu0 0.0
    %984 = vmatpush1.msra.mxu0 %v110
    %985 = vmatprep.subr.mxu0 0.0
    %986 = vmatpush1.msra.mxu0 %v111
    %987 = vmatprep.subr.mxu0 0.0
    %988 = vmatpush1.msra.mxu0 %v112
    %989 = vmatprep.subr.mxu0 0.0
    %990 = vmatpush1.msra.mxu0 %v113
    %991 = vmatprep.subr.mxu0 0.0
    %992 = vmatpush1.msra.mxu0 %v114
    %993 = vmatprep.subr.mxu0 0.0
    %994 = vmatpush1.msra.mxu0 %v115
    %995 = vmatprep.subr.mxu0 0.0
    %996 = vmatpush1.msra.mxu0 %v116
    %997 = vmatprep.subr.mxu0 0.0
    %998 = vmatpush1.msra.mxu0 %v117
    %999 = vmatprep.subr.mxu0 0.0
    %1000 = vmatpush1.msra.mxu0 %v118
    %1001 = vmatprep.subr.mxu0 0.0
    %1002 = vmatpush1.msra.mxu0 %v119
    %1003 = vmatprep.subr.mxu0 0.0
    %1004 = vmatpush1.msra.mxu0 %v120
    %1005 = vmatprep.subr.mxu0 0.0
    %1006 = vmatpush1.msra.mxu0 %v121
    %1007 = vmatprep.subr.mxu0 0.0
    %1008 = vmatpush1.msra.mxu0 %v122
    %1009 = vmatprep.subr.mxu0 0.0
    %1010 = vmatpush1.msra.mxu0 %v123
    %1011 = vmatprep.subr.mxu0 0.0
    %1012 = vmatpush1.msra.mxu0 %v124
    %1013 = vmatprep.subr.mxu0 0.0
    %1014 = vmatpush1.msra.mxu0 %v125
    %1015 = vmatprep.mubr.f32.mxu0 %v654
    %1016 = vmatmul.mubr.f32.gmra.mrb[0].mxu0 %v646
    %v1017 = vpop.f32.mrb[0].mxu0
    %v1018 = vadd.f32 %v948, %v1017
    %v1019 = vpop.f32.mrb[0].mxu0
    %1020 = vdwg.mxu0
    %1021 = vmatprep.subr.mxu0 0.0
    %1022 = vmatpush1.msra.mxu0 %v126
    %1023 = vmatprep.subr.mxu0 0.0
    %1024 = vmatpush1.msra.mxu0 %v127
    %1025 = vmatprep.subr.mxu0 0.0
    %1026 = vmatpush1.msra.mxu0 %v128
    %1027 = vmatprep.subr.mxu0 0.0
    %1028 = vmatpush1.msra.mxu0 %v129
    %1029 = vmatprep.subr.mxu0 0.0
    %1030 = vmatpush1.msra.mxu0 %v130
    %1031 = vmatprep.subr.mxu0 0.0
    %1032 = vmatpush1.msra.mxu0 %v131
    %1033 = vmatprep.subr.mxu0 0.0
    %1034 = vmatpush1.msra.mxu0 %v132
    %1035 = vmatprep.subr.mxu0 0.0
    %1036 = vmatpush1.msra.mxu0 %v133
    %1037 = vmatprep.subr.mxu0 0.0
    %1038 = vmatpush1.msra.mxu0 %v134
    %1039 = vmatprep.subr.mxu0 0.0
    %1040 = vmatpush1.msra.mxu0 %v135
    %1041 = vmatprep.subr.mxu0 0.0
    %1042 = vmatpush1.msra.mxu0 %v136
    %1043 = vmatprep.subr.mxu0 0.0
    %1044 = vmatpush1.msra.mxu0 %v137
    %1045 = vmatprep.subr.mxu0 0.0
    %1046 = vmatpush1.msra.mxu0 %v138
    %1047 = vmatprep.subr.mxu0 0.0
    %1048 = vmatpush1.msra.mxu0 %v139
    %1049 = vmatprep.subr.mxu0 0.0
    %1050 = vmatpush1.msra.mxu0 %v140
    %1051 = vmatprep.subr.mxu0 0.0
    %1052 = vmatpush1.msra.mxu0 %v141
    %1053 = vmatprep.subr.mxu0 0.0
    %1054 = vmatpush1.msra.mxu0 %v142
    %1055 = vmatprep.subr.mxu0 0.0
    %1056 = vmatpush1.msra.mxu0 %v143
    %1057 = vmatprep.subr.mxu0 0.0
    %1058 = vmatpush1.msra.mxu0 %v144
    %1059 = vmatprep.subr.mxu0 0.0
    %1060 = vmatpush1.msra.mxu0 %v145
    %1061 = vmatprep.subr.mxu0 0.0
    %1062 = vmatpush1.msra.mxu0 %v146
    %1063 = vmatprep.subr.mxu0 0.0
    %1064 = vmatpush1.msra.mxu0 %v147
    %1065 = vmatprep.subr.mxu0 0.0
    %1066 = vmatpush1.msra.mxu0 %v148
    %1067 = vmatprep.subr.mxu0 0.0
    %1068 = vmatpush1.msra.mxu0 %v149
    %1069 = vmatprep.subr.mxu0 0.0
    %1070 = vmatpush1.msra.mxu0 %v150
    %1071 = vmatprep.subr.mxu0 0.0
    %1072 = vmatpush1.msra.mxu0 %v151
    %1073 = vmatprep.subr.mxu0 0.0
    %1074 = vmatpush1.msra.mxu0 %v152
    %1075 = vmatprep.subr.mxu0 0.0
    %1076 = vmatpush1.msra.mxu0 %v153
    %1077 = vmatprep.subr.mxu0 0.0
    %1078 = vmatpush1.msra.mxu0 %v154
    %1079 = vmatprep.subr.mxu0 0.0
    %1080 = vmatpush1.msra.mxu0 %v155
    %1081 = vmatprep.subr.mxu0 0.0
    %1082 = vmatpush1.msra.mxu0 %v156
    %1083 = vmatprep.subr.mxu0 0.0
    %1084 = vmatpush1.msra.mxu0 %v157
    %1085 = vmatprep.mubr.f32.mxu0 %v655
    %1086 = vmatmul.mubr.f32.gmra.mrb[0].mxu0 %v653
    %v1087 = vpop.f32.mrb[0].mxu0
    %v1088 = vadd.f32 %v1018, %v1087
    %v1089 = vpop.f32.mrb[0].mxu0
    %1090 = vdwg.mxu0
    %1091 = vmatprep.subr.mxu0 0.0
    %1092 = vmatpush1.msra.mxu0 %v158
    %1093 = vmatprep.subr.mxu0 0.0
    %1094 = vmatpush1.msra.mxu0 %v159
    %1095 = vmatprep.subr.mxu0 0.0
    %1096 = vmatpush1.msra.mxu0 %v160
    %1097 = vmatprep.subr.mxu0 0.0
    %1098 = vmatpush1.msra.mxu0 %v161
    %1099 = vmatprep.subr.mxu0 0.0
    %1100 = vmatpush1.msra.mxu0 %v162
    %1101 = vmatprep.subr.mxu0 0.0
    %1102 = vmatpush1.msra.mxu0 %v163
    %1103 = vmatprep.subr.mxu0 0.0
    %1104 = vmatpush1.msra.mxu0 %v164
    %1105 = vmatprep.subr.mxu0 0.0
    %1106 = vmatpush1.msra.mxu0 %v165
    %1107 = vmatprep.subr.mxu0 0.0
    %1108 = vmatpush1.msra.mxu0 %v166
    %1109 = vmatprep.subr.mxu0 0.0
    %1110 = vmatpush1.msra.mxu0 %v167
    %1111 = vmatprep.subr.mxu0 0.0
    %1112 = vmatpush1.msra.mxu0 %v168
    %1113 = vmatprep.subr.mxu0 0.0
    %1114 = vmatpush1.msra.mxu0 %v169
    %1115 = vmatprep.subr.mxu0 0.0
    %1116 = vmatpush1.msra.mxu0 %v170
    %1117 = vmatprep.subr.mxu0 0.0
    %1118 = vmatpush1.msra.mxu0 %v171
    %1119 = vmatprep.subr.mxu0 0.0
    %1120 = vmatpush1.msra.mxu0 %v172
    %1121 = vmatprep.subr.mxu0 0.0
    %1122 = vmatpush1.msra.mxu0 %v173
    %1123 = vmatprep.subr.mxu0 0.0
    %1124 = vmatpush1.msra.mxu0 %v174
    %1125 = vmatprep.subr.mxu0 0.0
    %1126 = vmatpush1.msra.mxu0 %v175
    %1127 = vmatprep.subr.mxu0 0.0
    %1128 = vmatpush1.msra.mxu0 %v176
    %1129 = vmatprep.subr.mxu0 0.0
    %1130 = vmatpush1.msra.mxu0 %v177
    %1131 = vmatprep.subr.mxu0 0.0
    %1132 = vmatpush1.msra.mxu0 %v178
    %1133 = vmatprep.subr.mxu0 0.0
    %1134 = vmatpush1.msra.mxu0 %v179
    %1135 = vmatprep.subr.mxu0 0.0
    %1136 = vmatpush1.msra.mxu0 %v180
    %1137 = vmatprep.subr.mxu0 0.0
    %1138 = vmatpush1.msra.mxu0 %v181
    %1139 = vmatprep.subr.mxu0 0.0
    %1140 = vmatpush1.msra.mxu0 %v182
    %1141 = vmatprep.subr.mxu0 0.0
    %1142 = vmatpush1.msra.mxu0 %v183
    %1143 = vmatprep.subr.mxu0 0.0
    %1144 = vmatpush1.msra.mxu0 %v184
    %1145 = vmatprep.subr.mxu0 0.0
    %1146 = vmatpush1.msra.mxu0 %v185
    %1147 = vmatprep.subr.mxu0 0.0
    %1148 = vmatpush1.msra.mxu0 %v186
    %1149 = vmatprep.subr.mxu0 0.0
    %1150 = vmatpush1.msra.mxu0 %v187
    %1151 = vmatprep.subr.mxu0 0.0
    %1152 = vmatpush1.msra.mxu0 %v188
    %1153 = vmatprep.subr.mxu0 0.0
    %1154 = vmatpush1.msra.mxu0 %v189
    %1155 = vmatprep.mubr.f32.mxu0 %v671
    %1156 = vmatmul.mubr.f32.gmra.mrb[0].mxu0 %v663
    %v1157 = vpop.f32.mrb[0].mxu0
    %v1158 = vadd.f32 %v1088, %v1157
    %v1159 = vpop.f32.mrb[0].mxu0
    %1160 = vdwg.mxu0
    %1161 = vmatprep.subr.mxu0 0.0
    %1162 = vmatpush1.msra.mxu0 %v190
    %1163 = vmatprep.subr.mxu0 0.0
    %1164 = vmatpush1.msra.mxu0 %v191
    %1165 = vmatprep.subr.mxu0 0.0
    %1166 = vmatpush1.msra.mxu0 %v192
    %1167 = vmatprep.subr.mxu0 0.0
    %1168 = vmatpush1.msra.mxu0 %v193
    %1169 = vmatprep.subr.mxu0 0.0
    %1170 = vmatpush1.msra.mxu0 %v194
    %1171 = vmatprep.subr.mxu0 0.0
    %1172 = vmatpush1.msra.mxu0 %v195
    %1173 = vmatprep.subr.mxu0 0.0
    %1174 = vmatpush1.msra.mxu0 %v196
    %1175 = vmatprep.subr.mxu0 0.0
    %1176 = vmatpush1.msra.mxu0 %v197
    %1177 = vmatprep.subr.mxu0 0.0
    %1178 = vmatpush1.msra.mxu0 %v198
    %1179 = vmatprep.subr.mxu0 0.0
    %1180 = vmatpush1.msra.mxu0 %v199
    %1181 = vmatprep.subr.mxu0 0.0
    %1182 = vmatpush1.msra.mxu0 %v200
    %1183 = vmatprep.subr.mxu0 0.0
    %1184 = vmatpush1.msra.mxu0 %v201
    %1185 = vmatprep.subr.mxu0 0.0
    %1186 = vmatpush1.msra.mxu0 %v202
    %1187 = vmatprep.subr.mxu0 0.0
    %1188 = vmatpush1.msra.mxu0 %v203
    %1189 = vmatprep.subr.mxu0 0.0
    %1190 = vmatpush1.msra.mxu0 %v204
    %1191 = vmatprep.subr.mxu0 0.0
    %1192 = vmatpush1.msra.mxu0 %v205
    %1193 = vmatprep.subr.mxu0 0.0
    %1194 = vmatpush1.msra.mxu0 %v206
    %1195 = vmatprep.subr.mxu0 0.0
    %1196 = vmatpush1.msra.mxu0 %v207
    %1197 = vmatprep.subr.mxu0 0.0
    %1198 = vmatpush1.msra.mxu0 %v208
    %1199 = vmatprep.subr.mxu0 0.0
    %1200 = vmatpush1.msra.mxu0 %v209
    %1201 = vmatprep.subr.mxu0 0.0
    %1202 = vmatpush1.msra.mxu0 %v210
    %1203 = vmatprep.subr.mxu0 0.0
    %1204 = vmatpush1.msra.mxu0 %v211
    %1205 = vmatprep.subr.mxu0 0.0
    %1206 = vmatpush1.msra.mxu0 %v212
    %1207 = vmatprep.subr.mxu0 0.0
    %1208 = vmatpush1.msra.mxu0 %v213
    %1209 = vmatprep.subr.mxu0 0.0
    %1210 = vmatpush1.msra.mxu0 %v214
    %1211 = vmatprep.subr.mxu0 0.0
    %1212 = vmatpush1.msra.mxu0 %v215
    %1213 = vmatprep.subr.mxu0 0.0
    %1214 = vmatpush1.msra.mxu0 %v216
    %1215 = vmatprep.subr.mxu0 0.0
    %1216 = vmatpush1.msra.mxu0 %v217
    %1217 = vmatprep.subr.mxu0 0.0
    %1218 = vmatpush1.msra.mxu0 %v218
    %1219 = vmatprep.subr.mxu0 0.0
    %1220 = vmatpush1.msra.mxu0 %v219
    %1221 = vmatprep.subr.mxu0 0.0
    %1222 = vmatpush1.msra.mxu0 %v220
    %1223 = vmatprep.subr.mxu0 0.0
    %1224 = vmatpush1.msra.mxu0 %v221
    %1225 = vmatprep.mubr.f32.mxu0 %v672
    %1226 = vmatmul.mubr.f32.gmra.mrb[0].mxu0 %v670
    %v1227 = vpop.f32.mrb[0].mxu0
    %v1228 = vadd.f32 %v1158, %v1227
    %v1229 = vpop.f32.mrb[0].mxu0
    %1230 = vdwg.mxu0
    %1231 = vmatprep.subr.mxu0 0.0
    %1232 = vmatpush1.msra.mxu0 %v222
    %1233 = vmatprep.subr.mxu0 0.0
    %1234 = vmatpush1.msra.mxu0 %v223
    %1235 = vmatprep.subr.mxu0 0.0
    %1236 = vmatpush1.msra.mxu0 %v224
    %1237 = vmatprep.subr.mxu0 0.0
    %1238 = vmatpush1.msra.mxu0 %v225
    %1239 = vmatprep.subr.mxu0 0.0
    %1240 = vmatpush1.msra.mxu0 %v226
    %1241 = vmatprep.subr.mxu0 0.0
    %1242 = vmatpush1.msra.mxu0 %v227
    %1243 = vmatprep.subr.mxu0 0.0
    %1244 = vmatpush1.msra.mxu0 %v228
    %1245 = vmatprep.subr.mxu0 0.0
    %1246 = vmatpush1.msra.mxu0 %v229
    %1247 = vmatprep.subr.mxu0 0.0
    %1248 = vmatpush1.msra.mxu0 %v230
    %1249 = vmatprep.subr.mxu0 0.0
    %1250 = vmatpush1.msra.mxu0 %v231
    %1251 = vmatprep.subr.mxu0 0.0
    %1252 = vmatpush1.msra.mxu0 %v232
    %1253 = vmatprep.subr.mxu0 0.0
    %1254 = vmatpush1.msra.mxu0 %v233
    %1255 = vmatprep.subr.mxu0 0.0
    %1256 = vmatpush1.msra.mxu0 %v234
    %1257 = vmatprep.subr.mxu0 0.0
    %1258 = vmatpush1.msra.mxu0 %v235
    %1259 = vmatprep.subr.mxu0 0.0
    %1260 = vmatpush1.msra.mxu0 %v236
    %1261 = vmatprep.subr.mxu0 0.0
    %1262 = vmatpush1.msra.mxu0 %v237
    %1263 = vmatprep.subr.mxu0 0.0
    %1264 = vmatpush1.msra.mxu0 %v238
    %1265 = vmatprep.subr.mxu0 0.0
    %1266 = vmatpush1.msra.mxu0 %v239
    %1267 = vmatprep.subr.mxu0 0.0
    %1268 = vmatpush1.msra.mxu0 %v240
    %1269 = vmatprep.subr.mxu0 0.0
    %1270 = vmatpush1.msra.mxu0 %v241
    %1271 = vmatprep.subr.mxu0 0.0
    %1272 = vmatpush1.msra.mxu0 %v242
    %1273 = vmatprep.subr.mxu0 0.0
    %1274 = vmatpush1.msra.mxu0 %v243
    %1275 = vmatprep.subr.mxu0 0.0
    %1276 = vmatpush1.msra.mxu0 %v244
    %1277 = vmatprep.subr.mxu0 0.0
    %1278 = vmatpush1.msra.mxu0 %v245
    %1279 = vmatprep.subr.mxu0 0.0
    %1280 = vmatpush1.msra.mxu0 %v246
    %1281 = vmatprep.subr.mxu0 0.0
    %1282 = vmatpush1.msra.mxu0 %v247
    %1283 = vmatprep.subr.mxu0 0.0
    %1284 = vmatpush1.msra.mxu0 %v248
    %1285 = vmatprep.subr.mxu0 0.0
    %1286 = vmatpush1.msra.mxu0 %v249
    %1287 = vmatprep.subr.mxu0 0.0
    %1288 = vmatpush1.msra.mxu0 %v250
    %1289 = vmatprep.subr.mxu0 0.0
    %1290 = vmatpush1.msra.mxu0 %v251
    %1291 = vmatprep.subr.mxu0 0.0
    %1292 = vmatpush1.msra.mxu0 %v252
    %1293 = vmatprep.subr.mxu0 0.0
    %1294 = vmatpush1.msra.mxu0 %v253
    %1295 = vmatprep.mubr.f32.mxu0 %v688
    %1296 = vmatmul.mubr.f32.gmra.mrb[0].mxu0 %v680
    %v1297 = vpop.f32.mrb[0].mxu0
    %v1298 = vadd.f32 %v1228, %v1297
    %v1299 = vpop.f32.mrb[0].mxu0
    %1300 = vdwg.mxu0
    %1301 = vmatprep.subr.mxu0 0.0
    %1302 = vmatpush1.msra.mxu0 %v254
    %1303 = vmatprep.subr.mxu0 0.0
    %1304 = vmatpush1.msra.mxu0 %v255
    %1305 = vmatprep.subr.mxu0 0.0
    %1306 = vmatpush1.msra.mxu0 %v256
    %1307 = vmatprep.subr.mxu0 0.0
    %1308 = vmatpush1.msra.mxu0 %v257
    %1309 = vmatprep.subr.mxu0 0.0
    %1310 = vmatpush1.msra.mxu0 %v258
    %1311 = vmatprep.subr.mxu0 0.0
    %1312 = vmatpush1.msra.mxu0 %v259
    %1313 = vmatprep.subr.mxu0 0.0
    %1314 = vmatpush1.msra.mxu0 %v260
    %1315 = vmatprep.subr.mxu0 0.0
    %1316 = vmatpush1.msra.mxu0 %v261
    %1317 = vmatprep.subr.mxu0 0.0
    %1318 = vmatpush1.msra.mxu0 %v262
    %1319 = vmatprep.subr.mxu0 0.0
    %1320 = vmatpush1.msra.mxu0 %v263
    %1321 = vmatprep.subr.mxu0 0.0
    %1322 = vmatpush1.msra.mxu0 %v264
    %1323 = vmatprep.subr.mxu0 0.0
    %1324 = vmatpush1.msra.mxu0 %v265
    %1325 = vmatprep.subr.mxu0 0.0
    %1326 = vmatpush1.msra.mxu0 %v266
    %1327 = vmatprep.subr.mxu0 0.0
    %1328 = vmatpush1.msra.mxu0 %v267
    %1329 = vmatprep.subr.mxu0 0.0
    %1330 = vmatpush1.msra.mxu0 %v268
    %1331 = vmatprep.subr.mxu0 0.0
    %1332 = vmatpush1.msra.mxu0 %v269
    %1333 = vmatprep.subr.mxu0 0.0
    %1334 = vmatpush1.msra.mxu0 %v270
    %1335 = vmatprep.subr.mxu0 0.0
    %1336 = vmatpush1.msra.mxu0 %v271
    %1337 = vmatprep.subr.mxu0 0.0
    %1338 = vmatpush1.msra.mxu0 %v272
    %1339 = vmatprep.subr.mxu0 0.0
    %1340 = vmatpush1.msra.mxu0 %v273
    %1341 = vmatprep.subr.mxu0 0.0
    %1342 = vmatpush1.msra.mxu0 %v274
    %1343 = vmatprep.subr.mxu0 0.0
    %1344 = vmatpush1.msra.mxu0 %v275
    %1345 = vmatprep.subr.mxu0 0.0
    %1346 = vmatpush1.msra.mxu0 %v276
    %1347 = vmatprep.subr.mxu0 0.0
    %1348 = vmatpush1.msra.mxu0 %v277
    %1349 = vmatprep.subr.mxu0 0.0
    %1350 = vmatpush1.msra.mxu0 %v278
    %1351 = vmatprep.subr.mxu0 0.0
    %1352 = vmatpush1.msra.mxu0 %v279
    %1353 = vmatprep.subr.mxu0 0.0
    %1354 = vmatpush1.msra.mxu0 %v280
    %1355 = vmatprep.subr.mxu0 0.0
    %1356 = vmatpush1.msra.mxu0 %v281
    %1357 = vmatprep.subr.mxu0 0.0
    %1358 = vmatpush1.msra.mxu0 %v282
    %1359 = vmatprep.subr.mxu0 0.0
    %1360 = vmatpush1.msra.mxu0 %v283
    %1361 = vmatprep.subr.mxu0 0.0
    %1362 = vmatpush1.msra.mxu0 %v284
    %1363 = vmatprep.subr.mxu0 0.0
    %1364 = vmatpush1.msra.mxu0 %v285
    %1365 = vmatprep.mubr.f32.mxu0 %v689
    %1366 = vmatmul.mubr.f32.gmra.mrb[0].mxu0 %v687
    %v1367 = vpop.f32.mrb[0].mxu0
    %v1368 = vadd.f32 %v1298, %v1367
    %v1369 = vpop.f32.mrb[0].mxu0
    %1370 = vdwg.mxu0
    %1371 = vmatprep.subr.mxu0 0.0
    %1372 = vmatpush1.msra.mxu0 %v286
    %1373 = vmatprep.subr.mxu0 0.0
    %1374 = vmatpush1.msra.mxu0 %v287
    %1375 = vmatprep.subr.mxu0 0.0
    %1376 = vmatpush1.msra.mxu0 %v288
    %1377 = vmatprep.subr.mxu0 0.0
    %1378 = vmatpush1.msra.mxu0 %v289
    %1379 = vmatprep.subr.mxu0 0.0
    %1380 = vmatpush1.msra.mxu0 %v290
    %1381 = vmatprep.subr.mxu0 0.0
    %1382 = vmatpush1.msra.mxu0 %v291
    %1383 = vmatprep.subr.mxu0 0.0
    %1384 = vmatpush1.msra.mxu0 %v292
    %1385 = vmatprep.subr.mxu0 0.0
    %1386 = vmatpush1.msra.mxu0 %v293
    %1387 = vmatprep.subr.mxu0 0.0
    %1388 = vmatpush1.msra.mxu0 %v294
    %1389 = vmatprep.subr.mxu0 0.0
    %1390 = vmatpush1.msra.mxu0 %v295
    %1391 = vmatprep.subr.mxu0 0.0
    %1392 = vmatpush1.msra.mxu0 %v296
    %1393 = vmatprep.subr.mxu0 0.0
    %1394 = vmatpush1.msra.mxu0 %v297
    %1395 = vmatprep.subr.mxu0 0.0
    %1396 = vmatpush1.msra.mxu0 %v298
    %1397 = vmatprep.subr.mxu0 0.0
    %1398 = vmatpush1.msra.mxu0 %v299
    %1399 = vmatprep.subr.mxu0 0.0
    %1400 = vmatpush1.msra.mxu0 %v300
    %1401 = vmatprep.subr.mxu0 0.0
    %1402 = vmatpush1.msra.mxu0 %v301
    %1403 = vmatprep.subr.mxu0 0.0
    %1404 = vmatpush1.msra.mxu0 %v302
    %1405 = vmatprep.subr.mxu0 0.0
    %1406 = vmatpush1.msra.mxu0 %v303
    %1407 = vmatprep.subr.mxu0 0.0
    %1408 = vmatpush1.msra.mxu0 %v304
    %1409 = vmatprep.subr.mxu0 0.0
    %1410 = vmatpush1.msra.mxu0 %v305
    %1411 = vmatprep.subr.mxu0 0.0
    %1412 = vmatpush1.msra.mxu0 %v306
    %1413 = vmatprep.subr.mxu0 0.0
    %1414 = vmatpush1.msra.mxu0 %v307
    %1415 = vmatprep.subr.mxu0 0.0
    %1416 = vmatpush1.msra.mxu0 %v308
    %1417 = vmatprep.subr.mxu0 0.0
    %1418 = vmatpush1.msra.mxu0 %v309
    %1419 = vmatprep.subr.mxu0 0.0
    %1420 = vmatpush1.msra.mxu0 %v310
    %1421 = vmatprep.subr.mxu0 0.0
    %1422 = vmatpush1.msra.mxu0 %v311
    %1423 = vmatprep.subr.mxu0 0.0
    %1424 = vmatpush1.msra.mxu0 %v312
    %1425 = vmatprep.subr.mxu0 0.0
    %1426 = vmatpush1.msra.mxu0 %v313
    %1427 = vmatprep.subr.mxu0 0.0
    %1428 = vmatpush1.msra.mxu0 %v314
    %1429 = vmatprep.subr.mxu0 0.0
    %1430 = vmatpush1.msra.mxu0 %v315
    %1431 = vmatprep.subr.mxu0 0.0
    %1432 = vmatpush1.msra.mxu0 %v316
    %1433 = vmatprep.subr.mxu0 0.0
    %1434 = vmatpush1.msra.mxu0 %v317
    %1435 = vmatprep.mubr.f32.mxu0 %v705
    %1436 = vmatmul.mubr.f32.gmra.mrb[0].mxu0 %v697
    %v1437 = vpop.f32.mrb[0].mxu0
    %v1438 = vadd.f32 %v1368, %v1437
    %v1439 = vpop.f32.mrb[0].mxu0
    %1440 = vdwg.mxu0
    %1441 = vmatprep.subr.mxu0 0.0
    %1442 = vmatpush1.msra.mxu0 %v318
    %1443 = vmatprep.subr.mxu0 0.0
    %1444 = vmatpush1.msra.mxu0 %v319
    %1445 = vmatprep.subr.mxu0 0.0
    %1446 = vmatpush1.msra.mxu0 %v320
    %1447 = vmatprep.subr.mxu0 0.0
    %1448 = vmatpush1.msra.mxu0 %v321
    %1449 = vmatprep.subr.mxu0 0.0
    %1450 = vmatpush1.msra.mxu0 %v322
    %1451 = vmatprep.subr.mxu0 0.0
    %1452 = vmatpush1.msra.mxu0 %v323
    %1453 = vmatprep.subr.mxu0 0.0
    %1454 = vmatpush1.msra.mxu0 %v324
    %1455 = vmatprep.subr.mxu0 0.0
    %1456 = vmatpush1.msra.mxu0 %v325
    %1457 = vmatprep.subr.mxu0 0.0
    %1458 = vmatpush1.msra.mxu0 %v326
    %1459 = vmatprep.subr.mxu0 0.0
    %1460 = vmatpush1.msra.mxu0 %v327
    %1461 = vmatprep.subr.mxu0 0.0
    %1462 = vmatpush1.msra.mxu0 %v328
    %1463 = vmatprep.subr.mxu0 0.0
    %1464 = vmatpush1.msra.mxu0 %v329
    %1465 = vmatprep.subr.mxu0 0.0
    %1466 = vmatpush1.msra.mxu0 %v330
    %1467 = vmatprep.subr.mxu0 0.0
    %1468 = vmatpush1.msra.mxu0 %v331
    %1469 = vmatprep.subr.mxu0 0.0
    %1470 = vmatpush1.msra.mxu0 %v332
    %1471 = vmatprep.subr.mxu0 0.0
    %1472 = vmatpush1.msra.mxu0 %v333
    %1473 = vmatprep.subr.mxu0 0.0
    %1474 = vmatpush1.msra.mxu0 %v334
    %1475 = vmatprep.subr.mxu0 0.0
    %1476 = vmatpush1.msra.mxu0 %v335
    %1477 = vmatprep.subr.mxu0 0.0
    %1478 = vmatpush1.msra.mxu0 %v336
    %1479 = vmatprep.subr.mxu0 0.0
    %1480 = vmatpush1.msra.mxu0 %v337
    %1481 = vmatprep.subr.mxu0 0.0
    %1482 = vmatpush1.msra.mxu0 %v338
    %1483 = vmatprep.subr.mxu0 0.0
    %1484 = vmatpush1.msra.mxu0 %v339
    %1485 = vmatprep.subr.mxu0 0.0
    %1486 = vmatpush1.msra.mxu0 %v340
    %1487 = vmatprep.subr.mxu0 0.0
    %1488 = vmatpush1.msra.mxu0 %v341
    %1489 = vmatprep.subr.mxu0 0.0
    %1490 = vmatpush1.msra.mxu0 %v342
    %1491 = vmatprep.subr.mxu0 0.0
    %1492 = vmatpush1.msra.mxu0 %v343
    %1493 = vmatprep.subr.mxu0 0.0
    %1494 = vmatpush1.msra.mxu0 %v344
    %1495 = vmatprep.subr.mxu0 0.0
    %1496 = vmatpush1.msra.mxu0 %v345
    %1497 = vmatprep.subr.mxu0 0.0
    %1498 = vmatpush1.msra.mxu0 %v346
    %1499 = vmatprep.subr.mxu0 0.0
    %1500 = vmatpush1.msra.mxu0 %v347
    %1501 = vmatprep.subr.mxu0 0.0
    %1502 = vmatpush1.msra.mxu0 %v348
    %1503 = vmatprep.subr.mxu0 0.0
    %1504 = vmatpush1.msra.mxu0 %v349
    %1505 = vmatprep.mubr.f32.mxu0 %v706
    %1506 = vmatmul.mubr.f32.gmra.mrb[0].mxu0 %v704
    %v1507 = vpop.f32.mrb[0].mxu0
    %v1508 = vadd.f32 %v1438, %v1507
    %v1509 = vpop.f32.mrb[0].mxu0
    %1510 = vdwg.mxu0
    %1511 = vmatprep.subr.mxu0 0.0
    %1512 = vmatpush1.msra.mxu0 %v350
    %1513 = vmatprep.subr.mxu0 0.0
    %1514 = vmatpush1.msra.mxu0 %v351
    %1515 = vmatprep.subr.mxu0 0.0
    %1516 = vmatpush1.msra.mxu0 %v352
    %1517 = vmatprep.subr.mxu0 0.0
    %1518 = vmatpush1.msra.mxu0 %v353
    %1519 = vmatprep.subr.mxu0 0.0
    %1520 = vmatpush1.msra.mxu0 %v354
    %1521 = vmatprep.subr.mxu0 0.0
    %1522 = vmatpush1.msra.mxu0 %v355
    %1523 = vmatprep.subr.mxu0 0.0
    %1524 = vmatpush1.msra.mxu0 %v356
    %1525 = vmatprep.subr.mxu0 0.0
    %1526 = vmatpush1.msra.mxu0 %v357
    %1527 = vmatprep.subr.mxu0 0.0
    %1528 = vmatpush1.msra.mxu0 %v358
    %1529 = vmatprep.subr.mxu0 0.0
    %1530 = vmatpush1.msra.mxu0 %v359
    %1531 = vmatprep.subr.mxu0 0.0
    %1532 = vmatpush1.msra.mxu0 %v360
    %1533 = vmatprep.subr.mxu0 0.0
    %1534 = vmatpush1.msra.mxu0 %v361
    %1535 = vmatprep.subr.mxu0 0.0
    %1536 = vmatpush1.msra.mxu0 %v362
    %1537 = vmatprep.subr.mxu0 0.0
    %1538 = vmatpush1.msra.mxu0 %v363
    %1539 = vmatprep.subr.mxu0 0.0
    %1540 = vmatpush1.msra.mxu0 %v364
    %1541 = vmatprep.subr.mxu0 0.0
    %1542 = vmatpush1.msra.mxu0 %v365
    %1543 = vmatprep.subr.mxu0 0.0
    %1544 = vmatpush1.msra.mxu0 %v366
    %1545 = vmatprep.subr.mxu0 0.0
    %1546 = vmatpush1.msra.mxu0 %v367
    %1547 = vmatprep.subr.mxu0 0.0
    %1548 = vmatpush1.msra.mxu0 %v368
    %1549 = vmatprep.subr.mxu0 0.0
    %1550 = vmatpush1.msra.mxu0 %v369
    %1551 = vmatprep.subr.mxu0 0.0
    %1552 = vmatpush1.msra.mxu0 %v370
    %1553 = vmatprep.subr.mxu0 0.0
    %1554 = vmatpush1.msra.mxu0 %v371
    %1555 = vmatprep.subr.mxu0 0.0
    %1556 = vmatpush1.msra.mxu0 %v372
    %1557 = vmatprep.subr.mxu0 0.0
    %1558 = vmatpush1.msra.mxu0 %v373
    %1559 = vmatprep.subr.mxu0 0.0
    %1560 = vmatpush1.msra.mxu0 %v374
    %1561 = vmatprep.subr.mxu0 0.0
    %1562 = vmatpush1.msra.mxu0 %v375
    %1563 = vmatprep.subr.mxu0 0.0
    %1564 = vmatpush1.msra.mxu0 %v376
    %1565 = vmatprep.subr.mxu0 0.0
    %1566 = vmatpush1.msra.mxu0 %v377
    %1567 = vmatprep.subr.mxu0 0.0
    %1568 = vmatpush1.msra.mxu0 %v378
    %1569 = vmatprep.subr.mxu0 0.0
    %1570 = vmatpush1.msra.mxu0 %v379
    %1571 = vmatprep.subr.mxu0 0.0
    %1572 = vmatpush1.msra.mxu0 %v380
    %1573 = vmatprep.subr.mxu0 0.0
    %1574 = vmatpush1.msra.mxu0 %v381
    %1575 = vmatprep.mubr.f32.mxu0 %v722
    %1576 = vmatmul.mubr.f32.gmra.mrb[0].mxu0 %v714
    %v1577 = vpop.f32.mrb[0].mxu0
    %v1578 = vadd.f32 %v1508, %v1577
    %v1579 = vpop.f32.mrb[0].mxu0
    %1580 = vdwg.mxu0
    %1581 = vmatprep.subr.mxu0 0.0
    %1582 = vmatpush1.msra.mxu0 %v382
    %1583 = vmatprep.subr.mxu0 0.0
    %1584 = vmatpush1.msra.mxu0 %v383
    %1585 = vmatprep.subr.mxu0 0.0
    %1586 = vmatpush1.msra.mxu0 %v384
    %1587 = vmatprep.subr.mxu0 0.0
    %1588 = vmatpush1.msra.mxu0 %v385
    %1589 = vmatprep.subr.mxu0 0.0
    %1590 = vmatpush1.msra.mxu0 %v386
    %1591 = vmatprep.subr.mxu0 0.0
    %1592 = vmatpush1.msra.mxu0 %v387
    %1593 = vmatprep.subr.mxu0 0.0
    %1594 = vmatpush1.msra.mxu0 %v388
    %1595 = vmatprep.subr.mxu0 0.0
    %1596 = vmatpush1.msra.mxu0 %v389
    %1597 = vmatprep.subr.mxu0 0.0
    %1598 = vmatpush1.msra.mxu0 %v390
    %1599 = vmatprep.subr.mxu0 0.0
    %1600 = vmatpush1.msra.mxu0 %v391
    %1601 = vmatprep.subr.mxu0 0.0
    %1602 = vmatpush1.msra.mxu0 %v392
    %1603 = vmatprep.subr.mxu0 0.0
    %1604 = vmatpush1.msra.mxu0 %v393
    %1605 = vmatprep.subr.mxu0 0.0
    %1606 = vmatpush1.msra.mxu0 %v394
    %1607 = vmatprep.subr.mxu0 0.0
    %1608 = vmatpush1.msra.mxu0 %v395
    %1609 = vmatprep.subr.mxu0 0.0
    %1610 = vmatpush1.msra.mxu0 %v396
    %1611 = vmatprep.subr.mxu0 0.0
    %1612 = vmatpush1.msra.mxu0 %v397
    %1613 = vmatprep.subr.mxu0 0.0
    %1614 = vmatpush1.msra.mxu0 %v398
    %1615 = vmatprep.subr.mxu0 0.0
    %1616 = vmatpush1.msra.mxu0 %v399
    %1617 = vmatprep.subr.mxu0 0.0
    %1618 = vmatpush1.msra.mxu0 %v400
    %1619 = vmatprep.subr.mxu0 0.0
    %1620 = vmatpush1.msra.mxu0 %v401
    %1621 = vmatprep.subr.mxu0 0.0
    %1622 = vmatpush1.msra.mxu0 %v402
    %1623 = vmatprep.subr.mxu0 0.0
    %1624 = vmatpush1.msra.mxu0 %v403
    %1625 = vmatprep.subr.mxu0 0.0
    %1626 = vmatpush1.msra.mxu0 %v404
    %1627 = vmatprep.subr.mxu0 0.0
    %1628 = vmatpush1.msra.mxu0 %v405
    %1629 = vmatprep.subr.mxu0 0.0
    %1630 = vmatpush1.msra.mxu0 %v406
    %1631 = vmatprep.subr.mxu0 0.0
    %1632 = vmatpush1.msra.mxu0 %v407
    %1633 = vmatprep.subr.mxu0 0.0
    %1634 = vmatpush1.msra.mxu0 %v408
    %1635 = vmatprep.subr.mxu0 0.0
    %1636 = vmatpush1.msra.mxu0 %v409
    %1637 = vmatprep.subr.mxu0 0.0
    %1638 = vmatpush1.msra.mxu0 %v410
    %1639 = vmatprep.subr.mxu0 0.0
    %1640 = vmatpush1.msra.mxu0 %v411
    %1641 = vmatprep.subr.mxu0 0.0
    %1642 = vmatpush1.msra.mxu0 %v412
    %1643 = vmatprep.subr.mxu0 0.0
    %1644 = vmatpush1.msra.mxu0 %v413
    %1645 = vmatprep.mubr.f32.mxu0 %v723
    %1646 = vmatmul.mubr.f32.gmra.mrb[0].mxu0 %v721
    %v1647 = vpop.f32.mrb[0].mxu0
    %v1648 = vadd.f32 %v1578, %v1647
    %v1649 = vpop.f32.mrb[0].mxu0
    %1650 = vdwg.mxu0
    %1651 = vmatprep.subr.mxu0 0.0
    %1652 = vmatpush1.msra.mxu0 %v414
    %1653 = vmatprep.subr.mxu0 0.0
    %1654 = vmatpush1.msra.mxu0 %v415
    %1655 = vmatprep.subr.mxu0 0.0
    %1656 = vmatpush1.msra.mxu0 %v416
    %1657 = vmatprep.subr.mxu0 0.0
    %1658 = vmatpush1.msra.mxu0 %v417
    %1659 = vmatprep.subr.mxu0 0.0
    %1660 = vmatpush1.msra.mxu0 %v418
    %1661 = vmatprep.subr.mxu0 0.0
    %1662 = vmatpush1.msra.mxu0 %v419
    %1663 = vmatprep.subr.mxu0 0.0
    %1664 = vmatpush1.msra.mxu0 %v420
    %1665 = vmatprep.subr.mxu0 0.0
    %1666 = vmatpush1.msra.mxu0 %v421
    %1667 = vmatprep.subr.mxu0 0.0
    %1668 = vmatpush1.msra.mxu0 %v422
    %1669 = vmatprep.subr.mxu0 0.0
    %1670 = vmatpush1.msra.mxu0 %v423
    %1671 = vmatprep.subr.mxu0 0.0
    %1672 = vmatpush1.msra.mxu0 %v424
    %1673 = vmatprep.subr.mxu0 0.0
    %1674 = vmatpush1.msra.mxu0 %v425
    %1675 = vmatprep.subr.mxu0 0.0
    %1676 = vmatpush1.msra.mxu0 %v426
    %1677 = vmatprep.subr.mxu0 0.0
    %1678 = vmatpush1.msra.mxu0 %v427
    %1679 = vmatprep.subr.mxu0 0.0
    %1680 = vmatpush1.msra.mxu0 %v428
    %1681 = vmatprep.subr.mxu0 0.0
    %1682 = vmatpush1.msra.mxu0 %v429
    %1683 = vmatprep.subr.mxu0 0.0
    %1684 = vmatpush1.msra.mxu0 %v430
    %1685 = vmatprep.subr.mxu0 0.0
    %1686 = vmatpush1.msra.mxu0 %v431
    %1687 = vmatprep.subr.mxu0 0.0
    %1688 = vmatpush1.msra.mxu0 %v432
    %1689 = vmatprep.subr.mxu0 0.0
    %1690 = vmatpush1.msra.mxu0 %v433
    %1691 = vmatprep.subr.mxu0 0.0
    %1692 = vmatpush1.msra.mxu0 %v434
    %1693 = vmatprep.subr.mxu0 0.0
    %1694 = vmatpush1.msra.mxu0 %v435
    %1695 = vmatprep.subr.mxu0 0.0
    %1696 = vmatpush1.msra.mxu0 %v436
    %1697 = vmatprep.subr.mxu0 0.0
    %1698 = vmatpush1.msra.mxu0 %v437
    %1699 = vmatprep.subr.mxu0 0.0
    %1700 = vmatpush1.msra.mxu0 %v438
    %1701 = vmatprep.subr.mxu0 0.0
    %1702 = vmatpush1.msra.mxu0 %v439
    %1703 = vmatprep.subr.mxu0 0.0
    %1704 = vmatpush1.msra.mxu0 %v440
    %1705 = vmatprep.subr.mxu0 0.0
    %1706 = vmatpush1.msra.mxu0 %v441
    %1707 = vmatprep.subr.mxu0 0.0
    %1708 = vmatpush1.msra.mxu0 %v442
    %1709 = vmatprep.subr.mxu0 0.0
    %1710 = vmatpush1.msra.mxu0 %v443
    %1711 = vmatprep.subr.mxu0 0.0
    %1712 = vmatpush1.msra.mxu0 %v444
    %1713 = vmatprep.subr.mxu0 0.0
    %1714 = vmatpush1.msra.mxu0 %v445
    %1715 = vmatprep.mubr.f32.mxu0 %v739
    %1716 = vmatmul.mubr.f32.gmra.mrb[0].mxu0 %v731
    %v1717 = vpop.f32.mrb[0].mxu0
    %v1718 = vadd.f32 %v1648, %v1717
    %v1719 = vpop.f32.mrb[0].mxu0
    %1720 = vdwg.mxu0
    %1721 = vmatprep.subr.mxu0 0.0
    %1722 = vmatpush1.msra.mxu0 %v446
    %1723 = vmatprep.subr.mxu0 0.0
    %1724 = vmatpush1.msra.mxu0 %v447
    %1725 = vmatprep.subr.mxu0 0.0
    %1726 = vmatpush1.msra.mxu0 %v448
    %1727 = vmatprep.subr.mxu0 0.0
    %1728 = vmatpush1.msra.mxu0 %v449
    %1729 = vmatprep.subr.mxu0 0.0
    %1730 = vmatpush1.msra.mxu0 %v450
    %1731 = vmatprep.subr.mxu0 0.0
    %1732 = vmatpush1.msra.mxu0 %v451
    %1733 = vmatprep.subr.mxu0 0.0
    %1734 = vmatpush1.msra.mxu0 %v452
    %1735 = vmatprep.subr.mxu0 0.0
    %1736 = vmatpush1.msra.mxu0 %v453
    %1737 = vmatprep.subr.mxu0 0.0
    %1738 = vmatpush1.msra.mxu0 %v454
    %1739 = vmatprep.subr.mxu0 0.0
    %1740 = vmatpush1.msra.mxu0 %v455
    %1741 = vmatprep.subr.mxu0 0.0
    %1742 = vmatpush1.msra.mxu0 %v456
    %1743 = vmatprep.subr.mxu0 0.0
    %1744 = vmatpush1.msra.mxu0 %v457
    %1745 = vmatprep.subr.mxu0 0.0
    %1746 = vmatpush1.msra.mxu0 %v458
    %1747 = vmatprep.subr.mxu0 0.0
    %1748 = vmatpush1.msra.mxu0 %v459
    %1749 = vmatprep.subr.mxu0 0.0
    %1750 = vmatpush1.msra.mxu0 %v460
    %1751 = vmatprep.subr.mxu0 0.0
    %1752 = vmatpush1.msra.mxu0 %v461
    %1753 = vmatprep.subr.mxu0 0.0
    %1754 = vmatpush1.msra.mxu0 %v462
    %1755 = vmatprep.subr.mxu0 0.0
    %1756 = vmatpush1.msra.mxu0 %v463
    %1757 = vmatprep.subr.mxu0 0.0
    %1758 = vmatpush1.msra.mxu0 %v464
    %1759 = vmatprep.subr.mxu0 0.0
    %1760 = vmatpush1.msra.mxu0 %v465
    %1761 = vmatprep.subr.mxu0 0.0
    %1762 = vmatpush1.msra.mxu0 %v466
    %1763 = vmatprep.subr.mxu0 0.0
    %1764 = vmatpush1.msra.mxu0 %v467
    %1765 = vmatprep.subr.mxu0 0.0
    %1766 = vmatpush1.msra.mxu0 %v468
    %1767 = vmatprep.subr.mxu0 0.0
    %1768 = vmatpush1.msra.mxu0 %v469
    %1769 = vmatprep.subr.mxu0 0.0
    %1770 = vmatpush1.msra.mxu0 %v470
    %1771 = vmatprep.subr.mxu0 0.0
    %1772 = vmatpush1.msra.mxu0 %v471
    %1773 = vmatprep.subr.mxu0 0.0
    %1774 = vmatpush1.msra.mxu0 %v472
    %1775 = vmatprep.subr.mxu0 0.0
    %1776 = vmatpush1.msra.mxu0 %v473
    %1777 = vmatprep.subr.mxu0 0.0
    %1778 = vmatpush1.msra.mxu0 %v474
    %1779 = vmatprep.subr.mxu0 0.0
    %1780 = vmatpush1.msra.mxu0 %v475
    %1781 = vmatprep.subr.mxu0 0.0
    %1782 = vmatpush1.msra.mxu0 %v476
    %1783 = vmatprep.subr.mxu0 0.0
    %1784 = vmatpush1.msra.mxu0 %v477
    %1785 = vmatprep.mubr.f32.mxu0 %v740
    %1786 = vmatmul.mubr.f32.gmra.mrb[0].mxu0 %v738
    %v1787 = vpop.f32.mrb[0].mxu0
    %v1788 = vadd.f32 %v1718, %v1787
    %v1789 = vpop.f32.mrb[0].mxu0
    %1790 = vdwg.mxu0
    %1791 = vmatprep.subr.mxu0 0.0
    %1792 = vmatpush1.msra.mxu0 %v478
    %1793 = vmatprep.subr.mxu0 0.0
    %1794 = vmatpush1.msra.mxu0 %v479
    %1795 = vmatprep.subr.mxu0 0.0
    %1796 = vmatpush1.msra.mxu0 %v480
    %1797 = vmatprep.subr.mxu0 0.0
    %1798 = vmatpush1.msra.mxu0 %v481
    %1799 = vmatprep.subr.mxu0 0.0
    %1800 = vmatpush1.msra.mxu0 %v482
    %1801 = vmatprep.subr.mxu0 0.0
    %1802 = vmatpush1.msra.mxu0 %v483
    %1803 = vmatprep.subr.mxu0 0.0
    %1804 = vmatpush1.msra.mxu0 %v484
    %1805 = vmatprep.subr.mxu0 0.0
    %1806 = vmatpush1.msra.mxu0 %v485
    %1807 = vmatprep.subr.mxu0 0.0
    %1808 = vmatpush1.msra.mxu0 %v486
    %1809 = vmatprep.subr.mxu0 0.0
    %1810 = vmatpush1.msra.mxu0 %v487
    %1811 = vmatprep.subr.mxu0 0.0
    %1812 = vmatpush1.msra.mxu0 %v488
    %1813 = vmatprep.subr.mxu0 0.0
    %1814 = vmatpush1.msra.mxu0 %v489
    %1815 = vmatprep.subr.mxu0 0.0
    %1816 = vmatpush1.msra.mxu0 %v490
    %1817 = vmatprep.subr.mxu0 0.0
    %1818 = vmatpush1.msra.mxu0 %v491
    %1819 = vmatprep.subr.mxu0 0.0
    %1820 = vmatpush1.msra.mxu0 %v492
    %1821 = vmatprep.subr.mxu0 0.0
    %1822 = vmatpush1.msra.mxu0 %v493
    %1823 = vmatprep.subr.mxu0 0.0
    %1824 = vmatpush1.msra.mxu0 %v494
    %1825 = vmatprep.subr.mxu0 0.0
    %1826 = vmatpush1.msra.mxu0 %v495
    %1827 = vmatprep.subr.mxu0 0.0
    %1828 = vmatpush1.msra.mxu0 %v496
    %1829 = vmatprep.subr.mxu0 0.0
    %1830 = vmatpush1.msra.mxu0 %v497
    %1831 = vmatprep.subr.mxu0 0.0
    %1832 = vmatpush1.msra.mxu0 %v498
    %1833 = vmatprep.subr.mxu0 0.0
    %1834 = vmatpush1.msra.mxu0 %v499
    %1835 = vmatprep.subr.mxu0 0.0
    %1836 = vmatpush1.msra.mxu0 %v500
    %1837 = vmatprep.subr.mxu0 0.0
    %1838 = vmatpush1.msra.mxu0 %v501
    %1839 = vmatprep.subr.mxu0 0.0
    %1840 = vmatpush1.msra.mxu0 %v502
    %1841 = vmatprep.subr.mxu0 0.0
    %1842 = vmatpush1.msra.mxu0 %v503
    %1843 = vmatprep.subr.mxu0 0.0
    %1844 = vmatpush1.msra.mxu0 %v504
    %1845 = vmatprep.subr.mxu0 0.0
    %1846 = vmatpush1.msra.mxu0 %v505
    %1847 = vmatprep.subr.mxu0 0.0
    %1848 = vmatpush1.msra.mxu0 %v506
    %1849 = vmatprep.subr.mxu0 0.0
    %1850 = vmatpush1.msra.mxu0 %v507
    %1851 = vmatprep.subr.mxu0 0.0
    %1852 = vmatpush1.msra.mxu0 %v508
    %1853 = vmatprep.subr.mxu0 0.0
    %1854 = vmatpush1.msra.mxu0 %v509
    %1855 = vmatprep.mubr.f32.mxu0 %v756
    %1856 = vmatmul.mubr.f32.gmra.mrb[0].mxu0 %v748
    %v1857 = vpop.f32.mrb[0].mxu0
    %v1858 = vadd.f32 %v1788, %v1857
    %v1859 = vpop.f32.mrb[0].mxu0
    %1860 = vdwg.mxu0
    %1861 = vmatprep.subr.mxu0 0.0
    %1862 = vmatpush1.msra.mxu0 %v510
    %1863 = vmatprep.subr.mxu0 0.0
    %1864 = vmatpush1.msra.mxu0 %v511
    %1865 = vmatprep.subr.mxu0 0.0
    %1866 = vmatpush1.msra.mxu0 %v512
    %1867 = vmatprep.subr.mxu0 0.0
    %1868 = vmatpush1.msra.mxu0 %v513
    %1869 = vmatprep.subr.mxu0 0.0
    %1870 = vmatpush1.msra.mxu0 %v514
    %1871 = vmatprep.subr.mxu0 0.0
    %1872 = vmatpush1.msra.mxu0 %v515
    %1873 = vmatprep.subr.mxu0 0.0
    %1874 = vmatpush1.msra.mxu0 %v516
    %1875 = vmatprep.subr.mxu0 0.0
    %1876 = vmatpush1.msra.mxu0 %v517
    %1877 = vmatprep.subr.mxu0 0.0
    %1878 = vmatpush1.msra.mxu0 %v518
    %1879 = vmatprep.subr.mxu0 0.0
    %1880 = vmatpush1.msra.mxu0 %v519
    %1881 = vmatprep.subr.mxu0 0.0
    %1882 = vmatpush1.msra.mxu0 %v520
    %1883 = vmatprep.subr.mxu0 0.0
    %1884 = vmatpush1.msra.mxu0 %v521
    %1885 = vmatprep.subr.mxu0 0.0
    %1886 = vmatpush1.msra.mxu0 %v522
    %1887 = vmatprep.subr.mxu0 0.0
    %1888 = vmatpush1.msra.mxu0 %v523
    %1889 = vmatprep.subr.mxu0 0.0
    %1890 = vmatpush1.msra.mxu0 %v524
    %1891 = vmatprep.subr.mxu0 0.0
    %1892 = vmatpush1.msra.mxu0 %v525
    %1893 = vmatprep.subr.mxu0 0.0
    %1894 = vmatpush1.msra.mxu0 %v526
    %1895 = vmatprep.subr.mxu0 0.0
    %1896 = vmatpush1.msra.mxu0 %v527
    %1897 = vmatprep.subr.mxu0 0.0
    %1898 = vmatpush1.msra.mxu0 %v528
    %1899 = vmatprep.subr.mxu0 0.0
    %1900 = vmatpush1.msra.mxu0 %v529
    %1901 = vmatprep.subr.mxu0 0.0
    %1902 = vmatpush1.msra.mxu0 %v530
    %1903 = vmatprep.subr.mxu0 0.0
    %1904 = vmatpush1.msra.mxu0 %v531
    %1905 = vmatprep.subr.mxu0 0.0
    %1906 = vmatpush1.msra.mxu0 %v532
    %1907 = vmatprep.subr.mxu0 0.0
    %1908 = vmatpush1.msra.mxu0 %v533
    %1909 = vmatprep.subr.mxu0 0.0
    %1910 = vmatpush1.msra.mxu0 %v534
    %1911 = vmatprep.subr.mxu0 0.0
    %1912 = vmatpush1.msra.mxu0 %v535
    %1913 = vmatprep.subr.mxu0 0.0
    %1914 = vmatpush1.msra.mxu0 %v536
    %1915 = vmatprep.subr.mxu0 0.0
    %1916 = vmatpush1.msra.mxu0 %v537
    %1917 = vmatprep.subr.mxu0 0.0
    %1918 = vmatpush1.msra.mxu0 %v538
    %1919 = vmatprep.subr.mxu0 0.0
    %1920 = vmatpush1.msra.mxu0 %v539
    %1921 = vmatprep.subr.mxu0 0.0
    %1922 = vmatpush1.msra.mxu0 %v540
    %1923 = vmatprep.subr.mxu0 0.0
    %1924 = vmatpush1.msra.mxu0 %v541
    %1925 = vmatprep.mubr.f32.mxu0 %v757
    %1926 = vmatmul.mubr.f32.gmra.mrb[0].mxu0 %v755
    %v1927 = vpop.f32.mrb[0].mxu0
    %v1928 = vadd.f32 %v1858, %v1927
    %v1929 = vpop.f32.mrb[0].mxu0
    %1930 = vdwg.mxu0
    %1931 = vmatprep.subr.mxu0 0.0
    %1932 = vmatpush1.msra.mxu0 %v542
    %1933 = vmatprep.subr.mxu0 0.0
    %1934 = vmatpush1.msra.mxu0 %v543
    %1935 = vmatprep.subr.mxu0 0.0
    %1936 = vmatpush1.msra.mxu0 %v544
    %1937 = vmatprep.subr.mxu0 0.0
    %1938 = vmatpush1.msra.mxu0 %v545
    %1939 = vmatprep.subr.mxu0 0.0
    %1940 = vmatpush1.msra.mxu0 %v546
    %1941 = vmatprep.subr.mxu0 0.0
    %1942 = vmatpush1.msra.mxu0 %v547
    %1943 = vmatprep.subr.mxu0 0.0
    %1944 = vmatpush1.msra.mxu0 %v548
    %1945 = vmatprep.subr.mxu0 0.0
    %1946 = vmatpush1.msra.mxu0 %v549
    %1947 = vmatprep.subr.mxu0 0.0
    %1948 = vmatpush1.msra.mxu0 %v550
    %1949 = vmatprep.subr.mxu0 0.0
    %1950 = vmatpush1.msra.mxu0 %v551
    %1951 = vmatprep.subr.mxu0 0.0
    %1952 = vmatpush1.msra.mxu0 %v552
    %1953 = vmatprep.subr.mxu0 0.0
    %1954 = vmatpush1.msra.mxu0 %v553
    %1955 = vmatprep.subr.mxu0 0.0
    %1956 = vmatpush1.msra.mxu0 %v554
    %1957 = vmatprep.subr.mxu0 0.0
    %1958 = vmatpush1.msra.mxu0 %v555
    %1959 = vmatprep.subr.mxu0 0.0
    %1960 = vmatpush1.msra.mxu0 %v556
    %1961 = vmatprep.subr.mxu0 0.0
    %1962 = vmatpush1.msra.mxu0 %v557
    %1963 = vmatprep.subr.mxu0 0.0
    %1964 = vmatpush1.msra.mxu0 %v558
    %1965 = vmatprep.subr.mxu0 0.0
    %1966 = vmatpush1.msra.mxu0 %v559
    %1967 = vmatprep.subr.mxu0 0.0
    %1968 = vmatpush1.msra.mxu0 %v560
    %1969 = vmatprep.subr.mxu0 0.0
    %1970 = vmatpush1.msra.mxu0 %v561
    %1971 = vmatprep.subr.mxu0 0.0
    %1972 = vmatpush1.msra.mxu0 %v562
    %1973 = vmatprep.subr.mxu0 0.0
    %1974 = vmatpush1.msra.mxu0 %v563
    %1975 = vmatprep.subr.mxu0 0.0
    %1976 = vmatpush1.msra.mxu0 %v564
    %1977 = vmatprep.subr.mxu0 0.0
    %1978 = vmatpush1.msra.mxu0 %v565
    %1979 = vmatprep.subr.mxu0 0.0
    %1980 = vmatpush1.msra.mxu0 %v566
    %1981 = vmatprep.subr.mxu0 0.0
    %1982 = vmatpush1.msra.mxu0 %v567
    %1983 = vmatprep.subr.mxu0 0.0
    %1984 = vmatpush1.msra.mxu0 %v568
    %1985 = vmatprep.subr.mxu0 0.0
    %1986 = vmatpush1.msra.mxu0 %v569
    %1987 = vmatprep.subr.mxu0 0.0
    %1988 = vmatpush1.msra.mxu0 %v570
    %1989 = vmatprep.subr.mxu0 0.0
    %1990 = vmatpush1.msra.mxu0 %v571
    %1991 = vmatprep.subr.mxu0 0.0
    %1992 = vmatpush1.msra.mxu0 %v572
    %1993 = vmatprep.subr.mxu0 0.0
    %1994 = vmatpush1.msra.mxu0 %v573
    %1995 = vmatprep.mubr.f32.mxu0 %v773
    %1996 = vmatmul.mubr.f32.gmra.mrb[0].mxu0 %v765
    %v1997 = vpop.f32.mrb[0].mxu0
    %v1998 = vadd.f32 %v1928, %v1997
    %v1999 = vpop.f32.mrb[0].mxu0
    %2000 = vdwg.mxu0
    %2001 = vmatprep.subr.mxu0 0.0
    %2002 = vmatpush1.msra.mxu0 %v574
    %2003 = vmatprep.subr.mxu0 0.0
    %2004 = vmatpush1.msra.mxu0 %v575
    %2005 = vmatprep.subr.mxu0 0.0
    %2006 = vmatpush1.msra.mxu0 %v576
    %2007 = vmatprep.subr.mxu0 0.0
    %2008 = vmatpush1.msra.mxu0 %v577
    %2009 = vmatprep.subr.mxu0 0.0
    %2010 = vmatpush1.msra.mxu0 %v578
    %2011 = vmatprep.subr.mxu0 0.0
    %2012 = vmatpush1.msra.mxu0 %v579
    %2013 = vmatprep.subr.mxu0 0.0
    %2014 = vmatpush1.msra.mxu0 %v580
    %2015 = vmatprep.subr.mxu0 0.0
    %2016 = vmatpush1.msra.mxu0 %v581
    %2017 = vmatprep.subr.mxu0 0.0
    %2018 = vmatpush1.msra.mxu0 %v582
    %2019 = vmatprep.subr.mxu0 0.0
    %2020 = vmatpush1.msra.mxu0 %v583
    %2021 = vmatprep.subr.mxu0 0.0
    %2022 = vmatpush1.msra.mxu0 %v584
    %2023 = vmatprep.subr.mxu0 0.0
    %2024 = vmatpush1.msra.mxu0 %v585
    %2025 = vmatprep.subr.mxu0 0.0
    %2026 = vmatpush1.msra.mxu0 %v586
    %2027 = vmatprep.subr.mxu0 0.0
    %2028 = vmatpush1.msra.mxu0 %v587
    %2029 = vmatprep.subr.mxu0 0.0
    %2030 = vmatpush1.msra.mxu0 %v588
    %2031 = vmatprep.subr.mxu0 0.0
    %2032 = vmatpush1.msra.mxu0 %v589
    %2033 = vmatprep.subr.mxu0 0.0
    %2034 = vmatpush1.msra.mxu0 %v590
    %2035 = vmatprep.subr.mxu0 0.0
    %2036 = vmatpush1.msra.mxu0 %v591
    %2037 = vmatprep.subr.mxu0 0.0
    %2038 = vmatpush1.msra.mxu0 %v592
    %2039 = vmatprep.subr.mxu0 0.0
    %2040 = vmatpush1.msra.mxu0 %v593
    %2041 = vmatprep.subr.mxu0 0.0
    %2042 = vmatpush1.msra.mxu0 %v594
    %2043 = vmatprep.subr.mxu0 0.0
    %2044 = vmatpush1.msra.mxu0 %v595
    %2045 = vmatprep.subr.mxu0 0.0
    %2046 = vmatpush1.msra.mxu0 %v596
    %2047 = vmatprep.subr.mxu0 0.0
    %2048 = vmatpush1.msra.mxu0 %v597
    %2049 = vmatprep.subr.mxu0 0.0
    %2050 = vmatpush1.msra.mxu0 %v598
    %2051 = vmatprep.subr.mxu0 0.0
    %2052 = vmatpush1.msra.mxu0 %v599
    %2053 = vmatprep.subr.mxu0 0.0
    %2054 = vmatpush1.msra.mxu0 %v600
    %2055 = vmatprep.subr.mxu0 0.0
    %2056 = vmatpush1.msra.mxu0 %v601
    %2057 = vmatprep.subr.mxu0 0.0
    %2058 = vmatpush1.msra.mxu0 %v602
    %2059 = vmatprep.subr.mxu0 0.0
    %2060 = vmatpush1.msra.mxu0 %v603
    %2061 = vmatprep.subr.mxu0 0.0
    %2062 = vmatpush1.msra.mxu0 %v604
    %2063 = vmatprep.subr.mxu0 0.0
    %2064 = vmatpush1.msra.mxu0 %v605
    %2065 = vmatprep.mubr.f32.mxu0 %v774
    %2066 = vmatmul.mubr.f32.gmra.mrb[0].mxu0 %v772
    %v2067 = vpop.f32.mrb[0].mxu0
    %v2068 = vadd.f32 %v1998, %v2067
    %v2069 = vpop.f32.mrb[0].mxu0
    %2070 = vdwg.mxu0
    %v2071 = vmax.f32 %v2068, 0.0
    %v2072 = vld [vmem:[%s3] sm:$0xff]
    %v2073 = vld [vmem:[%s3 + $0x8] sm:$0xff]
    %v2074 = vld [vmem:[%s3 + $0x10] sm:$0xff]
    %v2075 = vld [vmem:[%s3 + $0x18] sm:$0xff]
    %v2076 = vld [vmem:[%s3 + $0x20] sm:$0xff]
    %v2077 = vld [vmem:[%s3 + $0x28] sm:$0xff]
    %v2078 = vld [vmem:[%s3 + $0x30] sm:$0xff]
    %v2079 = vld [vmem:[%s3 + $0x38] sm:$0xff]
    %v2080 = vld [vmem:[%s3 + $0x40] sm:$0xff]
    %v2081 = vld [vmem:[%s3 + $0x48] sm:$0xff]
    %v2082 = vld [vmem:[%s3 + $0x50] sm:$0xff]
    %v2083 = vld [vmem:[%s3 + $0x58] sm:$0xff]
    %v2084 = vld [vmem:[%s3 + $0x60] sm:$0xff]
    %v2085 = vld [vmem:[%s3 + $0x68] sm:$0xff]
    %v2086 = vld [vmem:[%s3 + $0x70] sm:$0xff]
    %v2087 = vld [vmem:[%s3 + $0x78] sm:$0xff]
    %v2088 = vld [vmem:[%s4] sm:$0x1]
    %v2090 = vlaneseq
    %v2091 = vshrl.u32 %v2090, 7
    %v2092 = vsub.s32 0, %v2091
    %v2093 = vrot.slane %v2088, %v2092
    %2095 = vmatprep.subr.mxu0 0.0
    %2096 = vmatpush1.msra.mxu0 %v2072
    %2097 = vmatprep.subr.mxu0 0.0
    %2098 = vmatpush1.msra.mxu0 %v2073
    %2099 = vmatprep.subr.mxu0 0.0
    %2100 = vmatpush1.msra.mxu0 %v2074
    %2101 = vmatprep.subr.mxu0 0.0
    %2102 = vmatpush1.msra.mxu0 %v2075
    %2103 = vmatprep.subr.mxu0 0.0
    %2104 = vmatpush1.msra.mxu0 %v2076
    %2105 = vmatprep.subr.mxu0 0.0
    %2106 = vmatpush1.msra.mxu0 %v2077
    %2107 = vmatprep.subr.mxu0 0.0
    %2108 = vmatpush1.msra.mxu0 %v2078
    %2109 = vmatprep.subr.mxu0 0.0
    %2110 = vmatpush1.msra.mxu0 %v2079
    %2111 = vmatprep.subr.mxu0 0.0
    %2112 = vmatpush1.msra.mxu0 %v2080
    %2113 = vmatprep.subr.mxu0 0.0
    %2114 = vmatpush1.msra.mxu0 %v2081
    %2115 = vmatprep.subr.mxu0 0.0
    %2116 = vmatpush1.msra.mxu0 %v2082
    %2117 = vmatprep.subr.mxu0 0.0
    %2118 = vmatpush1.msra.mxu0 %v2083
    %2119 = vmatprep.subr.mxu0 0.0
    %2120 = vmatpush1.msra.mxu0 %v2084
    %2121 = vmatprep.subr.mxu0 0.0
    %2122 = vmatpush1.msra.mxu0 %v2085
    %2123 = vmatprep.subr.mxu0 0.0
    %2124 = vmatpush1.msra.mxu0 %v2086
    %2125 = vmatprep.subr.mxu0 0.0
    %2126 = vmatpush1.msra.mxu0 %v2087
    %2127 = vmatprep.subr.mxu0 0.0
    %2128 = vmatpush1.msra.mxu0 0.0
    %2129 = vmatprep.subr.mxu0 0.0
    %2130 = vmatpush1.msra.mxu0 0.0
    %2131 = vmatprep.subr.mxu0 0.0
    %2132 = vmatpush1.msra.mxu0 0.0
    %2133 = vmatprep.subr.mxu0 0.0
    %2134 = vmatpush1.msra.mxu0 0.0
    %2135 = vmatprep.subr.mxu0 0.0
    %2136 = vmatpush1.msra.mxu0 0.0
    %2137 = vmatprep.subr.mxu0 0.0
    %2138 = vmatpush1.msra.mxu0 0.0
    %2139 = vmatprep.subr.mxu0 0.0
    %2140 = vmatpush1.msra.mxu0 0.0
    %2141 = vmatprep.subr.mxu0 0.0
    %2142 = vmatpush1.msra.mxu0 0.0
    %2143 = vmatprep.subr.mxu0 0.0
    %2144 = vmatpush1.msra.mxu0 0.0
    %2145 = vmatprep.subr.mxu0 0.0
    %2146 = vmatpush1.msra.mxu0 0.0
    %2147 = vmatprep.subr.mxu0 0.0
    %2148 = vmatpush1.msra.mxu0 0.0
    %2149 = vmatprep.subr.mxu0 0.0
    %2150 = vmatpush1.msra.mxu0 0.0
    %2151 = vmatprep.subr.mxu0 0.0
    %2152 = vmatpush1.msra.mxu0 0.0
    %2153 = vmatprep.subr.mxu0 0.0
    %2154 = vmatpush1.msra.mxu0 0.0
    %2155 = vmatprep.subr.mxu0 0.0
    %2156 = vmatpush1.msra.mxu0 0.0
    %2157 = vmatprep.subr.mxu0 0.0
    %2158 = vmatpush1.msra.mxu0 0.0
    %2159 = vmatprep.mubr.f32.mxu0 0.0
    %2160 = vmatmul.mubr.f32.gmra.mrb[0].mxu0 %v2071
    %v2161 = vpop.f32.mrb[0].mxu0
    %v2162 = vadd.f32 %v2093, %v2161
    %v2163 = vpop.f32.mrb[0].mxu0
    %2164 = vdwg.mxu0
    %2165 = vst [vmem:[#allocation2] sm:$0x3] %v2162
    // Predicated region
    $region22: #{skipcnn1_forward.5} parent=1 // pred_check
      _
    $region23: #{skipcnn1_forward.5} parent=1 // pred_check_branch
      %2167 = sbr.rel (0) target = $region25
    $region24: #{skipcnn1_forward.5} parent=1 // pred_region
      %s2169 = ssub.s32 32, 32
      %2170 = vsyncadd [#allocation3], %s2169
      %s2172 = sshll.u32 [#allocation2], 4
      %s2173 = int_to_ptr.vmem [resolvable:$true] %s2172
      %2175 = dma.vmem_to_hbm [thread:$0]  %s2173, 32, %s5, [#allocation3]
    $region25: #{skipcnn1_forward.5} parent=1 // pred_fallthru
      _
    // Predicated region
    $region26: #{skipcnn1_forward.5} parent=1 // pred_check
      _
    $region27: #{skipcnn1_forward.5} parent=1 // pred_check_branch
      %2177 = sbr.rel (0) target = $region29
    $region28: #{skipcnn1_forward.5} parent=1 // pred_region
      %2178 = dma.done [#allocation3], 32
    $region29: #{skipcnn1_forward.5} parent=1 // pred_fallthru
      _
    %2179 = vsyncpa [#allocation3], 1

</llo_original>
